<compile_context>
chip_gen: v6e
topology: v6e:2x2x1
jax: 0.10.0
libtpu: 0.0.40
codegen_flags: <defaults>
</compile_context>

<pallas_src>
import functools

import jax
import jax.numpy as jnp
from jax import lax
from jax.experimental import pallas as pl
from jax.experimental.pallas import tpu as pltpu

BN_EPS = 1e-5
LANE = 128
VMEM_LIMIT = 48 * 1024 * 1024  # fits v7x's 64 MiB; plenty of headroom on v5e/v6e

# 3x3 tap offsets, row-major; must match the weight-matrix row order.
_TAPS = tuple((dy, dx) for dy in range(3) for dx in range(3))


def _round_up(x, m):
    return (x + m - 1) // m * m


# ----------------------------------------------------------------------------
# In-kernel helper: 3x3 conv over a halo-padded bf16 slab as 9 accumulating
# MXU matmuls (no materialized im2col operand).
# ----------------------------------------------------------------------------
def _accum_conv3x3(src_ref, w_ref, h, w, lead=None):
    """src: (h+2, w+2, C) [or (1, h+2, w+2, C) with lead=0] bf16 halo slab.
    w_ref: (9*C, Cout) bf16, tap-major rows.  Returns (h*w, Cout) f32."""
    c = src_ref.shape[-1]
    cout = w_ref.shape[-1]
    acc = jnp.zeros((h * w, cout), jnp.float32)
    for t, (dy, dx) in enumerate(_TAPS):
        if lead is None:
            tap = src_ref[pl.ds(dy, h), pl.ds(dx, w), :]
        else:
            tap = src_ref[lead, pl.ds(dy, h), pl.ds(dx, w), :]
        tap = tap.reshape(h * w, c)
        acc = acc + jnp.dot(tap, w_ref[pl.ds(t * c, c), :],
                            preferred_element_type=jnp.float32)
    return acc


# ----------------------------------------------------------------------------
# Fused residual-block kernel: conv1+BN1+ReLU -> VMEM scratch -> conv2+BN2 +
# shortcut (projection matmul or identity add) + residual add + ReLU.
# ----------------------------------------------------------------------------
def fused_resblock_kernel(x_ref, w1_ref, b1_ref, w2_ref, b2_ref, *rest,
                          h, w, has_projection):
    if has_projection:
        wsc_ref, o_ref, hmid_ref = rest
    else:
        o_ref, hmid_ref = rest

    cip = x_ref.shape[-1]
    cop = o_ref.shape[-1]

    # Stage 1: 3x3 conv (BN1 scale folded into w1) + bias + ReLU, written into
    # a halo-padded bf16 VMEM scratch (border zeroed => padding=1 for stage 2).
    hmid_ref[...] = jnp.zeros_like(hmid_ref)
    acc1 = _accum_conv3x3(x_ref, w1_ref, h, w, lead=0)
    y1 = jnp.maximum(acc1 + b1_ref[...], 0.0)
    hmid_ref[pl.ds(1, h), pl.ds(1, w), :] = (
        y1.reshape(h, w, cop).astype(hmid_ref.dtype))

    # Stage 2: 3x3 conv (BN2 scale folded) + shortcut + combined bias + ReLU.
    acc2 = _accum_conv3x3(hmid_ref, w2_ref, h, w)
    x_int = x_ref[0, pl.ds(1, h), pl.ds(1, w), :].reshape(h * w, cip)
    if has_projection:
        acc2 = acc2 + jnp.dot(x_int, wsc_ref[...],
                              preferred_element_type=jnp.float32)
        y2 = acc2 + b2_ref[...]                      # b2 already includes bsc
    else:
        y2 = acc2 + b2_ref[...] + x_int.astype(jnp.float32)   # identity add
    o_ref[0] = jnp.maximum(y2, 0.0).astype(o_ref.dtype)


# ----------------------------------------------------------------------------
# pallas_call wrapper
# ----------------------------------------------------------------------------
def _residual_block_fused(x_halo, w1, b1, w2, b2, wsc, h, w, cop,
                          has_projection):
    n, _, _, cip = x_halo.shape
    kernel = functools.partial(fused_resblock_kernel, h=h, w=w,
                               has_projection=has_projection)

    in_specs = [
        pl.BlockSpec((1, h + 2, w + 2, cip), lambda i: (i, 0, 0, 0)),
        pl.BlockSpec((9 * cip, cop), lambda i: (0, 0)),
        pl.BlockSpec((1, cop), lambda i: (0, 0)),
        pl.BlockSpec((9 * cop, cop), lambda i: (0, 0)),
        pl.BlockSpec((1, cop), lambda i: (0, 0)),
    ]
    args = [x_halo, w1, b1, w2, b2]
    if has_projection:
        in_specs.append(pl.BlockSpec((cip, cop), lambda i: (0, 0)))
        args.append(wsc)

    flops = 2 * n * h * w * (9 * cip + 9 * cop
                             + (cip if has_projection else 0)) * cop
    bytes_accessed = (x_halo.size * 2 + w1.size * 2 + w2.size * 2
                      + (wsc.size * 2 if has_projection else 0)
                      + n * h * w * cop * 4)

    return pl.pallas_call(
        kernel,
        out_shape=jax.ShapeDtypeStruct((n, h * w, cop), jnp.float32),
        grid=(n,),
        in_specs=in_specs,
        out_specs=pl.BlockSpec((1, h * w, cop), lambda i: (i, 0, 0)),
        scratch_shapes=[pltpu.VMEM((h + 2, w + 2, cop), jnp.bfloat16)],
        compiler_params=pltpu.CompilerParams(
            dimension_semantics=("parallel",),
            vmem_limit_bytes=VMEM_LIMIT),
        cost_estimate=pl.CostEstimate(flops=flops, transcendentals=0,
                                      bytes_accessed=bytes_accessed),
    )(*args)


# ----------------------------------------------------------------------------
# Parameter layout helpers (wrapper-side, traced once under jit)
# ----------------------------------------------------------------------------
def _fold_bn(bn):
    gamma, beta, mean, var = bn
    scale = gamma * lax.rsqrt(var + BN_EPS)
    bias = beta - mean * scale
    return scale, bias


def _conv3x3_folded(w_oihw, scale, cip, cop):
    """(O, I, 3, 3) f32 -> (9*cip, cop) bf16 with BN scale folded (in f32)."""
    o, i = w_oihw.shape[:2]
    wt = jnp.transpose(w_oihw, (2, 3, 1, 0)) * scale          # (3, 3, I, O)
    wt = jnp.pad(wt, ((0, 0), (0, 0), (0, cip - i), (0, cop - o)))
    return wt.reshape(9 * cip, cop).astype(jnp.bfloat16)


def _conv1x1_folded(w_oi11, scale, cip, cop):
    o, i = w_oi11.shape[:2]
    wt = jnp.transpose(w_oi11[:, :, 0, 0], (1, 0)) * scale    # (I, O)
    wt = jnp.pad(wt, ((0, cip - i), (0, cop - o)))
    return wt.astype(jnp.bfloat16)


def _pad_bias(bias, cop):
    return jnp.pad(bias, (0, cop - bias.shape[0])).reshape(1, cop).astype(
        jnp.float32)


# ----------------------------------------------------------------------------
# ResidualBlock module
# ----------------------------------------------------------------------------
class ResidualBlockPallas:
    def __init__(self, inchannel, outchannel, stride=1, key=None):
        assert stride == 1, "TODO(synk): stride > 1 not implemented"
        self.inchannel, self.outchannel, self.stride = inchannel, outchannel, stride
        self.has_projection = (stride != 1) or (inchannel != outchannel)
        if key is None:
            key = jax.random.PRNGKey(0)
        ks = jax.random.split(key, 6)

        def bn_params(k, c):
            k1, k2, k3, k4 = jax.random.split(k, 4)
            gamma = 1.0 + 0.1 * jax.random.normal(k1, (c,), jnp.float32)
            beta = 0.1 * jax.random.normal(k2, (c,), jnp.float32)
            mean = 0.1 * jax.random.normal(k3, (c,), jnp.float32)
            var = jax.random.uniform(k4, (c,), jnp.float32, 0.5, 1.5)
            return gamma, beta, mean, var

        self.w1 = 0.1 * jax.random.normal(ks[0], (outchannel, inchannel, 3, 3),
                                          jnp.float32)
        self.bn1 = bn_params(ks[1], outchannel)
        self.w2 = 0.1 * jax.random.normal(ks[2], (outchannel, outchannel, 3, 3),
                                          jnp.float32)
        self.bn2 = bn_params(ks[3], outchannel)
        if self.has_projection:
            self.wsc = 0.1 * jax.random.normal(
                ks[4], (outchannel, inchannel, 1, 1), jnp.float32)
            self.bnsc = bn_params(ks[5], outchannel)

    @functools.partial(jax.jit, static_argnums=0)
    def __call__(self, x_nchw):
        n, cin, h, w = x_nchw.shape
        cout = self.outchannel
        cip = _round_up(cin, LANE)
        cop = _round_up(cout, LANE)

        # NCHW -> NHWC, channel pad to a lane multiple, 1-px halo, bf16 in HBM.
        x_nhwc = jnp.transpose(x_nchw, (0, 2, 3, 1))
        x_halo = jnp.pad(x_nhwc, ((0, 0), (1, 1), (1, 1), (0, cip - cin)))
        x_halo = x_halo.astype(jnp.bfloat16)

        s1, b1 = _fold_bn(self.bn1)
        w1 = _conv3x3_folded(self.w1, s1, cip, cop)
        b1 = _pad_bias(b1, cop)
        s2, b2 = _fold_bn(self.bn2)
        w2 = _conv3x3_folded(self.w2, s2, cop, cop)
        b2 = _pad_bias(b2, cop)
        if self.has_projection:
            ssc, bsc = _fold_bn(self.bnsc)
            wsc = _conv1x1_folded(self.wsc, ssc, cip, cop)
            b2 = b2 + _pad_bias(bsc, cop)     # single combined epilogue bias
        else:
            wsc = None

        out_flat = _residual_block_fused(x_halo, w1, b1, w2, b2, wsc,
                                         h, w, cop, self.has_projection)

        # Free metadata reshape + drop channel padding + back to NCHW.
        # TODO(synk): if the consumer accepts padded NHWC/bf16, skip this pass.
        out = out_flat.reshape(n, h, w, cop)[..., :cout]
        return jnp.transpose(out, (0, 3, 1, 2))

    # Pure-JAX f32 reference (correctness check only).
    def reference(self, x_nchw):
        x = jnp.transpose(x_nchw, (0, 2, 3, 1)).astype(jnp.float32)

        def conv(inp, w_oihw, pad):
            w_hwio = jnp.transpose(w_oihw, (2, 3, 1, 0))
            return lax.conv_general_dilated(
                inp, w_hwio, window_strides=(1, 1), padding=pad,
                dimension_numbers=("NHWC", "HWIO", "NHWC"))

        def bn(inp, params):
            g, bta, mu, var = params
            return (inp - mu) * (g * lax.rsqrt(var + BN_EPS)) + bta

        hmid = jnp.maximum(bn(conv(x, self.w1, ((1, 1), (1, 1))), self.bn1), 0.0)
        left = bn(conv(hmid, self.w2, ((1, 1), (1, 1))), self.bn2)
        if self.has_projection:
            sc = bn(conv(x, self.wsc, ((0, 0), (0, 0))), self.bnsc)
        else:
            sc = x
        out = jnp.maximum(left + sc, 0.0)
        return jnp.transpose(out, (0, 3, 1, 2))


if __name__ == "__main__":
    key = jax.random.PRNGKey(0)
    kx, kp, kx2, kp2 = jax.random.split(key, 4)

    # Projection-shortcut case: batch=2, inchannel=4, outchannel=8, 16x16.
    x = jax.random.normal(kx, (2, 4, 16, 16), jnp.float32)
    block = ResidualBlockPallas(inchannel=4, outchannel=8, stride=1, key=kp)
    out = jax.block_until_ready(block(x))
    ref = jax.block_until_ready(block.reference(x))
    assert out.shape == ref.shape == (2, 8, 16, 16)
    assert bool(jnp.allclose(out, ref, atol=5e-2, rtol=5e-2)), (
        "projection mismatch: max abs err = %e"
        % float(jnp.max(jnp.abs(out - ref))))

    # Identity-shortcut case: inchannel == outchannel == 8.
    x2 = jax.random.normal(kx2, (2, 8, 16, 16), jnp.float32)
    block2 = ResidualBlockPallas(inchannel=8, outchannel=8, stride=1, key=kp2)
    out2 = jax.block_until_ready(block2(x2))
    ref2 = jax.block_until_ready(block2.reference(x2))
    assert out2.shape == ref2.shape == (2, 8, 16, 16)
    assert bool(jnp.allclose(out2, ref2, atol=5e-2, rtol=5e-2)), (
        "identity mismatch: max abs err = %e"
        % float(jnp.max(jnp.abs(out2 - ref2))))

    print("KERNEL_OK")
</pallas_src>

<mosaic_0001>
module attributes {stable_mosaic.version = 11 : i64} {
  func.func @fused_resblock_kernel(%arg0: i32, %arg1: memref<1x18x18x128xbf16, #tpu.memory_space<vmem>>, %arg2: memref<1152x128xbf16, #tpu.memory_space<vmem>>, %arg3: memref<1x128xf32, #tpu.memory_space<vmem>>, %arg4: memref<1152x128xbf16, #tpu.memory_space<vmem>>, %arg5: memref<1x128xf32, #tpu.memory_space<vmem>>, %arg6: memref<128x128xbf16, #tpu.memory_space<vmem>>, %arg7: memref<1x256x128xf32, #tpu.memory_space<vmem>>, %arg8: memref<18x18x128xbf16, #tpu.memory_space<vmem>>) attributes {dimension_semantics = [#tpu.dimension_semantics<parallel>], iteration_bounds = array<i64: 2>, scalar_prefetch = 0 : i64, scratch_operands = 1 : i64, tpu.core_type = #tpu.core_type<tc>, window_params = [{transform_indices = @transform_0, window_bounds = array<i64: 1, 18, 18, 128>}, {pipeline_mode = #tpu.pipeline_mode<synchronous>, transform_indices = @transform_1, window_bounds = array<i64: 1152, 128>}, {pipeline_mode = #tpu.pipeline_mode<synchronous>, transform_indices = @transform_2, window_bounds = array<i64: 1, 128>}, {pipeline_mode = #tpu.pipeline_mode<synchronous>, transform_indices = @transform_3, window_bounds = array<i64: 1152, 128>}, {pipeline_mode = #tpu.pipeline_mode<synchronous>, transform_indices = @transform_4, window_bounds = array<i64: 1, 128>}, {pipeline_mode = #tpu.pipeline_mode<synchronous>, transform_indices = @transform_5, window_bounds = array<i64: 128, 128>}, {transform_indices = @transform_6, window_bounds = array<i64: 1, 256, 128>}]} {
    %cst = arith.constant 0.000000e+00 : bf16
    %0 = vector.broadcast %cst : bf16 to vector<18x18x128xbf16>
    %c0 = arith.constant 0 : index
    %c0_0 = arith.constant 0 : index
    %c0_1 = arith.constant 0 : index
    %1 = vector.load %arg8[%c0, %c0_0, %c0_1] : memref<18x18x128xbf16, #tpu.memory_space<vmem>>, vector<18x18x128xbf16>
    tpu.vector_store %arg8[%c0, %c0_0, %c0_1], %0 {strides = array<i32>} : memref<18x18x128xbf16, #tpu.memory_space<vmem>>, vector<18x18x128xbf16>,
    %cst_2 = arith.constant 0.000000e+00 : f32
    %2 = vector.broadcast %cst_2 : f32 to vector<256x128xf32>
    %c0_3 = arith.constant 0 : index
    %c0_4 = arith.constant 0 : index
    %c0_5 = arith.constant 0 : index
    %c0_6 = arith.constant 0 : index
    %3 = vector.load %arg1[%c0_3, %c0_4, %c0_5, %c0_6] : memref<1x18x18x128xbf16, #tpu.memory_space<vmem>>, vector<1x16x16x128xbf16>
    %4 = vector.shape_cast %3 : vector<1x16x16x128xbf16> to vector<16x16x128xbf16>
    %5 = vector.shape_cast %4 : vector<16x16x128xbf16> to vector<256x128xbf16>
    %c0_7 = arith.constant 0 : index
    %c0_8 = arith.constant 0 : index
    %6 = vector.load %arg2[%c0_7, %c0_8] : memref<1152x128xbf16, #tpu.memory_space<vmem>>, vector<128x128xbf16>
    %cst_9 = arith.constant dense<0.000000e+00> : vector<256x128xf32>
    %7 = tpu.matmul %5, %6, %cst_9 {dimension_numbers = #tpu.dot_dimension_numbers<[1], [0], [0], [1], [0, 0, 1, 1], [], []>} : vector<256x128xbf16>, vector<128x128xbf16>, vector<256x128xf32> -> vector<256x128xf32>
    %8 = arith.addf %2, %7 : vector<256x128xf32>
    %c0_10 = arith.constant 0 : index
    %c0_11 = arith.constant 0 : index
    %c1 = arith.constant 1 : index
    %c0_12 = arith.constant 0 : index
    %9 = vector.load %arg1[%c0_10, %c0_11, %c1, %c0_12] : memref<1x18x18x128xbf16, #tpu.memory_space<vmem>>, vector<1x16x16x128xbf16>
    %10 = vector.shape_cast %9 : vector<1x16x16x128xbf16> to vector<16x16x128xbf16>
    %11 = vector.shape_cast %10 : vector<16x16x128xbf16> to vector<256x128xbf16>
    %c128 = arith.constant 128 : index
    %c0_13 = arith.constant 0 : index
    %12 = vector.load %arg2[%c128, %c0_13] : memref<1152x128xbf16, #tpu.memory_space<vmem>>, vector<128x128xbf16>
    %cst_14 = arith.constant dense<0.000000e+00> : vector<256x128xf32>
    %13 = tpu.matmul %11, %12, %cst_14 {dimension_numbers = #tpu.dot_dimension_numbers<[1], [0], [0], [1], [0, 0, 1, 1], [], []>} : vector<256x128xbf16>, vector<128x128xbf16>, vector<256x128xf32> -> vector<256x128xf32>
    %14 = arith.addf %8, %13 : vector<256x128xf32>
    %c0_15 = arith.constant 0 : index
    %c0_16 = arith.constant 0 : index
    %c2 = arith.constant 2 : index
    %c0_17 = arith.constant 0 : index
    %15 = vector.load %arg1[%c0_15, %c0_16, %c2, %c0_17] : memref<1x18x18x128xbf16, #tpu.memory_space<vmem>>, vector<1x16x16x128xbf16>
    %16 = vector.shape_cast %15 : vector<1x16x16x128xbf16> to vector<16x16x128xbf16>
    %17 = vector.shape_cast %16 : vector<16x16x128xbf16> to vector<256x128xbf16>
    %c256 = arith.constant 256 : index
    %c0_18 = arith.constant 0 : index
    %18 = vector.load %arg2[%c256, %c0_18] : memref<1152x128xbf16, #tpu.memory_space<vmem>>, vector<128x128xbf16>
    %cst_19 = arith.constant dense<0.000000e+00> : vector<256x128xf32>
    %19 = tpu.matmul %17, %18, %cst_19 {dimension_numbers = #tpu.dot_dimension_numbers<[1], [0], [0], [1], [0, 0, 1, 1], [], []>} : vector<256x128xbf16>, vector<128x128xbf16>, vector<256x128xf32> -> vector<256x128xf32>
    %20 = arith.addf %14, %19 : vector<256x128xf32>
    %c0_20 = arith.constant 0 : index
    %c1_21 = arith.constant 1 : index
    %c0_22 = arith.constant 0 : index
    %c0_23 = arith.constant 0 : index
    %21 = vector.load %arg1[%c0_20, %c1_21, %c0_22, %c0_23] : memref<1x18x18x128xbf16, #tpu.memory_space<vmem>>, vector<1x16x16x128xbf16>
    %22 = vector.shape_cast %21 : vector<1x16x16x128xbf16> to vector<16x16x128xbf16>
    %23 = vector.shape_cast %22 : vector<16x16x128xbf16> to vector<256x128xbf16>
    %c384 = arith.constant 384 : index
    %c0_24 = arith.constant 0 : index
    %24 = vector.load %arg2[%c384, %c0_24] : memref<1152x128xbf16, #tpu.memory_space<vmem>>, vector<128x128xbf16>
    %cst_25 = arith.constant dense<0.000000e+00> : vector<256x128xf32>
    %25 = tpu.matmul %23, %24, %cst_25 {dimension_numbers = #tpu.dot_dimension_numbers<[1], [0], [0], [1], [0, 0, 1, 1], [], []>} : vector<256x128xbf16>, vector<128x128xbf16>, vector<256x128xf32> -> vector<256x128xf32>
    %26 = arith.addf %20, %25 : vector<256x128xf32>
    %c0_26 = arith.constant 0 : index
    %c1_27 = arith.constant 1 : index
    %c1_28 = arith.constant 1 : index
    %c0_29 = arith.constant 0 : index
    %27 = vector.load %arg1[%c0_26, %c1_27, %c1_28, %c0_29] : memref<1x18x18x128xbf16, #tpu.memory_space<vmem>>, vector<1x16x16x128xbf16>
    %28 = vector.shape_cast %27 : vector<1x16x16x128xbf16> to vector<16x16x128xbf16>
    %29 = vector.shape_cast %28 : vector<16x16x128xbf16> to vector<256x128xbf16>
    %c512 = arith.constant 512 : index
    %c0_30 = arith.constant 0 : index
    %30 = vector.load %arg2[%c512, %c0_30] : memref<1152x128xbf16, #tpu.memory_space<vmem>>, vector<128x128xbf16>
    %cst_31 = arith.constant dense<0.000000e+00> : vector<256x128xf32>
    %31 = tpu.matmul %29, %30, %cst_31 {dimension_numbers = #tpu.dot_dimension_numbers<[1], [0], [0], [1], [0, 0, 1, 1], [], []>} : vector<256x128xbf16>, vector<128x128xbf16>, vector<256x128xf32> -> vector<256x128xf32>
    %32 = arith.addf %26, %31 : vector<256x128xf32>
    %c0_32 = arith.constant 0 : index
    %c1_33 = arith.constant 1 : index
    %c2_34 = arith.constant 2 : index
    %c0_35 = arith.constant 0 : index
    %33 = vector.load %arg1[%c0_32, %c1_33, %c2_34, %c0_35] : memref<1x18x18x128xbf16, #tpu.memory_space<vmem>>, vector<1x16x16x128xbf16>
    %34 = vector.shape_cast %33 : vector<1x16x16x128xbf16> to vector<16x16x128xbf16>
    %35 = vector.shape_cast %34 : vector<16x16x128xbf16> to vector<256x128xbf16>
    %c640 = arith.constant 640 : index
    %c0_36 = arith.constant 0 : index
    %36 = vector.load %arg2[%c640, %c0_36] : memref<1152x128xbf16, #tpu.memory_space<vmem>>, vector<128x128xbf16>
    %cst_37 = arith.constant dense<0.000000e+00> : vector<256x128xf32>
    %37 = tpu.matmul %35, %36, %cst_37 {dimension_numbers = #tpu.dot_dimension_numbers<[1], [0], [0], [1], [0, 0, 1, 1], [], []>} : vector<256x128xbf16>, vector<128x128xbf16>, vector<256x128xf32> -> vector<256x128xf32>
    %38 = arith.addf %32, %37 : vector<256x128xf32>
    %c0_38 = arith.constant 0 : index
    %c2_39 = arith.constant 2 : index
    %c0_40 = arith.constant 0 : index
    %c0_41 = arith.constant 0 : index
    %39 = vector.load %arg1[%c0_38, %c2_39, %c0_40, %c0_41] : memref<1x18x18x128xbf16, #tpu.memory_space<vmem>>, vector<1x16x16x128xbf16>
    %40 = vector.shape_cast %39 : vector<1x16x16x128xbf16> to vector<16x16x128xbf16>
    %41 = vector.shape_cast %40 : vector<16x16x128xbf16> to vector<256x128xbf16>
    %c768 = arith.constant 768 : index
    %c0_42 = arith.constant 0 : index
    %42 = vector.load %arg2[%c768, %c0_42] : memref<1152x128xbf16, #tpu.memory_space<vmem>>, vector<128x128xbf16>
    %cst_43 = arith.constant dense<0.000000e+00> : vector<256x128xf32>
    %43 = tpu.matmul %41, %42, %cst_43 {dimension_numbers = #tpu.dot_dimension_numbers<[1], [0], [0], [1], [0, 0, 1, 1], [], []>} : vector<256x128xbf16>, vector<128x128xbf16>, vector<256x128xf32> -> vector<256x128xf32>
    %44 = arith.addf %38, %43 : vector<256x128xf32>
    %c0_44 = arith.constant 0 : index
    %c2_45 = arith.constant 2 : index
    %c1_46 = arith.constant 1 : index
    %c0_47 = arith.constant 0 : index
    %45 = vector.load %arg1[%c0_44, %c2_45, %c1_46, %c0_47] : memref<1x18x18x128xbf16, #tpu.memory_space<vmem>>, vector<1x16x16x128xbf16>
    %46 = vector.shape_cast %45 : vector<1x16x16x128xbf16> to vector<16x16x128xbf16>
    %47 = vector.shape_cast %46 : vector<16x16x128xbf16> to vector<256x128xbf16>
    %c896 = arith.constant 896 : index
    %c0_48 = arith.constant 0 : index
    %48 = vector.load %arg2[%c896, %c0_48] : memref<1152x128xbf16, #tpu.memory_space<vmem>>, vector<128x128xbf16>
    %cst_49 = arith.constant dense<0.000000e+00> : vector<256x128xf32>
    %49 = tpu.matmul %47, %48, %cst_49 {dimension_numbers = #tpu.dot_dimension_numbers<[1], [0], [0], [1], [0, 0, 1, 1], [], []>} : vector<256x128xbf16>, vector<128x128xbf16>, vector<256x128xf32> -> vector<256x128xf32>
    %50 = arith.addf %44, %49 : vector<256x128xf32>
    %c0_50 = arith.constant 0 : index
    %c2_51 = arith.constant 2 : index
    %c2_52 = arith.constant 2 : index
    %c0_53 = arith.constant 0 : index
    %51 = vector.load %arg1[%c0_50, %c2_51, %c2_52, %c0_53] : memref<1x18x18x128xbf16, #tpu.memory_space<vmem>>, vector<1x16x16x128xbf16>
    %52 = vector.shape_cast %51 : vector<1x16x16x128xbf16> to vector<16x16x128xbf16>
    %53 = vector.shape_cast %52 : vector<16x16x128xbf16> to vector<256x128xbf16>
    %c1024 = arith.constant 1024 : index
    %c0_54 = arith.constant 0 : index
    %54 = vector.load %arg2[%c1024, %c0_54] : memref<1152x128xbf16, #tpu.memory_space<vmem>>, vector<128x128xbf16>
    %cst_55 = arith.constant dense<0.000000e+00> : vector<256x128xf32>
    %55 = tpu.matmul %53, %54, %cst_55 {dimension_numbers = #tpu.dot_dimension_numbers<[1], [0], [0], [1], [0, 0, 1, 1], [], []>} : vector<256x128xbf16>, vector<128x128xbf16>, vector<256x128xf32> -> vector<256x128xf32>
    %56 = arith.addf %50, %55 : vector<256x128xf32>
    %c0_56 = arith.constant 0 : index
    %c0_57 = arith.constant 0 : index
    %57 = vector.load %arg3[%c0_56, %c0_57] : memref<1x128xf32, #tpu.memory_space<vmem>>, vector<1x128xf32>
    %58 = vector.broadcast %57 : vector<1x128xf32> to vector<256x128xf32>
    %59 = arith.addf %56, %58 : vector<256x128xf32>
    %cst_58 = arith.constant 0.000000e+00 : f32
    %60 = vector.broadcast %cst_58 : f32 to vector<256x128xf32>
    %61 = arith.maximumf %59, %60 : vector<256x128xf32>
    %62 = vector.shape_cast %61 : vector<256x128xf32> to vector<16x16x128xf32>
    %63 = arith.truncf %62 : vector<16x16x128xf32> to vector<16x16x128xbf16>
    %c1_59 = arith.constant 1 : index
    %c1_60 = arith.constant 1 : index
    %c0_61 = arith.constant 0 : index
    %64 = vector.load %arg8[%c1_59, %c1_60, %c0_61] : memref<18x18x128xbf16, #tpu.memory_space<vmem>>, vector<16x16x128xbf16>
    tpu.vector_store %arg8[%c1_59, %c1_60, %c0_61], %63 {strides = array<i32>} : memref<18x18x128xbf16, #tpu.memory_space<vmem>>, vector<16x16x128xbf16>,
    %cst_62 = arith.constant 0.000000e+00 : f32
    %65 = vector.broadcast %cst_62 : f32 to vector<256x128xf32>
    %c0_63 = arith.constant 0 : index
    %c0_64 = arith.constant 0 : index
    %c0_65 = arith.constant 0 : index
    %66 = vector.load %arg8[%c0_63, %c0_64, %c0_65] : memref<18x18x128xbf16, #tpu.memory_space<vmem>>, vector<16x16x128xbf16>
    %67 = vector.shape_cast %66 : vector<16x16x128xbf16> to vector<256x128xbf16>
    %c0_66 = arith.constant 0 : index
    %c0_67 = arith.constant 0 : index
    %68 = vector.load %arg4[%c0_66, %c0_67] : memref<1152x128xbf16, #tpu.memory_space<vmem>>, vector<128x128xbf16>
    %cst_68 = arith.constant dense<0.000000e+00> : vector<256x128xf32>
    %69 = tpu.matmul %67, %68, %cst_68 {dimension_numbers = #tpu.dot_dimension_numbers<[1], [0], [0], [1], [0, 0, 1, 1], [], []>} : vector<256x128xbf16>, vector<128x128xbf16>, vector<256x128xf32> -> vector<256x128xf32>
    %70 = arith.addf %65, %69 : vector<256x128xf32>
    %c0_69 = arith.constant 0 : index
    %c1_70 = arith.constant 1 : index
    %c0_71 = arith.constant 0 : index
    %71 = vector.load %arg8[%c0_69, %c1_70, %c0_71] : memref<18x18x128xbf16, #tpu.memory_space<vmem>>, vector<16x16x128xbf16>
    %72 = vector.shape_cast %71 : vector<16x16x128xbf16> to vector<256x128xbf16>
    %c128_72 = arith.constant 128 : index
    %c0_73 = arith.constant 0 : index
    %73 = vector.load %arg4[%c128_72, %c0_73] : memref<1152x128xbf16, #tpu.memory_space<vmem>>, vector<128x128xbf16>
    %cst_74 = arith.constant dense<0.000000e+00> : vector<256x128xf32>
    %74 = tpu.matmul %72, %73, %cst_74 {dimension_numbers = #tpu.dot_dimension_numbers<[1], [0], [0], [1], [0, 0, 1, 1], [], []>} : vector<256x128xbf16>, vector<128x128xbf16>, vector<256x128xf32> -> vector<256x128xf32>
    %75 = arith.addf %70, %74 : vector<256x128xf32>
    %c0_75 = arith.constant 0 : index
    %c2_76 = arith.constant 2 : index
    %c0_77 = arith.constant 0 : index
    %76 = vector.load %arg8[%c0_75, %c2_76, %c0_77] : memref<18x18x128xbf16, #tpu.memory_space<vmem>>, vector<16x16x128xbf16>
    %77 = vector.shape_cast %76 : vector<16x16x128xbf16> to vector<256x128xbf16>
    %c256_78 = arith.constant 256 : index
    %c0_79 = arith.constant 0 : index
    %78 = vector.load %arg4[%c256_78, %c0_79] : memref<1152x128xbf16, #tpu.memory_space<vmem>>, vector<128x128xbf16>
    %cst_80 = arith.constant dense<0.000000e+00> : vector<256x128xf32>
    %79 = tpu.matmul %77, %78, %cst_80 {dimension_numbers = #tpu.dot_dimension_numbers<[1], [0], [0], [1], [0, 0, 1, 1], [], []>} : vector<256x128xbf16>, vector<128x128xbf16>, vector<256x128xf32> -> vector<256x128xf32>
    %80 = arith.addf %75, %79 : vector<256x128xf32>
    %c1_81 = arith.constant 1 : index
    %c0_82 = arith.constant 0 : index
    %c0_83 = arith.constant 0 : index
    %81 = vector.load %arg8[%c1_81, %c0_82, %c0_83] : memref<18x18x128xbf16, #tpu.memory_space<vmem>>, vector<16x16x128xbf16>
    %82 = vector.shape_cast %81 : vector<16x16x128xbf16> to vector<256x128xbf16>
    %c384_84 = arith.constant 384 : index
    %c0_85 = arith.constant 0 : index
    %83 = vector.load %arg4[%c384_84, %c0_85] : memref<1152x128xbf16, #tpu.memory_space<vmem>>, vector<128x128xbf16>
    %cst_86 = arith.constant dense<0.000000e+00> : vector<256x128xf32>
    %84 = tpu.matmul %82, %83, %cst_86 {dimension_numbers = #tpu.dot_dimension_numbers<[1], [0], [0], [1], [0, 0, 1, 1], [], []>} : vector<256x128xbf16>, vector<128x128xbf16>, vector<256x128xf32> -> vector<256x128xf32>
    %85 = arith.addf %80, %84 : vector<256x128xf32>
    %c1_87 = arith.constant 1 : index
    %c1_88 = arith.constant 1 : index
    %c0_89 = arith.constant 0 : index
    %86 = vector.load %arg8[%c1_87, %c1_88, %c0_89] : memref<18x18x128xbf16, #tpu.memory_space<vmem>>, vector<16x16x128xbf16>
    %87 = vector.shape_cast %86 : vector<16x16x128xbf16> to vector<256x128xbf16>
    %c512_90 = arith.constant 512 : index
    %c0_91 = arith.constant 0 : index
    %88 = vector.load %arg4[%c512_90, %c0_91] : memref<1152x128xbf16, #tpu.memory_space<vmem>>, vector<128x128xbf16>
    %cst_92 = arith.constant dense<0.000000e+00> : vector<256x128xf32>
    %89 = tpu.matmul %87, %88, %cst_92 {dimension_numbers = #tpu.dot_dimension_numbers<[1], [0], [0], [1], [0, 0, 1, 1], [], []>} : vector<256x128xbf16>, vector<128x128xbf16>, vector<256x128xf32> -> vector<256x128xf32>
    %90 = arith.addf %85, %89 : vector<256x128xf32>
    %c1_93 = arith.constant 1 : index
    %c2_94 = arith.constant 2 : index
    %c0_95 = arith.constant 0 : index
    %91 = vector.load %arg8[%c1_93, %c2_94, %c0_95] : memref<18x18x128xbf16, #tpu.memory_space<vmem>>, vector<16x16x128xbf16>
    %92 = vector.shape_cast %91 : vector<16x16x128xbf16> to vector<256x128xbf16>
    %c640_96 = arith.constant 640 : index
    %c0_97 = arith.constant 0 : index
    %93 = vector.load %arg4[%c640_96, %c0_97] : memref<1152x128xbf16, #tpu.memory_space<vmem>>, vector<128x128xbf16>
    %cst_98 = arith.constant dense<0.000000e+00> : vector<256x128xf32>
    %94 = tpu.matmul %92, %93, %cst_98 {dimension_numbers = #tpu.dot_dimension_numbers<[1], [0], [0], [1], [0, 0, 1, 1], [], []>} : vector<256x128xbf16>, vector<128x128xbf16>, vector<256x128xf32> -> vector<256x128xf32>
    %95 = arith.addf %90, %94 : vector<256x128xf32>
    %c2_99 = arith.constant 2 : index
    %c0_100 = arith.constant 0 : index
    %c0_101 = arith.constant 0 : index
    %96 = vector.load %arg8[%c2_99, %c0_100, %c0_101] : memref<18x18x128xbf16, #tpu.memory_space<vmem>>, vector<16x16x128xbf16>
    %97 = vector.shape_cast %96 : vector<16x16x128xbf16> to vector<256x128xbf16>
    %c768_102 = arith.constant 768 : index
    %c0_103 = arith.constant 0 : index
    %98 = vector.load %arg4[%c768_102, %c0_103] : memref<1152x128xbf16, #tpu.memory_space<vmem>>, vector<128x128xbf16>
    %cst_104 = arith.constant dense<0.000000e+00> : vector<256x128xf32>
    %99 = tpu.matmul %97, %98, %cst_104 {dimension_numbers = #tpu.dot_dimension_numbers<[1], [0], [0], [1], [0, 0, 1, 1], [], []>} : vector<256x128xbf16>, vector<128x128xbf16>, vector<256x128xf32> -> vector<256x128xf32>
    %100 = arith.addf %95, %99 : vector<256x128xf32>
    %c2_105 = arith.constant 2 : index
    %c1_106 = arith.constant 1 : index
    %c0_107 = arith.constant 0 : index
    %101 = vector.load %arg8[%c2_105, %c1_106, %c0_107] : memref<18x18x128xbf16, #tpu.memory_space<vmem>>, vector<16x16x128xbf16>
    %102 = vector.shape_cast %101 : vector<16x16x128xbf16> to vector<256x128xbf16>
    %c896_108 = arith.constant 896 : index
    %c0_109 = arith.constant 0 : index
    %103 = vector.load %arg4[%c896_108, %c0_109] : memref<1152x128xbf16, #tpu.memory_space<vmem>>, vector<128x128xbf16>
    %cst_110 = arith.constant dense<0.000000e+00> : vector<256x128xf32>
    %104 = tpu.matmul %102, %103, %cst_110 {dimension_numbers = #tpu.dot_dimension_numbers<[1], [0], [0], [1], [0, 0, 1, 1], [], []>} : vector<256x128xbf16>, vector<128x128xbf16>, vector<256x128xf32> -> vector<256x128xf32>
    %105 = arith.addf %100, %104 : vector<256x128xf32>
    %c2_111 = arith.constant 2 : index
    %c2_112 = arith.constant 2 : index
    %c0_113 = arith.constant 0 : index
    %106 = vector.load %arg8[%c2_111, %c2_112, %c0_113] : memref<18x18x128xbf16, #tpu.memory_space<vmem>>, vector<16x16x128xbf16>
    %107 = vector.shape_cast %106 : vector<16x16x128xbf16> to vector<256x128xbf16>
    %c1024_114 = arith.constant 1024 : index
    %c0_115 = arith.constant 0 : index
    %108 = vector.load %arg4[%c1024_114, %c0_115] : memref<1152x128xbf16, #tpu.memory_space<vmem>>, vector<128x128xbf16>
    %cst_116 = arith.constant dense<0.000000e+00> : vector<256x128xf32>
    %109 = tpu.matmul %107, %108, %cst_116 {dimension_numbers = #tpu.dot_dimension_numbers<[1], [0], [0], [1], [0, 0, 1, 1], [], []>} : vector<256x128xbf16>, vector<128x128xbf16>, vector<256x128xf32> -> vector<256x128xf32>
    %110 = arith.addf %105, %109 : vector<256x128xf32>
    %c0_117 = arith.constant 0 : index
    %c1_118 = arith.constant 1 : index
    %c1_119 = arith.constant 1 : index
    %c0_120 = arith.constant 0 : index
    %111 = vector.load %arg1[%c0_117, %c1_118, %c1_119, %c0_120] : memref<1x18x18x128xbf16, #tpu.memory_space<vmem>>, vector<1x16x16x128xbf16>
    %112 = vector.shape_cast %111 : vector<1x16x16x128xbf16> to vector<16x16x128xbf16>
    %113 = vector.shape_cast %112 : vector<16x16x128xbf16> to vector<256x128xbf16>
    %c0_121 = arith.constant 0 : index
    %c0_122 = arith.constant 0 : index
    %114 = vector.load %arg6[%c0_121, %c0_122] : memref<128x128xbf16, #tpu.memory_space<vmem>>, vector<128x128xbf16>
    %cst_123 = arith.constant dense<0.000000e+00> : vector<256x128xf32>
    %115 = tpu.matmul %113, %114, %cst_123 {dimension_numbers = #tpu.dot_dimension_numbers<[1], [0], [0], [1], [0, 0, 1, 1], [], []>} : vector<256x128xbf16>, vector<128x128xbf16>, vector<256x128xf32> -> vector<256x128xf32>
    %116 = arith.addf %110, %115 : vector<256x128xf32>
    %c0_124 = arith.constant 0 : index
    %c0_125 = arith.constant 0 : index
    %117 = vector.load %arg5[%c0_124, %c0_125] : memref<1x128xf32, #tpu.memory_space<vmem>>, vector<1x128xf32>
    %118 = vector.broadcast %117 : vector<1x128xf32> to vector<256x128xf32>
    %119 = arith.addf %116, %118 : vector<256x128xf32>
    %cst_126 = arith.constant 0.000000e+00 : f32
    %120 = vector.broadcast %cst_126 : f32 to vector<256x128xf32>
    %121 = arith.maximumf %119, %120 : vector<256x128xf32>
    %c0_127 = arith.constant 0 : index
    %c0_128 = arith.constant 0 : index
    %c0_129 = arith.constant 0 : index
    %122 = vector.load %arg7[%c0_127, %c0_128, %c0_129] : memref<1x256x128xf32, #tpu.memory_space<vmem>>, vector<1x256x128xf32>
    %123 = vector.shape_cast %122 : vector<1x256x128xf32> to vector<256x128xf32>
    %124 = vector.shape_cast %121 : vector<256x128xf32> to vector<1x256x128xf32>
    tpu.vector_store %arg7[%c0_127, %c0_128, %c0_129], %124 {strides = array<i32>} : memref<1x256x128xf32, #tpu.memory_space<vmem>>, vector<1x256x128xf32>,
    return
  }
  func.func @transform_0(%arg0: i32) -> (i32, i32, i32, i32) {
    %c0_i32 = arith.constant 0 : i32
    %c0_i32_0 = arith.constant 0 : i32
    %c0_i32_1 = arith.constant 0 : i32
    %c0_i32_2 = arith.constant 0 : i32
    return %arg0, %c0_i32, %c0_i32_0, %c0_i32_1 : i32, i32, i32, i32
  }
  func.func @transform_1(%arg0: i32) -> (i32, i32) {
    %c0_i32 = arith.constant 0 : i32
    %c0_i32_0 = arith.constant 0 : i32
    %c0_i32_1 = arith.constant 0 : i32
    return %c0_i32, %c0_i32_0 : i32, i32
  }
  func.func @transform_2(%arg0: i32) -> (i32, i32) {
    %c0_i32 = arith.constant 0 : i32
    %c0_i32_0 = arith.constant 0 : i32
    %c0_i32_1 = arith.constant 0 : i32
    return %c0_i32, %c0_i32_0 : i32, i32
  }
  func.func @transform_3(%arg0: i32) -> (i32, i32) {
    %c0_i32 = arith.constant 0 : i32
    %c0_i32_0 = arith.constant 0 : i32
    %c0_i32_1 = arith.constant 0 : i32
    return %c0_i32, %c0_i32_0 : i32, i32
  }
  func.func @transform_4(%arg0: i32) -> (i32, i32) {
    %c0_i32 = arith.constant 0 : i32
    %c0_i32_0 = arith.constant 0 : i32
    %c0_i32_1 = arith.constant 0 : i32
    return %c0_i32, %c0_i32_0 : i32, i32
  }
  func.func @transform_5(%arg0: i32) -> (i32, i32) {
    %c0_i32 = arith.constant 0 : i32
    %c0_i32_0 = arith.constant 0 : i32
    %c0_i32_1 = arith.constant 0 : i32
    return %c0_i32, %c0_i32_0 : i32, i32
  }
  func.func @transform_6(%arg0: i32) -> (i32, i32, i32) {
    %c0_i32 = arith.constant 0 : i32
    %c0_i32_0 = arith.constant 0 : i32
    %c0_i32_1 = arith.constant 0 : i32
    return %arg0, %c0_i32, %c0_i32_0 : i32, i32, i32
  }
}

</mosaic_0001>

<llo_original>
// kernel: a_call__.1
$region0: #{a_call__.1}
  #allocation0 [shape = 'u32[]', space=smem, size = 0x4, offset = 0x4, fixed_abs, tag = 'smem constant byte address 0x4 - core index']
  #allocation1 [shape = 'u32[144,128]{1,0:T(1,128)}', space=vmem, size = 0x12000, scoped, tag = 'internal scratch']
  #allocation2 [shape = 'bf16[18,18,128]{2,1,0:T(8,128)(2,1)}', space=vmem, size = 0x1b000, scoped, tag = 'scratch operand']
  %s0 = inlined_call_operand.vmem [shape: bf16[2,18,18,128], index: 0, kind: input, shape index: {}]
  %s1 = inlined_call_operand.vmem [shape: bf16[1152,128], index: 1, kind: input, shape index: {}]
  %s2 = inlined_call_operand.vmem [shape: f32[1,128], index: 2, kind: input, shape index: {}]
  %s3 = inlined_call_operand.vmem [shape: bf16[1152,128], index: 3, kind: input, shape index: {}]
  %s4 = inlined_call_operand.vmem [shape: f32[1,128], index: 4, kind: input, shape index: {}]
  %s5 = inlined_call_operand.hbm [shape: bf16[128,128], index: 5, kind: input, shape index: {}]
  %s6 = inlined_call_operand.vmem [shape: f32[2,256,128], index: 6, kind: output, shape index: {}]
  %s7 = sld [smem:[#allocation0]]
  $region61: #{a_call__.1} parent=0
    _
  %s9 = ssub.s32 1, %s7
  %s10 = scalar_select 0, %s9, %s7
  $region1: #{a_call__.1} parent=0
    #allocation3 [shape = 'u8[32768]{0}', space=vmem, size = 0x8000, scoped, tag = 'input window, operand 5, single buffered']
    #allocation4 [shape = 's32[2]{0}', space=sflag, size = 0x8, scoped, tag = 'scoped memory for a_call__.1']
    %11 = vsyncpa [#allocation4], 0
    loop: start=0, step=1, limit=4
    $region2: #{a_call__.1} parent=1 // loop_pre_header
      _
    $region3: #{a_call__.1} parent=1 // loop_header
      %s13 = sphi 0, %s17
      %p14 = scmp.ge.s32.totalorder %s13, 4
      %s23 = sphi 0, %s25
      %s26 = sphi 0, %s23
      %s27 = sphi 0, %s26
      %s43 = sphi 0, %s27
      %s47 = sphi 0, %s47
      %s49 = sphi 0, %s47
      %s50 = sphi 0, %s49
      %s64 = sphi 0, %s50
      %s68 = sphi 0, %s68
      %s70 = sphi 0, %s68
      %s71 = sphi 0, %s70
      %s85 = sphi 0, %s71
      %s89 = sphi 0, %s89
      %s91 = sphi 0, %s89
      %s92 = sphi 0, %s91
      %s106 = sphi 0, %s92
      %s110 = sphi 0, %s110
      %s112 = sphi 0, %s110
      %s113 = sphi 0, %s112
      %s127 = sphi 0, %s113
      %s131 = sphi 0, %s131
      %s133 = sphi 0, %s131
      %s134 = sphi 0, %s133
      %s148 = sphi 0, %s134
      %s154 = sphi 0, %s156
      %s157 = sphi 0, %s154
      %s158 = sphi 0, %s157
      %s174 = sphi 0, %s158
    $region4: #{a_call__.1} parent=1 // loop_header_branch
      %16 = sbr.rel (%p14) target = $region8
    $region5: #{a_call__.1} parent=1 // loop_body
      %s18 = ssub.s32 %s13, 1
      %s19 = ssub.s32 %s13, 2
      %s20 = sadd.s32 %s13, 1
      %s21 = ssub.s32 %s13, %s20
      %p22 = scmp.eq.s32.totalorder %s21, 0
      %s24 = sadd.s32 %s23, 1
      %s25 = scalar_select %p22, %s23, %s24
      %p28 = pneg %p22
      %p29 = scmp.eq.s32.totalorder %s13, 1
      %p30 = por %p28, %p29
      %p31 = scmp.ne.s32.totalorder %s23, %s26
      %p32 = scmp.eq.s32.totalorder %s13, 0
      %p33 = por %p31, %p32
      %p34 = scmp.ne.s32.totalorder %s23, %s26
      %p35 = scmp.eq.s32.totalorder %s18, 1
      %p36 = por %p34, %p35
      %p37 = scmp.ne.s32.totalorder %s26, %s27
      %p38 = scmp.eq.s32.totalorder %s18, 0
      %p39 = por %p37, %p38
      %p40 = scmp.ne.s32.totalorder %s26, %s27
      %p41 = scmp.eq.s32.totalorder %s19, 1
      %p42 = por %p40, %p41
      %p44 = scmp.ne.s32.totalorder %s27, %s43
      %p45 = scmp.eq.s32.totalorder %s19, 0
      %p46 = por %p44, %p45
      %s48 = sadd.s32 %s47, 1
      %p51 = scmp.eq.s32.totalorder %s13, 1
      %p52 = scmp.ne.s32.totalorder %s47, %s49
      %p53 = scmp.eq.s32.totalorder %s13, 0
      %p54 = por %p52, %p53
      %p55 = scmp.ne.s32.totalorder %s47, %s49
      %p56 = scmp.eq.s32.totalorder %s18, 1
      %p57 = por %p55, %p56
      %p58 = scmp.ne.s32.totalorder %s49, %s50
      %p59 = scmp.eq.s32.totalorder %s18, 0
      %p60 = por %p58, %p59
      %p61 = scmp.ne.s32.totalorder %s49, %s50
      %p62 = scmp.eq.s32.totalorder %s19, 1
      %p63 = por %p61, %p62
      %p65 = scmp.ne.s32.totalorder %s50, %s64
      %p66 = scmp.eq.s32.totalorder %s19, 0
      %p67 = por %p65, %p66
      %s69 = sadd.s32 %s68, 1
      %p72 = scmp.eq.s32.totalorder %s13, 1
      %p73 = scmp.ne.s32.totalorder %s68, %s70
      %p74 = scmp.eq.s32.totalorder %s13, 0
      %p75 = por %p73, %p74
      %p76 = scmp.ne.s32.totalorder %s68, %s70
      %p77 = scmp.eq.s32.totalorder %s18, 1
      %p78 = por %p76, %p77
      %p79 = scmp.ne.s32.totalorder %s70, %s71
      %p80 = scmp.eq.s32.totalorder %s18, 0
      %p81 = por %p79, %p80
      %p82 = scmp.ne.s32.totalorder %s70, %s71
      %p83 = scmp.eq.s32.totalorder %s19, 1
      %p84 = por %p82, %p83
      %p86 = scmp.ne.s32.totalorder %s71, %s85
      %p87 = scmp.eq.s32.totalorder %s19, 0
      %p88 = por %p86, %p87
      %s90 = sadd.s32 %s89, 1
      %p93 = scmp.eq.s32.totalorder %s13, 1
      %p94 = scmp.ne.s32.totalorder %s89, %s91
      %p95 = scmp.eq.s32.totalorder %s13, 0
      %p96 = por %p94, %p95
      %p97 = scmp.ne.s32.totalorder %s89, %s91
      %p98 = scmp.eq.s32.totalorder %s18, 1
      %p99 = por %p97, %p98
      %p100 = scmp.ne.s32.totalorder %s91, %s92
      %p101 = scmp.eq.s32.totalorder %s18, 0
      %p102 = por %p100, %p101
      %p103 = scmp.ne.s32.totalorder %s91, %s92
      %p104 = scmp.eq.s32.totalorder %s19, 1
      %p105 = por %p103, %p104
      %p107 = scmp.ne.s32.totalorder %s92, %s106
      %p108 = scmp.eq.s32.totalorder %s19, 0
      %p109 = por %p107, %p108
      %s111 = sadd.s32 %s110, 1
      %p114 = scmp.eq.s32.totalorder %s13, 1
      %p115 = scmp.ne.s32.totalorder %s110, %s112
      %p116 = scmp.eq.s32.totalorder %s13, 0
      %p117 = por %p115, %p116
      %p118 = scmp.ne.s32.totalorder %s110, %s112
      %p119 = scmp.eq.s32.totalorder %s18, 1
      %p120 = por %p118, %p119
      %p121 = scmp.ne.s32.totalorder %s112, %s113
      %p122 = scmp.eq.s32.totalorder %s18, 0
      %p123 = por %p121, %p122
      %p124 = scmp.ne.s32.totalorder %s112, %s113
      %p125 = scmp.eq.s32.totalorder %s19, 1
      %p126 = por %p124, %p125
      %p128 = scmp.ne.s32.totalorder %s113, %s127
      %p129 = scmp.eq.s32.totalorder %s19, 0
      %p130 = por %p128, %p129
      %s132 = sadd.s32 %s131, 1
      %p135 = scmp.eq.s32.totalorder %s13, 1
      %p136 = scmp.ne.s32.totalorder %s131, %s133
      %p137 = scmp.eq.s32.totalorder %s13, 0
      %p138 = por %p136, %p137
      %p139 = scmp.ne.s32.totalorder %s131, %s133
      %p140 = scmp.eq.s32.totalorder %s18, 1
      %p141 = por %p139, %p140
      %p142 = scmp.ne.s32.totalorder %s133, %s134
      %p143 = scmp.eq.s32.totalorder %s18, 0
      %p144 = por %p142, %p143
      %p145 = scmp.ne.s32.totalorder %s133, %s134
      %p146 = scmp.eq.s32.totalorder %s19, 1
      %p147 = por %p145, %p146
      %p149 = scmp.ne.s32.totalorder %s134, %s148
      %p150 = scmp.eq.s32.totalorder %s19, 0
      %p151 = por %p149, %p150
      %s152 = ssub.s32 %s13, %s20
      %p153 = scmp.eq.s32.totalorder %s152, 0
      %s155 = sadd.s32 %s154, 1
      %s156 = scalar_select %p153, %s154, %s155
      %p159 = pneg %p153
      %p160 = scmp.eq.s32.totalorder %s13, 1
      %p161 = por %p159, %p160
      %p162 = scmp.ne.s32.totalorder %s154, %s157
      %p163 = scmp.eq.s32.totalorder %s13, 0
      %p164 = por %p162, %p163
      %p165 = scmp.ne.s32.totalorder %s154, %s157
      %p166 = scmp.eq.s32.totalorder %s18, 1
      %p167 = por %p165, %p166
      %p168 = scmp.ne.s32.totalorder %s157, %s158
      %p169 = scmp.eq.s32.totalorder %s18, 0
      %p170 = por %p168, %p169
      %p171 = scmp.ne.s32.totalorder %s157, %s158
      %p172 = scmp.eq.s32.totalorder %s19, 1
      %p173 = por %p171, %p172
      %p175 = scmp.ne.s32.totalorder %s158, %s174
      %p176 = scmp.eq.s32.totalorder %s19, 0
      %p177 = por %p175, %p176
      %p178 = scmp.le.s32.totalorder 1, %s13
      %p179 = scmp.lt.s32.totalorder %s13, 3
      %p180 = pnand %p178, %p179
      %p181 = pneg %p180
      // Predicated region
      $region9: #{a_call__.1} parent=5 // pred_check
        _
      $region10: #{a_call__.1} parent=5 // pred_check_branch
        %183 = sbr.rel (%p180) target = $region12
      $region11: #{a_call__.1} parent=5 // pred_region
        %s184 = ssub.s32 %s13, 1
        // Predicated region
        $region13: #{a_call__.1} parent=11 // pred_check
          %p185 = pneg %p60
        $region14: #{a_call__.1} parent=11 // pred_check_branch
          %187 = sbr.rel (%p185) target = $region16
        $region15: #{a_call__.1} parent=11 // pred_region
          _
        $region16: #{a_call__.1} parent=11 // pred_fallthru
          _
        // Predicated region
        $region17: #{a_call__.1} parent=11 // pred_check
          %p188 = pneg %p81
        $region18: #{a_call__.1} parent=11 // pred_check_branch
          %190 = sbr.rel (%p188) target = $region20
        $region19: #{a_call__.1} parent=11 // pred_region
          _
        $region20: #{a_call__.1} parent=11 // pred_fallthru
          _
        // Predicated region
        $region21: #{a_call__.1} parent=11 // pred_check
          %p191 = pneg %p102
        $region22: #{a_call__.1} parent=11 // pred_check_branch
          %193 = sbr.rel (%p191) target = $region24
        $region23: #{a_call__.1} parent=11 // pred_region
          _
        $region24: #{a_call__.1} parent=11 // pred_fallthru
          _
        // Predicated region
        $region25: #{a_call__.1} parent=11 // pred_check
          %p194 = pneg %p123
        $region26: #{a_call__.1} parent=11 // pred_check_branch
          %196 = sbr.rel (%p194) target = $region28
        $region27: #{a_call__.1} parent=11 // pred_region
          _
        $region28: #{a_call__.1} parent=11 // pred_fallthru
          _
        // Predicated region
        $region29: #{a_call__.1} parent=11 // pred_check
          %p197 = pneg %p144
        $region30: #{a_call__.1} parent=11 // pred_check_branch
          %199 = sbr.rel (%p197) target = $region32
        $region31: #{a_call__.1} parent=11 // pred_region
          %s201 = ssub.s32 1024, 1024
          %202 = vsyncadd [#allocation4], %s201
          %s203 = sshll.u32 [#allocation3], 4
          %s204 = int_to_ptr.vmem [resolvable:$true] %s203
          %209 = dma.hbm_to_vmem [thread:$0]  %s5, 1024, %s204, [#allocation4], 64, 64, 4
        $region32: #{a_call__.1} parent=11 // pred_fallthru
          _
      $region12: #{a_call__.1} parent=5 // pred_fallthru
        _
      %p210 = scmp.lt.s32.totalorder %s13, 2
      // Predicated region
      $region33: #{a_call__.1} parent=5 // pred_check
        %p211 = pneg %p210
      $region34: #{a_call__.1} parent=5 // pred_check_branch
        %213 = sbr.rel (%p211) target = $region36
      $region35: #{a_call__.1} parent=5 // pred_region
        // Predicated region
        $region37: #{a_call__.1} parent=35 // pred_check
          %p214 = pneg %p33
        $region38: #{a_call__.1} parent=35 // pred_check_branch
          %216 = sbr.rel (%p214) target = $region40
        $region39: #{a_call__.1} parent=35 // pred_region
          %p217 = scmp.lt.s32.totalorder %s13, 1
          %s218 = scalar_select %p217, %s13, 1
          %s219 = smul.addr %s218, 54
          %s220 = smul.addr %s219, 4
          %s221 = scalar_lea.vmem %s0, %s220
        $region40: #{a_call__.1} parent=35 // pred_fallthru
          _
      $region36: #{a_call__.1} parent=5 // pred_fallthru
        _
      %p222 = scmp.le.s32.totalorder 1, %s13
      %p223 = scmp.lt.s32.totalorder %s13, 3
      %p224 = pnand %p222, %p223
      %p225 = pneg %p224
      // Predicated region
      $region41: #{a_call__.1} parent=5 // pred_check
        _
      $region42: #{a_call__.1} parent=5 // pred_check_branch
        %227 = sbr.rel (%p224) target = $region44
      $region43: #{a_call__.1} parent=5 // pred_region
        %s228 = ssub.s32 %s13, 1
        // Predicated region
        $region45: #{a_call__.1} parent=43 // pred_check
          %p229 = pneg %p144
        $region46: #{a_call__.1} parent=43 // pred_check_branch
          %231 = sbr.rel (%p229) target = $region48
        $region47: #{a_call__.1} parent=43 // pred_region
          %232 = dma.done [#allocation4], 1024
        $region48: #{a_call__.1} parent=43 // pred_fallthru
          _
        %p233 = scmp.lt.s32.totalorder %s18, 1
        %s234 = scalar_select %p233, %s18, 1
        %s235 = smul.addr %s234, 54
        %s236 = smul.addr %s235, 4
        %s237 = scalar_lea.vmem %s0, %s236
        %p238 = pneg %p39
        %p239 = pneg %p36
        %p240 = pneg %p60
        %p241 = pneg %p57
        %p242 = pneg %p81
        %p243 = pneg %p78
        %p244 = pneg %p102
        %p245 = pneg %p99
        %p246 = pneg %p123
        %p247 = pneg %p120
        %p248 = pneg %p144
        %p249 = pneg %p141
        %p250 = pneg %p170
        %p251 = pneg %p167
        %p252 = scmp.lt.s32.totalorder %s18, 1
        %s253 = scalar_select %p252, %s18, 1
        %s254 = smul.addr %s253, 32
        %s255 = smul.addr %s254, 8
        %s256 = scalar_lea.vmem %s6, %s255
        %p257 = scmp.lt.s32.totalorder %s18, 1
        %s258 = scalar_select %p257, %s18, 1
        %s259 = smul.addr %s258, 54
        %s260 = smul.addr %s259, 4
        %s261 = scalar_lea.vmem %s0, %s260
        %p262 = scmp.lt.s32.totalorder %s18, 1
        %s263 = scalar_select %p262, %s18, 1
        %s264 = smul.addr %s263, 32
        %s265 = smul.addr %s264, 8
        %s266 = scalar_lea.vmem %s6, %s265
        %268 = vst [vmem:[#allocation2] sm:$0xf] 0
        %269 = vst [vmem:[#allocation2 + $0x4] sm:$0xf] 0
        %270 = vst [vmem:[#allocation2 + $0x8] sm:$0x1] 0
        %271 = vst [vmem:[#allocation2 + $0xc] sm:$0xf] 0
        %272 = vst [vmem:[#allocation2 + $0x10] sm:$0xf] 0
        %273 = vst [vmem:[#allocation2 + $0x14] sm:$0x1] 0
        %274 = vst [vmem:[#allocation2 + $0x18] sm:$0xf] 0
        %275 = vst [vmem:[#allocation2 + $0x1c] sm:$0xf] 0
        %276 = vst [vmem:[#allocation2 + $0x20] sm:$0x1] 0
        %277 = vst [vmem:[#allocation2 + $0x24] sm:$0xf] 0
        %278 = vst [vmem:[#allocation2 + $0x28] sm:$0xf] 0
        %279 = vst [vmem:[#allocation2 + $0x2c] sm:$0x1] 0
        %280 = vst [vmem:[#allocation2 + $0x30] sm:$0xf] 0
        %281 = vst [vmem:[#allocation2 + $0x34] sm:$0xf] 0
        %282 = vst [vmem:[#allocation2 + $0x38] sm:$0x1] 0
        %283 = vst [vmem:[#allocation2 + $0x3c] sm:$0xf] 0
        %284 = vst [vmem:[#allocation2 + $0x40] sm:$0xf] 0
        %285 = vst [vmem:[#allocation2 + $0x44] sm:$0x1] 0
        %286 = vst [vmem:[#allocation2 + $0x48] sm:$0xf] 0
        %287 = vst [vmem:[#allocation2 + $0x4c] sm:$0xf] 0
        %288 = vst [vmem:[#allocation2 + $0x50] sm:$0x1] 0
        %289 = vst [vmem:[#allocation2 + $0x54] sm:$0xf] 0
        %290 = vst [vmem:[#allocation2 + $0x58] sm:$0xf] 0
        %291 = vst [vmem:[#allocation2 + $0x5c] sm:$0x1] 0
        %292 = vst [vmem:[#allocation2 + $0x60] sm:$0xf] 0
        %293 = vst [vmem:[#allocation2 + $0x64] sm:$0xf] 0
        %294 = vst [vmem:[#allocation2 + $0x68] sm:$0x1] 0
        %295 = vst [vmem:[#allocation2 + $0x6c] sm:$0xf] 0
        %296 = vst [vmem:[#allocation2 + $0x70] sm:$0xf] 0
        %297 = vst [vmem:[#allocation2 + $0x74] sm:$0x1] 0
        %298 = vst [vmem:[#allocation2 + $0x78] sm:$0xf] 0
        %299 = vst [vmem:[#allocation2 + $0x7c] sm:$0xf] 0
        %300 = vst [vmem:[#allocation2 + $0x80] sm:$0x1] 0
        %301 = vst [vmem:[#allocation2 + $0x84] sm:$0xf] 0
        %302 = vst [vmem:[#allocation2 + $0x88] sm:$0xf] 0
        %303 = vst [vmem:[#allocation2 + $0x8c] sm:$0x1] 0
        %304 = vst [vmem:[#allocation2 + $0x90] sm:$0xf] 0
        %305 = vst [vmem:[#allocation2 + $0x94] sm:$0xf] 0
        %306 = vst [vmem:[#allocation2 + $0x98] sm:$0x1] 0
        %307 = vst [vmem:[#allocation2 + $0x9c] sm:$0xf] 0
        %308 = vst [vmem:[#allocation2 + $0xa0] sm:$0xf] 0
        %309 = vst [vmem:[#allocation2 + $0xa4] sm:$0x1] 0
        %310 = vst [vmem:[#allocation2 + $0xa8] sm:$0xf] 0
        %311 = vst [vmem:[#allocation2 + $0xac] sm:$0xf] 0
        %312 = vst [vmem:[#allocation2 + $0xb0] sm:$0x1] 0
        %313 = vst [vmem:[#allocation2 + $0xb4] sm:$0xf] 0
        %314 = vst [vmem:[#allocation2 + $0xb8] sm:$0xf] 0
        %315 = vst [vmem:[#allocation2 + $0xbc] sm:$0x1] 0
        %316 = vst [vmem:[#allocation2 + $0xc0] sm:$0xf] 0
        %317 = vst [vmem:[#allocation2 + $0xc4] sm:$0xf] 0
        %318 = vst [vmem:[#allocation2 + $0xc8] sm:$0x1] 0
        %319 = vst [vmem:[#allocation2 + $0xcc] sm:$0xf] 0
        %320 = vst [vmem:[#allocation2 + $0xd0] sm:$0xf] 0
        %321 = vst [vmem:[#allocation2 + $0xd4] sm:$0x1] 0
        %v322 = vld [vmem:[%s261] sm:$0xf]
        %v323 = vld [vmem:[%s261 + $0x4] sm:$0xf]
        %v324 = vld [vmem:[%s261 + $0xc] sm:$0xf]
        %v325 = vld [vmem:[%s261 + $0x10] sm:$0xf]
        %v326 = vld [vmem:[%s261 + $0x18] sm:$0xf]
        %v327 = vld [vmem:[%s261 + $0x1c] sm:$0xf]
        %v328 = vld [vmem:[%s261 + $0x24] sm:$0xf]
        %v329 = vld [vmem:[%s261 + $0x28] sm:$0xf]
        %v330 = vld [vmem:[%s261 + $0x30] sm:$0xf]
        %v331 = vld [vmem:[%s261 + $0x34] sm:$0xf]
        %v332 = vld [vmem:[%s261 + $0x3c] sm:$0xf]
        %v333 = vld [vmem:[%s261 + $0x40] sm:$0xf]
        %v334 = vld [vmem:[%s261 + $0x48] sm:$0xf]
        %v335 = vld [vmem:[%s261 + $0x4c] sm:$0xf]
        %v336 = vld [vmem:[%s261 + $0x54] sm:$0xf]
        %v337 = vld [vmem:[%s261 + $0x58] sm:$0xf]
        %v338 = vld [vmem:[%s261 + $0x60] sm:$0xf]
        %v339 = vld [vmem:[%s261 + $0x64] sm:$0xf]
        %v340 = vld [vmem:[%s261 + $0x6c] sm:$0xf]
        %v341 = vld [vmem:[%s261 + $0x70] sm:$0xf]
        %v342 = vld [vmem:[%s261 + $0x78] sm:$0xf]
        %v343 = vld [vmem:[%s261 + $0x7c] sm:$0xf]
        %v344 = vld [vmem:[%s261 + $0x84] sm:$0xf]
        %v345 = vld [vmem:[%s261 + $0x88] sm:$0xf]
        %v346 = vld [vmem:[%s261 + $0x90] sm:$0xf]
        %v347 = vld [vmem:[%s261 + $0x94] sm:$0xf]
        %v348 = vld [vmem:[%s261 + $0x9c] sm:$0xf]
        %v349 = vld [vmem:[%s261 + $0xa0] sm:$0xf]
        %v350 = vld [vmem:[%s261 + $0xa8] sm:$0xf]
        %v351 = vld [vmem:[%s261 + $0xac] sm:$0xf]
        %v352 = vld [vmem:[%s261 + $0xb4] sm:$0xf]
        %v353 = vld [vmem:[%s261 + $0xb8] sm:$0xf]
        %v354 = vld [vmem:[%s1] sm:$0xf]
        %v355 = vld [vmem:[%s1 + $0x4] sm:$0xf]
        %v356 = vld [vmem:[%s1 + $0x8] sm:$0xf]
        %v357 = vld [vmem:[%s1 + $0xc] sm:$0xf]
        %v358 = vld [vmem:[%s1 + $0x10] sm:$0xf]
        %v359 = vld [vmem:[%s1 + $0x14] sm:$0xf]
        %v360 = vld [vmem:[%s1 + $0x18] sm:$0xf]
        %v361 = vld [vmem:[%s1 + $0x1c] sm:$0xf]
        %v362 = vld [vmem:[%s1 + $0x20] sm:$0xf]
        %v363 = vld [vmem:[%s1 + $0x24] sm:$0xf]
        %v364 = vld [vmem:[%s1 + $0x28] sm:$0xf]
        %v365 = vld [vmem:[%s1 + $0x2c] sm:$0xf]
        %v366 = vld [vmem:[%s1 + $0x30] sm:$0xf]
        %v367 = vld [vmem:[%s1 + $0x34] sm:$0xf]
        %v368 = vld [vmem:[%s1 + $0x38] sm:$0xf]
        %v369 = vld [vmem:[%s1 + $0x3c] sm:$0xf]
        %v370 = vld [vmem:[%s261 + $0x8] sm:$0x1]
        %v371 = vld [vmem:[%s261 + $0x14] sm:$0x1]
        %v372 = vld [vmem:[%s261 + $0x20] sm:$0x1]
        %v373 = vld [vmem:[%s261 + $0x2c] sm:$0x1]
        %v374 = vld [vmem:[%s261 + $0x38] sm:$0x1]
        %v375 = vld [vmem:[%s261 + $0x44] sm:$0x1]
        %v376 = vld [vmem:[%s261 + $0x50] sm:$0x1]
        %v377 = vld [vmem:[%s261 + $0x5c] sm:$0x1]
        %v378 = vld [vmem:[%s261 + $0x68] sm:$0x1]
        %v379 = vld [vmem:[%s261 + $0x74] sm:$0x1]
        %v380 = vld [vmem:[%s261 + $0x80] sm:$0x1]
        %v381 = vld [vmem:[%s261 + $0x8c] sm:$0x1]
        %v382 = vld [vmem:[%s261 + $0x98] sm:$0x1]
        %v383 = vld [vmem:[%s261 + $0xa4] sm:$0x1]
        %v384 = vld [vmem:[%s261 + $0xb0] sm:$0x1]
        %v385 = vld [vmem:[%s261 + $0xbc] sm:$0x1]
        %vm386 = vsmask.f32 3328
        %vm387 = vsmask.f32 7440
        %vm388 = vmor %vm386, %vm387
        %v390 = vshrl.u32 %v322, 16
        %v392 = vrot.slane %v390, 4
        %v393 = vshll.u32 %v322, 16
        %v395 = vrot.slane %v393, 5
        %v396 = vor.u32 %v392, %v395
        %v397 = vrot.slane %v396, 4
        %v399 = vshll.u32 %v323, 16
        %v401 = vrot.slane %v399, 5
        %v402 = vsel %vm388, %v397, %v401
        %v403 = vshrl.u32 %v323, 16
        %v405 = vrot.slane %v403, 4
        %v406 = vor.u32 %v405, %v401
        %v407 = vrot.slane %v406, 4
        %v409 = vshll.u32 %v370, 16
        %v411 = vrot.slane %v409, 5
        %v412 = vsel %vm388, %v407, %v411
        %v414 = vshrl.u32 %v324, 16
        %v416 = vrot.slane %v414, 4
        %v417 = vshll.u32 %v324, 16
        %v419 = vrot.slane %v417, 5
        %v420 = vor.u32 %v416, %v419
        %v421 = vrot.slane %v420, 4
        %v423 = vshll.u32 %v325, 16
        %v425 = vrot.slane %v423, 5
        %v426 = vsel %vm388, %v421, %v425
        %v427 = vshrl.u32 %v325, 16
        %v429 = vrot.slane %v427, 4
        %v430 = vor.u32 %v429, %v425
        %v431 = vrot.slane %v430, 4
        %v433 = vshll.u32 %v371, 16
        %v435 = vrot.slane %v433, 5
        %v436 = vsel %vm388, %v431, %v435
        %v438 = vshrl.u32 %v326, 16
        %v440 = vrot.slane %v438, 4
        %v441 = vshll.u32 %v326, 16
        %v443 = vrot.slane %v441, 5
        %v444 = vor.u32 %v440, %v443
        %v445 = vrot.slane %v444, 4
        %v447 = vshll.u32 %v327, 16
        %v449 = vrot.slane %v447, 5
        %v450 = vsel %vm388, %v445, %v449
        %v451 = vshrl.u32 %v327, 16
        %v453 = vrot.slane %v451, 4
        %v454 = vor.u32 %v453, %v449
        %v455 = vrot.slane %v454, 4
        %v457 = vshll.u32 %v372, 16
        %v459 = vrot.slane %v457, 5
        %v460 = vsel %vm388, %v455, %v459
        %v462 = vshrl.u32 %v328, 16
        %v464 = vrot.slane %v462, 4
        %v465 = vshll.u32 %v328, 16
        %v467 = vrot.slane %v465, 5
        %v468 = vor.u32 %v464, %v467
        %v469 = vrot.slane %v468, 4
        %v471 = vshll.u32 %v329, 16
        %v473 = vrot.slane %v471, 5
        %v474 = vsel %vm388, %v469, %v473
        %v475 = vshrl.u32 %v329, 16
        %v477 = vrot.slane %v475, 4
        %v478 = vor.u32 %v477, %v473
        %v479 = vrot.slane %v478, 4
        %v481 = vshll.u32 %v373, 16
        %v483 = vrot.slane %v481, 5
        %v484 = vsel %vm388, %v479, %v483
        %v486 = vshrl.u32 %v330, 16
        %v488 = vrot.slane %v486, 4
        %v489 = vshll.u32 %v330, 16
        %v491 = vrot.slane %v489, 5
        %v492 = vor.u32 %v488, %v491
        %v493 = vrot.slane %v492, 4
        %v495 = vshll.u32 %v331, 16
        %v497 = vrot.slane %v495, 5
        %v498 = vsel %vm388, %v493, %v497
        %v499 = vshrl.u32 %v331, 16
        %v501 = vrot.slane %v499, 4
        %v502 = vor.u32 %v501, %v497
        %v503 = vrot.slane %v502, 4
        %v505 = vshll.u32 %v374, 16
        %v507 = vrot.slane %v505, 5
        %v508 = vsel %vm388, %v503, %v507
        %v510 = vshrl.u32 %v332, 16
        %v512 = vrot.slane %v510, 4
        %v513 = vshll.u32 %v332, 16
        %v515 = vrot.slane %v513, 5
        %v516 = vor.u32 %v512, %v515
        %v517 = vrot.slane %v516, 4
        %v519 = vshll.u32 %v333, 16
        %v521 = vrot.slane %v519, 5
        %v522 = vsel %vm388, %v517, %v521
        %v523 = vshrl.u32 %v333, 16
        %v525 = vrot.slane %v523, 4
        %v526 = vor.u32 %v525, %v521
        %v527 = vrot.slane %v526, 4
        %v529 = vshll.u32 %v375, 16
        %v531 = vrot.slane %v529, 5
        %v532 = vsel %vm388, %v527, %v531
        %v534 = vshrl.u32 %v334, 16
        %v536 = vrot.slane %v534, 4
        %v537 = vshll.u32 %v334, 16
        %v539 = vrot.slane %v537, 5
        %v540 = vor.u32 %v536, %v539
        %v541 = vrot.slane %v540, 4
        %v543 = vshll.u32 %v335, 16
        %v545 = vrot.slane %v543, 5
        %v546 = vsel %vm388, %v541, %v545
        %v547 = vshrl.u32 %v335, 16
        %v549 = vrot.slane %v547, 4
        %v550 = vor.u32 %v549, %v545
        %v551 = vrot.slane %v550, 4
        %v553 = vshll.u32 %v376, 16
        %v555 = vrot.slane %v553, 5
        %v556 = vsel %vm388, %v551, %v555
        %v558 = vshrl.u32 %v336, 16
        %v560 = vrot.slane %v558, 4
        %v561 = vshll.u32 %v336, 16
        %v563 = vrot.slane %v561, 5
        %v564 = vor.u32 %v560, %v563
        %v565 = vrot.slane %v564, 4
        %v567 = vshll.u32 %v337, 16
        %v569 = vrot.slane %v567, 5
        %v570 = vsel %vm388, %v565, %v569
        %v571 = vshrl.u32 %v337, 16
        %v573 = vrot.slane %v571, 4
        %v574 = vor.u32 %v573, %v569
        %v575 = vrot.slane %v574, 4
        %v577 = vshll.u32 %v377, 16
        %v579 = vrot.slane %v577, 5
        %v580 = vsel %vm388, %v575, %v579
        %v582 = vshrl.u32 %v338, 16
        %v584 = vrot.slane %v582, 4
        %v585 = vshll.u32 %v338, 16
        %v587 = vrot.slane %v585, 5
        %v588 = vor.u32 %v584, %v587
        %v589 = vrot.slane %v588, 4
        %v591 = vshll.u32 %v339, 16
        %v593 = vrot.slane %v591, 5
        %v594 = vsel %vm388, %v589, %v593
        %v595 = vshrl.u32 %v339, 16
        %v597 = vrot.slane %v595, 4
        %v598 = vor.u32 %v597, %v593
        %v599 = vrot.slane %v598, 4
        %v601 = vshll.u32 %v378, 16
        %v603 = vrot.slane %v601, 5
        %v604 = vsel %vm388, %v599, %v603
        %v606 = vshrl.u32 %v340, 16
        %v608 = vrot.slane %v606, 4
        %v609 = vshll.u32 %v340, 16
        %v611 = vrot.slane %v609, 5
        %v612 = vor.u32 %v608, %v611
        %v613 = vrot.slane %v612, 4
        %v615 = vshll.u32 %v341, 16
        %v617 = vrot.slane %v615, 5
        %v618 = vsel %vm388, %v613, %v617
        %v619 = vshrl.u32 %v341, 16
        %v621 = vrot.slane %v619, 4
        %v622 = vor.u32 %v621, %v617
        %v623 = vrot.slane %v622, 4
        %v625 = vshll.u32 %v379, 16
        %v627 = vrot.slane %v625, 5
        %v628 = vsel %vm388, %v623, %v627
        %v630 = vshrl.u32 %v342, 16
        %v632 = vrot.slane %v630, 4
        %v633 = vshll.u32 %v342, 16
        %v635 = vrot.slane %v633, 5
        %v636 = vor.u32 %v632, %v635
        %v637 = vrot.slane %v636, 4
        %v639 = vshll.u32 %v343, 16
        %v641 = vrot.slane %v639, 5
        %v642 = vsel %vm388, %v637, %v641
        %v643 = vshrl.u32 %v343, 16
        %v645 = vrot.slane %v643, 4
        %v646 = vor.u32 %v645, %v641
        %v647 = vrot.slane %v646, 4
        %v649 = vshll.u32 %v380, 16
        %v651 = vrot.slane %v649, 5
        %v652 = vsel %vm388, %v647, %v651
        %v654 = vshrl.u32 %v344, 16
        %v656 = vrot.slane %v654, 4
        %v657 = vshll.u32 %v344, 16
        %v659 = vrot.slane %v657, 5
        %v660 = vor.u32 %v656, %v659
        %v661 = vrot.slane %v660, 4
        %v663 = vshll.u32 %v345, 16
        %v665 = vrot.slane %v663, 5
        %v666 = vsel %vm388, %v661, %v665
        %v667 = vshrl.u32 %v345, 16
        %v669 = vrot.slane %v667, 4
        %v670 = vor.u32 %v669, %v665
        %v671 = vrot.slane %v670, 4
        %v673 = vshll.u32 %v381, 16
        %v675 = vrot.slane %v673, 5
        %v676 = vsel %vm388, %v671, %v675
        %v678 = vshrl.u32 %v346, 16
        %v680 = vrot.slane %v678, 4
        %v681 = vshll.u32 %v346, 16
        %v683 = vrot.slane %v681, 5
        %v684 = vor.u32 %v680, %v683
        %v685 = vrot.slane %v684, 4
        %v687 = vshll.u32 %v347, 16
        %v689 = vrot.slane %v687, 5
        %v690 = vsel %vm388, %v685, %v689
        %v691 = vshrl.u32 %v347, 16
        %v693 = vrot.slane %v691, 4
        %v694 = vor.u32 %v693, %v689
        %v695 = vrot.slane %v694, 4
        %v697 = vshll.u32 %v382, 16
        %v699 = vrot.slane %v697, 5
        %v700 = vsel %vm388, %v695, %v699
        %v702 = vshrl.u32 %v348, 16
        %v704 = vrot.slane %v702, 4
        %v705 = vshll.u32 %v348, 16
        %v707 = vrot.slane %v705, 5
        %v708 = vor.u32 %v704, %v707
        %v709 = vrot.slane %v708, 4
        %v711 = vshll.u32 %v349, 16
        %v713 = vrot.slane %v711, 5
        %v714 = vsel %vm388, %v709, %v713
        %v715 = vshrl.u32 %v349, 16
        %v717 = vrot.slane %v715, 4
        %v718 = vor.u32 %v717, %v713
        %v719 = vrot.slane %v718, 4
        %v721 = vshll.u32 %v383, 16
        %v723 = vrot.slane %v721, 5
        %v724 = vsel %vm388, %v719, %v723
        %v726 = vshrl.u32 %v350, 16
        %v728 = vrot.slane %v726, 4
        %v729 = vshll.u32 %v350, 16
        %v731 = vrot.slane %v729, 5
        %v732 = vor.u32 %v728, %v731
        %v733 = vrot.slane %v732, 4
        %v735 = vshll.u32 %v351, 16
        %v737 = vrot.slane %v735, 5
        %v738 = vsel %vm388, %v733, %v737
        %v739 = vshrl.u32 %v351, 16
        %v741 = vrot.slane %v739, 4
        %v742 = vor.u32 %v741, %v737
        %v743 = vrot.slane %v742, 4
        %v745 = vshll.u32 %v384, 16
        %v747 = vrot.slane %v745, 5
        %v748 = vsel %vm388, %v743, %v747
        %v750 = vshrl.u32 %v352, 16
        %v752 = vrot.slane %v750, 4
        %v753 = vshll.u32 %v352, 16
        %v755 = vrot.slane %v753, 5
        %v756 = vor.u32 %v752, %v755
        %v757 = vrot.slane %v756, 4
        %v759 = vshll.u32 %v353, 16
        %v761 = vrot.slane %v759, 5
        %v762 = vsel %vm388, %v757, %v761
        %v763 = vshrl.u32 %v353, 16
        %v765 = vrot.slane %v763, 4
        %v766 = vor.u32 %v765, %v761
        %v767 = vrot.slane %v766, 4
        %v769 = vshll.u32 %v385, 16
        %v771 = vrot.slane %v769, 5
        %v772 = vsel %vm388, %v767, %v771
        %v773 = vld [vmem:[%s1 + $0x40] sm:$0xf]
        %v774 = vld [vmem:[%s1 + $0x44] sm:$0xf]
        %v775 = vld [vmem:[%s1 + $0x48] sm:$0xf]
        %v776 = vld [vmem:[%s1 + $0x4c] sm:$0xf]
        %v777 = vld [vmem:[%s1 + $0x50] sm:$0xf]
        %v778 = vld [vmem:[%s1 + $0x54] sm:$0xf]
        %v779 = vld [vmem:[%s1 + $0x58] sm:$0xf]
        %v780 = vld [vmem:[%s1 + $0x5c] sm:$0xf]
        %v781 = vld [vmem:[%s1 + $0x60] sm:$0xf]
        %v782 = vld [vmem:[%s1 + $0x64] sm:$0xf]
        %v783 = vld [vmem:[%s1 + $0x68] sm:$0xf]
        %v784 = vld [vmem:[%s1 + $0x6c] sm:$0xf]
        %v785 = vld [vmem:[%s1 + $0x70] sm:$0xf]
        %v786 = vld [vmem:[%s1 + $0x74] sm:$0xf]
        %v787 = vld [vmem:[%s1 + $0x78] sm:$0xf]
        %v788 = vld [vmem:[%s1 + $0x7c] sm:$0xf]
        %v789 = vunpack.c.l.b16 %v402
        %v790 = vunpack.c.l.b16 %v412
        %v791 = vunpack.c.l.b16 %v426
        %v792 = vunpack.c.l.b16 %v436
        %v793 = vunpack.c.l.b16 %v450
        %v794 = vunpack.c.l.b16 %v460
        %v795 = vunpack.c.l.b16 %v474
        %v796 = vunpack.c.l.b16 %v484
        %v797 = vunpack.c.l.b16 %v498
        %v798 = vunpack.c.l.b16 %v508
        %v799 = vunpack.c.l.b16 %v522
        %v800 = vunpack.c.l.b16 %v532
        %v801 = vunpack.c.l.b16 %v546
        %v802 = vunpack.c.l.b16 %v556
        %v803 = vunpack.c.l.b16 %v570
        %v804 = vunpack.c.l.b16 %v580
        %v805 = vunpack.c.l.b16 %v594
        %v806 = vunpack.c.l.b16 %v604
        %v807 = vunpack.c.l.b16 %v618
        %v808 = vunpack.c.l.b16 %v628
        %v809 = vunpack.c.l.b16 %v642
        %v810 = vunpack.c.l.b16 %v652
        %v811 = vunpack.c.l.b16 %v666
        %v812 = vunpack.c.l.b16 %v676
        %v813 = vunpack.c.l.b16 %v690
        %v814 = vunpack.c.l.b16 %v700
        %v815 = vunpack.c.l.b16 %v714
        %v816 = vunpack.c.l.b16 %v724
        %v817 = vunpack.c.l.b16 %v738
        %v818 = vunpack.c.l.b16 %v748
        %v819 = vunpack.c.l.b16 %v762
        %v820 = vunpack.c.l.b16 %v772
        %v821 = vpack.c.b16 %v790, %v789
        %v822 = vpack.c.b16 %v792, %v791
        %v823 = vpack.c.b16 %v794, %v793
        %v824 = vpack.c.b16 %v796, %v795
        %v825 = vpack.c.b16 %v798, %v797
        %v826 = vpack.c.b16 %v800, %v799
        %v827 = vpack.c.b16 %v802, %v801
        %v828 = vpack.c.b16 %v804, %v803
        %v829 = vpack.c.b16 %v806, %v805
        %v830 = vpack.c.b16 %v808, %v807
        %v831 = vpack.c.b16 %v810, %v809
        %v832 = vpack.c.b16 %v812, %v811
        %v833 = vpack.c.b16 %v814, %v813
        %v834 = vpack.c.b16 %v816, %v815
        %v835 = vpack.c.b16 %v818, %v817
        %v836 = vpack.c.b16 %v820, %v819
        %v869 = vunpack.c.l.b16 %v773
        %v870 = vunpack.c.l.b16 %v774
        %v871 = vunpack.c.l.b16 %v775
        %v872 = vunpack.c.l.b16 %v776
        %v873 = vunpack.c.l.b16 %v777
        %v874 = vunpack.c.l.b16 %v778
        %v875 = vunpack.c.l.b16 %v779
        %v876 = vunpack.c.l.b16 %v780
        %v877 = vunpack.c.l.b16 %v781
        %v878 = vunpack.c.l.b16 %v782
        %v879 = vunpack.c.l.b16 %v783
        %v880 = vunpack.c.l.b16 %v784
        %v881 = vunpack.c.l.b16 %v785
        %v882 = vunpack.c.l.b16 %v786
        %v883 = vunpack.c.l.b16 %v787
        %v884 = vunpack.c.l.b16 %v788
        %v885 = vpack.c.b16 %v870, %v869
        %v886 = vpack.c.b16 %v872, %v871
        %v887 = vpack.c.b16 %v874, %v873
        %v888 = vpack.c.b16 %v876, %v875
        %v889 = vpack.c.b16 %v878, %v877
        %v890 = vpack.c.b16 %v880, %v879
        %v891 = vpack.c.b16 %v882, %v881
        %v892 = vpack.c.b16 %v884, %v883
        %901 = vmatprep.subr.bf16.mxu0 0
        %902 = vmatpush1.bf16.msra.mxu0 %v892
        %903 = vmatprep.subr.bf16.mxu0 0
        %904 = vmatpush1.bf16.msra.mxu0 %v891
        %905 = vmatprep.subr.bf16.mxu0 0
        %906 = vmatpush1.bf16.msra.mxu0 %v890
        %907 = vmatprep.subr.bf16.mxu0 0
        %908 = vmatpush1.bf16.msra.mxu0 %v889
        %909 = vmatprep.subr.bf16.mxu0 0
        %910 = vmatpush1.bf16.msra.mxu0 %v888
        %911 = vmatprep.subr.bf16.mxu0 0
        %912 = vmatpush1.bf16.msra.mxu0 %v887
        %913 = vmatprep.subr.bf16.mxu0 0
        %914 = vmatpush1.bf16.msra.mxu0 %v886
        %915 = vmatprep.subr.bf16.mxu0 0
        %916 = vmatpush1.bf16.msra.mxu0 %v885
        %917 = vmatprep.subr.bf16.mxu0 0
        %918 = vmatpush2.bf16.msra.mxu0 0
        %919 = vmatprep.subr.bf16.mxu0 0
        %920 = vmatpush2.bf16.msra.mxu0 0
        %921 = vmatprep.subr.bf16.mxu0 0
        %922 = vmatpush2.bf16.msra.mxu0 0
        %923 = vmatprep.subr.bf16.mxu0 0
        %924 = vmatpush2.bf16.msra.mxu0 0
        %925 = vmatprep.subr.bf16.mxu0 0
        %926 = vmatpush2.bf16.msra.mxu0 0
        %927 = vmatprep.subr.bf16.mxu0 0
        %928 = vmatpush2.bf16.msra.mxu0 0
        %929 = vmatprep.subr.bf16.mxu0 0
        %930 = vmatpush2.bf16.msra.mxu0 0
        %931 = vmatprep.subr.bf16.mxu0 0
        %932 = vmatpush2.bf16.msra.mxu0 0
        %933 = vmatprep.mubr.bf16.mxu0 0
        %934 = vmatmul.mubr.bf16.gmra.mxu0 %v821
        %v935 = vpop.f32.mrf.mxu0
        %v936 = vadd.f32 0.0, %v935
        %v937 = vpop.f32.mrf.mxu0
        %v938 = vpop.f32.mrf.mxu0
        %v939 = vadd.f32 0.0, %v938
        %v940 = vpop.f32.mrf.mxu0
        %941 = vmatprep.mubr.bf16.mxu0 0
        %942 = vmatmul.mubr.bf16.gmra.mxu0 %v822
        %v943 = vpop.f32.mrf.mxu0
        %v944 = vadd.f32 0.0, %v943
        %v945 = vpop.f32.mrf.mxu0
        %v946 = vpop.f32.mrf.mxu0
        %v947 = vadd.f32 0.0, %v946
        %v948 = vpop.f32.mrf.mxu0
        %949 = vmatprep.mubr.bf16.mxu0 0
        %950 = vmatmul.mubr.bf16.gmra.mxu0 %v823
        %v951 = vpop.f32.mrf.mxu0
        %v952 = vadd.f32 0.0, %v951
        %v953 = vpop.f32.mrf.mxu0
        %v954 = vpop.f32.mrf.mxu0
        %v955 = vadd.f32 0.0, %v954
        %v956 = vpop.f32.mrf.mxu0
        %957 = vmatprep.mubr.bf16.mxu0 0
        %958 = vmatmul.mubr.bf16.gmra.mxu0 %v824
        %v959 = vpop.f32.mrf.mxu0
        %v960 = vadd.f32 0.0, %v959
        %v961 = vpop.f32.mrf.mxu0
        %v962 = vpop.f32.mrf.mxu0
        %v963 = vadd.f32 0.0, %v962
        %v964 = vpop.f32.mrf.mxu0
        %965 = vmatprep.mubr.bf16.mxu0 0
        %966 = vmatmul.mubr.bf16.gmra.mxu0 %v825
        %v967 = vpop.f32.mrf.mxu0
        %v968 = vadd.f32 0.0, %v967
        %v969 = vpop.f32.mrf.mxu0
        %v970 = vpop.f32.mrf.mxu0
        %v971 = vadd.f32 0.0, %v970
        %v972 = vpop.f32.mrf.mxu0
        %973 = vmatprep.mubr.bf16.mxu0 0
        %974 = vmatmul.mubr.bf16.gmra.mxu0 %v826
        %v975 = vpop.f32.mrf.mxu0
        %v976 = vadd.f32 0.0, %v975
        %v977 = vpop.f32.mrf.mxu0
        %v978 = vpop.f32.mrf.mxu0
        %v979 = vadd.f32 0.0, %v978
        %v980 = vpop.f32.mrf.mxu0
        %981 = vmatprep.mubr.bf16.mxu0 0
        %982 = vmatmul.mubr.bf16.gmra.mxu0 %v827
        %v983 = vpop.f32.mrf.mxu0
        %v984 = vadd.f32 0.0, %v983
        %v985 = vpop.f32.mrf.mxu0
        %v986 = vpop.f32.mrf.mxu0
        %v987 = vadd.f32 0.0, %v986
        %v988 = vpop.f32.mrf.mxu0
        %989 = vmatprep.mubr.bf16.mxu0 0
        %990 = vmatmul.mubr.bf16.gmra.mxu0 %v828
        %v991 = vpop.f32.mrf.mxu0
        %v992 = vadd.f32 0.0, %v991
        %v993 = vpop.f32.mrf.mxu0
        %v994 = vpop.f32.mrf.mxu0
        %v995 = vadd.f32 0.0, %v994
        %v996 = vpop.f32.mrf.mxu0
        %997 = vmatprep.mubr.bf16.mxu0 0
        %998 = vmatmul.mubr.bf16.gmra.mxu0 %v829
        %v999 = vpop.f32.mrf.mxu0
        %v1000 = vadd.f32 0.0, %v999
        %v1001 = vpop.f32.mrf.mxu0
        %v1002 = vpop.f32.mrf.mxu0
        %v1003 = vadd.f32 0.0, %v1002
        %v1004 = vpop.f32.mrf.mxu0
        %1005 = vmatprep.mubr.bf16.mxu0 0
        %1006 = vmatmul.mubr.bf16.gmra.mxu0 %v830
        %v1007 = vpop.f32.mrf.mxu0
        %v1008 = vadd.f32 0.0, %v1007
        %v1009 = vpop.f32.mrf.mxu0
        %v1010 = vpop.f32.mrf.mxu0
        %v1011 = vadd.f32 0.0, %v1010
        %v1012 = vpop.f32.mrf.mxu0
        %1013 = vmatprep.mubr.bf16.mxu0 0
        %1014 = vmatmul.mubr.bf16.gmra.mxu0 %v831
        %v1015 = vpop.f32.mrf.mxu0
        %v1016 = vadd.f32 0.0, %v1015
        %v1017 = vpop.f32.mrf.mxu0
        %v1018 = vpop.f32.mrf.mxu0
        %v1019 = vadd.f32 0.0, %v1018
        %v1020 = vpop.f32.mrf.mxu0
        %1021 = vmatprep.mubr.bf16.mxu0 0
        %1022 = vmatmul.mubr.bf16.gmra.mxu0 %v832
        %v1023 = vpop.f32.mrf.mxu0
        %v1024 = vadd.f32 0.0, %v1023
        %v1025 = vpop.f32.mrf.mxu0
        %v1026 = vpop.f32.mrf.mxu0
        %v1027 = vadd.f32 0.0, %v1026
        %v1028 = vpop.f32.mrf.mxu0
        %1029 = vmatprep.mubr.bf16.mxu0 0
        %1030 = vmatmul.mubr.bf16.gmra.mxu0 %v833
        %v1031 = vpop.f32.mrf.mxu0
        %v1032 = vadd.f32 0.0, %v1031
        %v1033 = vpop.f32.mrf.mxu0
        %v1034 = vpop.f32.mrf.mxu0
        %v1035 = vadd.f32 0.0, %v1034
        %v1036 = vpop.f32.mrf.mxu0
        %1037 = vmatprep.mubr.bf16.mxu0 0
        %1038 = vmatmul.mubr.bf16.gmra.mxu0 %v834
        %v1039 = vpop.f32.mrf.mxu0
        %v1040 = vadd.f32 0.0, %v1039
        %v1041 = vpop.f32.mrf.mxu0
        %v1042 = vpop.f32.mrf.mxu0
        %v1043 = vadd.f32 0.0, %v1042
        %v1044 = vpop.f32.mrf.mxu0
        %1045 = vmatprep.mubr.bf16.mxu0 0
        %1046 = vmatmul.mubr.bf16.gmra.mxu0 %v835
        %v1047 = vpop.f32.mrf.mxu0
        %v1048 = vadd.f32 0.0, %v1047
        %v1049 = vpop.f32.mrf.mxu0
        %v1050 = vpop.f32.mrf.mxu0
        %v1051 = vadd.f32 0.0, %v1050
        %v1052 = vpop.f32.mrf.mxu0
        %1053 = vmatprep.mubr.bf16.mxu0 0
        %1054 = vmatmul.mubr.bf16.gmra.mxu0 %v836
        %v1055 = vpop.f32.mrf.mxu0
        %v1056 = vadd.f32 0.0, %v1055
        %v1057 = vpop.f32.mrf.mxu0
        %v1058 = vpop.f32.mrf.mxu0
        %v1059 = vadd.f32 0.0, %v1058
        %v1060 = vpop.f32.mrf.mxu0
        %1061 = vdwg.mxu0
        %v1094 = vunpack.c.l.b16 %v322
        %v1095 = vunpack.c.l.b16 %v323
        %v1096 = vunpack.c.l.b16 %v324
        %v1097 = vunpack.c.l.b16 %v325
        %v1098 = vunpack.c.l.b16 %v326
        %v1099 = vunpack.c.l.b16 %v327
        %v1100 = vunpack.c.l.b16 %v328
        %v1101 = vunpack.c.l.b16 %v329
        %v1102 = vunpack.c.l.b16 %v330
        %v1103 = vunpack.c.l.b16 %v331
        %v1104 = vunpack.c.l.b16 %v332
        %v1105 = vunpack.c.l.b16 %v333
        %v1106 = vunpack.c.l.b16 %v334
        %v1107 = vunpack.c.l.b16 %v335
        %v1108 = vunpack.c.l.b16 %v336
        %v1109 = vunpack.c.l.b16 %v337
        %v1110 = vunpack.c.l.b16 %v338
        %v1111 = vunpack.c.l.b16 %v339
        %v1112 = vunpack.c.l.b16 %v340
        %v1113 = vunpack.c.l.b16 %v341
        %v1114 = vunpack.c.l.b16 %v342
        %v1115 = vunpack.c.l.b16 %v343
        %v1116 = vunpack.c.l.b16 %v344
        %v1117 = vunpack.c.l.b16 %v345
        %v1118 = vunpack.c.l.b16 %v346
        %v1119 = vunpack.c.l.b16 %v347
        %v1120 = vunpack.c.l.b16 %v348
        %v1121 = vunpack.c.l.b16 %v349
        %v1122 = vunpack.c.l.b16 %v350
        %v1123 = vunpack.c.l.b16 %v351
        %v1124 = vunpack.c.l.b16 %v352
        %v1125 = vunpack.c.l.b16 %v353
        %v1126 = vpack.c.b16 %v1095, %v1094
        %v1127 = vpack.c.b16 %v1097, %v1096
        %v1128 = vpack.c.b16 %v1099, %v1098
        %v1129 = vpack.c.b16 %v1101, %v1100
        %v1130 = vpack.c.b16 %v1103, %v1102
        %v1131 = vpack.c.b16 %v1105, %v1104
        %v1132 = vpack.c.b16 %v1107, %v1106
        %v1133 = vpack.c.b16 %v1109, %v1108
        %v1134 = vpack.c.b16 %v1111, %v1110
        %v1135 = vpack.c.b16 %v1113, %v1112
        %v1136 = vpack.c.b16 %v1115, %v1114
        %v1137 = vpack.c.b16 %v1117, %v1116
        %v1138 = vpack.c.b16 %v1119, %v1118
        %v1139 = vpack.c.b16 %v1121, %v1120
        %v1140 = vpack.c.b16 %v1123, %v1122
        %v1141 = vpack.c.b16 %v1125, %v1124
        %v1174 = vunpack.c.l.b16 %v354
        %v1175 = vunpack.c.l.b16 %v355
        %v1176 = vunpack.c.l.b16 %v356
        %v1177 = vunpack.c.l.b16 %v357
        %v1178 = vunpack.c.l.b16 %v358
        %v1179 = vunpack.c.l.b16 %v359
        %v1180 = vunpack.c.l.b16 %v360
        %v1181 = vunpack.c.l.b16 %v361
        %v1182 = vunpack.c.l.b16 %v362
        %v1183 = vunpack.c.l.b16 %v363
        %v1184 = vunpack.c.l.b16 %v364
        %v1185 = vunpack.c.l.b16 %v365
        %v1186 = vunpack.c.l.b16 %v366
        %v1187 = vunpack.c.l.b16 %v367
        %v1188 = vunpack.c.l.b16 %v368
        %v1189 = vunpack.c.l.b16 %v369
        %v1190 = vpack.c.b16 %v1175, %v1174
        %v1191 = vpack.c.b16 %v1177, %v1176
        %v1192 = vpack.c.b16 %v1179, %v1178
        %v1193 = vpack.c.b16 %v1181, %v1180
        %v1194 = vpack.c.b16 %v1183, %v1182
        %v1195 = vpack.c.b16 %v1185, %v1184
        %v1196 = vpack.c.b16 %v1187, %v1186
        %v1197 = vpack.c.b16 %v1189, %v1188
        %1206 = vmatprep.subr.bf16.mxu0 0
        %1207 = vmatpush1.bf16.msra.mxu0 %v1197
        %1208 = vmatprep.subr.bf16.mxu0 0
        %1209 = vmatpush1.bf16.msra.mxu0 %v1196
        %1210 = vmatprep.subr.bf16.mxu0 0
        %1211 = vmatpush1.bf16.msra.mxu0 %v1195
        %1212 = vmatprep.subr.bf16.mxu0 0
        %1213 = vmatpush1.bf16.msra.mxu0 %v1194
        %1214 = vmatprep.subr.bf16.mxu0 0
        %1215 = vmatpush1.bf16.msra.mxu0 %v1193
        %1216 = vmatprep.subr.bf16.mxu0 0
        %1217 = vmatpush1.bf16.msra.mxu0 %v1192
        %1218 = vmatprep.subr.bf16.mxu0 0
        %1219 = vmatpush1.bf16.msra.mxu0 %v1191
        %1220 = vmatprep.subr.bf16.mxu0 0
        %1221 = vmatpush1.bf16.msra.mxu0 %v1190
        %1222 = vmatprep.subr.bf16.mxu0 0
        %1223 = vmatpush2.bf16.msra.mxu0 0
        %1224 = vmatprep.subr.bf16.mxu0 0
        %1225 = vmatpush2.bf16.msra.mxu0 0
        %1226 = vmatprep.subr.bf16.mxu0 0
        %1227 = vmatpush2.bf16.msra.mxu0 0
        %1228 = vmatprep.subr.bf16.mxu0 0
        %1229 = vmatpush2.bf16.msra.mxu0 0
        %1230 = vmatprep.subr.bf16.mxu0 0
        %1231 = vmatpush2.bf16.msra.mxu0 0
        %1232 = vmatprep.subr.bf16.mxu0 0
        %1233 = vmatpush2.bf16.msra.mxu0 0
        %1234 = vmatprep.subr.bf16.mxu0 0
        %1235 = vmatpush2.bf16.msra.mxu0 0
        %1236 = vmatprep.subr.bf16.mxu0 0
        %1237 = vmatpush2.bf16.msra.mxu0 0
        %1238 = vmatprep.mubr.bf16.mxu0 0
        %1239 = vmatmul.mubr.bf16.gmra.mxu0 %v1126
        %v1240 = vpop.f32.mrf.mxu0
        %v1241 = vadd.f32 %v936, %v1240
        %v1242 = vpop.f32.mrf.mxu0
        %v1243 = vpop.f32.mrf.mxu0
        %v1244 = vadd.f32 %v939, %v1243
        %v1245 = vpop.f32.mrf.mxu0
        %1246 = vmatprep.mubr.bf16.mxu0 0
        %1247 = vmatmul.mubr.bf16.gmra.mxu0 %v1127
        %v1248 = vpop.f32.mrf.mxu0
        %v1249 = vadd.f32 %v944, %v1248
        %v1250 = vpop.f32.mrf.mxu0
        %v1251 = vpop.f32.mrf.mxu0
        %v1252 = vadd.f32 %v947, %v1251
        %v1253 = vpop.f32.mrf.mxu0
        %1254 = vmatprep.mubr.bf16.mxu0 0
        %1255 = vmatmul.mubr.bf16.gmra.mxu0 %v1128
        %v1256 = vpop.f32.mrf.mxu0
        %v1257 = vadd.f32 %v952, %v1256
        %v1258 = vpop.f32.mrf.mxu0
        %v1259 = vpop.f32.mrf.mxu0
        %v1260 = vadd.f32 %v955, %v1259
        %v1261 = vpop.f32.mrf.mxu0
        %1262 = vmatprep.mubr.bf16.mxu0 0
        %1263 = vmatmul.mubr.bf16.gmra.mxu0 %v1129
        %v1264 = vpop.f32.mrf.mxu0
        %v1265 = vadd.f32 %v960, %v1264
        %v1266 = vpop.f32.mrf.mxu0
        %v1267 = vpop.f32.mrf.mxu0
        %v1268 = vadd.f32 %v963, %v1267
        %v1269 = vpop.f32.mrf.mxu0
        %1270 = vmatprep.mubr.bf16.mxu0 0
        %1271 = vmatmul.mubr.bf16.gmra.mxu0 %v1130
        %v1272 = vpop.f32.mrf.mxu0
        %v1273 = vadd.f32 %v968, %v1272
        %v1274 = vpop.f32.mrf.mxu0
        %v1275 = vpop.f32.mrf.mxu0
        %v1276 = vadd.f32 %v971, %v1275
        %v1277 = vpop.f32.mrf.mxu0
        %1278 = vmatprep.mubr.bf16.mxu0 0
        %1279 = vmatmul.mubr.bf16.gmra.mxu0 %v1131
        %v1280 = vpop.f32.mrf.mxu0
        %v1281 = vadd.f32 %v976, %v1280
        %v1282 = vpop.f32.mrf.mxu0
        %v1283 = vpop.f32.mrf.mxu0
        %v1284 = vadd.f32 %v979, %v1283
        %v1285 = vpop.f32.mrf.mxu0
        %1286 = vmatprep.mubr.bf16.mxu0 0
        %1287 = vmatmul.mubr.bf16.gmra.mxu0 %v1132
        %v1288 = vpop.f32.mrf.mxu0
        %v1289 = vadd.f32 %v984, %v1288
        %v1290 = vpop.f32.mrf.mxu0
        %v1291 = vpop.f32.mrf.mxu0
        %v1292 = vadd.f32 %v987, %v1291
        %v1293 = vpop.f32.mrf.mxu0
        %1294 = vmatprep.mubr.bf16.mxu0 0
        %1295 = vmatmul.mubr.bf16.gmra.mxu0 %v1133
        %v1296 = vpop.f32.mrf.mxu0
        %v1297 = vadd.f32 %v992, %v1296
        %v1298 = vpop.f32.mrf.mxu0
        %v1299 = vpop.f32.mrf.mxu0
        %v1300 = vadd.f32 %v995, %v1299
        %v1301 = vpop.f32.mrf.mxu0
        %1302 = vmatprep.mubr.bf16.mxu0 0
        %1303 = vmatmul.mubr.bf16.gmra.mxu0 %v1134
        %v1304 = vpop.f32.mrf.mxu0
        %v1305 = vadd.f32 %v1000, %v1304
        %v1306 = vpop.f32.mrf.mxu0
        %v1307 = vpop.f32.mrf.mxu0
        %v1308 = vadd.f32 %v1003, %v1307
        %v1309 = vpop.f32.mrf.mxu0
        %1310 = vmatprep.mubr.bf16.mxu0 0
        %1311 = vmatmul.mubr.bf16.gmra.mxu0 %v1135
        %v1312 = vpop.f32.mrf.mxu0
        %v1313 = vadd.f32 %v1008, %v1312
        %v1314 = vpop.f32.mrf.mxu0
        %v1315 = vpop.f32.mrf.mxu0
        %v1316 = vadd.f32 %v1011, %v1315
        %v1317 = vpop.f32.mrf.mxu0
        %1318 = vmatprep.mubr.bf16.mxu0 0
        %1319 = vmatmul.mubr.bf16.gmra.mxu0 %v1136
        %v1320 = vpop.f32.mrf.mxu0
        %v1321 = vadd.f32 %v1016, %v1320
        %v1322 = vpop.f32.mrf.mxu0
        %v1323 = vpop.f32.mrf.mxu0
        %v1324 = vadd.f32 %v1019, %v1323
        %v1325 = vpop.f32.mrf.mxu0
        %1326 = vmatprep.mubr.bf16.mxu0 0
        %1327 = vmatmul.mubr.bf16.gmra.mxu0 %v1137
        %v1328 = vpop.f32.mrf.mxu0
        %v1329 = vadd.f32 %v1024, %v1328
        %v1330 = vpop.f32.mrf.mxu0
        %v1331 = vpop.f32.mrf.mxu0
        %v1332 = vadd.f32 %v1027, %v1331
        %v1333 = vpop.f32.mrf.mxu0
        %1334 = vmatprep.mubr.bf16.mxu0 0
        %1335 = vmatmul.mubr.bf16.gmra.mxu0 %v1138
        %v1336 = vpop.f32.mrf.mxu0
        %v1337 = vadd.f32 %v1032, %v1336
        %v1338 = vpop.f32.mrf.mxu0
        %v1339 = vpop.f32.mrf.mxu0
        %v1340 = vadd.f32 %v1035, %v1339
        %v1341 = vpop.f32.mrf.mxu0
        %1342 = vmatprep.mubr.bf16.mxu0 0
        %1343 = vmatmul.mubr.bf16.gmra.mxu0 %v1139
        %v1344 = vpop.f32.mrf.mxu0
        %v1345 = vadd.f32 %v1040, %v1344
        %v1346 = vpop.f32.mrf.mxu0
        %v1347 = vpop.f32.mrf.mxu0
        %v1348 = vadd.f32 %v1043, %v1347
        %v1349 = vpop.f32.mrf.mxu0
        %1350 = vmatprep.mubr.bf16.mxu0 0
        %1351 = vmatmul.mubr.bf16.gmra.mxu0 %v1140
        %v1352 = vpop.f32.mrf.mxu0
        %v1353 = vadd.f32 %v1048, %v1352
        %v1354 = vpop.f32.mrf.mxu0
        %v1355 = vpop.f32.mrf.mxu0
        %v1356 = vadd.f32 %v1051, %v1355
        %v1357 = vpop.f32.mrf.mxu0
        %1358 = vmatprep.mubr.bf16.mxu0 0
        %1359 = vmatmul.mubr.bf16.gmra.mxu0 %v1141
        %v1360 = vpop.f32.mrf.mxu0
        %v1361 = vadd.f32 %v1056, %v1360
        %v1362 = vpop.f32.mrf.mxu0
        %v1363 = vpop.f32.mrf.mxu0
        %v1364 = vadd.f32 %v1059, %v1363
        %v1365 = vpop.f32.mrf.mxu0
        %1366 = vdwg.mxu0
        %v1367 = vld [vmem:[%s261] sm:$0xe]
        %v1368 = vld [vmem:[%s261 + $0xc] sm:$0xe]
        %v1369 = vld [vmem:[%s261 + $0x18] sm:$0xe]
        %v1370 = vld [vmem:[%s261 + $0x24] sm:$0xe]
        %v1371 = vld [vmem:[%s261 + $0x30] sm:$0xe]
        %v1372 = vld [vmem:[%s261 + $0x3c] sm:$0xe]
        %v1373 = vld [vmem:[%s261 + $0x48] sm:$0xe]
        %v1374 = vld [vmem:[%s261 + $0x54] sm:$0xe]
        %v1375 = vld [vmem:[%s261 + $0x60] sm:$0xe]
        %v1376 = vld [vmem:[%s261 + $0x6c] sm:$0xe]
        %v1377 = vld [vmem:[%s261 + $0x78] sm:$0xe]
        %v1378 = vld [vmem:[%s261 + $0x84] sm:$0xe]
        %v1379 = vld [vmem:[%s261 + $0x90] sm:$0xe]
        %v1380 = vld [vmem:[%s261 + $0x9c] sm:$0xe]
        %v1381 = vld [vmem:[%s261 + $0xa8] sm:$0xe]
        %v1382 = vld [vmem:[%s261 + $0xb4] sm:$0xe]
        %vm1415 = vcmask 1042432
        %vm1416 = vcmask 1046532
        %vm1417 = vmor %vm1415, %vm1416
        %v1418 = vrot.slane %v1367, 5
        %v1419 = vrot.slane %v1418, 4
        %v1420 = vrot.slane %v323, 5
        %v1421 = vsel %vm1417, %v1419, %v1420
        %v1422 = vrot.slane %v1420, 4
        %v1423 = vrot.slane %v370, 5
        %v1424 = vsel %vm1417, %v1422, %v1423
        %v1425 = vrot.slane %v1368, 5
        %v1426 = vrot.slane %v1425, 4
        %v1427 = vrot.slane %v325, 5
        %v1428 = vsel %vm1417, %v1426, %v1427
        %v1429 = vrot.slane %v1427, 4
        %v1430 = vrot.slane %v371, 5
        %v1431 = vsel %vm1417, %v1429, %v1430
        %v1432 = vrot.slane %v1369, 5
        %v1433 = vrot.slane %v1432, 4
        %v1434 = vrot.slane %v327, 5
        %v1435 = vsel %vm1417, %v1433, %v1434
        %v1436 = vrot.slane %v1434, 4
        %v1437 = vrot.slane %v372, 5
        %v1438 = vsel %vm1417, %v1436, %v1437
        %v1439 = vrot.slane %v1370, 5
        %v1440 = vrot.slane %v1439, 4
        %v1441 = vrot.slane %v329, 5
        %v1442 = vsel %vm1417, %v1440, %v1441
        %v1443 = vrot.slane %v1441, 4
        %v1444 = vrot.slane %v373, 5
        %v1445 = vsel %vm1417, %v1443, %v1444
        %v1446 = vrot.slane %v1371, 5
        %v1447 = vrot.slane %v1446, 4
        %v1448 = vrot.slane %v331, 5
        %v1449 = vsel %vm1417, %v1447, %v1448
        %v1450 = vrot.slane %v1448, 4
        %v1451 = vrot.slane %v374, 5
        %v1452 = vsel %vm1417, %v1450, %v1451
        %v1453 = vrot.slane %v1372, 5
        %v1454 = vrot.slane %v1453, 4
        %v1455 = vrot.slane %v333, 5
        %v1456 = vsel %vm1417, %v1454, %v1455
        %v1457 = vrot.slane %v1455, 4
        %v1458 = vrot.slane %v375, 5
        %v1459 = vsel %vm1417, %v1457, %v1458
        %v1460 = vrot.slane %v1373, 5
        %v1461 = vrot.slane %v1460, 4
        %v1462 = vrot.slane %v335, 5
        %v1463 = vsel %vm1417, %v1461, %v1462
        %v1464 = vrot.slane %v1462, 4
        %v1465 = vrot.slane %v376, 5
        %v1466 = vsel %vm1417, %v1464, %v1465
        %v1467 = vrot.slane %v1374, 5
        %v1468 = vrot.slane %v1467, 4
        %v1469 = vrot.slane %v337, 5
        %v1470 = vsel %vm1417, %v1468, %v1469
        %v1471 = vrot.slane %v1469, 4
        %v1472 = vrot.slane %v377, 5
        %v1473 = vsel %vm1417, %v1471, %v1472
        %v1474 = vrot.slane %v1375, 5
        %v1475 = vrot.slane %v1474, 4
        %v1476 = vrot.slane %v339, 5
        %v1477 = vsel %vm1417, %v1475, %v1476
        %v1478 = vrot.slane %v1476, 4
        %v1479 = vrot.slane %v378, 5
        %v1480 = vsel %vm1417, %v1478, %v1479
        %v1481 = vrot.slane %v1376, 5
        %v1482 = vrot.slane %v1481, 4
        %v1483 = vrot.slane %v341, 5
        %v1484 = vsel %vm1417, %v1482, %v1483
        %v1485 = vrot.slane %v1483, 4
        %v1486 = vrot.slane %v379, 5
        %v1487 = vsel %vm1417, %v1485, %v1486
        %v1488 = vrot.slane %v1377, 5
        %v1489 = vrot.slane %v1488, 4
        %v1490 = vrot.slane %v343, 5
        %v1491 = vsel %vm1417, %v1489, %v1490
        %v1492 = vrot.slane %v1490, 4
        %v1493 = vrot.slane %v380, 5
        %v1494 = vsel %vm1417, %v1492, %v1493
        %v1495 = vrot.slane %v1378, 5
        %v1496 = vrot.slane %v1495, 4
        %v1497 = vrot.slane %v345, 5
        %v1498 = vsel %vm1417, %v1496, %v1497
        %v1499 = vrot.slane %v1497, 4
        %v1500 = vrot.slane %v381, 5
        %v1501 = vsel %vm1417, %v1499, %v1500
        %v1502 = vrot.slane %v1379, 5
        %v1503 = vrot.slane %v1502, 4
        %v1504 = vrot.slane %v347, 5
        %v1505 = vsel %vm1417, %v1503, %v1504
        %v1506 = vrot.slane %v1504, 4
        %v1507 = vrot.slane %v382, 5
        %v1508 = vsel %vm1417, %v1506, %v1507
        %v1509 = vrot.slane %v1380, 5
        %v1510 = vrot.slane %v1509, 4
        %v1511 = vrot.slane %v349, 5
        %v1512 = vsel %vm1417, %v1510, %v1511
        %v1513 = vrot.slane %v1511, 4
        %v1514 = vrot.slane %v383, 5
        %v1515 = vsel %vm1417, %v1513, %v1514
        %v1516 = vrot.slane %v1381, 5
        %v1517 = vrot.slane %v1516, 4
        %v1518 = vrot.slane %v351, 5
        %v1519 = vsel %vm1417, %v1517, %v1518
        %v1520 = vrot.slane %v1518, 4
        %v1521 = vrot.slane %v384, 5
        %v1522 = vsel %vm1417, %v1520, %v1521
        %v1523 = vrot.slane %v1382, 5
        %v1524 = vrot.slane %v1523, 4
        %v1525 = vrot.slane %v353, 5
        %v1526 = vsel %vm1417, %v1524, %v1525
        %v1527 = vrot.slane %v1525, 4
        %v1528 = vrot.slane %v385, 5
        %v1529 = vsel %vm1417, %v1527, %v1528
        %v1530 = vld [vmem:[%s1 + $0x80] sm:$0xf]
        %v1531 = vld [vmem:[%s1 + $0x84] sm:$0xf]
        %v1532 = vld [vmem:[%s1 + $0x88] sm:$0xf]
        %v1533 = vld [vmem:[%s1 + $0x8c] sm:$0xf]
        %v1534 = vld [vmem:[%s1 + $0x90] sm:$0xf]
        %v1535 = vld [vmem:[%s1 + $0x94] sm:$0xf]
        %v1536 = vld [vmem:[%s1 + $0x98] sm:$0xf]
        %v1537 = vld [vmem:[%s1 + $0x9c] sm:$0xf]
        %v1538 = vld [vmem:[%s1 + $0xa0] sm:$0xf]
        %v1539 = vld [vmem:[%s1 + $0xa4] sm:$0xf]
        %v1540 = vld [vmem:[%s1 + $0xa8] sm:$0xf]
        %v1541 = vld [vmem:[%s1 + $0xac] sm:$0xf]
        %v1542 = vld [vmem:[%s1 + $0xb0] sm:$0xf]
        %v1543 = vld [vmem:[%s1 + $0xb4] sm:$0xf]
        %v1544 = vld [vmem:[%s1 + $0xb8] sm:$0xf]
        %v1545 = vld [vmem:[%s1 + $0xbc] sm:$0xf]
        %v1546 = vunpack.c.l.b16 %v1421
        %v1547 = vunpack.c.l.b16 %v1424
        %v1548 = vunpack.c.l.b16 %v1428
        %v1549 = vunpack.c.l.b16 %v1431
        %v1550 = vunpack.c.l.b16 %v1435
        %v1551 = vunpack.c.l.b16 %v1438
        %v1552 = vunpack.c.l.b16 %v1442
        %v1553 = vunpack.c.l.b16 %v1445
        %v1554 = vunpack.c.l.b16 %v1449
        %v1555 = vunpack.c.l.b16 %v1452
        %v1556 = vunpack.c.l.b16 %v1456
        %v1557 = vunpack.c.l.b16 %v1459
        %v1558 = vunpack.c.l.b16 %v1463
        %v1559 = vunpack.c.l.b16 %v1466
        %v1560 = vunpack.c.l.b16 %v1470
        %v1561 = vunpack.c.l.b16 %v1473
        %v1562 = vunpack.c.l.b16 %v1477
        %v1563 = vunpack.c.l.b16 %v1480
        %v1564 = vunpack.c.l.b16 %v1484
        %v1565 = vunpack.c.l.b16 %v1487
        %v1566 = vunpack.c.l.b16 %v1491
        %v1567 = vunpack.c.l.b16 %v1494
        %v1568 = vunpack.c.l.b16 %v1498
        %v1569 = vunpack.c.l.b16 %v1501
        %v1570 = vunpack.c.l.b16 %v1505
        %v1571 = vunpack.c.l.b16 %v1508
        %v1572 = vunpack.c.l.b16 %v1512
        %v1573 = vunpack.c.l.b16 %v1515
        %v1574 = vunpack.c.l.b16 %v1519
        %v1575 = vunpack.c.l.b16 %v1522
        %v1576 = vunpack.c.l.b16 %v1526
        %v1577 = vunpack.c.l.b16 %v1529
        %v1578 = vpack.c.b16 %v1547, %v1546
        %v1579 = vpack.c.b16 %v1549, %v1548
        %v1580 = vpack.c.b16 %v1551, %v1550
        %v1581 = vpack.c.b16 %v1553, %v1552
        %v1582 = vpack.c.b16 %v1555, %v1554
        %v1583 = vpack.c.b16 %v1557, %v1556
        %v1584 = vpack.c.b16 %v1559, %v1558
        %v1585 = vpack.c.b16 %v1561, %v1560
        %v1586 = vpack.c.b16 %v1563, %v1562
        %v1587 = vpack.c.b16 %v1565, %v1564
        %v1588 = vpack.c.b16 %v1567, %v1566
        %v1589 = vpack.c.b16 %v1569, %v1568
        %v1590 = vpack.c.b16 %v1571, %v1570
        %v1591 = vpack.c.b16 %v1573, %v1572
        %v1592 = vpack.c.b16 %v1575, %v1574
        %v1593 = vpack.c.b16 %v1577, %v1576
        %v1626 = vunpack.c.l.b16 %v1530
        %v1627 = vunpack.c.l.b16 %v1531
        %v1628 = vunpack.c.l.b16 %v1532
        %v1629 = vunpack.c.l.b16 %v1533
        %v1630 = vunpack.c.l.b16 %v1534
        %v1631 = vunpack.c.l.b16 %v1535
        %v1632 = vunpack.c.l.b16 %v1536
        %v1633 = vunpack.c.l.b16 %v1537
        %v1634 = vunpack.c.l.b16 %v1538
        %v1635 = vunpack.c.l.b16 %v1539
        %v1636 = vunpack.c.l.b16 %v1540
        %v1637 = vunpack.c.l.b16 %v1541
        %v1638 = vunpack.c.l.b16 %v1542
        %v1639 = vunpack.c.l.b16 %v1543
        %v1640 = vunpack.c.l.b16 %v1544
        %v1641 = vunpack.c.l.b16 %v1545
        %v1642 = vpack.c.b16 %v1627, %v1626
        %v1643 = vpack.c.b16 %v1629, %v1628
        %v1644 = vpack.c.b16 %v1631, %v1630
        %v1645 = vpack.c.b16 %v1633, %v1632
        %v1646 = vpack.c.b16 %v1635, %v1634
        %v1647 = vpack.c.b16 %v1637, %v1636
        %v1648 = vpack.c.b16 %v1639, %v1638
        %v1649 = vpack.c.b16 %v1641, %v1640
        %1658 = vmatprep.subr.bf16.mxu0 0
        %1659 = vmatpush1.bf16.msra.mxu0 %v1649
        %1660 = vmatprep.subr.bf16.mxu0 0
        %1661 = vmatpush1.bf16.msra.mxu0 %v1648
        %1662 = vmatprep.subr.bf16.mxu0 0
        %1663 = vmatpush1.bf16.msra.mxu0 %v1647
        %1664 = vmatprep.subr.bf16.mxu0 0
        %1665 = vmatpush1.bf16.msra.mxu0 %v1646
        %1666 = vmatprep.subr.bf16.mxu0 0
        %1667 = vmatpush1.bf16.msra.mxu0 %v1645
        %1668 = vmatprep.subr.bf16.mxu0 0
        %1669 = vmatpush1.bf16.msra.mxu0 %v1644
        %1670 = vmatprep.subr.bf16.mxu0 0
        %1671 = vmatpush1.bf16.msra.mxu0 %v1643
        %1672 = vmatprep.subr.bf16.mxu0 0
        %1673 = vmatpush1.bf16.msra.mxu0 %v1642
        %1674 = vmatprep.subr.bf16.mxu0 0
        %1675 = vmatpush2.bf16.msra.mxu0 0
        %1676 = vmatprep.subr.bf16.mxu0 0
        %1677 = vmatpush2.bf16.msra.mxu0 0
        %1678 = vmatprep.subr.bf16.mxu0 0
        %1679 = vmatpush2.bf16.msra.mxu0 0
        %1680 = vmatprep.subr.bf16.mxu0 0
        %1681 = vmatpush2.bf16.msra.mxu0 0
        %1682 = vmatprep.subr.bf16.mxu0 0
        %1683 = vmatpush2.bf16.msra.mxu0 0
        %1684 = vmatprep.subr.bf16.mxu0 0
        %1685 = vmatpush2.bf16.msra.mxu0 0
        %1686 = vmatprep.subr.bf16.mxu0 0
        %1687 = vmatpush2.bf16.msra.mxu0 0
        %1688 = vmatprep.subr.bf16.mxu0 0
        %1689 = vmatpush2.bf16.msra.mxu0 0
        %1690 = vmatprep.mubr.bf16.mxu0 0
        %1691 = vmatmul.mubr.bf16.gmra.mxu0 %v1578
        %v1692 = vpop.f32.mrf.mxu0
        %v1693 = vadd.f32 0.0, %v1692
        %v1694 = vpop.f32.mrf.mxu0
        %v1695 = vpop.f32.mrf.mxu0
        %v1696 = vadd.f32 0.0, %v1695
        %v1697 = vpop.f32.mrf.mxu0
        %1698 = vmatprep.mubr.bf16.mxu0 0
        %1699 = vmatmul.mubr.bf16.gmra.mxu0 %v1579
        %v1700 = vpop.f32.mrf.mxu0
        %v1701 = vadd.f32 0.0, %v1700
        %v1702 = vpop.f32.mrf.mxu0
        %v1703 = vpop.f32.mrf.mxu0
        %v1704 = vadd.f32 0.0, %v1703
        %v1705 = vpop.f32.mrf.mxu0
        %1706 = vmatprep.mubr.bf16.mxu0 0
        %1707 = vmatmul.mubr.bf16.gmra.mxu0 %v1580
        %v1708 = vpop.f32.mrf.mxu0
        %v1709 = vadd.f32 0.0, %v1708
        %v1710 = vpop.f32.mrf.mxu0
        %v1711 = vpop.f32.mrf.mxu0
        %v1712 = vadd.f32 0.0, %v1711
        %v1713 = vpop.f32.mrf.mxu0
        %1714 = vmatprep.mubr.bf16.mxu0 0
        %1715 = vmatmul.mubr.bf16.gmra.mxu0 %v1581
        %v1716 = vpop.f32.mrf.mxu0
        %v1717 = vadd.f32 0.0, %v1716
        %v1718 = vpop.f32.mrf.mxu0
        %v1719 = vpop.f32.mrf.mxu0
        %v1720 = vadd.f32 0.0, %v1719
        %v1721 = vpop.f32.mrf.mxu0
        %1722 = vmatprep.mubr.bf16.mxu0 0
        %1723 = vmatmul.mubr.bf16.gmra.mxu0 %v1582
        %v1724 = vpop.f32.mrf.mxu0
        %v1725 = vadd.f32 0.0, %v1724
        %v1726 = vpop.f32.mrf.mxu0
        %v1727 = vpop.f32.mrf.mxu0
        %v1728 = vadd.f32 0.0, %v1727
        %v1729 = vpop.f32.mrf.mxu0
        %1730 = vmatprep.mubr.bf16.mxu0 0
        %1731 = vmatmul.mubr.bf16.gmra.mxu0 %v1583
        %v1732 = vpop.f32.mrf.mxu0
        %v1733 = vadd.f32 0.0, %v1732
        %v1734 = vpop.f32.mrf.mxu0
        %v1735 = vpop.f32.mrf.mxu0
        %v1736 = vadd.f32 0.0, %v1735
        %v1737 = vpop.f32.mrf.mxu0
        %1738 = vmatprep.mubr.bf16.mxu0 0
        %1739 = vmatmul.mubr.bf16.gmra.mxu0 %v1584
        %v1740 = vpop.f32.mrf.mxu0
        %v1741 = vadd.f32 0.0, %v1740
        %v1742 = vpop.f32.mrf.mxu0
        %v1743 = vpop.f32.mrf.mxu0
        %v1744 = vadd.f32 0.0, %v1743
        %v1745 = vpop.f32.mrf.mxu0
        %1746 = vmatprep.mubr.bf16.mxu0 0
        %1747 = vmatmul.mubr.bf16.gmra.mxu0 %v1585
        %v1748 = vpop.f32.mrf.mxu0
        %v1749 = vadd.f32 0.0, %v1748
        %v1750 = vpop.f32.mrf.mxu0
        %v1751 = vpop.f32.mrf.mxu0
        %v1752 = vadd.f32 0.0, %v1751
        %v1753 = vpop.f32.mrf.mxu0
        %1754 = vmatprep.mubr.bf16.mxu0 0
        %1755 = vmatmul.mubr.bf16.gmra.mxu0 %v1586
        %v1756 = vpop.f32.mrf.mxu0
        %v1757 = vadd.f32 0.0, %v1756
        %v1758 = vpop.f32.mrf.mxu0
        %v1759 = vpop.f32.mrf.mxu0
        %v1760 = vadd.f32 0.0, %v1759
        %v1761 = vpop.f32.mrf.mxu0
        %1762 = vmatprep.mubr.bf16.mxu0 0
        %1763 = vmatmul.mubr.bf16.gmra.mxu0 %v1587
        %v1764 = vpop.f32.mrf.mxu0
        %v1765 = vadd.f32 0.0, %v1764
        %v1766 = vpop.f32.mrf.mxu0
        %v1767 = vpop.f32.mrf.mxu0
        %v1768 = vadd.f32 0.0, %v1767
        %v1769 = vpop.f32.mrf.mxu0
        %1770 = vmatprep.mubr.bf16.mxu0 0
        %1771 = vmatmul.mubr.bf16.gmra.mxu0 %v1588
        %v1772 = vpop.f32.mrf.mxu0
        %v1773 = vadd.f32 0.0, %v1772
        %v1774 = vpop.f32.mrf.mxu0
        %v1775 = vpop.f32.mrf.mxu0
        %v1776 = vadd.f32 0.0, %v1775
        %v1777 = vpop.f32.mrf.mxu0
        %1778 = vmatprep.mubr.bf16.mxu0 0
        %1779 = vmatmul.mubr.bf16.gmra.mxu0 %v1589
        %v1780 = vpop.f32.mrf.mxu0
        %v1781 = vadd.f32 0.0, %v1780
        %v1782 = vpop.f32.mrf.mxu0
        %v1783 = vpop.f32.mrf.mxu0
        %v1784 = vadd.f32 0.0, %v1783
        %v1785 = vpop.f32.mrf.mxu0
        %1786 = vmatprep.mubr.bf16.mxu0 0
        %1787 = vmatmul.mubr.bf16.gmra.mxu0 %v1590
        %v1788 = vpop.f32.mrf.mxu0
        %v1789 = vadd.f32 0.0, %v1788
        %v1790 = vpop.f32.mrf.mxu0
        %v1791 = vpop.f32.mrf.mxu0
        %v1792 = vadd.f32 0.0, %v1791
        %v1793 = vpop.f32.mrf.mxu0
        %1794 = vmatprep.mubr.bf16.mxu0 0
        %1795 = vmatmul.mubr.bf16.gmra.mxu0 %v1591
        %v1796 = vpop.f32.mrf.mxu0
        %v1797 = vadd.f32 0.0, %v1796
        %v1798 = vpop.f32.mrf.mxu0
        %v1799 = vpop.f32.mrf.mxu0
        %v1800 = vadd.f32 0.0, %v1799
        %v1801 = vpop.f32.mrf.mxu0
        %1802 = vmatprep.mubr.bf16.mxu0 0
        %1803 = vmatmul.mubr.bf16.gmra.mxu0 %v1592
        %v1804 = vpop.f32.mrf.mxu0
        %v1805 = vadd.f32 0.0, %v1804
        %v1806 = vpop.f32.mrf.mxu0
        %v1807 = vpop.f32.mrf.mxu0
        %v1808 = vadd.f32 0.0, %v1807
        %v1809 = vpop.f32.mrf.mxu0
        %1810 = vmatprep.mubr.bf16.mxu0 0
        %1811 = vmatmul.mubr.bf16.gmra.mxu0 %v1593
        %v1812 = vpop.f32.mrf.mxu0
        %v1813 = vadd.f32 0.0, %v1812
        %v1814 = vpop.f32.mrf.mxu0
        %v1815 = vpop.f32.mrf.mxu0
        %v1816 = vadd.f32 0.0, %v1815
        %v1817 = vpop.f32.mrf.mxu0
        %1818 = vdwg.mxu0
        %v1819 = vadd.f32 %v1241, %v1693
        %v1820 = vadd.f32 %v1244, %v1696
        %v1821 = vadd.f32 %v1249, %v1701
        %v1822 = vadd.f32 %v1252, %v1704
        %v1823 = vadd.f32 %v1257, %v1709
        %v1824 = vadd.f32 %v1260, %v1712
        %v1825 = vadd.f32 %v1265, %v1717
        %v1826 = vadd.f32 %v1268, %v1720
        %v1827 = vadd.f32 %v1273, %v1725
        %v1828 = vadd.f32 %v1276, %v1728
        %v1829 = vadd.f32 %v1281, %v1733
        %v1830 = vadd.f32 %v1284, %v1736
        %v1831 = vadd.f32 %v1289, %v1741
        %v1832 = vadd.f32 %v1292, %v1744
        %v1833 = vadd.f32 %v1297, %v1749
        %v1834 = vadd.f32 %v1300, %v1752
        %v1835 = vadd.f32 %v1305, %v1757
        %v1836 = vadd.f32 %v1308, %v1760
        %v1837 = vadd.f32 %v1313, %v1765
        %v1838 = vadd.f32 %v1316, %v1768
        %v1839 = vadd.f32 %v1321, %v1773
        %v1840 = vadd.f32 %v1324, %v1776
        %v1841 = vadd.f32 %v1329, %v1781
        %v1842 = vadd.f32 %v1332, %v1784
        %v1843 = vadd.f32 %v1337, %v1789
        %v1844 = vadd.f32 %v1340, %v1792
        %v1845 = vadd.f32 %v1345, %v1797
        %v1846 = vadd.f32 %v1348, %v1800
        %v1847 = vadd.f32 %v1353, %v1805
        %v1848 = vadd.f32 %v1356, %v1808
        %v1849 = vadd.f32 %v1361, %v1813
        %v1850 = vadd.f32 %v1364, %v1816
        %s1851 = scalar_lea.vmem %s261, 12
        %v1852 = vld [vmem:[%s1851] sm:$0xf]
        %v1853 = vld [vmem:[%s1851 + $0x4] sm:$0xf]
        %v1854 = vld [vmem:[%s1851 + $0xc] sm:$0xf]
        %v1855 = vld [vmem:[%s1851 + $0x10] sm:$0xf]
        %v1856 = vld [vmem:[%s1851 + $0x18] sm:$0xf]
        %v1857 = vld [vmem:[%s1851 + $0x1c] sm:$0xf]
        %v1858 = vld [vmem:[%s1851 + $0x24] sm:$0xf]
        %v1859 = vld [vmem:[%s1851 + $0x28] sm:$0xf]
        %v1860 = vld [vmem:[%s1851 + $0x30] sm:$0xf]
        %v1861 = vld [vmem:[%s1851 + $0x34] sm:$0xf]
        %v1862 = vld [vmem:[%s1851 + $0x3c] sm:$0xf]
        %v1863 = vld [vmem:[%s1851 + $0x40] sm:$0xf]
        %v1864 = vld [vmem:[%s1851 + $0x48] sm:$0xf]
        %v1865 = vld [vmem:[%s1851 + $0x4c] sm:$0xf]
        %v1866 = vld [vmem:[%s1851 + $0x54] sm:$0xf]
        %v1867 = vld [vmem:[%s1851 + $0x58] sm:$0xf]
        %v1868 = vld [vmem:[%s1851 + $0x60] sm:$0xf]
        %v1869 = vld [vmem:[%s1851 + $0x64] sm:$0xf]
        %v1870 = vld [vmem:[%s1851 + $0x6c] sm:$0xf]
        %v1871 = vld [vmem:[%s1851 + $0x70] sm:$0xf]
        %v1872 = vld [vmem:[%s1851 + $0x78] sm:$0xf]
        %v1873 = vld [vmem:[%s1851 + $0x7c] sm:$0xf]
        %v1874 = vld [vmem:[%s1851 + $0x84] sm:$0xf]
        %v1875 = vld [vmem:[%s1851 + $0x88] sm:$0xf]
        %v1876 = vld [vmem:[%s1851 + $0x90] sm:$0xf]
        %v1877 = vld [vmem:[%s1851 + $0x94] sm:$0xf]
        %v1878 = vld [vmem:[%s1851 + $0x9c] sm:$0xf]
        %v1879 = vld [vmem:[%s1851 + $0xa0] sm:$0xf]
        %v1880 = vld [vmem:[%s1851 + $0xa8] sm:$0xf]
        %v1881 = vld [vmem:[%s1851 + $0xac] sm:$0xf]
        %v1882 = vld [vmem:[%s1851 + $0xb4] sm:$0xf]
        %v1883 = vld [vmem:[%s1851 + $0xb8] sm:$0xf]
        %v1884 = vld [vmem:[%s1 + $0xc0] sm:$0xf]
        %v1885 = vld [vmem:[%s1 + $0xc4] sm:$0xf]
        %v1886 = vld [vmem:[%s1 + $0xc8] sm:$0xf]
        %v1887 = vld [vmem:[%s1 + $0xcc] sm:$0xf]
        %v1888 = vld [vmem:[%s1 + $0xd0] sm:$0xf]
        %v1889 = vld [vmem:[%s1 + $0xd4] sm:$0xf]
        %v1890 = vld [vmem:[%s1 + $0xd8] sm:$0xf]
        %v1891 = vld [vmem:[%s1 + $0xdc] sm:$0xf]
        %v1892 = vld [vmem:[%s1 + $0xe0] sm:$0xf]
        %v1893 = vld [vmem:[%s1 + $0xe4] sm:$0xf]
        %v1894 = vld [vmem:[%s1 + $0xe8] sm:$0xf]
        %v1895 = vld [vmem:[%s1 + $0xec] sm:$0xf]
        %v1896 = vld [vmem:[%s1 + $0xf0] sm:$0xf]
        %v1897 = vld [vmem:[%s1 + $0xf4] sm:$0xf]
        %v1898 = vld [vmem:[%s1 + $0xf8] sm:$0xf]
        %v1899 = vld [vmem:[%s1 + $0xfc] sm:$0xf]
        %v1932 = vunpack.c.l.b16 %v1852
        %v1933 = vunpack.c.l.b16 %v1853
        %v1934 = vunpack.c.l.b16 %v1854
        %v1935 = vunpack.c.l.b16 %v1855
        %v1936 = vunpack.c.l.b16 %v1856
        %v1937 = vunpack.c.l.b16 %v1857
        %v1938 = vunpack.c.l.b16 %v1858
        %v1939 = vunpack.c.l.b16 %v1859
        %v1940 = vunpack.c.l.b16 %v1860
        %v1941 = vunpack.c.l.b16 %v1861
        %v1942 = vunpack.c.l.b16 %v1862
        %v1943 = vunpack.c.l.b16 %v1863
        %v1944 = vunpack.c.l.b16 %v1864
        %v1945 = vunpack.c.l.b16 %v1865
        %v1946 = vunpack.c.l.b16 %v1866
        %v1947 = vunpack.c.l.b16 %v1867
        %v1948 = vunpack.c.l.b16 %v1868
        %v1949 = vunpack.c.l.b16 %v1869
        %v1950 = vunpack.c.l.b16 %v1870
        %v1951 = vunpack.c.l.b16 %v1871
        %v1952 = vunpack.c.l.b16 %v1872
        %v1953 = vunpack.c.l.b16 %v1873
        %v1954 = vunpack.c.l.b16 %v1874
        %v1955 = vunpack.c.l.b16 %v1875
        %v1956 = vunpack.c.l.b16 %v1876
        %v1957 = vunpack.c.l.b16 %v1877
        %v1958 = vunpack.c.l.b16 %v1878
        %v1959 = vunpack.c.l.b16 %v1879
        %v1960 = vunpack.c.l.b16 %v1880
        %v1961 = vunpack.c.l.b16 %v1881
        %v1962 = vunpack.c.l.b16 %v1882
        %v1963 = vunpack.c.l.b16 %v1883
        %v1964 = vpack.c.b16 %v1933, %v1932
        %v1965 = vpack.c.b16 %v1935, %v1934
        %v1966 = vpack.c.b16 %v1937, %v1936
        %v1967 = vpack.c.b16 %v1939, %v1938
        %v1968 = vpack.c.b16 %v1941, %v1940
        %v1969 = vpack.c.b16 %v1943, %v1942
        %v1970 = vpack.c.b16 %v1945, %v1944
        %v1971 = vpack.c.b16 %v1947, %v1946
        %v1972 = vpack.c.b16 %v1949, %v1948
        %v1973 = vpack.c.b16 %v1951, %v1950
        %v1974 = vpack.c.b16 %v1953, %v1952
        %v1975 = vpack.c.b16 %v1955, %v1954
        %v1976 = vpack.c.b16 %v1957, %v1956
        %v1977 = vpack.c.b16 %v1959, %v1958
        %v1978 = vpack.c.b16 %v1961, %v1960
        %v1979 = vpack.c.b16 %v1963, %v1962
        %v2012 = vunpack.c.l.b16 %v1884
        %v2013 = vunpack.c.l.b16 %v1885
        %v2014 = vunpack.c.l.b16 %v1886
        %v2015 = vunpack.c.l.b16 %v1887
        %v2016 = vunpack.c.l.b16 %v1888
        %v2017 = vunpack.c.l.b16 %v1889
        %v2018 = vunpack.c.l.b16 %v1890
        %v2019 = vunpack.c.l.b16 %v1891
        %v2020 = vunpack.c.l.b16 %v1892
        %v2021 = vunpack.c.l.b16 %v1893
        %v2022 = vunpack.c.l.b16 %v1894
        %v2023 = vunpack.c.l.b16 %v1895
        %v2024 = vunpack.c.l.b16 %v1896
        %v2025 = vunpack.c.l.b16 %v1897
        %v2026 = vunpack.c.l.b16 %v1898
        %v2027 = vunpack.c.l.b16 %v1899
        %v2028 = vpack.c.b16 %v2013, %v2012
        %v2029 = vpack.c.b16 %v2015, %v2014
        %v2030 = vpack.c.b16 %v2017, %v2016
        %v2031 = vpack.c.b16 %v2019, %v2018
        %v2032 = vpack.c.b16 %v2021, %v2020
        %v2033 = vpack.c.b16 %v2023, %v2022
        %v2034 = vpack.c.b16 %v2025, %v2024
        %v2035 = vpack.c.b16 %v2027, %v2026
        %2044 = vmatprep.subr.bf16.mxu0 0
        %2045 = vmatpush1.bf16.msra.mxu0 %v2035
        %2046 = vmatprep.subr.bf16.mxu0 0
        %2047 = vmatpush1.bf16.msra.mxu0 %v2034
        %2048 = vmatprep.subr.bf16.mxu0 0
        %2049 = vmatpush1.bf16.msra.mxu0 %v2033
        %2050 = vmatprep.subr.bf16.mxu0 0
        %2051 = vmatpush1.bf16.msra.mxu0 %v2032
        %2052 = vmatprep.subr.bf16.mxu0 0
        %2053 = vmatpush1.bf16.msra.mxu0 %v2031
        %2054 = vmatprep.subr.bf16.mxu0 0
        %2055 = vmatpush1.bf16.msra.mxu0 %v2030
        %2056 = vmatprep.subr.bf16.mxu0 0
        %2057 = vmatpush1.bf16.msra.mxu0 %v2029
        %2058 = vmatprep.subr.bf16.mxu0 0
        %2059 = vmatpush1.bf16.msra.mxu0 %v2028
        %2060 = vmatprep.subr.bf16.mxu0 0
        %2061 = vmatpush2.bf16.msra.mxu0 0
        %2062 = vmatprep.subr.bf16.mxu0 0
        %2063 = vmatpush2.bf16.msra.mxu0 0
        %2064 = vmatprep.subr.bf16.mxu0 0
        %2065 = vmatpush2.bf16.msra.mxu0 0
        %2066 = vmatprep.subr.bf16.mxu0 0
        %2067 = vmatpush2.bf16.msra.mxu0 0
        %2068 = vmatprep.subr.bf16.mxu0 0
        %2069 = vmatpush2.bf16.msra.mxu0 0
        %2070 = vmatprep.subr.bf16.mxu0 0
        %2071 = vmatpush2.bf16.msra.mxu0 0
        %2072 = vmatprep.subr.bf16.mxu0 0
        %2073 = vmatpush2.bf16.msra.mxu0 0
        %2074 = vmatprep.subr.bf16.mxu0 0
        %2075 = vmatpush2.bf16.msra.mxu0 0
        %2076 = vmatprep.mubr.bf16.mxu0 0
        %2077 = vmatmul.mubr.bf16.gmra.mxu0 %v1964
        %v2078 = vpop.f32.mrf.mxu0
        %v2079 = vadd.f32 0.0, %v2078
        %v2080 = vpop.f32.mrf.mxu0
        %v2081 = vpop.f32.mrf.mxu0
        %v2082 = vadd.f32 0.0, %v2081
        %v2083 = vpop.f32.mrf.mxu0
        %2084 = vmatprep.mubr.bf16.mxu0 0
        %2085 = vmatmul.mubr.bf16.gmra.mxu0 %v1965
        %v2086 = vpop.f32.mrf.mxu0
        %v2087 = vadd.f32 0.0, %v2086
        %v2088 = vpop.f32.mrf.mxu0
        %v2089 = vpop.f32.mrf.mxu0
        %v2090 = vadd.f32 0.0, %v2089
        %v2091 = vpop.f32.mrf.mxu0
        %2092 = vmatprep.mubr.bf16.mxu0 0
        %2093 = vmatmul.mubr.bf16.gmra.mxu0 %v1966
        %v2094 = vpop.f32.mrf.mxu0
        %v2095 = vadd.f32 0.0, %v2094
        %v2096 = vpop.f32.mrf.mxu0
        %v2097 = vpop.f32.mrf.mxu0
        %v2098 = vadd.f32 0.0, %v2097
        %v2099 = vpop.f32.mrf.mxu0
        %2100 = vmatprep.mubr.bf16.mxu0 0
        %2101 = vmatmul.mubr.bf16.gmra.mxu0 %v1967
        %v2102 = vpop.f32.mrf.mxu0
        %v2103 = vadd.f32 0.0, %v2102
        %v2104 = vpop.f32.mrf.mxu0
        %v2105 = vpop.f32.mrf.mxu0
        %v2106 = vadd.f32 0.0, %v2105
        %v2107 = vpop.f32.mrf.mxu0
        %2108 = vmatprep.mubr.bf16.mxu0 0
        %2109 = vmatmul.mubr.bf16.gmra.mxu0 %v1968
        %v2110 = vpop.f32.mrf.mxu0
        %v2111 = vadd.f32 0.0, %v2110
        %v2112 = vpop.f32.mrf.mxu0
        %v2113 = vpop.f32.mrf.mxu0
        %v2114 = vadd.f32 0.0, %v2113
        %v2115 = vpop.f32.mrf.mxu0
        %2116 = vmatprep.mubr.bf16.mxu0 0
        %2117 = vmatmul.mubr.bf16.gmra.mxu0 %v1969
        %v2118 = vpop.f32.mrf.mxu0
        %v2119 = vadd.f32 0.0, %v2118
        %v2120 = vpop.f32.mrf.mxu0
        %v2121 = vpop.f32.mrf.mxu0
        %v2122 = vadd.f32 0.0, %v2121
        %v2123 = vpop.f32.mrf.mxu0
        %2124 = vmatprep.mubr.bf16.mxu0 0
        %2125 = vmatmul.mubr.bf16.gmra.mxu0 %v1970
        %v2126 = vpop.f32.mrf.mxu0
        %v2127 = vadd.f32 0.0, %v2126
        %v2128 = vpop.f32.mrf.mxu0
        %v2129 = vpop.f32.mrf.mxu0
        %v2130 = vadd.f32 0.0, %v2129
        %v2131 = vpop.f32.mrf.mxu0
        %2132 = vmatprep.mubr.bf16.mxu0 0
        %2133 = vmatmul.mubr.bf16.gmra.mxu0 %v1971
        %v2134 = vpop.f32.mrf.mxu0
        %v2135 = vadd.f32 0.0, %v2134
        %v2136 = vpop.f32.mrf.mxu0
        %v2137 = vpop.f32.mrf.mxu0
        %v2138 = vadd.f32 0.0, %v2137
        %v2139 = vpop.f32.mrf.mxu0
        %2140 = vmatprep.mubr.bf16.mxu0 0
        %2141 = vmatmul.mubr.bf16.gmra.mxu0 %v1972
        %v2142 = vpop.f32.mrf.mxu0
        %v2143 = vadd.f32 0.0, %v2142
        %v2144 = vpop.f32.mrf.mxu0
        %v2145 = vpop.f32.mrf.mxu0
        %v2146 = vadd.f32 0.0, %v2145
        %v2147 = vpop.f32.mrf.mxu0
        %2148 = vmatprep.mubr.bf16.mxu0 0
        %2149 = vmatmul.mubr.bf16.gmra.mxu0 %v1973
        %v2150 = vpop.f32.mrf.mxu0
        %v2151 = vadd.f32 0.0, %v2150
        %v2152 = vpop.f32.mrf.mxu0
        %v2153 = vpop.f32.mrf.mxu0
        %v2154 = vadd.f32 0.0, %v2153
        %v2155 = vpop.f32.mrf.mxu0
        %2156 = vmatprep.mubr.bf16.mxu0 0
        %2157 = vmatmul.mubr.bf16.gmra.mxu0 %v1974
        %v2158 = vpop.f32.mrf.mxu0
        %v2159 = vadd.f32 0.0, %v2158
        %v2160 = vpop.f32.mrf.mxu0
        %v2161 = vpop.f32.mrf.mxu0
        %v2162 = vadd.f32 0.0, %v2161
        %v2163 = vpop.f32.mrf.mxu0
        %2164 = vmatprep.mubr.bf16.mxu0 0
        %2165 = vmatmul.mubr.bf16.gmra.mxu0 %v1975
        %v2166 = vpop.f32.mrf.mxu0
        %v2167 = vadd.f32 0.0, %v2166
        %v2168 = vpop.f32.mrf.mxu0
        %v2169 = vpop.f32.mrf.mxu0
        %v2170 = vadd.f32 0.0, %v2169
        %v2171 = vpop.f32.mrf.mxu0
        %2172 = vmatprep.mubr.bf16.mxu0 0
        %2173 = vmatmul.mubr.bf16.gmra.mxu0 %v1976
        %v2174 = vpop.f32.mrf.mxu0
        %v2175 = vadd.f32 0.0, %v2174
        %v2176 = vpop.f32.mrf.mxu0
        %v2177 = vpop.f32.mrf.mxu0
        %v2178 = vadd.f32 0.0, %v2177
        %v2179 = vpop.f32.mrf.mxu0
        %2180 = vmatprep.mubr.bf16.mxu0 0
        %2181 = vmatmul.mubr.bf16.gmra.mxu0 %v1977
        %v2182 = vpop.f32.mrf.mxu0
        %v2183 = vadd.f32 0.0, %v2182
        %v2184 = vpop.f32.mrf.mxu0
        %v2185 = vpop.f32.mrf.mxu0
        %v2186 = vadd.f32 0.0, %v2185
        %v2187 = vpop.f32.mrf.mxu0
        %2188 = vmatprep.mubr.bf16.mxu0 0
        %2189 = vmatmul.mubr.bf16.gmra.mxu0 %v1978
        %v2190 = vpop.f32.mrf.mxu0
        %v2191 = vadd.f32 0.0, %v2190
        %v2192 = vpop.f32.mrf.mxu0
        %v2193 = vpop.f32.mrf.mxu0
        %v2194 = vadd.f32 0.0, %v2193
        %v2195 = vpop.f32.mrf.mxu0
        %2196 = vmatprep.mubr.bf16.mxu0 0
        %2197 = vmatmul.mubr.bf16.gmra.mxu0 %v1979
        %v2198 = vpop.f32.mrf.mxu0
        %v2199 = vadd.f32 0.0, %v2198
        %v2200 = vpop.f32.mrf.mxu0
        %v2201 = vpop.f32.mrf.mxu0
        %v2202 = vadd.f32 0.0, %v2201
        %v2203 = vpop.f32.mrf.mxu0
        %2204 = vdwg.mxu0
        %v2205 = vadd.f32 %v1819, %v2079
        %v2206 = vadd.f32 %v1820, %v2082
        %v2207 = vadd.f32 %v1821, %v2087
        %v2208 = vadd.f32 %v1822, %v2090
        %v2209 = vadd.f32 %v1823, %v2095
        %v2210 = vadd.f32 %v1824, %v2098
        %v2211 = vadd.f32 %v1825, %v2103
        %v2212 = vadd.f32 %v1826, %v2106
        %v2213 = vadd.f32 %v1827, %v2111
        %v2214 = vadd.f32 %v1828, %v2114
        %v2215 = vadd.f32 %v1829, %v2119
        %v2216 = vadd.f32 %v1830, %v2122
        %v2217 = vadd.f32 %v1831, %v2127
        %v2218 = vadd.f32 %v1832, %v2130
        %v2219 = vadd.f32 %v1833, %v2135
        %v2220 = vadd.f32 %v1834, %v2138
        %v2221 = vadd.f32 %v1835, %v2143
        %v2222 = vadd.f32 %v1836, %v2146
        %v2223 = vadd.f32 %v1837, %v2151
        %v2224 = vadd.f32 %v1838, %v2154
        %v2225 = vadd.f32 %v1839, %v2159
        %v2226 = vadd.f32 %v1840, %v2162
        %v2227 = vadd.f32 %v1841, %v2167
        %v2228 = vadd.f32 %v1842, %v2170
        %v2229 = vadd.f32 %v1843, %v2175
        %v2230 = vadd.f32 %v1844, %v2178
        %v2231 = vadd.f32 %v1845, %v2183
        %v2232 = vadd.f32 %v1846, %v2186
        %v2233 = vadd.f32 %v1847, %v2191
        %v2234 = vadd.f32 %v1848, %v2194
        %v2235 = vadd.f32 %v1849, %v2199
        %v2236 = vadd.f32 %v1850, %v2202
        %v2237 = vld [vmem:[%s1851] sm:$0xf]
        %v2238 = vld [vmem:[%s1851 + $0x4] sm:$0xf]
        %v2239 = vld [vmem:[%s1851 + $0x8] sm:$0x1]
        %v2240 = vld [vmem:[%s1851 + $0xc] sm:$0xf]
        %v2241 = vld [vmem:[%s1851 + $0x10] sm:$0xf]
        %v2242 = vld [vmem:[%s1851 + $0x14] sm:$0x1]
        %v2243 = vld [vmem:[%s1851 + $0x18] sm:$0xf]
        %v2244 = vld [vmem:[%s1851 + $0x1c] sm:$0xf]
        %v2245 = vld [vmem:[%s1851 + $0x20] sm:$0x1]
        %v2246 = vld [vmem:[%s1851 + $0x24] sm:$0xf]
        %v2247 = vld [vmem:[%s1851 + $0x28] sm:$0xf]
        %v2248 = vld [vmem:[%s1851 + $0x2c] sm:$0x1]
        %v2249 = vld [vmem:[%s1851 + $0x30] sm:$0xf]
        %v2250 = vld [vmem:[%s1851 + $0x34] sm:$0xf]
        %v2251 = vld [vmem:[%s1851 + $0x38] sm:$0x1]
        %v2252 = vld [vmem:[%s1851 + $0x3c] sm:$0xf]
        %v2253 = vld [vmem:[%s1851 + $0x40] sm:$0xf]
        %v2254 = vld [vmem:[%s1851 + $0x44] sm:$0x1]
        %v2255 = vld [vmem:[%s1851 + $0x48] sm:$0xf]
        %v2256 = vld [vmem:[%s1851 + $0x4c] sm:$0xf]
        %v2257 = vld [vmem:[%s1851 + $0x50] sm:$0x1]
        %v2258 = vld [vmem:[%s1851 + $0x54] sm:$0xf]
        %v2259 = vld [vmem:[%s1851 + $0x58] sm:$0xf]
        %v2260 = vld [vmem:[%s1851 + $0x5c] sm:$0x1]
        %v2261 = vld [vmem:[%s1851 + $0x60] sm:$0xf]
        %v2262 = vld [vmem:[%s1851 + $0x64] sm:$0xf]
        %v2263 = vld [vmem:[%s1851 + $0x68] sm:$0x1]
        %v2264 = vld [vmem:[%s1851 + $0x6c] sm:$0xf]
        %v2265 = vld [vmem:[%s1851 + $0x70] sm:$0xf]
        %v2266 = vld [vmem:[%s1851 + $0x74] sm:$0x1]
        %v2267 = vld [vmem:[%s1851 + $0x78] sm:$0xf]
        %v2268 = vld [vmem:[%s1851 + $0x7c] sm:$0xf]
        %v2269 = vld [vmem:[%s1851 + $0x80] sm:$0x1]
        %v2270 = vld [vmem:[%s1851 + $0x84] sm:$0xf]
        %v2271 = vld [vmem:[%s1851 + $0x88] sm:$0xf]
        %v2272 = vld [vmem:[%s1851 + $0x8c] sm:$0x1]
        %v2273 = vld [vmem:[%s1851 + $0x90] sm:$0xf]
        %v2274 = vld [vmem:[%s1851 + $0x94] sm:$0xf]
        %v2275 = vld [vmem:[%s1851 + $0x98] sm:$0x1]
        %v2276 = vld [vmem:[%s1851 + $0x9c] sm:$0xf]
        %v2277 = vld [vmem:[%s1851 + $0xa0] sm:$0xf]
        %v2278 = vld [vmem:[%s1851 + $0xa4] sm:$0x1]
        %v2279 = vld [vmem:[%s1851 + $0xa8] sm:$0xf]
        %v2280 = vld [vmem:[%s1851 + $0xac] sm:$0xf]
        %v2281 = vld [vmem:[%s1851 + $0xb0] sm:$0x1]
        %v2282 = vld [vmem:[%s1851 + $0xb4] sm:$0xf]
        %v2283 = vld [vmem:[%s1851 + $0xb8] sm:$0xf]
        %v2284 = vld [vmem:[%s1851 + $0xbc] sm:$0x1]
        %v2286 = vshrl.u32 %v2237, 16
        %v2288 = vrot.slane %v2286, 4
        %v2289 = vshll.u32 %v2237, 16
        %v2291 = vrot.slane %v2289, 5
        %v2292 = vor.u32 %v2288, %v2291
        %v2293 = vrot.slane %v2292, 4
        %v2295 = vshll.u32 %v2238, 16
        %v2297 = vrot.slane %v2295, 5
        %v2298 = vsel %vm388, %v2293, %v2297
        %v2299 = vshrl.u32 %v2238, 16
        %v2301 = vrot.slane %v2299, 4
        %v2302 = vor.u32 %v2301, %v2297
        %v2303 = vrot.slane %v2302, 4
        %v2305 = vshll.u32 %v2239, 16
        %v2307 = vrot.slane %v2305, 5
        %v2308 = vsel %vm388, %v2303, %v2307
        %v2310 = vshrl.u32 %v2240, 16
        %v2312 = vrot.slane %v2310, 4
        %v2313 = vshll.u32 %v2240, 16
        %v2315 = vrot.slane %v2313, 5
        %v2316 = vor.u32 %v2312, %v2315
        %v2317 = vrot.slane %v2316, 4
        %v2319 = vshll.u32 %v2241, 16
        %v2321 = vrot.slane %v2319, 5
        %v2322 = vsel %vm388, %v2317, %v2321
        %v2323 = vshrl.u32 %v2241, 16
        %v2325 = vrot.slane %v2323, 4
        %v2326 = vor.u32 %v2325, %v2321
        %v2327 = vrot.slane %v2326, 4
        %v2329 = vshll.u32 %v2242, 16
        %v2331 = vrot.slane %v2329, 5
        %v2332 = vsel %vm388, %v2327, %v2331
        %v2334 = vshrl.u32 %v2243, 16
        %v2336 = vrot.slane %v2334, 4
        %v2337 = vshll.u32 %v2243, 16
        %v2339 = vrot.slane %v2337, 5
        %v2340 = vor.u32 %v2336, %v2339
        %v2341 = vrot.slane %v2340, 4
        %v2343 = vshll.u32 %v2244, 16
        %v2345 = vrot.slane %v2343, 5
        %v2346 = vsel %vm388, %v2341, %v2345
        %v2347 = vshrl.u32 %v2244, 16
        %v2349 = vrot.slane %v2347, 4
        %v2350 = vor.u32 %v2349, %v2345
        %v2351 = vrot.slane %v2350, 4
        %v2353 = vshll.u32 %v2245, 16
        %v2355 = vrot.slane %v2353, 5
        %v2356 = vsel %vm388, %v2351, %v2355
        %v2358 = vshrl.u32 %v2246, 16
        %v2360 = vrot.slane %v2358, 4
        %v2361 = vshll.u32 %v2246, 16
        %v2363 = vrot.slane %v2361, 5
        %v2364 = vor.u32 %v2360, %v2363
        %v2365 = vrot.slane %v2364, 4
        %v2367 = vshll.u32 %v2247, 16
        %v2369 = vrot.slane %v2367, 5
        %v2370 = vsel %vm388, %v2365, %v2369
        %v2371 = vshrl.u32 %v2247, 16
        %v2373 = vrot.slane %v2371, 4
        %v2374 = vor.u32 %v2373, %v2369
        %v2375 = vrot.slane %v2374, 4
        %v2377 = vshll.u32 %v2248, 16
        %v2379 = vrot.slane %v2377, 5
        %v2380 = vsel %vm388, %v2375, %v2379
        %v2382 = vshrl.u32 %v2249, 16
        %v2384 = vrot.slane %v2382, 4
        %v2385 = vshll.u32 %v2249, 16
        %v2387 = vrot.slane %v2385, 5
        %v2388 = vor.u32 %v2384, %v2387
        %v2389 = vrot.slane %v2388, 4
        %v2391 = vshll.u32 %v2250, 16
        %v2393 = vrot.slane %v2391, 5
        %v2394 = vsel %vm388, %v2389, %v2393
        %v2395 = vshrl.u32 %v2250, 16
        %v2397 = vrot.slane %v2395, 4
        %v2398 = vor.u32 %v2397, %v2393
        %v2399 = vrot.slane %v2398, 4
        %v2401 = vshll.u32 %v2251, 16
        %v2403 = vrot.slane %v2401, 5
        %v2404 = vsel %vm388, %v2399, %v2403
        %v2406 = vshrl.u32 %v2252, 16
        %v2408 = vrot.slane %v2406, 4
        %v2409 = vshll.u32 %v2252, 16
        %v2411 = vrot.slane %v2409, 5
        %v2412 = vor.u32 %v2408, %v2411
        %v2413 = vrot.slane %v2412, 4
        %v2415 = vshll.u32 %v2253, 16
        %v2417 = vrot.slane %v2415, 5
        %v2418 = vsel %vm388, %v2413, %v2417
        %v2419 = vshrl.u32 %v2253, 16
        %v2421 = vrot.slane %v2419, 4
        %v2422 = vor.u32 %v2421, %v2417
        %v2423 = vrot.slane %v2422, 4
        %v2425 = vshll.u32 %v2254, 16
        %v2427 = vrot.slane %v2425, 5
        %v2428 = vsel %vm388, %v2423, %v2427
        %v2430 = vshrl.u32 %v2255, 16
        %v2432 = vrot.slane %v2430, 4
        %v2433 = vshll.u32 %v2255, 16
        %v2435 = vrot.slane %v2433, 5
        %v2436 = vor.u32 %v2432, %v2435
        %v2437 = vrot.slane %v2436, 4
        %v2439 = vshll.u32 %v2256, 16
        %v2441 = vrot.slane %v2439, 5
        %v2442 = vsel %vm388, %v2437, %v2441
        %v2443 = vshrl.u32 %v2256, 16
        %v2445 = vrot.slane %v2443, 4
        %v2446 = vor.u32 %v2445, %v2441
        %v2447 = vrot.slane %v2446, 4
        %v2449 = vshll.u32 %v2257, 16
        %v2451 = vrot.slane %v2449, 5
        %v2452 = vsel %vm388, %v2447, %v2451
        %v2454 = vshrl.u32 %v2258, 16
        %v2456 = vrot.slane %v2454, 4
        %v2457 = vshll.u32 %v2258, 16
        %v2459 = vrot.slane %v2457, 5
        %v2460 = vor.u32 %v2456, %v2459
        %v2461 = vrot.slane %v2460, 4
        %v2463 = vshll.u32 %v2259, 16
        %v2465 = vrot.slane %v2463, 5
        %v2466 = vsel %vm388, %v2461, %v2465
        %v2467 = vshrl.u32 %v2259, 16
        %v2469 = vrot.slane %v2467, 4
        %v2470 = vor.u32 %v2469, %v2465
        %v2471 = vrot.slane %v2470, 4
        %v2473 = vshll.u32 %v2260, 16
        %v2475 = vrot.slane %v2473, 5
        %v2476 = vsel %vm388, %v2471, %v2475
        %v2478 = vshrl.u32 %v2261, 16
        %v2480 = vrot.slane %v2478, 4
        %v2481 = vshll.u32 %v2261, 16
        %v2483 = vrot.slane %v2481, 5
        %v2484 = vor.u32 %v2480, %v2483
        %v2485 = vrot.slane %v2484, 4
        %v2487 = vshll.u32 %v2262, 16
        %v2489 = vrot.slane %v2487, 5
        %v2490 = vsel %vm388, %v2485, %v2489
        %v2491 = vshrl.u32 %v2262, 16
        %v2493 = vrot.slane %v2491, 4
        %v2494 = vor.u32 %v2493, %v2489
        %v2495 = vrot.slane %v2494, 4
        %v2497 = vshll.u32 %v2263, 16
        %v2499 = vrot.slane %v2497, 5
        %v2500 = vsel %vm388, %v2495, %v2499
        %v2502 = vshrl.u32 %v2264, 16
        %v2504 = vrot.slane %v2502, 4
        %v2505 = vshll.u32 %v2264, 16
        %v2507 = vrot.slane %v2505, 5
        %v2508 = vor.u32 %v2504, %v2507
        %v2509 = vrot.slane %v2508, 4
        %v2511 = vshll.u32 %v2265, 16
        %v2513 = vrot.slane %v2511, 5
        %v2514 = vsel %vm388, %v2509, %v2513
        %v2515 = vshrl.u32 %v2265, 16
        %v2517 = vrot.slane %v2515, 4
        %v2518 = vor.u32 %v2517, %v2513
        %v2519 = vrot.slane %v2518, 4
        %v2521 = vshll.u32 %v2266, 16
        %v2523 = vrot.slane %v2521, 5
        %v2524 = vsel %vm388, %v2519, %v2523
        %v2526 = vshrl.u32 %v2267, 16
        %v2528 = vrot.slane %v2526, 4
        %v2529 = vshll.u32 %v2267, 16
        %v2531 = vrot.slane %v2529, 5
        %v2532 = vor.u32 %v2528, %v2531
        %v2533 = vrot.slane %v2532, 4
        %v2535 = vshll.u32 %v2268, 16
        %v2537 = vrot.slane %v2535, 5
        %v2538 = vsel %vm388, %v2533, %v2537
        %v2539 = vshrl.u32 %v2268, 16
        %v2541 = vrot.slane %v2539, 4
        %v2542 = vor.u32 %v2541, %v2537
        %v2543 = vrot.slane %v2542, 4
        %v2545 = vshll.u32 %v2269, 16
        %v2547 = vrot.slane %v2545, 5
        %v2548 = vsel %vm388, %v2543, %v2547
        %v2550 = vshrl.u32 %v2270, 16
        %v2552 = vrot.slane %v2550, 4
        %v2553 = vshll.u32 %v2270, 16
        %v2555 = vrot.slane %v2553, 5
        %v2556 = vor.u32 %v2552, %v2555
        %v2557 = vrot.slane %v2556, 4
        %v2559 = vshll.u32 %v2271, 16
        %v2561 = vrot.slane %v2559, 5
        %v2562 = vsel %vm388, %v2557, %v2561
        %v2563 = vshrl.u32 %v2271, 16
        %v2565 = vrot.slane %v2563, 4
        %v2566 = vor.u32 %v2565, %v2561
        %v2567 = vrot.slane %v2566, 4
        %v2569 = vshll.u32 %v2272, 16
        %v2571 = vrot.slane %v2569, 5
        %v2572 = vsel %vm388, %v2567, %v2571
        %v2574 = vshrl.u32 %v2273, 16
        %v2576 = vrot.slane %v2574, 4
        %v2577 = vshll.u32 %v2273, 16
        %v2579 = vrot.slane %v2577, 5
        %v2580 = vor.u32 %v2576, %v2579
        %v2581 = vrot.slane %v2580, 4
        %v2583 = vshll.u32 %v2274, 16
        %v2585 = vrot.slane %v2583, 5
        %v2586 = vsel %vm388, %v2581, %v2585
        %v2587 = vshrl.u32 %v2274, 16
        %v2589 = vrot.slane %v2587, 4
        %v2590 = vor.u32 %v2589, %v2585
        %v2591 = vrot.slane %v2590, 4
        %v2593 = vshll.u32 %v2275, 16
        %v2595 = vrot.slane %v2593, 5
        %v2596 = vsel %vm388, %v2591, %v2595
        %v2598 = vshrl.u32 %v2276, 16
        %v2600 = vrot.slane %v2598, 4
        %v2601 = vshll.u32 %v2276, 16
        %v2603 = vrot.slane %v2601, 5
        %v2604 = vor.u32 %v2600, %v2603
        %v2605 = vrot.slane %v2604, 4
        %v2607 = vshll.u32 %v2277, 16
        %v2609 = vrot.slane %v2607, 5
        %v2610 = vsel %vm388, %v2605, %v2609
        %v2611 = vshrl.u32 %v2277, 16
        %v2613 = vrot.slane %v2611, 4
        %v2614 = vor.u32 %v2613, %v2609
        %v2615 = vrot.slane %v2614, 4
        %v2617 = vshll.u32 %v2278, 16
        %v2619 = vrot.slane %v2617, 5
        %v2620 = vsel %vm388, %v2615, %v2619
        %v2622 = vshrl.u32 %v2279, 16
        %v2624 = vrot.slane %v2622, 4
        %v2625 = vshll.u32 %v2279, 16
        %v2627 = vrot.slane %v2625, 5
        %v2628 = vor.u32 %v2624, %v2627
        %v2629 = vrot.slane %v2628, 4
        %v2631 = vshll.u32 %v2280, 16
        %v2633 = vrot.slane %v2631, 5
        %v2634 = vsel %vm388, %v2629, %v2633
        %v2635 = vshrl.u32 %v2280, 16
        %v2637 = vrot.slane %v2635, 4
        %v2638 = vor.u32 %v2637, %v2633
        %v2639 = vrot.slane %v2638, 4
        %v2641 = vshll.u32 %v2281, 16
        %v2643 = vrot.slane %v2641, 5
        %v2644 = vsel %vm388, %v2639, %v2643
        %v2646 = vshrl.u32 %v2282, 16
        %v2648 = vrot.slane %v2646, 4
        %v2649 = vshll.u32 %v2282, 16
        %v2651 = vrot.slane %v2649, 5
        %v2652 = vor.u32 %v2648, %v2651
        %v2653 = vrot.slane %v2652, 4
        %v2655 = vshll.u32 %v2283, 16
        %v2657 = vrot.slane %v2655, 5
        %v2658 = vsel %vm388, %v2653, %v2657
        %v2659 = vshrl.u32 %v2283, 16
        %v2661 = vrot.slane %v2659, 4
        %v2662 = vor.u32 %v2661, %v2657
        %v2663 = vrot.slane %v2662, 4
        %v2665 = vshll.u32 %v2284, 16
        %v2667 = vrot.slane %v2665, 5
        %v2668 = vsel %vm388, %v2663, %v2667
        %v2669 = vld [vmem:[%s1 + $0x100] sm:$0xf]
        %v2670 = vld [vmem:[%s1 + $0x104] sm:$0xf]
        %v2671 = vld [vmem:[%s1 + $0x108] sm:$0xf]
        %v2672 = vld [vmem:[%s1 + $0x10c] sm:$0xf]
        %v2673 = vld [vmem:[%s1 + $0x110] sm:$0xf]
        %v2674 = vld [vmem:[%s1 + $0x114] sm:$0xf]
        %v2675 = vld [vmem:[%s1 + $0x118] sm:$0xf]
        %v2676 = vld [vmem:[%s1 + $0x11c] sm:$0xf]
        %v2677 = vld [vmem:[%s1 + $0x120] sm:$0xf]
        %v2678 = vld [vmem:[%s1 + $0x124] sm:$0xf]
        %v2679 = vld [vmem:[%s1 + $0x128] sm:$0xf]
        %v2680 = vld [vmem:[%s1 + $0x12c] sm:$0xf]
        %v2681 = vld [vmem:[%s1 + $0x130] sm:$0xf]
        %v2682 = vld [vmem:[%s1 + $0x134] sm:$0xf]
        %v2683 = vld [vmem:[%s1 + $0x138] sm:$0xf]
        %v2684 = vld [vmem:[%s1 + $0x13c] sm:$0xf]
        %v2685 = vunpack.c.l.b16 %v2298
        %v2686 = vunpack.c.l.b16 %v2308
        %v2687 = vunpack.c.l.b16 %v2322
        %v2688 = vunpack.c.l.b16 %v2332
        %v2689 = vunpack.c.l.b16 %v2346
        %v2690 = vunpack.c.l.b16 %v2356
        %v2691 = vunpack.c.l.b16 %v2370
        %v2692 = vunpack.c.l.b16 %v2380
        %v2693 = vunpack.c.l.b16 %v2394
        %v2694 = vunpack.c.l.b16 %v2404
        %v2695 = vunpack.c.l.b16 %v2418
        %v2696 = vunpack.c.l.b16 %v2428
        %v2697 = vunpack.c.l.b16 %v2442
        %v2698 = vunpack.c.l.b16 %v2452
        %v2699 = vunpack.c.l.b16 %v2466
        %v2700 = vunpack.c.l.b16 %v2476
        %v2701 = vunpack.c.l.b16 %v2490
        %v2702 = vunpack.c.l.b16 %v2500
        %v2703 = vunpack.c.l.b16 %v2514
        %v2704 = vunpack.c.l.b16 %v2524
        %v2705 = vunpack.c.l.b16 %v2538
        %v2706 = vunpack.c.l.b16 %v2548
        %v2707 = vunpack.c.l.b16 %v2562
        %v2708 = vunpack.c.l.b16 %v2572
        %v2709 = vunpack.c.l.b16 %v2586
        %v2710 = vunpack.c.l.b16 %v2596
        %v2711 = vunpack.c.l.b16 %v2610
        %v2712 = vunpack.c.l.b16 %v2620
        %v2713 = vunpack.c.l.b16 %v2634
        %v2714 = vunpack.c.l.b16 %v2644
        %v2715 = vunpack.c.l.b16 %v2658
        %v2716 = vunpack.c.l.b16 %v2668
        %v2717 = vpack.c.b16 %v2686, %v2685
        %v2718 = vpack.c.b16 %v2688, %v2687
        %v2719 = vpack.c.b16 %v2690, %v2689
        %v2720 = vpack.c.b16 %v2692, %v2691
        %v2721 = vpack.c.b16 %v2694, %v2693
        %v2722 = vpack.c.b16 %v2696, %v2695
        %v2723 = vpack.c.b16 %v2698, %v2697
        %v2724 = vpack.c.b16 %v2700, %v2699
        %v2725 = vpack.c.b16 %v2702, %v2701
        %v2726 = vpack.c.b16 %v2704, %v2703
        %v2727 = vpack.c.b16 %v2706, %v2705
        %v2728 = vpack.c.b16 %v2708, %v2707
        %v2729 = vpack.c.b16 %v2710, %v2709
        %v2730 = vpack.c.b16 %v2712, %v2711
        %v2731 = vpack.c.b16 %v2714, %v2713
        %v2732 = vpack.c.b16 %v2716, %v2715
        %v2765 = vunpack.c.l.b16 %v2669
        %v2766 = vunpack.c.l.b16 %v2670
        %v2767 = vunpack.c.l.b16 %v2671
        %v2768 = vunpack.c.l.b16 %v2672
        %v2769 = vunpack.c.l.b16 %v2673
        %v2770 = vunpack.c.l.b16 %v2674
        %v2771 = vunpack.c.l.b16 %v2675
        %v2772 = vunpack.c.l.b16 %v2676
        %v2773 = vunpack.c.l.b16 %v2677
        %v2774 = vunpack.c.l.b16 %v2678
        %v2775 = vunpack.c.l.b16 %v2679
        %v2776 = vunpack.c.l.b16 %v2680
        %v2777 = vunpack.c.l.b16 %v2681
        %v2778 = vunpack.c.l.b16 %v2682
        %v2779 = vunpack.c.l.b16 %v2683
        %v2780 = vunpack.c.l.b16 %v2684
        %v2781 = vpack.c.b16 %v2766, %v2765
        %v2782 = vpack.c.b16 %v2768, %v2767
        %v2783 = vpack.c.b16 %v2770, %v2769
        %v2784 = vpack.c.b16 %v2772, %v2771
        %v2785 = vpack.c.b16 %v2774, %v2773
        %v2786 = vpack.c.b16 %v2776, %v2775
        %v2787 = vpack.c.b16 %v2778, %v2777
        %v2788 = vpack.c.b16 %v2780, %v2779
        %2797 = vmatprep.subr.bf16.mxu0 0
        %2798 = vmatpush1.bf16.msra.mxu0 %v2788
        %2799 = vmatprep.subr.bf16.mxu0 0
        %2800 = vmatpush1.bf16.msra.mxu0 %v2787
        %2801 = vmatprep.subr.bf16.mxu0 0
        %2802 = vmatpush1.bf16.msra.mxu0 %v2786
        %2803 = vmatprep.subr.bf16.mxu0 0
        %2804 = vmatpush1.bf16.msra.mxu0 %v2785
        %2805 = vmatprep.subr.bf16.mxu0 0
        %2806 = vmatpush1.bf16.msra.mxu0 %v2784
        %2807 = vmatprep.subr.bf16.mxu0 0
        %2808 = vmatpush1.bf16.msra.mxu0 %v2783
        %2809 = vmatprep.subr.bf16.mxu0 0
        %2810 = vmatpush1.bf16.msra.mxu0 %v2782
        %2811 = vmatprep.subr.bf16.mxu0 0
        %2812 = vmatpush1.bf16.msra.mxu0 %v2781
        %2813 = vmatprep.subr.bf16.mxu0 0
        %2814 = vmatpush2.bf16.msra.mxu0 0
        %2815 = vmatprep.subr.bf16.mxu0 0
        %2816 = vmatpush2.bf16.msra.mxu0 0
        %2817 = vmatprep.subr.bf16.mxu0 0
        %2818 = vmatpush2.bf16.msra.mxu0 0
        %2819 = vmatprep.subr.bf16.mxu0 0
        %2820 = vmatpush2.bf16.msra.mxu0 0
        %2821 = vmatprep.subr.bf16.mxu0 0
        %2822 = vmatpush2.bf16.msra.mxu0 0
        %2823 = vmatprep.subr.bf16.mxu0 0
        %2824 = vmatpush2.bf16.msra.mxu0 0
        %2825 = vmatprep.subr.bf16.mxu0 0
        %2826 = vmatpush2.bf16.msra.mxu0 0
        %2827 = vmatprep.subr.bf16.mxu0 0
        %2828 = vmatpush2.bf16.msra.mxu0 0
        %2829 = vmatprep.mubr.bf16.mxu0 0
        %2830 = vmatmul.mubr.bf16.gmra.mxu0 %v2717
        %v2831 = vpop.f32.mrf.mxu0
        %v2832 = vadd.f32 0.0, %v2831
        %v2833 = vpop.f32.mrf.mxu0
        %v2834 = vpop.f32.mrf.mxu0
        %v2835 = vadd.f32 0.0, %v2834
        %v2836 = vpop.f32.mrf.mxu0
        %2837 = vmatprep.mubr.bf16.mxu0 0
        %2838 = vmatmul.mubr.bf16.gmra.mxu0 %v2718
        %v2839 = vpop.f32.mrf.mxu0
        %v2840 = vadd.f32 0.0, %v2839
        %v2841 = vpop.f32.mrf.mxu0
        %v2842 = vpop.f32.mrf.mxu0
        %v2843 = vadd.f32 0.0, %v2842
        %v2844 = vpop.f32.mrf.mxu0
        %2845 = vmatprep.mubr.bf16.mxu0 0
        %2846 = vmatmul.mubr.bf16.gmra.mxu0 %v2719
        %v2847 = vpop.f32.mrf.mxu0
        %v2848 = vadd.f32 0.0, %v2847
        %v2849 = vpop.f32.mrf.mxu0
        %v2850 = vpop.f32.mrf.mxu0
        %v2851 = vadd.f32 0.0, %v2850
        %v2852 = vpop.f32.mrf.mxu0
        %2853 = vmatprep.mubr.bf16.mxu0 0
        %2854 = vmatmul.mubr.bf16.gmra.mxu0 %v2720
        %v2855 = vpop.f32.mrf.mxu0
        %v2856 = vadd.f32 0.0, %v2855
        %v2857 = vpop.f32.mrf.mxu0
        %v2858 = vpop.f32.mrf.mxu0
        %v2859 = vadd.f32 0.0, %v2858
        %v2860 = vpop.f32.mrf.mxu0
        %2861 = vmatprep.mubr.bf16.mxu0 0
        %2862 = vmatmul.mubr.bf16.gmra.mxu0 %v2721
        %v2863 = vpop.f32.mrf.mxu0
        %v2864 = vadd.f32 0.0, %v2863
        %v2865 = vpop.f32.mrf.mxu0
        %v2866 = vpop.f32.mrf.mxu0
        %v2867 = vadd.f32 0.0, %v2866
        %v2868 = vpop.f32.mrf.mxu0
        %2869 = vmatprep.mubr.bf16.mxu0 0
        %2870 = vmatmul.mubr.bf16.gmra.mxu0 %v2722
        %v2871 = vpop.f32.mrf.mxu0
        %v2872 = vadd.f32 0.0, %v2871
        %v2873 = vpop.f32.mrf.mxu0
        %v2874 = vpop.f32.mrf.mxu0
        %v2875 = vadd.f32 0.0, %v2874
        %v2876 = vpop.f32.mrf.mxu0
        %2877 = vmatprep.mubr.bf16.mxu0 0
        %2878 = vmatmul.mubr.bf16.gmra.mxu0 %v2723
        %v2879 = vpop.f32.mrf.mxu0
        %v2880 = vadd.f32 0.0, %v2879
        %v2881 = vpop.f32.mrf.mxu0
        %v2882 = vpop.f32.mrf.mxu0
        %v2883 = vadd.f32 0.0, %v2882
        %v2884 = vpop.f32.mrf.mxu0
        %2885 = vmatprep.mubr.bf16.mxu0 0
        %2886 = vmatmul.mubr.bf16.gmra.mxu0 %v2724
        %v2887 = vpop.f32.mrf.mxu0
        %v2888 = vadd.f32 0.0, %v2887
        %v2889 = vpop.f32.mrf.mxu0
        %v2890 = vpop.f32.mrf.mxu0
        %v2891 = vadd.f32 0.0, %v2890
        %v2892 = vpop.f32.mrf.mxu0
        %2893 = vmatprep.mubr.bf16.mxu0 0
        %2894 = vmatmul.mubr.bf16.gmra.mxu0 %v2725
        %v2895 = vpop.f32.mrf.mxu0
        %v2896 = vadd.f32 0.0, %v2895
        %v2897 = vpop.f32.mrf.mxu0
        %v2898 = vpop.f32.mrf.mxu0
        %v2899 = vadd.f32 0.0, %v2898
        %v2900 = vpop.f32.mrf.mxu0
        %2901 = vmatprep.mubr.bf16.mxu0 0
        %2902 = vmatmul.mubr.bf16.gmra.mxu0 %v2726
        %v2903 = vpop.f32.mrf.mxu0
        %v2904 = vadd.f32 0.0, %v2903
        %v2905 = vpop.f32.mrf.mxu0
        %v2906 = vpop.f32.mrf.mxu0
        %v2907 = vadd.f32 0.0, %v2906
        %v2908 = vpop.f32.mrf.mxu0
        %2909 = vmatprep.mubr.bf16.mxu0 0
        %2910 = vmatmul.mubr.bf16.gmra.mxu0 %v2727
        %v2911 = vpop.f32.mrf.mxu0
        %v2912 = vadd.f32 0.0, %v2911
        %v2913 = vpop.f32.mrf.mxu0
        %v2914 = vpop.f32.mrf.mxu0
        %v2915 = vadd.f32 0.0, %v2914
        %v2916 = vpop.f32.mrf.mxu0
        %2917 = vmatprep.mubr.bf16.mxu0 0
        %2918 = vmatmul.mubr.bf16.gmra.mxu0 %v2728
        %v2919 = vpop.f32.mrf.mxu0
        %v2920 = vadd.f32 0.0, %v2919
        %v2921 = vpop.f32.mrf.mxu0
        %v2922 = vpop.f32.mrf.mxu0
        %v2923 = vadd.f32 0.0, %v2922
        %v2924 = vpop.f32.mrf.mxu0
        %2925 = vmatprep.mubr.bf16.mxu0 0
        %2926 = vmatmul.mubr.bf16.gmra.mxu0 %v2729
        %v2927 = vpop.f32.mrf.mxu0
        %v2928 = vadd.f32 0.0, %v2927
        %v2929 = vpop.f32.mrf.mxu0
        %v2930 = vpop.f32.mrf.mxu0
        %v2931 = vadd.f32 0.0, %v2930
        %v2932 = vpop.f32.mrf.mxu0
        %2933 = vmatprep.mubr.bf16.mxu0 0
        %2934 = vmatmul.mubr.bf16.gmra.mxu0 %v2730
        %v2935 = vpop.f32.mrf.mxu0
        %v2936 = vadd.f32 0.0, %v2935
        %v2937 = vpop.f32.mrf.mxu0
        %v2938 = vpop.f32.mrf.mxu0
        %v2939 = vadd.f32 0.0, %v2938
        %v2940 = vpop.f32.mrf.mxu0
        %2941 = vmatprep.mubr.bf16.mxu0 0
        %2942 = vmatmul.mubr.bf16.gmra.mxu0 %v2731
        %v2943 = vpop.f32.mrf.mxu0
        %v2944 = vadd.f32 0.0, %v2943
        %v2945 = vpop.f32.mrf.mxu0
        %v2946 = vpop.f32.mrf.mxu0
        %v2947 = vadd.f32 0.0, %v2946
        %v2948 = vpop.f32.mrf.mxu0
        %2949 = vmatprep.mubr.bf16.mxu0 0
        %2950 = vmatmul.mubr.bf16.gmra.mxu0 %v2732
        %v2951 = vpop.f32.mrf.mxu0
        %v2952 = vadd.f32 0.0, %v2951
        %v2953 = vpop.f32.mrf.mxu0
        %v2954 = vpop.f32.mrf.mxu0
        %v2955 = vadd.f32 0.0, %v2954
        %v2956 = vpop.f32.mrf.mxu0
        %2957 = vdwg.mxu0
        %v2958 = vadd.f32 %v2205, %v2832
        %v2959 = vadd.f32 %v2206, %v2835
        %v2960 = vadd.f32 %v2207, %v2840
        %v2961 = vadd.f32 %v2208, %v2843
        %v2962 = vadd.f32 %v2209, %v2848
        %v2963 = vadd.f32 %v2210, %v2851
        %v2964 = vadd.f32 %v2211, %v2856
        %v2965 = vadd.f32 %v2212, %v2859
        %v2966 = vadd.f32 %v2213, %v2864
        %v2967 = vadd.f32 %v2214, %v2867
        %v2968 = vadd.f32 %v2215, %v2872
        %v2969 = vadd.f32 %v2216, %v2875
        %v2970 = vadd.f32 %v2217, %v2880
        %v2971 = vadd.f32 %v2218, %v2883
        %v2972 = vadd.f32 %v2219, %v2888
        %v2973 = vadd.f32 %v2220, %v2891
        %v2974 = vadd.f32 %v2221, %v2896
        %v2975 = vadd.f32 %v2222, %v2899
        %v2976 = vadd.f32 %v2223, %v2904
        %v2977 = vadd.f32 %v2224, %v2907
        %v2978 = vadd.f32 %v2225, %v2912
        %v2979 = vadd.f32 %v2226, %v2915
        %v2980 = vadd.f32 %v2227, %v2920
        %v2981 = vadd.f32 %v2228, %v2923
        %v2982 = vadd.f32 %v2229, %v2928
        %v2983 = vadd.f32 %v2230, %v2931
        %v2984 = vadd.f32 %v2231, %v2936
        %v2985 = vadd.f32 %v2232, %v2939
        %v2986 = vadd.f32 %v2233, %v2944
        %v2987 = vadd.f32 %v2234, %v2947
        %v2988 = vadd.f32 %v2235, %v2952
        %v2989 = vadd.f32 %v2236, %v2955
        %v2990 = vld [vmem:[%s1851] sm:$0xe]
        %v2991 = vld [vmem:[%s1851 + $0xc] sm:$0xe]
        %v2992 = vld [vmem:[%s1851 + $0x18] sm:$0xe]
        %v2993 = vld [vmem:[%s1851 + $0x24] sm:$0xe]
        %v2994 = vld [vmem:[%s1851 + $0x30] sm:$0xe]
        %v2995 = vld [vmem:[%s1851 + $0x3c] sm:$0xe]
        %v2996 = vld [vmem:[%s1851 + $0x48] sm:$0xe]
        %v2997 = vld [vmem:[%s1851 + $0x54] sm:$0xe]
        %v2998 = vld [vmem:[%s1851 + $0x60] sm:$0xe]
        %v2999 = vld [vmem:[%s1851 + $0x6c] sm:$0xe]
        %v3000 = vld [vmem:[%s1851 + $0x78] sm:$0xe]
        %v3001 = vld [vmem:[%s1851 + $0x84] sm:$0xe]
        %v3002 = vld [vmem:[%s1851 + $0x90] sm:$0xe]
        %v3003 = vld [vmem:[%s1851 + $0x9c] sm:$0xe]
        %v3004 = vld [vmem:[%s1851 + $0xa8] sm:$0xe]
        %v3005 = vld [vmem:[%s1851 + $0xb4] sm:$0xe]
        %v3054 = vrot.slane %v2990, 5
        %v3055 = vrot.slane %v3054, 4
        %v3056 = vrot.slane %v2238, 5
        %v3057 = vsel %vm1417, %v3055, %v3056
        %v3058 = vrot.slane %v3056, 4
        %v3059 = vrot.slane %v2239, 5
        %v3060 = vsel %vm1417, %v3058, %v3059
        %v3061 = vrot.slane %v2991, 5
        %v3062 = vrot.slane %v3061, 4
        %v3063 = vrot.slane %v2241, 5
        %v3064 = vsel %vm1417, %v3062, %v3063
        %v3065 = vrot.slane %v3063, 4
        %v3066 = vrot.slane %v2242, 5
        %v3067 = vsel %vm1417, %v3065, %v3066
        %v3068 = vrot.slane %v2992, 5
        %v3069 = vrot.slane %v3068, 4
        %v3070 = vrot.slane %v2244, 5
        %v3071 = vsel %vm1417, %v3069, %v3070
        %v3072 = vrot.slane %v3070, 4
        %v3073 = vrot.slane %v2245, 5
        %v3074 = vsel %vm1417, %v3072, %v3073
        %v3075 = vrot.slane %v2993, 5
        %v3076 = vrot.slane %v3075, 4
        %v3077 = vrot.slane %v2247, 5
        %v3078 = vsel %vm1417, %v3076, %v3077
        %v3079 = vrot.slane %v3077, 4
        %v3080 = vrot.slane %v2248, 5
        %v3081 = vsel %vm1417, %v3079, %v3080
        %v3082 = vrot.slane %v2994, 5
        %v3083 = vrot.slane %v3082, 4
        %v3084 = vrot.slane %v2250, 5
        %v3085 = vsel %vm1417, %v3083, %v3084
        %v3086 = vrot.slane %v3084, 4
        %v3087 = vrot.slane %v2251, 5
        %v3088 = vsel %vm1417, %v3086, %v3087
        %v3089 = vrot.slane %v2995, 5
        %v3090 = vrot.slane %v3089, 4
        %v3091 = vrot.slane %v2253, 5
        %v3092 = vsel %vm1417, %v3090, %v3091
        %v3093 = vrot.slane %v3091, 4
        %v3094 = vrot.slane %v2254, 5
        %v3095 = vsel %vm1417, %v3093, %v3094
        %v3096 = vrot.slane %v2996, 5
        %v3097 = vrot.slane %v3096, 4
        %v3098 = vrot.slane %v2256, 5
        %v3099 = vsel %vm1417, %v3097, %v3098
        %v3100 = vrot.slane %v3098, 4
        %v3101 = vrot.slane %v2257, 5
        %v3102 = vsel %vm1417, %v3100, %v3101
        %v3103 = vrot.slane %v2997, 5
        %v3104 = vrot.slane %v3103, 4
        %v3105 = vrot.slane %v2259, 5
        %v3106 = vsel %vm1417, %v3104, %v3105
        %v3107 = vrot.slane %v3105, 4
        %v3108 = vrot.slane %v2260, 5
        %v3109 = vsel %vm1417, %v3107, %v3108
        %v3110 = vrot.slane %v2998, 5
        %v3111 = vrot.slane %v3110, 4
        %v3112 = vrot.slane %v2262, 5
        %v3113 = vsel %vm1417, %v3111, %v3112
        %v3114 = vrot.slane %v3112, 4
        %v3115 = vrot.slane %v2263, 5
        %v3116 = vsel %vm1417, %v3114, %v3115
        %v3117 = vrot.slane %v2999, 5
        %v3118 = vrot.slane %v3117, 4
        %v3119 = vrot.slane %v2265, 5
        %v3120 = vsel %vm1417, %v3118, %v3119
        %v3121 = vrot.slane %v3119, 4
        %v3122 = vrot.slane %v2266, 5
        %v3123 = vsel %vm1417, %v3121, %v3122
        %v3124 = vrot.slane %v3000, 5
        %v3125 = vrot.slane %v3124, 4
        %v3126 = vrot.slane %v2268, 5
        %v3127 = vsel %vm1417, %v3125, %v3126
        %v3128 = vrot.slane %v3126, 4
        %v3129 = vrot.slane %v2269, 5
        %v3130 = vsel %vm1417, %v3128, %v3129
        %v3131 = vrot.slane %v3001, 5
        %v3132 = vrot.slane %v3131, 4
        %v3133 = vrot.slane %v2271, 5
        %v3134 = vsel %vm1417, %v3132, %v3133
        %v3135 = vrot.slane %v3133, 4
        %v3136 = vrot.slane %v2272, 5
        %v3137 = vsel %vm1417, %v3135, %v3136
        %v3138 = vrot.slane %v3002, 5
        %v3139 = vrot.slane %v3138, 4
        %v3140 = vrot.slane %v2274, 5
        %v3141 = vsel %vm1417, %v3139, %v3140
        %v3142 = vrot.slane %v3140, 4
        %v3143 = vrot.slane %v2275, 5
        %v3144 = vsel %vm1417, %v3142, %v3143
        %v3145 = vrot.slane %v3003, 5
        %v3146 = vrot.slane %v3145, 4
        %v3147 = vrot.slane %v2277, 5
        %v3148 = vsel %vm1417, %v3146, %v3147
        %v3149 = vrot.slane %v3147, 4
        %v3150 = vrot.slane %v2278, 5
        %v3151 = vsel %vm1417, %v3149, %v3150
        %v3152 = vrot.slane %v3004, 5
        %v3153 = vrot.slane %v3152, 4
        %v3154 = vrot.slane %v2280, 5
        %v3155 = vsel %vm1417, %v3153, %v3154
        %v3156 = vrot.slane %v3154, 4
        %v3157 = vrot.slane %v2281, 5
        %v3158 = vsel %vm1417, %v3156, %v3157
        %v3159 = vrot.slane %v3005, 5
        %v3160 = vrot.slane %v3159, 4
        %v3161 = vrot.slane %v2283, 5
        %v3162 = vsel %vm1417, %v3160, %v3161
        %v3163 = vrot.slane %v3161, 4
        %v3164 = vrot.slane %v2284, 5
        %v3165 = vsel %vm1417, %v3163, %v3164
        %v3166 = vld [vmem:[%s1 + $0x140] sm:$0xf]
        %v3167 = vld [vmem:[%s1 + $0x144] sm:$0xf]
        %v3168 = vld [vmem:[%s1 + $0x148] sm:$0xf]
        %v3169 = vld [vmem:[%s1 + $0x14c] sm:$0xf]
        %v3170 = vld [vmem:[%s1 + $0x150] sm:$0xf]
        %v3171 = vld [vmem:[%s1 + $0x154] sm:$0xf]
        %v3172 = vld [vmem:[%s1 + $0x158] sm:$0xf]
        %v3173 = vld [vmem:[%s1 + $0x15c] sm:$0xf]
        %v3174 = vld [vmem:[%s1 + $0x160] sm:$0xf]
        %v3175 = vld [vmem:[%s1 + $0x164] sm:$0xf]
        %v3176 = vld [vmem:[%s1 + $0x168] sm:$0xf]
        %v3177 = vld [vmem:[%s1 + $0x16c] sm:$0xf]
        %v3178 = vld [vmem:[%s1 + $0x170] sm:$0xf]
        %v3179 = vld [vmem:[%s1 + $0x174] sm:$0xf]
        %v3180 = vld [vmem:[%s1 + $0x178] sm:$0xf]
        %v3181 = vld [vmem:[%s1 + $0x17c] sm:$0xf]
        %v3182 = vunpack.c.l.b16 %v3057
        %v3183 = vunpack.c.l.b16 %v3060
        %v3184 = vunpack.c.l.b16 %v3064
        %v3185 = vunpack.c.l.b16 %v3067
        %v3186 = vunpack.c.l.b16 %v3071
        %v3187 = vunpack.c.l.b16 %v3074
        %v3188 = vunpack.c.l.b16 %v3078
        %v3189 = vunpack.c.l.b16 %v3081
        %v3190 = vunpack.c.l.b16 %v3085
        %v3191 = vunpack.c.l.b16 %v3088
        %v3192 = vunpack.c.l.b16 %v3092
        %v3193 = vunpack.c.l.b16 %v3095
        %v3194 = vunpack.c.l.b16 %v3099
        %v3195 = vunpack.c.l.b16 %v3102
        %v3196 = vunpack.c.l.b16 %v3106
        %v3197 = vunpack.c.l.b16 %v3109
        %v3198 = vunpack.c.l.b16 %v3113
        %v3199 = vunpack.c.l.b16 %v3116
        %v3200 = vunpack.c.l.b16 %v3120
        %v3201 = vunpack.c.l.b16 %v3123
        %v3202 = vunpack.c.l.b16 %v3127
        %v3203 = vunpack.c.l.b16 %v3130
        %v3204 = vunpack.c.l.b16 %v3134
        %v3205 = vunpack.c.l.b16 %v3137
        %v3206 = vunpack.c.l.b16 %v3141
        %v3207 = vunpack.c.l.b16 %v3144
        %v3208 = vunpack.c.l.b16 %v3148
        %v3209 = vunpack.c.l.b16 %v3151
        %v3210 = vunpack.c.l.b16 %v3155
        %v3211 = vunpack.c.l.b16 %v3158
        %v3212 = vunpack.c.l.b16 %v3162
        %v3213 = vunpack.c.l.b16 %v3165
        %v3214 = vpack.c.b16 %v3183, %v3182
        %v3215 = vpack.c.b16 %v3185, %v3184
        %v3216 = vpack.c.b16 %v3187, %v3186
        %v3217 = vpack.c.b16 %v3189, %v3188
        %v3218 = vpack.c.b16 %v3191, %v3190
        %v3219 = vpack.c.b16 %v3193, %v3192
        %v3220 = vpack.c.b16 %v3195, %v3194
        %v3221 = vpack.c.b16 %v3197, %v3196
        %v3222 = vpack.c.b16 %v3199, %v3198
        %v3223 = vpack.c.b16 %v3201, %v3200
        %v3224 = vpack.c.b16 %v3203, %v3202
        %v3225 = vpack.c.b16 %v3205, %v3204
        %v3226 = vpack.c.b16 %v3207, %v3206
        %v3227 = vpack.c.b16 %v3209, %v3208
        %v3228 = vpack.c.b16 %v3211, %v3210
        %v3229 = vpack.c.b16 %v3213, %v3212
        %v3262 = vunpack.c.l.b16 %v3166
        %v3263 = vunpack.c.l.b16 %v3167
        %v3264 = vunpack.c.l.b16 %v3168
        %v3265 = vunpack.c.l.b16 %v3169
        %v3266 = vunpack.c.l.b16 %v3170
        %v3267 = vunpack.c.l.b16 %v3171
        %v3268 = vunpack.c.l.b16 %v3172
        %v3269 = vunpack.c.l.b16 %v3173
        %v3270 = vunpack.c.l.b16 %v3174
        %v3271 = vunpack.c.l.b16 %v3175
        %v3272 = vunpack.c.l.b16 %v3176
        %v3273 = vunpack.c.l.b16 %v3177
        %v3274 = vunpack.c.l.b16 %v3178
        %v3275 = vunpack.c.l.b16 %v3179
        %v3276 = vunpack.c.l.b16 %v3180
        %v3277 = vunpack.c.l.b16 %v3181
        %v3278 = vpack.c.b16 %v3263, %v3262
        %v3279 = vpack.c.b16 %v3265, %v3264
        %v3280 = vpack.c.b16 %v3267, %v3266
        %v3281 = vpack.c.b16 %v3269, %v3268
        %v3282 = vpack.c.b16 %v3271, %v3270
        %v3283 = vpack.c.b16 %v3273, %v3272
        %v3284 = vpack.c.b16 %v3275, %v3274
        %v3285 = vpack.c.b16 %v3277, %v3276
        %3294 = vmatprep.subr.bf16.mxu0 0
        %3295 = vmatpush1.bf16.msra.mxu0 %v3285
        %3296 = vmatprep.subr.bf16.mxu0 0
        %3297 = vmatpush1.bf16.msra.mxu0 %v3284
        %3298 = vmatprep.subr.bf16.mxu0 0
        %3299 = vmatpush1.bf16.msra.mxu0 %v3283
        %3300 = vmatprep.subr.bf16.mxu0 0
        %3301 = vmatpush1.bf16.msra.mxu0 %v3282
        %3302 = vmatprep.subr.bf16.mxu0 0
        %3303 = vmatpush1.bf16.msra.mxu0 %v3281
        %3304 = vmatprep.subr.bf16.mxu0 0
        %3305 = vmatpush1.bf16.msra.mxu0 %v3280
        %3306 = vmatprep.subr.bf16.mxu0 0
        %3307 = vmatpush1.bf16.msra.mxu0 %v3279
        %3308 = vmatprep.subr.bf16.mxu0 0
        %3309 = vmatpush1.bf16.msra.mxu0 %v3278
        %3310 = vmatprep.subr.bf16.mxu0 0
        %3311 = vmatpush2.bf16.msra.mxu0 0
        %3312 = vmatprep.subr.bf16.mxu0 0
        %3313 = vmatpush2.bf16.msra.mxu0 0
        %3314 = vmatprep.subr.bf16.mxu0 0
        %3315 = vmatpush2.bf16.msra.mxu0 0
        %3316 = vmatprep.subr.bf16.mxu0 0
        %3317 = vmatpush2.bf16.msra.mxu0 0
        %3318 = vmatprep.subr.bf16.mxu0 0
        %3319 = vmatpush2.bf16.msra.mxu0 0
        %3320 = vmatprep.subr.bf16.mxu0 0
        %3321 = vmatpush2.bf16.msra.mxu0 0
        %3322 = vmatprep.subr.bf16.mxu0 0
        %3323 = vmatpush2.bf16.msra.mxu0 0
        %3324 = vmatprep.subr.bf16.mxu0 0
        %3325 = vmatpush2.bf16.msra.mxu0 0
        %3326 = vmatprep.mubr.bf16.mxu0 0
        %3327 = vmatmul.mubr.bf16.gmra.mxu0 %v3214
        %v3328 = vpop.f32.mrf.mxu0
        %v3329 = vadd.f32 0.0, %v3328
        %v3330 = vpop.f32.mrf.mxu0
        %v3331 = vpop.f32.mrf.mxu0
        %v3332 = vadd.f32 0.0, %v3331
        %v3333 = vpop.f32.mrf.mxu0
        %3334 = vmatprep.mubr.bf16.mxu0 0
        %3335 = vmatmul.mubr.bf16.gmra.mxu0 %v3215
        %v3336 = vpop.f32.mrf.mxu0
        %v3337 = vadd.f32 0.0, %v3336
        %v3338 = vpop.f32.mrf.mxu0
        %v3339 = vpop.f32.mrf.mxu0
        %v3340 = vadd.f32 0.0, %v3339
        %v3341 = vpop.f32.mrf.mxu0
        %3342 = vmatprep.mubr.bf16.mxu0 0
        %3343 = vmatmul.mubr.bf16.gmra.mxu0 %v3216
        %v3344 = vpop.f32.mrf.mxu0
        %v3345 = vadd.f32 0.0, %v3344
        %v3346 = vpop.f32.mrf.mxu0
        %v3347 = vpop.f32.mrf.mxu0
        %v3348 = vadd.f32 0.0, %v3347
        %v3349 = vpop.f32.mrf.mxu0
        %3350 = vmatprep.mubr.bf16.mxu0 0
        %3351 = vmatmul.mubr.bf16.gmra.mxu0 %v3217
        %v3352 = vpop.f32.mrf.mxu0
        %v3353 = vadd.f32 0.0, %v3352
        %v3354 = vpop.f32.mrf.mxu0
        %v3355 = vpop.f32.mrf.mxu0
        %v3356 = vadd.f32 0.0, %v3355
        %v3357 = vpop.f32.mrf.mxu0
        %3358 = vmatprep.mubr.bf16.mxu0 0
        %3359 = vmatmul.mubr.bf16.gmra.mxu0 %v3218
        %v3360 = vpop.f32.mrf.mxu0
        %v3361 = vadd.f32 0.0, %v3360
        %v3362 = vpop.f32.mrf.mxu0
        %v3363 = vpop.f32.mrf.mxu0
        %v3364 = vadd.f32 0.0, %v3363
        %v3365 = vpop.f32.mrf.mxu0
        %3366 = vmatprep.mubr.bf16.mxu0 0
        %3367 = vmatmul.mubr.bf16.gmra.mxu0 %v3219
        %v3368 = vpop.f32.mrf.mxu0
        %v3369 = vadd.f32 0.0, %v3368
        %v3370 = vpop.f32.mrf.mxu0
        %v3371 = vpop.f32.mrf.mxu0
        %v3372 = vadd.f32 0.0, %v3371
        %v3373 = vpop.f32.mrf.mxu0
        %3374 = vmatprep.mubr.bf16.mxu0 0
        %3375 = vmatmul.mubr.bf16.gmra.mxu0 %v3220
        %v3376 = vpop.f32.mrf.mxu0
        %v3377 = vadd.f32 0.0, %v3376
        %v3378 = vpop.f32.mrf.mxu0
        %v3379 = vpop.f32.mrf.mxu0
        %v3380 = vadd.f32 0.0, %v3379
        %v3381 = vpop.f32.mrf.mxu0
        %3382 = vmatprep.mubr.bf16.mxu0 0
        %3383 = vmatmul.mubr.bf16.gmra.mxu0 %v3221
        %v3384 = vpop.f32.mrf.mxu0
        %v3385 = vadd.f32 0.0, %v3384
        %v3386 = vpop.f32.mrf.mxu0
        %v3387 = vpop.f32.mrf.mxu0
        %v3388 = vadd.f32 0.0, %v3387
        %v3389 = vpop.f32.mrf.mxu0
        %3390 = vmatprep.mubr.bf16.mxu0 0
        %3391 = vmatmul.mubr.bf16.gmra.mxu0 %v3222
        %v3392 = vpop.f32.mrf.mxu0
        %v3393 = vadd.f32 0.0, %v3392
        %v3394 = vpop.f32.mrf.mxu0
        %v3395 = vpop.f32.mrf.mxu0
        %v3396 = vadd.f32 0.0, %v3395
        %v3397 = vpop.f32.mrf.mxu0
        %3398 = vmatprep.mubr.bf16.mxu0 0
        %3399 = vmatmul.mubr.bf16.gmra.mxu0 %v3223
        %v3400 = vpop.f32.mrf.mxu0
        %v3401 = vadd.f32 0.0, %v3400
        %v3402 = vpop.f32.mrf.mxu0
        %v3403 = vpop.f32.mrf.mxu0
        %v3404 = vadd.f32 0.0, %v3403
        %v3405 = vpop.f32.mrf.mxu0
        %3406 = vmatprep.mubr.bf16.mxu0 0
        %3407 = vmatmul.mubr.bf16.gmra.mxu0 %v3224
        %v3408 = vpop.f32.mrf.mxu0
        %v3409 = vadd.f32 0.0, %v3408
        %v3410 = vpop.f32.mrf.mxu0
        %v3411 = vpop.f32.mrf.mxu0
        %v3412 = vadd.f32 0.0, %v3411
        %v3413 = vpop.f32.mrf.mxu0
        %3414 = vmatprep.mubr.bf16.mxu0 0
        %3415 = vmatmul.mubr.bf16.gmra.mxu0 %v3225
        %v3416 = vpop.f32.mrf.mxu0
        %v3417 = vadd.f32 0.0, %v3416
        %v3418 = vpop.f32.mrf.mxu0
        %v3419 = vpop.f32.mrf.mxu0
        %v3420 = vadd.f32 0.0, %v3419
        %v3421 = vpop.f32.mrf.mxu0
        %3422 = vmatprep.mubr.bf16.mxu0 0
        %3423 = vmatmul.mubr.bf16.gmra.mxu0 %v3226
        %v3424 = vpop.f32.mrf.mxu0
        %v3425 = vadd.f32 0.0, %v3424
        %v3426 = vpop.f32.mrf.mxu0
        %v3427 = vpop.f32.mrf.mxu0
        %v3428 = vadd.f32 0.0, %v3427
        %v3429 = vpop.f32.mrf.mxu0
        %3430 = vmatprep.mubr.bf16.mxu0 0
        %3431 = vmatmul.mubr.bf16.gmra.mxu0 %v3227
        %v3432 = vpop.f32.mrf.mxu0
        %v3433 = vadd.f32 0.0, %v3432
        %v3434 = vpop.f32.mrf.mxu0
        %v3435 = vpop.f32.mrf.mxu0
        %v3436 = vadd.f32 0.0, %v3435
        %v3437 = vpop.f32.mrf.mxu0
        %3438 = vmatprep.mubr.bf16.mxu0 0
        %3439 = vmatmul.mubr.bf16.gmra.mxu0 %v3228
        %v3440 = vpop.f32.mrf.mxu0
        %v3441 = vadd.f32 0.0, %v3440
        %v3442 = vpop.f32.mrf.mxu0
        %v3443 = vpop.f32.mrf.mxu0
        %v3444 = vadd.f32 0.0, %v3443
        %v3445 = vpop.f32.mrf.mxu0
        %3446 = vmatprep.mubr.bf16.mxu0 0
        %3447 = vmatmul.mubr.bf16.gmra.mxu0 %v3229
        %v3448 = vpop.f32.mrf.mxu0
        %v3449 = vadd.f32 0.0, %v3448
        %v3450 = vpop.f32.mrf.mxu0
        %v3451 = vpop.f32.mrf.mxu0
        %v3452 = vadd.f32 0.0, %v3451
        %v3453 = vpop.f32.mrf.mxu0
        %3454 = vdwg.mxu0
        %v3455 = vadd.f32 %v2958, %v3329
        %v3456 = vadd.f32 %v2959, %v3332
        %v3457 = vadd.f32 %v2960, %v3337
        %v3458 = vadd.f32 %v2961, %v3340
        %v3459 = vadd.f32 %v2962, %v3345
        %v3460 = vadd.f32 %v2963, %v3348
        %v3461 = vadd.f32 %v2964, %v3353
        %v3462 = vadd.f32 %v2965, %v3356
        %v3463 = vadd.f32 %v2966, %v3361
        %v3464 = vadd.f32 %v2967, %v3364
        %v3465 = vadd.f32 %v2968, %v3369
        %v3466 = vadd.f32 %v2969, %v3372
        %v3467 = vadd.f32 %v2970, %v3377
        %v3468 = vadd.f32 %v2971, %v3380
        %v3469 = vadd.f32 %v2972, %v3385
        %v3470 = vadd.f32 %v2973, %v3388
        %v3471 = vadd.f32 %v2974, %v3393
        %v3472 = vadd.f32 %v2975, %v3396
        %v3473 = vadd.f32 %v2976, %v3401
        %v3474 = vadd.f32 %v2977, %v3404
        %v3475 = vadd.f32 %v2978, %v3409
        %v3476 = vadd.f32 %v2979, %v3412
        %v3477 = vadd.f32 %v2980, %v3417
        %v3478 = vadd.f32 %v2981, %v3420
        %v3479 = vadd.f32 %v2982, %v3425
        %v3480 = vadd.f32 %v2983, %v3428
        %v3481 = vadd.f32 %v2984, %v3433
        %v3482 = vadd.f32 %v2985, %v3436
        %v3483 = vadd.f32 %v2986, %v3441
        %v3484 = vadd.f32 %v2987, %v3444
        %v3485 = vadd.f32 %v2988, %v3449
        %v3486 = vadd.f32 %v2989, %v3452
        %s3487 = scalar_lea.vmem %s261, 24
        %v3488 = vld [vmem:[%s3487] sm:$0xf]
        %v3489 = vld [vmem:[%s3487 + $0x4] sm:$0xf]
        %v3490 = vld [vmem:[%s3487 + $0xc] sm:$0xf]
        %v3491 = vld [vmem:[%s3487 + $0x10] sm:$0xf]
        %v3492 = vld [vmem:[%s3487 + $0x18] sm:$0xf]
        %v3493 = vld [vmem:[%s3487 + $0x1c] sm:$0xf]
        %v3494 = vld [vmem:[%s3487 + $0x24] sm:$0xf]
        %v3495 = vld [vmem:[%s3487 + $0x28] sm:$0xf]
        %v3496 = vld [vmem:[%s3487 + $0x30] sm:$0xf]
        %v3497 = vld [vmem:[%s3487 + $0x34] sm:$0xf]
        %v3498 = vld [vmem:[%s3487 + $0x3c] sm:$0xf]
        %v3499 = vld [vmem:[%s3487 + $0x40] sm:$0xf]
        %v3500 = vld [vmem:[%s3487 + $0x48] sm:$0xf]
        %v3501 = vld [vmem:[%s3487 + $0x4c] sm:$0xf]
        %v3502 = vld [vmem:[%s3487 + $0x54] sm:$0xf]
        %v3503 = vld [vmem:[%s3487 + $0x58] sm:$0xf]
        %v3504 = vld [vmem:[%s3487 + $0x60] sm:$0xf]
        %v3505 = vld [vmem:[%s3487 + $0x64] sm:$0xf]
        %v3506 = vld [vmem:[%s3487 + $0x6c] sm:$0xf]
        %v3507 = vld [vmem:[%s3487 + $0x70] sm:$0xf]
        %v3508 = vld [vmem:[%s3487 + $0x78] sm:$0xf]
        %v3509 = vld [vmem:[%s3487 + $0x7c] sm:$0xf]
        %v3510 = vld [vmem:[%s3487 + $0x84] sm:$0xf]
        %v3511 = vld [vmem:[%s3487 + $0x88] sm:$0xf]
        %v3512 = vld [vmem:[%s3487 + $0x90] sm:$0xf]
        %v3513 = vld [vmem:[%s3487 + $0x94] sm:$0xf]
        %v3514 = vld [vmem:[%s3487 + $0x9c] sm:$0xf]
        %v3515 = vld [vmem:[%s3487 + $0xa0] sm:$0xf]
        %v3516 = vld [vmem:[%s3487 + $0xa8] sm:$0xf]
        %v3517 = vld [vmem:[%s3487 + $0xac] sm:$0xf]
        %v3518 = vld [vmem:[%s3487 + $0xb4] sm:$0xf]
        %v3519 = vld [vmem:[%s3487 + $0xb8] sm:$0xf]
        %v3520 = vld [vmem:[%s1 + $0x180] sm:$0xf]
        %v3521 = vld [vmem:[%s1 + $0x184] sm:$0xf]
        %v3522 = vld [vmem:[%s1 + $0x188] sm:$0xf]
        %v3523 = vld [vmem:[%s1 + $0x18c] sm:$0xf]
        %v3524 = vld [vmem:[%s1 + $0x190] sm:$0xf]
        %v3525 = vld [vmem:[%s1 + $0x194] sm:$0xf]
        %v3526 = vld [vmem:[%s1 + $0x198] sm:$0xf]
        %v3527 = vld [vmem:[%s1 + $0x19c] sm:$0xf]
        %v3528 = vld [vmem:[%s1 + $0x1a0] sm:$0xf]
        %v3529 = vld [vmem:[%s1 + $0x1a4] sm:$0xf]
        %v3530 = vld [vmem:[%s1 + $0x1a8] sm:$0xf]
        %v3531 = vld [vmem:[%s1 + $0x1ac] sm:$0xf]
        %v3532 = vld [vmem:[%s1 + $0x1b0] sm:$0xf]
        %v3533 = vld [vmem:[%s1 + $0x1b4] sm:$0xf]
        %v3534 = vld [vmem:[%s1 + $0x1b8] sm:$0xf]
        %v3535 = vld [vmem:[%s1 + $0x1bc] sm:$0xf]
        %v3568 = vunpack.c.l.b16 %v3488
        %v3569 = vunpack.c.l.b16 %v3489
        %v3570 = vunpack.c.l.b16 %v3490
        %v3571 = vunpack.c.l.b16 %v3491
        %v3572 = vunpack.c.l.b16 %v3492
        %v3573 = vunpack.c.l.b16 %v3493
        %v3574 = vunpack.c.l.b16 %v3494
        %v3575 = vunpack.c.l.b16 %v3495
        %v3576 = vunpack.c.l.b16 %v3496
        %v3577 = vunpack.c.l.b16 %v3497
        %v3578 = vunpack.c.l.b16 %v3498
        %v3579 = vunpack.c.l.b16 %v3499
        %v3580 = vunpack.c.l.b16 %v3500
        %v3581 = vunpack.c.l.b16 %v3501
        %v3582 = vunpack.c.l.b16 %v3502
        %v3583 = vunpack.c.l.b16 %v3503
        %v3584 = vunpack.c.l.b16 %v3504
        %v3585 = vunpack.c.l.b16 %v3505
        %v3586 = vunpack.c.l.b16 %v3506
        %v3587 = vunpack.c.l.b16 %v3507
        %v3588 = vunpack.c.l.b16 %v3508
        %v3589 = vunpack.c.l.b16 %v3509
        %v3590 = vunpack.c.l.b16 %v3510
        %v3591 = vunpack.c.l.b16 %v3511
        %v3592 = vunpack.c.l.b16 %v3512
        %v3593 = vunpack.c.l.b16 %v3513
        %v3594 = vunpack.c.l.b16 %v3514
        %v3595 = vunpack.c.l.b16 %v3515
        %v3596 = vunpack.c.l.b16 %v3516
        %v3597 = vunpack.c.l.b16 %v3517
        %v3598 = vunpack.c.l.b16 %v3518
        %v3599 = vunpack.c.l.b16 %v3519
        %v3600 = vpack.c.b16 %v3569, %v3568
        %v3601 = vpack.c.b16 %v3571, %v3570
        %v3602 = vpack.c.b16 %v3573, %v3572
        %v3603 = vpack.c.b16 %v3575, %v3574
        %v3604 = vpack.c.b16 %v3577, %v3576
        %v3605 = vpack.c.b16 %v3579, %v3578
        %v3606 = vpack.c.b16 %v3581, %v3580
        %v3607 = vpack.c.b16 %v3583, %v3582
        %v3608 = vpack.c.b16 %v3585, %v3584
        %v3609 = vpack.c.b16 %v3587, %v3586
        %v3610 = vpack.c.b16 %v3589, %v3588
        %v3611 = vpack.c.b16 %v3591, %v3590
        %v3612 = vpack.c.b16 %v3593, %v3592
        %v3613 = vpack.c.b16 %v3595, %v3594
        %v3614 = vpack.c.b16 %v3597, %v3596
        %v3615 = vpack.c.b16 %v3599, %v3598
        %v3648 = vunpack.c.l.b16 %v3520
        %v3649 = vunpack.c.l.b16 %v3521
        %v3650 = vunpack.c.l.b16 %v3522
        %v3651 = vunpack.c.l.b16 %v3523
        %v3652 = vunpack.c.l.b16 %v3524
        %v3653 = vunpack.c.l.b16 %v3525
        %v3654 = vunpack.c.l.b16 %v3526
        %v3655 = vunpack.c.l.b16 %v3527
        %v3656 = vunpack.c.l.b16 %v3528
        %v3657 = vunpack.c.l.b16 %v3529
        %v3658 = vunpack.c.l.b16 %v3530
        %v3659 = vunpack.c.l.b16 %v3531
        %v3660 = vunpack.c.l.b16 %v3532
        %v3661 = vunpack.c.l.b16 %v3533
        %v3662 = vunpack.c.l.b16 %v3534
        %v3663 = vunpack.c.l.b16 %v3535
        %v3664 = vpack.c.b16 %v3649, %v3648
        %v3665 = vpack.c.b16 %v3651, %v3650
        %v3666 = vpack.c.b16 %v3653, %v3652
        %v3667 = vpack.c.b16 %v3655, %v3654
        %v3668 = vpack.c.b16 %v3657, %v3656
        %v3669 = vpack.c.b16 %v3659, %v3658
        %v3670 = vpack.c.b16 %v3661, %v3660
        %v3671 = vpack.c.b16 %v3663, %v3662
        %3680 = vmatprep.subr.bf16.mxu0 0
        %3681 = vmatpush1.bf16.msra.mxu0 %v3671
        %3682 = vmatprep.subr.bf16.mxu0 0
        %3683 = vmatpush1.bf16.msra.mxu0 %v3670
        %3684 = vmatprep.subr.bf16.mxu0 0
        %3685 = vmatpush1.bf16.msra.mxu0 %v3669
        %3686 = vmatprep.subr.bf16.mxu0 0
        %3687 = vmatpush1.bf16.msra.mxu0 %v3668
        %3688 = vmatprep.subr.bf16.mxu0 0
        %3689 = vmatpush1.bf16.msra.mxu0 %v3667
        %3690 = vmatprep.subr.bf16.mxu0 0
        %3691 = vmatpush1.bf16.msra.mxu0 %v3666
        %3692 = vmatprep.subr.bf16.mxu0 0
        %3693 = vmatpush1.bf16.msra.mxu0 %v3665
        %3694 = vmatprep.subr.bf16.mxu0 0
        %3695 = vmatpush1.bf16.msra.mxu0 %v3664
        %3696 = vmatprep.subr.bf16.mxu0 0
        %3697 = vmatpush2.bf16.msra.mxu0 0
        %3698 = vmatprep.subr.bf16.mxu0 0
        %3699 = vmatpush2.bf16.msra.mxu0 0
        %3700 = vmatprep.subr.bf16.mxu0 0
        %3701 = vmatpush2.bf16.msra.mxu0 0
        %3702 = vmatprep.subr.bf16.mxu0 0
        %3703 = vmatpush2.bf16.msra.mxu0 0
        %3704 = vmatprep.subr.bf16.mxu0 0
        %3705 = vmatpush2.bf16.msra.mxu0 0
        %3706 = vmatprep.subr.bf16.mxu0 0
        %3707 = vmatpush2.bf16.msra.mxu0 0
        %3708 = vmatprep.subr.bf16.mxu0 0
        %3709 = vmatpush2.bf16.msra.mxu0 0
        %3710 = vmatprep.subr.bf16.mxu0 0
        %3711 = vmatpush2.bf16.msra.mxu0 0
        %3712 = vmatprep.mubr.bf16.mxu0 0
        %3713 = vmatmul.mubr.bf16.gmra.mxu0 %v3600
        %v3714 = vpop.f32.mrf.mxu0
        %v3715 = vadd.f32 0.0, %v3714
        %v3716 = vpop.f32.mrf.mxu0
        %v3717 = vpop.f32.mrf.mxu0
        %v3718 = vadd.f32 0.0, %v3717
        %v3719 = vpop.f32.mrf.mxu0
        %3720 = vmatprep.mubr.bf16.mxu0 0
        %3721 = vmatmul.mubr.bf16.gmra.mxu0 %v3601
        %v3722 = vpop.f32.mrf.mxu0
        %v3723 = vadd.f32 0.0, %v3722
        %v3724 = vpop.f32.mrf.mxu0
        %v3725 = vpop.f32.mrf.mxu0
        %v3726 = vadd.f32 0.0, %v3725
        %v3727 = vpop.f32.mrf.mxu0
        %3728 = vmatprep.mubr.bf16.mxu0 0
        %3729 = vmatmul.mubr.bf16.gmra.mxu0 %v3602
        %v3730 = vpop.f32.mrf.mxu0
        %v3731 = vadd.f32 0.0, %v3730
        %v3732 = vpop.f32.mrf.mxu0
        %v3733 = vpop.f32.mrf.mxu0
        %v3734 = vadd.f32 0.0, %v3733
        %v3735 = vpop.f32.mrf.mxu0
        %3736 = vmatprep.mubr.bf16.mxu0 0
        %3737 = vmatmul.mubr.bf16.gmra.mxu0 %v3603
        %v3738 = vpop.f32.mrf.mxu0
        %v3739 = vadd.f32 0.0, %v3738
        %v3740 = vpop.f32.mrf.mxu0
        %v3741 = vpop.f32.mrf.mxu0
        %v3742 = vadd.f32 0.0, %v3741
        %v3743 = vpop.f32.mrf.mxu0
        %3744 = vmatprep.mubr.bf16.mxu0 0
        %3745 = vmatmul.mubr.bf16.gmra.mxu0 %v3604
        %v3746 = vpop.f32.mrf.mxu0
        %v3747 = vadd.f32 0.0, %v3746
        %v3748 = vpop.f32.mrf.mxu0
        %v3749 = vpop.f32.mrf.mxu0
        %v3750 = vadd.f32 0.0, %v3749
        %v3751 = vpop.f32.mrf.mxu0
        %3752 = vmatprep.mubr.bf16.mxu0 0
        %3753 = vmatmul.mubr.bf16.gmra.mxu0 %v3605
        %v3754 = vpop.f32.mrf.mxu0
        %v3755 = vadd.f32 0.0, %v3754
        %v3756 = vpop.f32.mrf.mxu0
        %v3757 = vpop.f32.mrf.mxu0
        %v3758 = vadd.f32 0.0, %v3757
        %v3759 = vpop.f32.mrf.mxu0
        %3760 = vmatprep.mubr.bf16.mxu0 0
        %3761 = vmatmul.mubr.bf16.gmra.mxu0 %v3606
        %v3762 = vpop.f32.mrf.mxu0
        %v3763 = vadd.f32 0.0, %v3762
        %v3764 = vpop.f32.mrf.mxu0
        %v3765 = vpop.f32.mrf.mxu0
        %v3766 = vadd.f32 0.0, %v3765
        %v3767 = vpop.f32.mrf.mxu0
        %3768 = vmatprep.mubr.bf16.mxu0 0
        %3769 = vmatmul.mubr.bf16.gmra.mxu0 %v3607
        %v3770 = vpop.f32.mrf.mxu0
        %v3771 = vadd.f32 0.0, %v3770
        %v3772 = vpop.f32.mrf.mxu0
        %v3773 = vpop.f32.mrf.mxu0
        %v3774 = vadd.f32 0.0, %v3773
        %v3775 = vpop.f32.mrf.mxu0
        %3776 = vmatprep.mubr.bf16.mxu0 0
        %3777 = vmatmul.mubr.bf16.gmra.mxu0 %v3608
        %v3778 = vpop.f32.mrf.mxu0
        %v3779 = vadd.f32 0.0, %v3778
        %v3780 = vpop.f32.mrf.mxu0
        %v3781 = vpop.f32.mrf.mxu0
        %v3782 = vadd.f32 0.0, %v3781
        %v3783 = vpop.f32.mrf.mxu0
        %3784 = vmatprep.mubr.bf16.mxu0 0
        %3785 = vmatmul.mubr.bf16.gmra.mxu0 %v3609
        %v3786 = vpop.f32.mrf.mxu0
        %v3787 = vadd.f32 0.0, %v3786
        %v3788 = vpop.f32.mrf.mxu0
        %v3789 = vpop.f32.mrf.mxu0
        %v3790 = vadd.f32 0.0, %v3789
        %v3791 = vpop.f32.mrf.mxu0
        %3792 = vmatprep.mubr.bf16.mxu0 0
        %3793 = vmatmul.mubr.bf16.gmra.mxu0 %v3610
        %v3794 = vpop.f32.mrf.mxu0
        %v3795 = vadd.f32 0.0, %v3794
        %v3796 = vpop.f32.mrf.mxu0
        %v3797 = vpop.f32.mrf.mxu0
        %v3798 = vadd.f32 0.0, %v3797
        %v3799 = vpop.f32.mrf.mxu0
        %3800 = vmatprep.mubr.bf16.mxu0 0
        %3801 = vmatmul.mubr.bf16.gmra.mxu0 %v3611
        %v3802 = vpop.f32.mrf.mxu0
        %v3803 = vadd.f32 0.0, %v3802
        %v3804 = vpop.f32.mrf.mxu0
        %v3805 = vpop.f32.mrf.mxu0
        %v3806 = vadd.f32 0.0, %v3805
        %v3807 = vpop.f32.mrf.mxu0
        %3808 = vmatprep.mubr.bf16.mxu0 0
        %3809 = vmatmul.mubr.bf16.gmra.mxu0 %v3612
        %v3810 = vpop.f32.mrf.mxu0
        %v3811 = vadd.f32 0.0, %v3810
        %v3812 = vpop.f32.mrf.mxu0
        %v3813 = vpop.f32.mrf.mxu0
        %v3814 = vadd.f32 0.0, %v3813
        %v3815 = vpop.f32.mrf.mxu0
        %3816 = vmatprep.mubr.bf16.mxu0 0
        %3817 = vmatmul.mubr.bf16.gmra.mxu0 %v3613
        %v3818 = vpop.f32.mrf.mxu0
        %v3819 = vadd.f32 0.0, %v3818
        %v3820 = vpop.f32.mrf.mxu0
        %v3821 = vpop.f32.mrf.mxu0
        %v3822 = vadd.f32 0.0, %v3821
        %v3823 = vpop.f32.mrf.mxu0
        %3824 = vmatprep.mubr.bf16.mxu0 0
        %3825 = vmatmul.mubr.bf16.gmra.mxu0 %v3614
        %v3826 = vpop.f32.mrf.mxu0
        %v3827 = vadd.f32 0.0, %v3826
        %v3828 = vpop.f32.mrf.mxu0
        %v3829 = vpop.f32.mrf.mxu0
        %v3830 = vadd.f32 0.0, %v3829
        %v3831 = vpop.f32.mrf.mxu0
        %3832 = vmatprep.mubr.bf16.mxu0 0
        %3833 = vmatmul.mubr.bf16.gmra.mxu0 %v3615
        %v3834 = vpop.f32.mrf.mxu0
        %v3835 = vadd.f32 0.0, %v3834
        %v3836 = vpop.f32.mrf.mxu0
        %v3837 = vpop.f32.mrf.mxu0
        %v3838 = vadd.f32 0.0, %v3837
        %v3839 = vpop.f32.mrf.mxu0
        %3840 = vdwg.mxu0
        %v3841 = vadd.f32 %v3455, %v3715
        %v3842 = vadd.f32 %v3456, %v3718
        %v3843 = vadd.f32 %v3457, %v3723
        %v3844 = vadd.f32 %v3458, %v3726
        %v3845 = vadd.f32 %v3459, %v3731
        %v3846 = vadd.f32 %v3460, %v3734
        %v3847 = vadd.f32 %v3461, %v3739
        %v3848 = vadd.f32 %v3462, %v3742
        %v3849 = vadd.f32 %v3463, %v3747
        %v3850 = vadd.f32 %v3464, %v3750
        %v3851 = vadd.f32 %v3465, %v3755
        %v3852 = vadd.f32 %v3466, %v3758
        %v3853 = vadd.f32 %v3467, %v3763
        %v3854 = vadd.f32 %v3468, %v3766
        %v3855 = vadd.f32 %v3469, %v3771
        %v3856 = vadd.f32 %v3470, %v3774
        %v3857 = vadd.f32 %v3471, %v3779
        %v3858 = vadd.f32 %v3472, %v3782
        %v3859 = vadd.f32 %v3473, %v3787
        %v3860 = vadd.f32 %v3474, %v3790
        %v3861 = vadd.f32 %v3475, %v3795
        %v3862 = vadd.f32 %v3476, %v3798
        %v3863 = vadd.f32 %v3477, %v3803
        %v3864 = vadd.f32 %v3478, %v3806
        %v3865 = vadd.f32 %v3479, %v3811
        %v3866 = vadd.f32 %v3480, %v3814
        %v3867 = vadd.f32 %v3481, %v3819
        %v3868 = vadd.f32 %v3482, %v3822
        %v3869 = vadd.f32 %v3483, %v3827
        %v3870 = vadd.f32 %v3484, %v3830
        %v3871 = vadd.f32 %v3485, %v3835
        %v3872 = vadd.f32 %v3486, %v3838
        %v3873 = vld [vmem:[%s3487] sm:$0xf]
        %v3874 = vld [vmem:[%s3487 + $0x4] sm:$0xf]
        %v3875 = vld [vmem:[%s3487 + $0x8] sm:$0x1]
        %v3876 = vld [vmem:[%s3487 + $0xc] sm:$0xf]
        %v3877 = vld [vmem:[%s3487 + $0x10] sm:$0xf]
        %v3878 = vld [vmem:[%s3487 + $0x14] sm:$0x1]
        %v3879 = vld [vmem:[%s3487 + $0x18] sm:$0xf]
        %v3880 = vld [vmem:[%s3487 + $0x1c] sm:$0xf]
        %v3881 = vld [vmem:[%s3487 + $0x20] sm:$0x1]
        %v3882 = vld [vmem:[%s3487 + $0x24] sm:$0xf]
        %v3883 = vld [vmem:[%s3487 + $0x28] sm:$0xf]
        %v3884 = vld [vmem:[%s3487 + $0x2c] sm:$0x1]
        %v3885 = vld [vmem:[%s3487 + $0x30] sm:$0xf]
        %v3886 = vld [vmem:[%s3487 + $0x34] sm:$0xf]
        %v3887 = vld [vmem:[%s3487 + $0x38] sm:$0x1]
        %v3888 = vld [vmem:[%s3487 + $0x3c] sm:$0xf]
        %v3889 = vld [vmem:[%s3487 + $0x40] sm:$0xf]
        %v3890 = vld [vmem:[%s3487 + $0x44] sm:$0x1]
        %v3891 = vld [vmem:[%s3487 + $0x48] sm:$0xf]
        %v3892 = vld [vmem:[%s3487 + $0x4c] sm:$0xf]
        %v3893 = vld [vmem:[%s3487 + $0x50] sm:$0x1]
        %v3894 = vld [vmem:[%s3487 + $0x54] sm:$0xf]
        %v3895 = vld [vmem:[%s3487 + $0x58] sm:$0xf]
        %v3896 = vld [vmem:[%s3487 + $0x5c] sm:$0x1]
        %v3897 = vld [vmem:[%s3487 + $0x60] sm:$0xf]
        %v3898 = vld [vmem:[%s3487 + $0x64] sm:$0xf]
        %v3899 = vld [vmem:[%s3487 + $0x68] sm:$0x1]
        %v3900 = vld [vmem:[%s3487 + $0x6c] sm:$0xf]
        %v3901 = vld [vmem:[%s3487 + $0x70] sm:$0xf]
        %v3902 = vld [vmem:[%s3487 + $0x74] sm:$0x1]
        %v3903 = vld [vmem:[%s3487 + $0x78] sm:$0xf]
        %v3904 = vld [vmem:[%s3487 + $0x7c] sm:$0xf]
        %v3905 = vld [vmem:[%s3487 + $0x80] sm:$0x1]
        %v3906 = vld [vmem:[%s3487 + $0x84] sm:$0xf]
        %v3907 = vld [vmem:[%s3487 + $0x88] sm:$0xf]
        %v3908 = vld [vmem:[%s3487 + $0x8c] sm:$0x1]
        %v3909 = vld [vmem:[%s3487 + $0x90] sm:$0xf]
        %v3910 = vld [vmem:[%s3487 + $0x94] sm:$0xf]
        %v3911 = vld [vmem:[%s3487 + $0x98] sm:$0x1]
        %v3912 = vld [vmem:[%s3487 + $0x9c] sm:$0xf]
        %v3913 = vld [vmem:[%s3487 + $0xa0] sm:$0xf]
        %v3914 = vld [vmem:[%s3487 + $0xa4] sm:$0x1]
        %v3915 = vld [vmem:[%s3487 + $0xa8] sm:$0xf]
        %v3916 = vld [vmem:[%s3487 + $0xac] sm:$0xf]
        %v3917 = vld [vmem:[%s3487 + $0xb0] sm:$0x1]
        %v3918 = vld [vmem:[%s3487 + $0xb4] sm:$0xf]
        %v3919 = vld [vmem:[%s3487 + $0xb8] sm:$0xf]
        %v3920 = vld [vmem:[%s3487 + $0xbc] sm:$0x1]
        %v3922 = vshrl.u32 %v3873, 16
        %v3924 = vrot.slane %v3922, 4
        %v3925 = vshll.u32 %v3873, 16
        %v3927 = vrot.slane %v3925, 5
        %v3928 = vor.u32 %v3924, %v3927
        %v3929 = vrot.slane %v3928, 4
        %v3931 = vshll.u32 %v3874, 16
        %v3933 = vrot.slane %v3931, 5
        %v3934 = vsel %vm388, %v3929, %v3933
        %v3935 = vshrl.u32 %v3874, 16
        %v3937 = vrot.slane %v3935, 4
        %v3938 = vor.u32 %v3937, %v3933
        %v3939 = vrot.slane %v3938, 4
        %v3941 = vshll.u32 %v3875, 16
        %v3943 = vrot.slane %v3941, 5
        %v3944 = vsel %vm388, %v3939, %v3943
        %v3946 = vshrl.u32 %v3876, 16
        %v3948 = vrot.slane %v3946, 4
        %v3949 = vshll.u32 %v3876, 16
        %v3951 = vrot.slane %v3949, 5
        %v3952 = vor.u32 %v3948, %v3951
        %v3953 = vrot.slane %v3952, 4
        %v3955 = vshll.u32 %v3877, 16
        %v3957 = vrot.slane %v3955, 5
        %v3958 = vsel %vm388, %v3953, %v3957
        %v3959 = vshrl.u32 %v3877, 16
        %v3961 = vrot.slane %v3959, 4
        %v3962 = vor.u32 %v3961, %v3957
        %v3963 = vrot.slane %v3962, 4
        %v3965 = vshll.u32 %v3878, 16
        %v3967 = vrot.slane %v3965, 5
        %v3968 = vsel %vm388, %v3963, %v3967
        %v3970 = vshrl.u32 %v3879, 16
        %v3972 = vrot.slane %v3970, 4
        %v3973 = vshll.u32 %v3879, 16
        %v3975 = vrot.slane %v3973, 5
        %v3976 = vor.u32 %v3972, %v3975
        %v3977 = vrot.slane %v3976, 4
        %v3979 = vshll.u32 %v3880, 16
        %v3981 = vrot.slane %v3979, 5
        %v3982 = vsel %vm388, %v3977, %v3981
        %v3983 = vshrl.u32 %v3880, 16
        %v3985 = vrot.slane %v3983, 4
        %v3986 = vor.u32 %v3985, %v3981
        %v3987 = vrot.slane %v3986, 4
        %v3989 = vshll.u32 %v3881, 16
        %v3991 = vrot.slane %v3989, 5
        %v3992 = vsel %vm388, %v3987, %v3991
        %v3994 = vshrl.u32 %v3882, 16
        %v3996 = vrot.slane %v3994, 4
        %v3997 = vshll.u32 %v3882, 16
        %v3999 = vrot.slane %v3997, 5
        %v4000 = vor.u32 %v3996, %v3999
        %v4001 = vrot.slane %v4000, 4
        %v4003 = vshll.u32 %v3883, 16
        %v4005 = vrot.slane %v4003, 5
        %v4006 = vsel %vm388, %v4001, %v4005
        %v4007 = vshrl.u32 %v3883, 16
        %v4009 = vrot.slane %v4007, 4
        %v4010 = vor.u32 %v4009, %v4005
        %v4011 = vrot.slane %v4010, 4
        %v4013 = vshll.u32 %v3884, 16
        %v4015 = vrot.slane %v4013, 5
        %v4016 = vsel %vm388, %v4011, %v4015
        %v4018 = vshrl.u32 %v3885, 16
        %v4020 = vrot.slane %v4018, 4
        %v4021 = vshll.u32 %v3885, 16
        %v4023 = vrot.slane %v4021, 5
        %v4024 = vor.u32 %v4020, %v4023
        %v4025 = vrot.slane %v4024, 4
        %v4027 = vshll.u32 %v3886, 16
        %v4029 = vrot.slane %v4027, 5
        %v4030 = vsel %vm388, %v4025, %v4029
        %v4031 = vshrl.u32 %v3886, 16
        %v4033 = vrot.slane %v4031, 4
        %v4034 = vor.u32 %v4033, %v4029
        %v4035 = vrot.slane %v4034, 4
        %v4037 = vshll.u32 %v3887, 16
        %v4039 = vrot.slane %v4037, 5
        %v4040 = vsel %vm388, %v4035, %v4039
        %v4042 = vshrl.u32 %v3888, 16
        %v4044 = vrot.slane %v4042, 4
        %v4045 = vshll.u32 %v3888, 16
        %v4047 = vrot.slane %v4045, 5
        %v4048 = vor.u32 %v4044, %v4047
        %v4049 = vrot.slane %v4048, 4
        %v4051 = vshll.u32 %v3889, 16
        %v4053 = vrot.slane %v4051, 5
        %v4054 = vsel %vm388, %v4049, %v4053
        %v4055 = vshrl.u32 %v3889, 16
        %v4057 = vrot.slane %v4055, 4
        %v4058 = vor.u32 %v4057, %v4053
        %v4059 = vrot.slane %v4058, 4
        %v4061 = vshll.u32 %v3890, 16
        %v4063 = vrot.slane %v4061, 5
        %v4064 = vsel %vm388, %v4059, %v4063
        %v4066 = vshrl.u32 %v3891, 16
        %v4068 = vrot.slane %v4066, 4
        %v4069 = vshll.u32 %v3891, 16
        %v4071 = vrot.slane %v4069, 5
        %v4072 = vor.u32 %v4068, %v4071
        %v4073 = vrot.slane %v4072, 4
        %v4075 = vshll.u32 %v3892, 16
        %v4077 = vrot.slane %v4075, 5
        %v4078 = vsel %vm388, %v4073, %v4077
        %v4079 = vshrl.u32 %v3892, 16
        %v4081 = vrot.slane %v4079, 4
        %v4082 = vor.u32 %v4081, %v4077
        %v4083 = vrot.slane %v4082, 4
        %v4085 = vshll.u32 %v3893, 16
        %v4087 = vrot.slane %v4085, 5
        %v4088 = vsel %vm388, %v4083, %v4087
        %v4090 = vshrl.u32 %v3894, 16
        %v4092 = vrot.slane %v4090, 4
        %v4093 = vshll.u32 %v3894, 16
        %v4095 = vrot.slane %v4093, 5
        %v4096 = vor.u32 %v4092, %v4095
        %v4097 = vrot.slane %v4096, 4
        %v4099 = vshll.u32 %v3895, 16
        %v4101 = vrot.slane %v4099, 5
        %v4102 = vsel %vm388, %v4097, %v4101
        %v4103 = vshrl.u32 %v3895, 16
        %v4105 = vrot.slane %v4103, 4
        %v4106 = vor.u32 %v4105, %v4101
        %v4107 = vrot.slane %v4106, 4
        %v4109 = vshll.u32 %v3896, 16
        %v4111 = vrot.slane %v4109, 5
        %v4112 = vsel %vm388, %v4107, %v4111
        %v4114 = vshrl.u32 %v3897, 16
        %v4116 = vrot.slane %v4114, 4
        %v4117 = vshll.u32 %v3897, 16
        %v4119 = vrot.slane %v4117, 5
        %v4120 = vor.u32 %v4116, %v4119
        %v4121 = vrot.slane %v4120, 4
        %v4123 = vshll.u32 %v3898, 16
        %v4125 = vrot.slane %v4123, 5
        %v4126 = vsel %vm388, %v4121, %v4125
        %v4127 = vshrl.u32 %v3898, 16
        %v4129 = vrot.slane %v4127, 4
        %v4130 = vor.u32 %v4129, %v4125
        %v4131 = vrot.slane %v4130, 4
        %v4133 = vshll.u32 %v3899, 16
        %v4135 = vrot.slane %v4133, 5
        %v4136 = vsel %vm388, %v4131, %v4135
        %v4138 = vshrl.u32 %v3900, 16
        %v4140 = vrot.slane %v4138, 4
        %v4141 = vshll.u32 %v3900, 16
        %v4143 = vrot.slane %v4141, 5
        %v4144 = vor.u32 %v4140, %v4143
        %v4145 = vrot.slane %v4144, 4
        %v4147 = vshll.u32 %v3901, 16
        %v4149 = vrot.slane %v4147, 5
        %v4150 = vsel %vm388, %v4145, %v4149
        %v4151 = vshrl.u32 %v3901, 16
        %v4153 = vrot.slane %v4151, 4
        %v4154 = vor.u32 %v4153, %v4149
        %v4155 = vrot.slane %v4154, 4
        %v4157 = vshll.u32 %v3902, 16
        %v4159 = vrot.slane %v4157, 5
        %v4160 = vsel %vm388, %v4155, %v4159
        %v4162 = vshrl.u32 %v3903, 16
        %v4164 = vrot.slane %v4162, 4
        %v4165 = vshll.u32 %v3903, 16
        %v4167 = vrot.slane %v4165, 5
        %v4168 = vor.u32 %v4164, %v4167
        %v4169 = vrot.slane %v4168, 4
        %v4171 = vshll.u32 %v3904, 16
        %v4173 = vrot.slane %v4171, 5
        %v4174 = vsel %vm388, %v4169, %v4173
        %v4175 = vshrl.u32 %v3904, 16
        %v4177 = vrot.slane %v4175, 4
        %v4178 = vor.u32 %v4177, %v4173
        %v4179 = vrot.slane %v4178, 4
        %v4181 = vshll.u32 %v3905, 16
        %v4183 = vrot.slane %v4181, 5
        %v4184 = vsel %vm388, %v4179, %v4183
        %v4186 = vshrl.u32 %v3906, 16
        %v4188 = vrot.slane %v4186, 4
        %v4189 = vshll.u32 %v3906, 16
        %v4191 = vrot.slane %v4189, 5
        %v4192 = vor.u32 %v4188, %v4191
        %v4193 = vrot.slane %v4192, 4
        %v4195 = vshll.u32 %v3907, 16
        %v4197 = vrot.slane %v4195, 5
        %v4198 = vsel %vm388, %v4193, %v4197
        %v4199 = vshrl.u32 %v3907, 16
        %v4201 = vrot.slane %v4199, 4
        %v4202 = vor.u32 %v4201, %v4197
        %v4203 = vrot.slane %v4202, 4
        %v4205 = vshll.u32 %v3908, 16
        %v4207 = vrot.slane %v4205, 5
        %v4208 = vsel %vm388, %v4203, %v4207
        %v4210 = vshrl.u32 %v3909, 16
        %v4212 = vrot.slane %v4210, 4
        %v4213 = vshll.u32 %v3909, 16
        %v4215 = vrot.slane %v4213, 5
        %v4216 = vor.u32 %v4212, %v4215
        %v4217 = vrot.slane %v4216, 4
        %v4219 = vshll.u32 %v3910, 16
        %v4221 = vrot.slane %v4219, 5
        %v4222 = vsel %vm388, %v4217, %v4221
        %v4223 = vshrl.u32 %v3910, 16
        %v4225 = vrot.slane %v4223, 4
        %v4226 = vor.u32 %v4225, %v4221
        %v4227 = vrot.slane %v4226, 4
        %v4229 = vshll.u32 %v3911, 16
        %v4231 = vrot.slane %v4229, 5
        %v4232 = vsel %vm388, %v4227, %v4231
        %v4234 = vshrl.u32 %v3912, 16
        %v4236 = vrot.slane %v4234, 4
        %v4237 = vshll.u32 %v3912, 16
        %v4239 = vrot.slane %v4237, 5
        %v4240 = vor.u32 %v4236, %v4239
        %v4241 = vrot.slane %v4240, 4
        %v4243 = vshll.u32 %v3913, 16
        %v4245 = vrot.slane %v4243, 5
        %v4246 = vsel %vm388, %v4241, %v4245
        %v4247 = vshrl.u32 %v3913, 16
        %v4249 = vrot.slane %v4247, 4
        %v4250 = vor.u32 %v4249, %v4245
        %v4251 = vrot.slane %v4250, 4
        %v4253 = vshll.u32 %v3914, 16
        %v4255 = vrot.slane %v4253, 5
        %v4256 = vsel %vm388, %v4251, %v4255
        %v4258 = vshrl.u32 %v3915, 16
        %v4260 = vrot.slane %v4258, 4
        %v4261 = vshll.u32 %v3915, 16
        %v4263 = vrot.slane %v4261, 5
        %v4264 = vor.u32 %v4260, %v4263
        %v4265 = vrot.slane %v4264, 4
        %v4267 = vshll.u32 %v3916, 16
        %v4269 = vrot.slane %v4267, 5
        %v4270 = vsel %vm388, %v4265, %v4269
        %v4271 = vshrl.u32 %v3916, 16
        %v4273 = vrot.slane %v4271, 4
        %v4274 = vor.u32 %v4273, %v4269
        %v4275 = vrot.slane %v4274, 4
        %v4277 = vshll.u32 %v3917, 16
        %v4279 = vrot.slane %v4277, 5
        %v4280 = vsel %vm388, %v4275, %v4279
        %v4282 = vshrl.u32 %v3918, 16
        %v4284 = vrot.slane %v4282, 4
        %v4285 = vshll.u32 %v3918, 16
        %v4287 = vrot.slane %v4285, 5
        %v4288 = vor.u32 %v4284, %v4287
        %v4289 = vrot.slane %v4288, 4
        %v4291 = vshll.u32 %v3919, 16
        %v4293 = vrot.slane %v4291, 5
        %v4294 = vsel %vm388, %v4289, %v4293
        %v4295 = vshrl.u32 %v3919, 16
        %v4297 = vrot.slane %v4295, 4
        %v4298 = vor.u32 %v4297, %v4293
        %v4299 = vrot.slane %v4298, 4
        %v4301 = vshll.u32 %v3920, 16
        %v4303 = vrot.slane %v4301, 5
        %v4304 = vsel %vm388, %v4299, %v4303
        %v4305 = vld [vmem:[%s1 + $0x1c0] sm:$0xf]
        %v4306 = vld [vmem:[%s1 + $0x1c4] sm:$0xf]
        %v4307 = vld [vmem:[%s1 + $0x1c8] sm:$0xf]
        %v4308 = vld [vmem:[%s1 + $0x1cc] sm:$0xf]
        %v4309 = vld [vmem:[%s1 + $0x1d0] sm:$0xf]
        %v4310 = vld [vmem:[%s1 + $0x1d4] sm:$0xf]
        %v4311 = vld [vmem:[%s1 + $0x1d8] sm:$0xf]
        %v4312 = vld [vmem:[%s1 + $0x1dc] sm:$0xf]
        %v4313 = vld [vmem:[%s1 + $0x1e0] sm:$0xf]
        %v4314 = vld [vmem:[%s1 + $0x1e4] sm:$0xf]
        %v4315 = vld [vmem:[%s1 + $0x1e8] sm:$0xf]
        %v4316 = vld [vmem:[%s1 + $0x1ec] sm:$0xf]
        %v4317 = vld [vmem:[%s1 + $0x1f0] sm:$0xf]
        %v4318 = vld [vmem:[%s1 + $0x1f4] sm:$0xf]
        %v4319 = vld [vmem:[%s1 + $0x1f8] sm:$0xf]
        %v4320 = vld [vmem:[%s1 + $0x1fc] sm:$0xf]
        %v4321 = vunpack.c.l.b16 %v3934
        %v4322 = vunpack.c.l.b16 %v3944
        %v4323 = vunpack.c.l.b16 %v3958
        %v4324 = vunpack.c.l.b16 %v3968
        %v4325 = vunpack.c.l.b16 %v3982
        %v4326 = vunpack.c.l.b16 %v3992
        %v4327 = vunpack.c.l.b16 %v4006
        %v4328 = vunpack.c.l.b16 %v4016
        %v4329 = vunpack.c.l.b16 %v4030
        %v4330 = vunpack.c.l.b16 %v4040
        %v4331 = vunpack.c.l.b16 %v4054
        %v4332 = vunpack.c.l.b16 %v4064
        %v4333 = vunpack.c.l.b16 %v4078
        %v4334 = vunpack.c.l.b16 %v4088
        %v4335 = vunpack.c.l.b16 %v4102
        %v4336 = vunpack.c.l.b16 %v4112
        %v4337 = vunpack.c.l.b16 %v4126
        %v4338 = vunpack.c.l.b16 %v4136
        %v4339 = vunpack.c.l.b16 %v4150
        %v4340 = vunpack.c.l.b16 %v4160
        %v4341 = vunpack.c.l.b16 %v4174
        %v4342 = vunpack.c.l.b16 %v4184
        %v4343 = vunpack.c.l.b16 %v4198
        %v4344 = vunpack.c.l.b16 %v4208
        %v4345 = vunpack.c.l.b16 %v4222
        %v4346 = vunpack.c.l.b16 %v4232
        %v4347 = vunpack.c.l.b16 %v4246
        %v4348 = vunpack.c.l.b16 %v4256
        %v4349 = vunpack.c.l.b16 %v4270
        %v4350 = vunpack.c.l.b16 %v4280
        %v4351 = vunpack.c.l.b16 %v4294
        %v4352 = vunpack.c.l.b16 %v4304
        %v4353 = vpack.c.b16 %v4322, %v4321
        %v4354 = vpack.c.b16 %v4324, %v4323
        %v4355 = vpack.c.b16 %v4326, %v4325
        %v4356 = vpack.c.b16 %v4328, %v4327
        %v4357 = vpack.c.b16 %v4330, %v4329
        %v4358 = vpack.c.b16 %v4332, %v4331
        %v4359 = vpack.c.b16 %v4334, %v4333
        %v4360 = vpack.c.b16 %v4336, %v4335
        %v4361 = vpack.c.b16 %v4338, %v4337
        %v4362 = vpack.c.b16 %v4340, %v4339
        %v4363 = vpack.c.b16 %v4342, %v4341
        %v4364 = vpack.c.b16 %v4344, %v4343
        %v4365 = vpack.c.b16 %v4346, %v4345
        %v4366 = vpack.c.b16 %v4348, %v4347
        %v4367 = vpack.c.b16 %v4350, %v4349
        %v4368 = vpack.c.b16 %v4352, %v4351
        %v4401 = vunpack.c.l.b16 %v4305
        %v4402 = vunpack.c.l.b16 %v4306
        %v4403 = vunpack.c.l.b16 %v4307
        %v4404 = vunpack.c.l.b16 %v4308
        %v4405 = vunpack.c.l.b16 %v4309
        %v4406 = vunpack.c.l.b16 %v4310
        %v4407 = vunpack.c.l.b16 %v4311
        %v4408 = vunpack.c.l.b16 %v4312
        %v4409 = vunpack.c.l.b16 %v4313
        %v4410 = vunpack.c.l.b16 %v4314
        %v4411 = vunpack.c.l.b16 %v4315
        %v4412 = vunpack.c.l.b16 %v4316
        %v4413 = vunpack.c.l.b16 %v4317
        %v4414 = vunpack.c.l.b16 %v4318
        %v4415 = vunpack.c.l.b16 %v4319
        %v4416 = vunpack.c.l.b16 %v4320
        %v4417 = vpack.c.b16 %v4402, %v4401
        %v4418 = vpack.c.b16 %v4404, %v4403
        %v4419 = vpack.c.b16 %v4406, %v4405
        %v4420 = vpack.c.b16 %v4408, %v4407
        %v4421 = vpack.c.b16 %v4410, %v4409
        %v4422 = vpack.c.b16 %v4412, %v4411
        %v4423 = vpack.c.b16 %v4414, %v4413
        %v4424 = vpack.c.b16 %v4416, %v4415
        %4433 = vmatprep.subr.bf16.mxu0 0
        %4434 = vmatpush1.bf16.msra.mxu0 %v4424
        %4435 = vmatprep.subr.bf16.mxu0 0
        %4436 = vmatpush1.bf16.msra.mxu0 %v4423
        %4437 = vmatprep.subr.bf16.mxu0 0
        %4438 = vmatpush1.bf16.msra.mxu0 %v4422
        %4439 = vmatprep.subr.bf16.mxu0 0
        %4440 = vmatpush1.bf16.msra.mxu0 %v4421
        %4441 = vmatprep.subr.bf16.mxu0 0
        %4442 = vmatpush1.bf16.msra.mxu0 %v4420
        %4443 = vmatprep.subr.bf16.mxu0 0
        %4444 = vmatpush1.bf16.msra.mxu0 %v4419
        %4445 = vmatprep.subr.bf16.mxu0 0
        %4446 = vmatpush1.bf16.msra.mxu0 %v4418
        %4447 = vmatprep.subr.bf16.mxu0 0
        %4448 = vmatpush1.bf16.msra.mxu0 %v4417
        %4449 = vmatprep.subr.bf16.mxu0 0
        %4450 = vmatpush2.bf16.msra.mxu0 0
        %4451 = vmatprep.subr.bf16.mxu0 0
        %4452 = vmatpush2.bf16.msra.mxu0 0
        %4453 = vmatprep.subr.bf16.mxu0 0
        %4454 = vmatpush2.bf16.msra.mxu0 0
        %4455 = vmatprep.subr.bf16.mxu0 0
        %4456 = vmatpush2.bf16.msra.mxu0 0
        %4457 = vmatprep.subr.bf16.mxu0 0
        %4458 = vmatpush2.bf16.msra.mxu0 0
        %4459 = vmatprep.subr.bf16.mxu0 0
        %4460 = vmatpush2.bf16.msra.mxu0 0
        %4461 = vmatprep.subr.bf16.mxu0 0
        %4462 = vmatpush2.bf16.msra.mxu0 0
        %4463 = vmatprep.subr.bf16.mxu0 0
        %4464 = vmatpush2.bf16.msra.mxu0 0
        %4465 = vmatprep.mubr.bf16.mxu0 0
        %4466 = vmatmul.mubr.bf16.gmra.mxu0 %v4353
        %v4467 = vpop.f32.mrf.mxu0
        %v4468 = vadd.f32 0.0, %v4467
        %v4469 = vpop.f32.mrf.mxu0
        %v4470 = vpop.f32.mrf.mxu0
        %v4471 = vadd.f32 0.0, %v4470
        %v4472 = vpop.f32.mrf.mxu0
        %4473 = vmatprep.mubr.bf16.mxu0 0
        %4474 = vmatmul.mubr.bf16.gmra.mxu0 %v4354
        %v4475 = vpop.f32.mrf.mxu0
        %v4476 = vadd.f32 0.0, %v4475
        %v4477 = vpop.f32.mrf.mxu0
        %v4478 = vpop.f32.mrf.mxu0
        %v4479 = vadd.f32 0.0, %v4478
        %v4480 = vpop.f32.mrf.mxu0
        %4481 = vmatprep.mubr.bf16.mxu0 0
        %4482 = vmatmul.mubr.bf16.gmra.mxu0 %v4355
        %v4483 = vpop.f32.mrf.mxu0
        %v4484 = vadd.f32 0.0, %v4483
        %v4485 = vpop.f32.mrf.mxu0
        %v4486 = vpop.f32.mrf.mxu0
        %v4487 = vadd.f32 0.0, %v4486
        %v4488 = vpop.f32.mrf.mxu0
        %4489 = vmatprep.mubr.bf16.mxu0 0
        %4490 = vmatmul.mubr.bf16.gmra.mxu0 %v4356
        %v4491 = vpop.f32.mrf.mxu0
        %v4492 = vadd.f32 0.0, %v4491
        %v4493 = vpop.f32.mrf.mxu0
        %v4494 = vpop.f32.mrf.mxu0
        %v4495 = vadd.f32 0.0, %v4494
        %v4496 = vpop.f32.mrf.mxu0
        %4497 = vmatprep.mubr.bf16.mxu0 0
        %4498 = vmatmul.mubr.bf16.gmra.mxu0 %v4357
        %v4499 = vpop.f32.mrf.mxu0
        %v4500 = vadd.f32 0.0, %v4499
        %v4501 = vpop.f32.mrf.mxu0
        %v4502 = vpop.f32.mrf.mxu0
        %v4503 = vadd.f32 0.0, %v4502
        %v4504 = vpop.f32.mrf.mxu0
        %4505 = vmatprep.mubr.bf16.mxu0 0
        %4506 = vmatmul.mubr.bf16.gmra.mxu0 %v4358
        %v4507 = vpop.f32.mrf.mxu0
        %v4508 = vadd.f32 0.0, %v4507
        %v4509 = vpop.f32.mrf.mxu0
        %v4510 = vpop.f32.mrf.mxu0
        %v4511 = vadd.f32 0.0, %v4510
        %v4512 = vpop.f32.mrf.mxu0
        %4513 = vmatprep.mubr.bf16.mxu0 0
        %4514 = vmatmul.mubr.bf16.gmra.mxu0 %v4359
        %v4515 = vpop.f32.mrf.mxu0
        %v4516 = vadd.f32 0.0, %v4515
        %v4517 = vpop.f32.mrf.mxu0
        %v4518 = vpop.f32.mrf.mxu0
        %v4519 = vadd.f32 0.0, %v4518
        %v4520 = vpop.f32.mrf.mxu0
        %4521 = vmatprep.mubr.bf16.mxu0 0
        %4522 = vmatmul.mubr.bf16.gmra.mxu0 %v4360
        %v4523 = vpop.f32.mrf.mxu0
        %v4524 = vadd.f32 0.0, %v4523
        %v4525 = vpop.f32.mrf.mxu0
        %v4526 = vpop.f32.mrf.mxu0
        %v4527 = vadd.f32 0.0, %v4526
        %v4528 = vpop.f32.mrf.mxu0
        %4529 = vmatprep.mubr.bf16.mxu0 0
        %4530 = vmatmul.mubr.bf16.gmra.mxu0 %v4361
        %v4531 = vpop.f32.mrf.mxu0
        %v4532 = vadd.f32 0.0, %v4531
        %v4533 = vpop.f32.mrf.mxu0
        %v4534 = vpop.f32.mrf.mxu0
        %v4535 = vadd.f32 0.0, %v4534
        %v4536 = vpop.f32.mrf.mxu0
        %4537 = vmatprep.mubr.bf16.mxu0 0
        %4538 = vmatmul.mubr.bf16.gmra.mxu0 %v4362
        %v4539 = vpop.f32.mrf.mxu0
        %v4540 = vadd.f32 0.0, %v4539
        %v4541 = vpop.f32.mrf.mxu0
        %v4542 = vpop.f32.mrf.mxu0
        %v4543 = vadd.f32 0.0, %v4542
        %v4544 = vpop.f32.mrf.mxu0
        %4545 = vmatprep.mubr.bf16.mxu0 0
        %4546 = vmatmul.mubr.bf16.gmra.mxu0 %v4363
        %v4547 = vpop.f32.mrf.mxu0
        %v4548 = vadd.f32 0.0, %v4547
        %v4549 = vpop.f32.mrf.mxu0
        %v4550 = vpop.f32.mrf.mxu0
        %v4551 = vadd.f32 0.0, %v4550
        %v4552 = vpop.f32.mrf.mxu0
        %4553 = vmatprep.mubr.bf16.mxu0 0
        %4554 = vmatmul.mubr.bf16.gmra.mxu0 %v4364
        %v4555 = vpop.f32.mrf.mxu0
        %v4556 = vadd.f32 0.0, %v4555
        %v4557 = vpop.f32.mrf.mxu0
        %v4558 = vpop.f32.mrf.mxu0
        %v4559 = vadd.f32 0.0, %v4558
        %v4560 = vpop.f32.mrf.mxu0
        %4561 = vmatprep.mubr.bf16.mxu0 0
        %4562 = vmatmul.mubr.bf16.gmra.mxu0 %v4365
        %v4563 = vpop.f32.mrf.mxu0
        %v4564 = vadd.f32 0.0, %v4563
        %v4565 = vpop.f32.mrf.mxu0
        %v4566 = vpop.f32.mrf.mxu0
        %v4567 = vadd.f32 0.0, %v4566
        %v4568 = vpop.f32.mrf.mxu0
        %4569 = vmatprep.mubr.bf16.mxu0 0
        %4570 = vmatmul.mubr.bf16.gmra.mxu0 %v4366
        %v4571 = vpop.f32.mrf.mxu0
        %v4572 = vadd.f32 0.0, %v4571
        %v4573 = vpop.f32.mrf.mxu0
        %v4574 = vpop.f32.mrf.mxu0
        %v4575 = vadd.f32 0.0, %v4574
        %v4576 = vpop.f32.mrf.mxu0
        %4577 = vmatprep.mubr.bf16.mxu0 0
        %4578 = vmatmul.mubr.bf16.gmra.mxu0 %v4367
        %v4579 = vpop.f32.mrf.mxu0
        %v4580 = vadd.f32 0.0, %v4579
        %v4581 = vpop.f32.mrf.mxu0
        %v4582 = vpop.f32.mrf.mxu0
        %v4583 = vadd.f32 0.0, %v4582
        %v4584 = vpop.f32.mrf.mxu0
        %4585 = vmatprep.mubr.bf16.mxu0 0
        %4586 = vmatmul.mubr.bf16.gmra.mxu0 %v4368
        %v4587 = vpop.f32.mrf.mxu0
        %v4588 = vadd.f32 0.0, %v4587
        %v4589 = vpop.f32.mrf.mxu0
        %v4590 = vpop.f32.mrf.mxu0
        %v4591 = vadd.f32 0.0, %v4590
        %v4592 = vpop.f32.mrf.mxu0
        %4593 = vdwg.mxu0
        %v4594 = vadd.f32 %v3841, %v4468
        %v4595 = vadd.f32 %v3842, %v4471
        %v4596 = vadd.f32 %v3843, %v4476
        %v4597 = vadd.f32 %v3844, %v4479
        %v4598 = vadd.f32 %v3845, %v4484
        %v4599 = vadd.f32 %v3846, %v4487
        %v4600 = vadd.f32 %v3847, %v4492
        %v4601 = vadd.f32 %v3848, %v4495
        %v4602 = vadd.f32 %v3849, %v4500
        %v4603 = vadd.f32 %v3850, %v4503
        %v4604 = vadd.f32 %v3851, %v4508
        %v4605 = vadd.f32 %v3852, %v4511
        %v4606 = vadd.f32 %v3853, %v4516
        %v4607 = vadd.f32 %v3854, %v4519
        %v4608 = vadd.f32 %v3855, %v4524
        %v4609 = vadd.f32 %v3856, %v4527
        %v4610 = vadd.f32 %v3857, %v4532
        %v4611 = vadd.f32 %v3858, %v4535
        %v4612 = vadd.f32 %v3859, %v4540
        %v4613 = vadd.f32 %v3860, %v4543
        %v4614 = vadd.f32 %v3861, %v4548
        %v4615 = vadd.f32 %v3862, %v4551
        %v4616 = vadd.f32 %v3863, %v4556
        %v4617 = vadd.f32 %v3864, %v4559
        %v4618 = vadd.f32 %v3865, %v4564
        %v4619 = vadd.f32 %v3866, %v4567
        %v4620 = vadd.f32 %v3867, %v4572
        %v4621 = vadd.f32 %v3868, %v4575
        %v4622 = vadd.f32 %v3869, %v4580
        %v4623 = vadd.f32 %v3870, %v4583
        %v4624 = vadd.f32 %v3871, %v4588
        %v4625 = vadd.f32 %v3872, %v4591
        %v4626 = vld [vmem:[%s3487] sm:$0xe]
        %v4627 = vld [vmem:[%s3487 + $0xc] sm:$0xe]
        %v4628 = vld [vmem:[%s3487 + $0x18] sm:$0xe]
        %v4629 = vld [vmem:[%s3487 + $0x24] sm:$0xe]
        %v4630 = vld [vmem:[%s3487 + $0x30] sm:$0xe]
        %v4631 = vld [vmem:[%s3487 + $0x3c] sm:$0xe]
        %v4632 = vld [vmem:[%s3487 + $0x48] sm:$0xe]
        %v4633 = vld [vmem:[%s3487 + $0x54] sm:$0xe]
        %v4634 = vld [vmem:[%s3487 + $0x60] sm:$0xe]
        %v4635 = vld [vmem:[%s3487 + $0x6c] sm:$0xe]
        %v4636 = vld [vmem:[%s3487 + $0x78] sm:$0xe]
        %v4637 = vld [vmem:[%s3487 + $0x84] sm:$0xe]
        %v4638 = vld [vmem:[%s3487 + $0x90] sm:$0xe]
        %v4639 = vld [vmem:[%s3487 + $0x9c] sm:$0xe]
        %v4640 = vld [vmem:[%s3487 + $0xa8] sm:$0xe]
        %v4641 = vld [vmem:[%s3487 + $0xb4] sm:$0xe]
        %v4690 = vrot.slane %v4626, 5
        %v4691 = vrot.slane %v4690, 4
        %v4692 = vrot.slane %v3874, 5
        %v4693 = vsel %vm1417, %v4691, %v4692
        %v4694 = vrot.slane %v4692, 4
        %v4695 = vrot.slane %v3875, 5
        %v4696 = vsel %vm1417, %v4694, %v4695
        %v4697 = vrot.slane %v4627, 5
        %v4698 = vrot.slane %v4697, 4
        %v4699 = vrot.slane %v3877, 5
        %v4700 = vsel %vm1417, %v4698, %v4699
        %v4701 = vrot.slane %v4699, 4
        %v4702 = vrot.slane %v3878, 5
        %v4703 = vsel %vm1417, %v4701, %v4702
        %v4704 = vrot.slane %v4628, 5
        %v4705 = vrot.slane %v4704, 4
        %v4706 = vrot.slane %v3880, 5
        %v4707 = vsel %vm1417, %v4705, %v4706
        %v4708 = vrot.slane %v4706, 4
        %v4709 = vrot.slane %v3881, 5
        %v4710 = vsel %vm1417, %v4708, %v4709
        %v4711 = vrot.slane %v4629, 5
        %v4712 = vrot.slane %v4711, 4
        %v4713 = vrot.slane %v3883, 5
        %v4714 = vsel %vm1417, %v4712, %v4713
        %v4715 = vrot.slane %v4713, 4
        %v4716 = vrot.slane %v3884, 5
        %v4717 = vsel %vm1417, %v4715, %v4716
        %v4718 = vrot.slane %v4630, 5
        %v4719 = vrot.slane %v4718, 4
        %v4720 = vrot.slane %v3886, 5
        %v4721 = vsel %vm1417, %v4719, %v4720
        %v4722 = vrot.slane %v4720, 4
        %v4723 = vrot.slane %v3887, 5
        %v4724 = vsel %vm1417, %v4722, %v4723
        %v4725 = vrot.slane %v4631, 5
        %v4726 = vrot.slane %v4725, 4
        %v4727 = vrot.slane %v3889, 5
        %v4728 = vsel %vm1417, %v4726, %v4727
        %v4729 = vrot.slane %v4727, 4
        %v4730 = vrot.slane %v3890, 5
        %v4731 = vsel %vm1417, %v4729, %v4730
        %v4732 = vrot.slane %v4632, 5
        %v4733 = vrot.slane %v4732, 4
        %v4734 = vrot.slane %v3892, 5
        %v4735 = vsel %vm1417, %v4733, %v4734
        %v4736 = vrot.slane %v4734, 4
        %v4737 = vrot.slane %v3893, 5
        %v4738 = vsel %vm1417, %v4736, %v4737
        %v4739 = vrot.slane %v4633, 5
        %v4740 = vrot.slane %v4739, 4
        %v4741 = vrot.slane %v3895, 5
        %v4742 = vsel %vm1417, %v4740, %v4741
        %v4743 = vrot.slane %v4741, 4
        %v4744 = vrot.slane %v3896, 5
        %v4745 = vsel %vm1417, %v4743, %v4744
        %v4746 = vrot.slane %v4634, 5
        %v4747 = vrot.slane %v4746, 4
        %v4748 = vrot.slane %v3898, 5
        %v4749 = vsel %vm1417, %v4747, %v4748
        %v4750 = vrot.slane %v4748, 4
        %v4751 = vrot.slane %v3899, 5
        %v4752 = vsel %vm1417, %v4750, %v4751
        %v4753 = vrot.slane %v4635, 5
        %v4754 = vrot.slane %v4753, 4
        %v4755 = vrot.slane %v3901, 5
        %v4756 = vsel %vm1417, %v4754, %v4755
        %v4757 = vrot.slane %v4755, 4
        %v4758 = vrot.slane %v3902, 5
        %v4759 = vsel %vm1417, %v4757, %v4758
        %v4760 = vrot.slane %v4636, 5
        %v4761 = vrot.slane %v4760, 4
        %v4762 = vrot.slane %v3904, 5
        %v4763 = vsel %vm1417, %v4761, %v4762
        %v4764 = vrot.slane %v4762, 4
        %v4765 = vrot.slane %v3905, 5
        %v4766 = vsel %vm1417, %v4764, %v4765
        %v4767 = vrot.slane %v4637, 5
        %v4768 = vrot.slane %v4767, 4
        %v4769 = vrot.slane %v3907, 5
        %v4770 = vsel %vm1417, %v4768, %v4769
        %v4771 = vrot.slane %v4769, 4
        %v4772 = vrot.slane %v3908, 5
        %v4773 = vsel %vm1417, %v4771, %v4772
        %v4774 = vrot.slane %v4638, 5
        %v4775 = vrot.slane %v4774, 4
        %v4776 = vrot.slane %v3910, 5
        %v4777 = vsel %vm1417, %v4775, %v4776
        %v4778 = vrot.slane %v4776, 4
        %v4779 = vrot.slane %v3911, 5
        %v4780 = vsel %vm1417, %v4778, %v4779
        %v4781 = vrot.slane %v4639, 5
        %v4782 = vrot.slane %v4781, 4
        %v4783 = vrot.slane %v3913, 5
        %v4784 = vsel %vm1417, %v4782, %v4783
        %v4785 = vrot.slane %v4783, 4
        %v4786 = vrot.slane %v3914, 5
        %v4787 = vsel %vm1417, %v4785, %v4786
        %v4788 = vrot.slane %v4640, 5
        %v4789 = vrot.slane %v4788, 4
        %v4790 = vrot.slane %v3916, 5
        %v4791 = vsel %vm1417, %v4789, %v4790
        %v4792 = vrot.slane %v4790, 4
        %v4793 = vrot.slane %v3917, 5
        %v4794 = vsel %vm1417, %v4792, %v4793
        %v4795 = vrot.slane %v4641, 5
        %v4796 = vrot.slane %v4795, 4
        %v4797 = vrot.slane %v3919, 5
        %v4798 = vsel %vm1417, %v4796, %v4797
        %v4799 = vrot.slane %v4797, 4
        %v4800 = vrot.slane %v3920, 5
        %v4801 = vsel %vm1417, %v4799, %v4800
        %v4802 = vld [vmem:[%s1 + $0x200] sm:$0xf]
        %v4803 = vld [vmem:[%s1 + $0x204] sm:$0xf]
        %v4804 = vld [vmem:[%s1 + $0x208] sm:$0xf]
        %v4805 = vld [vmem:[%s1 + $0x20c] sm:$0xf]
        %v4806 = vld [vmem:[%s1 + $0x210] sm:$0xf]
        %v4807 = vld [vmem:[%s1 + $0x214] sm:$0xf]
        %v4808 = vld [vmem:[%s1 + $0x218] sm:$0xf]
        %v4809 = vld [vmem:[%s1 + $0x21c] sm:$0xf]
        %v4810 = vld [vmem:[%s1 + $0x220] sm:$0xf]
        %v4811 = vld [vmem:[%s1 + $0x224] sm:$0xf]
        %v4812 = vld [vmem:[%s1 + $0x228] sm:$0xf]
        %v4813 = vld [vmem:[%s1 + $0x22c] sm:$0xf]
        %v4814 = vld [vmem:[%s1 + $0x230] sm:$0xf]
        %v4815 = vld [vmem:[%s1 + $0x234] sm:$0xf]
        %v4816 = vld [vmem:[%s1 + $0x238] sm:$0xf]
        %v4817 = vld [vmem:[%s1 + $0x23c] sm:$0xf]
        %v4818 = vunpack.c.l.b16 %v4693
        %v4819 = vunpack.c.l.b16 %v4696
        %v4820 = vunpack.c.l.b16 %v4700
        %v4821 = vunpack.c.l.b16 %v4703
        %v4822 = vunpack.c.l.b16 %v4707
        %v4823 = vunpack.c.l.b16 %v4710
        %v4824 = vunpack.c.l.b16 %v4714
        %v4825 = vunpack.c.l.b16 %v4717
        %v4826 = vunpack.c.l.b16 %v4721
        %v4827 = vunpack.c.l.b16 %v4724
        %v4828 = vunpack.c.l.b16 %v4728
        %v4829 = vunpack.c.l.b16 %v4731
        %v4830 = vunpack.c.l.b16 %v4735
        %v4831 = vunpack.c.l.b16 %v4738
        %v4832 = vunpack.c.l.b16 %v4742
        %v4833 = vunpack.c.l.b16 %v4745
        %v4834 = vunpack.c.l.b16 %v4749
        %v4835 = vunpack.c.l.b16 %v4752
        %v4836 = vunpack.c.l.b16 %v4756
        %v4837 = vunpack.c.l.b16 %v4759
        %v4838 = vunpack.c.l.b16 %v4763
        %v4839 = vunpack.c.l.b16 %v4766
        %v4840 = vunpack.c.l.b16 %v4770
        %v4841 = vunpack.c.l.b16 %v4773
        %v4842 = vunpack.c.l.b16 %v4777
        %v4843 = vunpack.c.l.b16 %v4780
        %v4844 = vunpack.c.l.b16 %v4784
        %v4845 = vunpack.c.l.b16 %v4787
        %v4846 = vunpack.c.l.b16 %v4791
        %v4847 = vunpack.c.l.b16 %v4794
        %v4848 = vunpack.c.l.b16 %v4798
        %v4849 = vunpack.c.l.b16 %v4801
        %v4850 = vpack.c.b16 %v4819, %v4818
        %v4851 = vpack.c.b16 %v4821, %v4820
        %v4852 = vpack.c.b16 %v4823, %v4822
        %v4853 = vpack.c.b16 %v4825, %v4824
        %v4854 = vpack.c.b16 %v4827, %v4826
        %v4855 = vpack.c.b16 %v4829, %v4828
        %v4856 = vpack.c.b16 %v4831, %v4830
        %v4857 = vpack.c.b16 %v4833, %v4832
        %v4858 = vpack.c.b16 %v4835, %v4834
        %v4859 = vpack.c.b16 %v4837, %v4836
        %v4860 = vpack.c.b16 %v4839, %v4838
        %v4861 = vpack.c.b16 %v4841, %v4840
        %v4862 = vpack.c.b16 %v4843, %v4842
        %v4863 = vpack.c.b16 %v4845, %v4844
        %v4864 = vpack.c.b16 %v4847, %v4846
        %v4865 = vpack.c.b16 %v4849, %v4848
        %v4898 = vunpack.c.l.b16 %v4802
        %v4899 = vunpack.c.l.b16 %v4803
        %v4900 = vunpack.c.l.b16 %v4804
        %v4901 = vunpack.c.l.b16 %v4805
        %v4902 = vunpack.c.l.b16 %v4806
        %v4903 = vunpack.c.l.b16 %v4807
        %v4904 = vunpack.c.l.b16 %v4808
        %v4905 = vunpack.c.l.b16 %v4809
        %v4906 = vunpack.c.l.b16 %v4810
        %v4907 = vunpack.c.l.b16 %v4811
        %v4908 = vunpack.c.l.b16 %v4812
        %v4909 = vunpack.c.l.b16 %v4813
        %v4910 = vunpack.c.l.b16 %v4814
        %v4911 = vunpack.c.l.b16 %v4815
        %v4912 = vunpack.c.l.b16 %v4816
        %v4913 = vunpack.c.l.b16 %v4817
        %v4914 = vpack.c.b16 %v4899, %v4898
        %v4915 = vpack.c.b16 %v4901, %v4900
        %v4916 = vpack.c.b16 %v4903, %v4902
        %v4917 = vpack.c.b16 %v4905, %v4904
        %v4918 = vpack.c.b16 %v4907, %v4906
        %v4919 = vpack.c.b16 %v4909, %v4908
        %v4920 = vpack.c.b16 %v4911, %v4910
        %v4921 = vpack.c.b16 %v4913, %v4912
        %4930 = vmatprep.subr.bf16.mxu0 0
        %4931 = vmatpush1.bf16.msra.mxu0 %v4921
        %4932 = vmatprep.subr.bf16.mxu0 0
        %4933 = vmatpush1.bf16.msra.mxu0 %v4920
        %4934 = vmatprep.subr.bf16.mxu0 0
        %4935 = vmatpush1.bf16.msra.mxu0 %v4919
        %4936 = vmatprep.subr.bf16.mxu0 0
        %4937 = vmatpush1.bf16.msra.mxu0 %v4918
        %4938 = vmatprep.subr.bf16.mxu0 0
        %4939 = vmatpush1.bf16.msra.mxu0 %v4917
        %4940 = vmatprep.subr.bf16.mxu0 0
        %4941 = vmatpush1.bf16.msra.mxu0 %v4916
        %4942 = vmatprep.subr.bf16.mxu0 0
        %4943 = vmatpush1.bf16.msra.mxu0 %v4915
        %4944 = vmatprep.subr.bf16.mxu0 0
        %4945 = vmatpush1.bf16.msra.mxu0 %v4914
        %4946 = vmatprep.subr.bf16.mxu0 0
        %4947 = vmatpush2.bf16.msra.mxu0 0
        %4948 = vmatprep.subr.bf16.mxu0 0
        %4949 = vmatpush2.bf16.msra.mxu0 0
        %4950 = vmatprep.subr.bf16.mxu0 0
        %4951 = vmatpush2.bf16.msra.mxu0 0
        %4952 = vmatprep.subr.bf16.mxu0 0
        %4953 = vmatpush2.bf16.msra.mxu0 0
        %4954 = vmatprep.subr.bf16.mxu0 0
        %4955 = vmatpush2.bf16.msra.mxu0 0
        %4956 = vmatprep.subr.bf16.mxu0 0
        %4957 = vmatpush2.bf16.msra.mxu0 0
        %4958 = vmatprep.subr.bf16.mxu0 0
        %4959 = vmatpush2.bf16.msra.mxu0 0
        %4960 = vmatprep.subr.bf16.mxu0 0
        %4961 = vmatpush2.bf16.msra.mxu0 0
        %4962 = vmatprep.mubr.bf16.mxu0 0
        %4963 = vmatmul.mubr.bf16.gmra.mxu0 %v4850
        %v4964 = vpop.f32.mrf.mxu0
        %v4965 = vadd.f32 0.0, %v4964
        %v4966 = vpop.f32.mrf.mxu0
        %v4967 = vpop.f32.mrf.mxu0
        %v4968 = vadd.f32 0.0, %v4967
        %v4969 = vpop.f32.mrf.mxu0
        %4970 = vmatprep.mubr.bf16.mxu0 0
        %4971 = vmatmul.mubr.bf16.gmra.mxu0 %v4851
        %v4972 = vpop.f32.mrf.mxu0
        %v4973 = vadd.f32 0.0, %v4972
        %v4974 = vpop.f32.mrf.mxu0
        %v4975 = vpop.f32.mrf.mxu0
        %v4976 = vadd.f32 0.0, %v4975
        %v4977 = vpop.f32.mrf.mxu0
        %4978 = vmatprep.mubr.bf16.mxu0 0
        %4979 = vmatmul.mubr.bf16.gmra.mxu0 %v4852
        %v4980 = vpop.f32.mrf.mxu0
        %v4981 = vadd.f32 0.0, %v4980
        %v4982 = vpop.f32.mrf.mxu0
        %v4983 = vpop.f32.mrf.mxu0
        %v4984 = vadd.f32 0.0, %v4983
        %v4985 = vpop.f32.mrf.mxu0
        %4986 = vmatprep.mubr.bf16.mxu0 0
        %4987 = vmatmul.mubr.bf16.gmra.mxu0 %v4853
        %v4988 = vpop.f32.mrf.mxu0
        %v4989 = vadd.f32 0.0, %v4988
        %v4990 = vpop.f32.mrf.mxu0
        %v4991 = vpop.f32.mrf.mxu0
        %v4992 = vadd.f32 0.0, %v4991
        %v4993 = vpop.f32.mrf.mxu0
        %4994 = vmatprep.mubr.bf16.mxu0 0
        %4995 = vmatmul.mubr.bf16.gmra.mxu0 %v4854
        %v4996 = vpop.f32.mrf.mxu0
        %v4997 = vadd.f32 0.0, %v4996
        %v4998 = vpop.f32.mrf.mxu0
        %v4999 = vpop.f32.mrf.mxu0
        %v5000 = vadd.f32 0.0, %v4999
        %v5001 = vpop.f32.mrf.mxu0
        %5002 = vmatprep.mubr.bf16.mxu0 0
        %5003 = vmatmul.mubr.bf16.gmra.mxu0 %v4855
        %v5004 = vpop.f32.mrf.mxu0
        %v5005 = vadd.f32 0.0, %v5004
        %v5006 = vpop.f32.mrf.mxu0
        %v5007 = vpop.f32.mrf.mxu0
        %v5008 = vadd.f32 0.0, %v5007
        %v5009 = vpop.f32.mrf.mxu0
        %5010 = vmatprep.mubr.bf16.mxu0 0
        %5011 = vmatmul.mubr.bf16.gmra.mxu0 %v4856
        %v5012 = vpop.f32.mrf.mxu0
        %v5013 = vadd.f32 0.0, %v5012
        %v5014 = vpop.f32.mrf.mxu0
        %v5015 = vpop.f32.mrf.mxu0
        %v5016 = vadd.f32 0.0, %v5015
        %v5017 = vpop.f32.mrf.mxu0
        %5018 = vmatprep.mubr.bf16.mxu0 0
        %5019 = vmatmul.mubr.bf16.gmra.mxu0 %v4857
        %v5020 = vpop.f32.mrf.mxu0
        %v5021 = vadd.f32 0.0, %v5020
        %v5022 = vpop.f32.mrf.mxu0
        %v5023 = vpop.f32.mrf.mxu0
        %v5024 = vadd.f32 0.0, %v5023
        %v5025 = vpop.f32.mrf.mxu0
        %5026 = vmatprep.mubr.bf16.mxu0 0
        %5027 = vmatmul.mubr.bf16.gmra.mxu0 %v4858
        %v5028 = vpop.f32.mrf.mxu0
        %v5029 = vadd.f32 0.0, %v5028
        %v5030 = vpop.f32.mrf.mxu0
        %v5031 = vpop.f32.mrf.mxu0
        %v5032 = vadd.f32 0.0, %v5031
        %v5033 = vpop.f32.mrf.mxu0
        %5034 = vmatprep.mubr.bf16.mxu0 0
        %5035 = vmatmul.mubr.bf16.gmra.mxu0 %v4859
        %v5036 = vpop.f32.mrf.mxu0
        %v5037 = vadd.f32 0.0, %v5036
        %v5038 = vpop.f32.mrf.mxu0
        %v5039 = vpop.f32.mrf.mxu0
        %v5040 = vadd.f32 0.0, %v5039
        %v5041 = vpop.f32.mrf.mxu0
        %5042 = vmatprep.mubr.bf16.mxu0 0
        %5043 = vmatmul.mubr.bf16.gmra.mxu0 %v4860
        %v5044 = vpop.f32.mrf.mxu0
        %v5045 = vadd.f32 0.0, %v5044
        %v5046 = vpop.f32.mrf.mxu0
        %v5047 = vpop.f32.mrf.mxu0
        %v5048 = vadd.f32 0.0, %v5047
        %v5049 = vpop.f32.mrf.mxu0
        %5050 = vmatprep.mubr.bf16.mxu0 0
        %5051 = vmatmul.mubr.bf16.gmra.mxu0 %v4861
        %v5052 = vpop.f32.mrf.mxu0
        %v5053 = vadd.f32 0.0, %v5052
        %v5054 = vpop.f32.mrf.mxu0
        %v5055 = vpop.f32.mrf.mxu0
        %v5056 = vadd.f32 0.0, %v5055
        %v5057 = vpop.f32.mrf.mxu0
        %5058 = vmatprep.mubr.bf16.mxu0 0
        %5059 = vmatmul.mubr.bf16.gmra.mxu0 %v4862
        %v5060 = vpop.f32.mrf.mxu0
        %v5061 = vadd.f32 0.0, %v5060
        %v5062 = vpop.f32.mrf.mxu0
        %v5063 = vpop.f32.mrf.mxu0
        %v5064 = vadd.f32 0.0, %v5063
        %v5065 = vpop.f32.mrf.mxu0
        %5066 = vmatprep.mubr.bf16.mxu0 0
        %5067 = vmatmul.mubr.bf16.gmra.mxu0 %v4863
        %v5068 = vpop.f32.mrf.mxu0
        %v5069 = vadd.f32 0.0, %v5068
        %v5070 = vpop.f32.mrf.mxu0
        %v5071 = vpop.f32.mrf.mxu0
        %v5072 = vadd.f32 0.0, %v5071
        %v5073 = vpop.f32.mrf.mxu0
        %5074 = vmatprep.mubr.bf16.mxu0 0
        %5075 = vmatmul.mubr.bf16.gmra.mxu0 %v4864
        %v5076 = vpop.f32.mrf.mxu0
        %v5077 = vadd.f32 0.0, %v5076
        %v5078 = vpop.f32.mrf.mxu0
        %v5079 = vpop.f32.mrf.mxu0
        %v5080 = vadd.f32 0.0, %v5079
        %v5081 = vpop.f32.mrf.mxu0
        %5082 = vmatprep.mubr.bf16.mxu0 0
        %5083 = vmatmul.mubr.bf16.gmra.mxu0 %v4865
        %v5084 = vpop.f32.mrf.mxu0
        %v5085 = vadd.f32 0.0, %v5084
        %v5086 = vpop.f32.mrf.mxu0
        %v5087 = vpop.f32.mrf.mxu0
        %v5088 = vadd.f32 0.0, %v5087
        %v5089 = vpop.f32.mrf.mxu0
        %5090 = vdwg.mxu0
        %v5091 = vadd.f32 %v4594, %v4965
        %v5092 = vadd.f32 %v4595, %v4968
        %v5093 = vadd.f32 %v4596, %v4973
        %v5094 = vadd.f32 %v4597, %v4976
        %v5095 = vadd.f32 %v4598, %v4981
        %v5096 = vadd.f32 %v4599, %v4984
        %v5097 = vadd.f32 %v4600, %v4989
        %v5098 = vadd.f32 %v4601, %v4992
        %v5099 = vadd.f32 %v4602, %v4997
        %v5100 = vadd.f32 %v4603, %v5000
        %v5101 = vadd.f32 %v4604, %v5005
        %v5102 = vadd.f32 %v4605, %v5008
        %v5103 = vadd.f32 %v4606, %v5013
        %v5104 = vadd.f32 %v4607, %v5016
        %v5105 = vadd.f32 %v4608, %v5021
        %v5106 = vadd.f32 %v4609, %v5024
        %v5107 = vadd.f32 %v4610, %v5029
        %v5108 = vadd.f32 %v4611, %v5032
        %v5109 = vadd.f32 %v4612, %v5037
        %v5110 = vadd.f32 %v4613, %v5040
        %v5111 = vadd.f32 %v4614, %v5045
        %v5112 = vadd.f32 %v4615, %v5048
        %v5113 = vadd.f32 %v4616, %v5053
        %v5114 = vadd.f32 %v4617, %v5056
        %v5115 = vadd.f32 %v4618, %v5061
        %v5116 = vadd.f32 %v4619, %v5064
        %v5117 = vadd.f32 %v4620, %v5069
        %v5118 = vadd.f32 %v4621, %v5072
        %v5119 = vadd.f32 %v4622, %v5077
        %v5120 = vadd.f32 %v4623, %v5080
        %v5121 = vadd.f32 %v4624, %v5085
        %v5122 = vadd.f32 %v4625, %v5088
        %v5123 = vld [vmem:[%s2] sm:$0x1]
        %v5125 = vlaneseq
        %v5126 = vshrl.u32 %v5125, 7
        %v5127 = vsub.s32 0, %v5126
        %v5128 = vrot.slane %v5123, %v5127
        %v5130 = vadd.f32 %v5091, %v5128
        %v5131 = vadd.f32 %v5092, %v5128
        %v5132 = vadd.f32 %v5093, %v5128
        %v5133 = vadd.f32 %v5094, %v5128
        %v5134 = vadd.f32 %v5095, %v5128
        %v5135 = vadd.f32 %v5096, %v5128
        %v5136 = vadd.f32 %v5097, %v5128
        %v5137 = vadd.f32 %v5098, %v5128
        %v5138 = vadd.f32 %v5099, %v5128
        %v5139 = vadd.f32 %v5100, %v5128
        %v5140 = vadd.f32 %v5101, %v5128
        %v5141 = vadd.f32 %v5102, %v5128
        %v5142 = vadd.f32 %v5103, %v5128
        %v5143 = vadd.f32 %v5104, %v5128
        %v5144 = vadd.f32 %v5105, %v5128
        %v5145 = vadd.f32 %v5106, %v5128
        %v5146 = vadd.f32 %v5107, %v5128
        %v5147 = vadd.f32 %v5108, %v5128
        %v5148 = vadd.f32 %v5109, %v5128
        %v5149 = vadd.f32 %v5110, %v5128
        %v5150 = vadd.f32 %v5111, %v5128
        %v5151 = vadd.f32 %v5112, %v5128
        %v5152 = vadd.f32 %v5113, %v5128
        %v5153 = vadd.f32 %v5114, %v5128
        %v5154 = vadd.f32 %v5115, %v5128
        %v5155 = vadd.f32 %v5116, %v5128
        %v5156 = vadd.f32 %v5117, %v5128
        %v5157 = vadd.f32 %v5118, %v5128
        %v5158 = vadd.f32 %v5119, %v5128
        %v5159 = vadd.f32 %v5120, %v5128
        %v5160 = vadd.f32 %v5121, %v5128
        %v5161 = vadd.f32 %v5122, %v5128
        %v5162 = vmax.f32 %v5130, 0.0
        %v5163 = vmax.f32 %v5131, 0.0
        %v5164 = vmax.f32 %v5132, 0.0
        %v5165 = vmax.f32 %v5133, 0.0
        %v5166 = vmax.f32 %v5134, 0.0
        %v5167 = vmax.f32 %v5135, 0.0
        %v5168 = vmax.f32 %v5136, 0.0
        %v5169 = vmax.f32 %v5137, 0.0
        %v5170 = vmax.f32 %v5138, 0.0
        %v5171 = vmax.f32 %v5139, 0.0
        %v5172 = vmax.f32 %v5140, 0.0
        %v5173 = vmax.f32 %v5141, 0.0
        %v5174 = vmax.f32 %v5142, 0.0
        %v5175 = vmax.f32 %v5143, 0.0
        %v5176 = vmax.f32 %v5144, 0.0
        %v5177 = vmax.f32 %v5145, 0.0
        %v5178 = vmax.f32 %v5146, 0.0
        %v5179 = vmax.f32 %v5147, 0.0
        %v5180 = vmax.f32 %v5148, 0.0
        %v5181 = vmax.f32 %v5149, 0.0
        %v5182 = vmax.f32 %v5150, 0.0
        %v5183 = vmax.f32 %v5151, 0.0
        %v5184 = vmax.f32 %v5152, 0.0
        %v5185 = vmax.f32 %v5153, 0.0
        %v5186 = vmax.f32 %v5154, 0.0
        %v5187 = vmax.f32 %v5155, 0.0
        %v5188 = vmax.f32 %v5156, 0.0
        %v5189 = vmax.f32 %v5157, 0.0
        %v5190 = vmax.f32 %v5158, 0.0
        %v5191 = vmax.f32 %v5159, 0.0
        %v5192 = vmax.f32 %v5160, 0.0
        %v5193 = vmax.f32 %v5161, 0.0
        %v5194 = vpack.c.bf16 %v5163, %v5162
        %v5195 = vpack.c.bf16 %v5165, %v5164
        %v5196 = vpack.c.bf16 %v5167, %v5166
        %v5197 = vpack.c.bf16 %v5169, %v5168
        %v5198 = vpack.c.bf16 %v5171, %v5170
        %v5199 = vpack.c.bf16 %v5173, %v5172
        %v5200 = vpack.c.bf16 %v5175, %v5174
        %v5201 = vpack.c.bf16 %v5177, %v5176
        %v5202 = vpack.c.bf16 %v5179, %v5178
        %v5203 = vpack.c.bf16 %v5181, %v5180
        %v5204 = vpack.c.bf16 %v5183, %v5182
        %v5205 = vpack.c.bf16 %v5185, %v5184
        %v5206 = vpack.c.bf16 %v5187, %v5186
        %v5207 = vpack.c.bf16 %v5189, %v5188
        %v5208 = vpack.c.bf16 %v5191, %v5190
        %v5209 = vpack.c.bf16 %v5193, %v5192
        %v5226 = vunpack.c.l.b16 %v5194
        %v5227 = vunpack.c.h.b16 %v5194
        %v5228 = vunpack.c.l.b16 %v5195
        %v5229 = vunpack.c.h.b16 %v5195
        %v5230 = vunpack.c.l.b16 %v5196
        %v5231 = vunpack.c.h.b16 %v5196
        %v5232 = vunpack.c.l.b16 %v5197
        %v5233 = vunpack.c.h.b16 %v5197
        %v5234 = vunpack.c.l.b16 %v5198
        %v5235 = vunpack.c.h.b16 %v5198
        %v5236 = vunpack.c.l.b16 %v5199
        %v5237 = vunpack.c.h.b16 %v5199
        %v5238 = vunpack.c.l.b16 %v5200
        %v5239 = vunpack.c.h.b16 %v5200
        %v5240 = vunpack.c.l.b16 %v5201
        %v5241 = vunpack.c.h.b16 %v5201
        %v5242 = vunpack.c.l.b16 %v5202
        %v5243 = vunpack.c.h.b16 %v5202
        %v5244 = vunpack.c.l.b16 %v5203
        %v5245 = vunpack.c.h.b16 %v5203
        %v5246 = vunpack.c.l.b16 %v5204
        %v5247 = vunpack.c.h.b16 %v5204
        %v5248 = vunpack.c.l.b16 %v5205
        %v5249 = vunpack.c.h.b16 %v5205
        %v5250 = vunpack.c.l.b16 %v5206
        %v5251 = vunpack.c.h.b16 %v5206
        %v5252 = vunpack.c.l.b16 %v5207
        %v5253 = vunpack.c.h.b16 %v5207
        %v5254 = vunpack.c.l.b16 %v5208
        %v5255 = vunpack.c.h.b16 %v5208
        %v5256 = vunpack.c.l.b16 %v5209
        %v5257 = vunpack.c.h.b16 %v5209
        %v5258 = vpack.c.b16 %v5226, %v5226
        %v5259 = vpack.c.b16 %v5227, %v5227
        %v5260 = vpack.c.b16 %v5228, %v5228
        %v5261 = vpack.c.b16 %v5229, %v5229
        %v5262 = vpack.c.b16 %v5230, %v5230
        %v5263 = vpack.c.b16 %v5231, %v5231
        %v5264 = vpack.c.b16 %v5232, %v5232
        %v5265 = vpack.c.b16 %v5233, %v5233
        %v5266 = vpack.c.b16 %v5234, %v5234
        %v5267 = vpack.c.b16 %v5235, %v5235
        %v5268 = vpack.c.b16 %v5236, %v5236
        %v5269 = vpack.c.b16 %v5237, %v5237
        %v5270 = vpack.c.b16 %v5238, %v5238
        %v5271 = vpack.c.b16 %v5239, %v5239
        %v5272 = vpack.c.b16 %v5240, %v5240
        %v5273 = vpack.c.b16 %v5241, %v5241
        %v5274 = vpack.c.b16 %v5242, %v5242
        %v5275 = vpack.c.b16 %v5243, %v5243
        %v5276 = vpack.c.b16 %v5244, %v5244
        %v5277 = vpack.c.b16 %v5245, %v5245
        %v5278 = vpack.c.b16 %v5246, %v5246
        %v5279 = vpack.c.b16 %v5247, %v5247
        %v5280 = vpack.c.b16 %v5248, %v5248
        %v5281 = vpack.c.b16 %v5249, %v5249
        %v5282 = vpack.c.b16 %v5250, %v5250
        %v5283 = vpack.c.b16 %v5251, %v5251
        %v5284 = vpack.c.b16 %v5252, %v5252
        %v5285 = vpack.c.b16 %v5253, %v5253
        %v5286 = vpack.c.b16 %v5254, %v5254
        %v5287 = vpack.c.b16 %v5255, %v5255
        %v5288 = vpack.c.b16 %v5256, %v5256
        %v5289 = vpack.c.b16 %v5257, %v5257
        %vm5290 = vsmask.f32 256
        %vm5291 = vsmask.f32 4368
        %vm5292 = vmor %vm5290, %vm5291
        %v5294 = vshrl.u32 %v5258, 16
        %v5296 = vrot.slane %v5294, 7
        %v5297 = vshll.u32 %v5258, 16
        %v5299 = vor.u32 %v5296, %v5297
        %v5300 = vrot.slane %v5296, 4
        %v5302 = vshrl.u32 %v5259, 16
        %v5304 = vrot.slane %v5302, 7
        %v5305 = vshll.u32 %v5259, 16
        %v5307 = vor.u32 %v5304, %v5305
        %v5308 = vsel %vm5292, %v5300, %v5307
        %v5309 = vrot.slane %v5304, 4
        %v5311 = vshrl.u32 %v5260, 16
        %v5313 = vrot.slane %v5311, 7
        %v5314 = vshll.u32 %v5260, 16
        %v5316 = vor.u32 %v5313, %v5314
        %v5317 = vrot.slane %v5313, 4
        %v5319 = vshrl.u32 %v5261, 16
        %v5321 = vrot.slane %v5319, 7
        %v5322 = vshll.u32 %v5261, 16
        %v5324 = vor.u32 %v5321, %v5322
        %v5325 = vsel %vm5292, %v5317, %v5324
        %v5326 = vrot.slane %v5321, 4
        %v5328 = vshrl.u32 %v5262, 16
        %v5330 = vrot.slane %v5328, 7
        %v5331 = vshll.u32 %v5262, 16
        %v5333 = vor.u32 %v5330, %v5331
        %v5334 = vrot.slane %v5330, 4
        %v5336 = vshrl.u32 %v5263, 16
        %v5338 = vrot.slane %v5336, 7
        %v5339 = vshll.u32 %v5263, 16
        %v5341 = vor.u32 %v5338, %v5339
        %v5342 = vsel %vm5292, %v5334, %v5341
        %v5343 = vrot.slane %v5338, 4
        %v5345 = vshrl.u32 %v5264, 16
        %v5347 = vrot.slane %v5345, 7
        %v5348 = vshll.u32 %v5264, 16
        %v5350 = vor.u32 %v5347, %v5348
        %v5351 = vrot.slane %v5347, 4
        %v5353 = vshrl.u32 %v5265, 16
        %v5355 = vrot.slane %v5353, 7
        %v5356 = vshll.u32 %v5265, 16
        %v5358 = vor.u32 %v5355, %v5356
        %v5359 = vsel %vm5292, %v5351, %v5358
        %v5360 = vrot.slane %v5355, 4
        %v5362 = vshrl.u32 %v5266, 16
        %v5364 = vrot.slane %v5362, 7
        %v5365 = vshll.u32 %v5266, 16
        %v5367 = vor.u32 %v5364, %v5365
        %v5368 = vrot.slane %v5364, 4
        %v5370 = vshrl.u32 %v5267, 16
        %v5372 = vrot.slane %v5370, 7
        %v5373 = vshll.u32 %v5267, 16
        %v5375 = vor.u32 %v5372, %v5373
        %v5376 = vsel %vm5292, %v5368, %v5375
        %v5377 = vrot.slane %v5372, 4
        %v5379 = vshrl.u32 %v5268, 16
        %v5381 = vrot.slane %v5379, 7
        %v5382 = vshll.u32 %v5268, 16
        %v5384 = vor.u32 %v5381, %v5382
        %v5385 = vrot.slane %v5381, 4
        %v5387 = vshrl.u32 %v5269, 16
        %v5389 = vrot.slane %v5387, 7
        %v5390 = vshll.u32 %v5269, 16
        %v5392 = vor.u32 %v5389, %v5390
        %v5393 = vsel %vm5292, %v5385, %v5392
        %v5394 = vrot.slane %v5389, 4
        %v5396 = vshrl.u32 %v5270, 16
        %v5398 = vrot.slane %v5396, 7
        %v5399 = vshll.u32 %v5270, 16
        %v5401 = vor.u32 %v5398, %v5399
        %v5402 = vrot.slane %v5398, 4
        %v5404 = vshrl.u32 %v5271, 16
        %v5406 = vrot.slane %v5404, 7
        %v5407 = vshll.u32 %v5271, 16
        %v5409 = vor.u32 %v5406, %v5407
        %v5410 = vsel %vm5292, %v5402, %v5409
        %v5411 = vrot.slane %v5406, 4
        %v5413 = vshrl.u32 %v5272, 16
        %v5415 = vrot.slane %v5413, 7
        %v5416 = vshll.u32 %v5272, 16
        %v5418 = vor.u32 %v5415, %v5416
        %v5419 = vrot.slane %v5415, 4
        %v5421 = vshrl.u32 %v5273, 16
        %v5423 = vrot.slane %v5421, 7
        %v5424 = vshll.u32 %v5273, 16
        %v5426 = vor.u32 %v5423, %v5424
        %v5427 = vsel %vm5292, %v5419, %v5426
        %v5428 = vrot.slane %v5423, 4
        %v5430 = vshrl.u32 %v5274, 16
        %v5432 = vrot.slane %v5430, 7
        %v5433 = vshll.u32 %v5274, 16
        %v5435 = vor.u32 %v5432, %v5433
        %v5436 = vrot.slane %v5432, 4
        %v5438 = vshrl.u32 %v5275, 16
        %v5440 = vrot.slane %v5438, 7
        %v5441 = vshll.u32 %v5275, 16
        %v5443 = vor.u32 %v5440, %v5441
        %v5444 = vsel %vm5292, %v5436, %v5443
        %v5445 = vrot.slane %v5440, 4
        %v5447 = vshrl.u32 %v5276, 16
        %v5449 = vrot.slane %v5447, 7
        %v5450 = vshll.u32 %v5276, 16
        %v5452 = vor.u32 %v5449, %v5450
        %v5453 = vrot.slane %v5449, 4
        %v5455 = vshrl.u32 %v5277, 16
        %v5457 = vrot.slane %v5455, 7
        %v5458 = vshll.u32 %v5277, 16
        %v5460 = vor.u32 %v5457, %v5458
        %v5461 = vsel %vm5292, %v5453, %v5460
        %v5462 = vrot.slane %v5457, 4
        %v5464 = vshrl.u32 %v5278, 16
        %v5466 = vrot.slane %v5464, 7
        %v5467 = vshll.u32 %v5278, 16
        %v5469 = vor.u32 %v5466, %v5467
        %v5470 = vrot.slane %v5466, 4
        %v5472 = vshrl.u32 %v5279, 16
        %v5474 = vrot.slane %v5472, 7
        %v5475 = vshll.u32 %v5279, 16
        %v5477 = vor.u32 %v5474, %v5475
        %v5478 = vsel %vm5292, %v5470, %v5477
        %v5479 = vrot.slane %v5474, 4
        %v5481 = vshrl.u32 %v5280, 16
        %v5483 = vrot.slane %v5481, 7
        %v5484 = vshll.u32 %v5280, 16
        %v5486 = vor.u32 %v5483, %v5484
        %v5487 = vrot.slane %v5483, 4
        %v5489 = vshrl.u32 %v5281, 16
        %v5491 = vrot.slane %v5489, 7
        %v5492 = vshll.u32 %v5281, 16
        %v5494 = vor.u32 %v5491, %v5492
        %v5495 = vsel %vm5292, %v5487, %v5494
        %v5496 = vrot.slane %v5491, 4
        %v5498 = vshrl.u32 %v5282, 16
        %v5500 = vrot.slane %v5498, 7
        %v5501 = vshll.u32 %v5282, 16
        %v5503 = vor.u32 %v5500, %v5501
        %v5504 = vrot.slane %v5500, 4
        %v5506 = vshrl.u32 %v5283, 16
        %v5508 = vrot.slane %v5506, 7
        %v5509 = vshll.u32 %v5283, 16
        %v5511 = vor.u32 %v5508, %v5509
        %v5512 = vsel %vm5292, %v5504, %v5511
        %v5513 = vrot.slane %v5508, 4
        %v5515 = vshrl.u32 %v5284, 16
        %v5517 = vrot.slane %v5515, 7
        %v5518 = vshll.u32 %v5284, 16
        %v5520 = vor.u32 %v5517, %v5518
        %v5521 = vrot.slane %v5517, 4
        %v5523 = vshrl.u32 %v5285, 16
        %v5525 = vrot.slane %v5523, 7
        %v5526 = vshll.u32 %v5285, 16
        %v5528 = vor.u32 %v5525, %v5526
        %v5529 = vsel %vm5292, %v5521, %v5528
        %v5530 = vrot.slane %v5525, 4
        %v5532 = vshrl.u32 %v5286, 16
        %v5534 = vrot.slane %v5532, 7
        %v5535 = vshll.u32 %v5286, 16
        %v5537 = vor.u32 %v5534, %v5535
        %v5538 = vrot.slane %v5534, 4
        %v5540 = vshrl.u32 %v5287, 16
        %v5542 = vrot.slane %v5540, 7
        %v5543 = vshll.u32 %v5287, 16
        %v5545 = vor.u32 %v5542, %v5543
        %v5546 = vsel %vm5292, %v5538, %v5545
        %v5547 = vrot.slane %v5542, 4
        %v5549 = vshrl.u32 %v5288, 16
        %v5551 = vrot.slane %v5549, 7
        %v5552 = vshll.u32 %v5288, 16
        %v5554 = vor.u32 %v5551, %v5552
        %v5555 = vrot.slane %v5551, 4
        %v5557 = vshrl.u32 %v5289, 16
        %v5559 = vrot.slane %v5557, 7
        %v5560 = vshll.u32 %v5289, 16
        %v5562 = vor.u32 %v5559, %v5560
        %v5563 = vsel %vm5292, %v5555, %v5562
        %v5564 = vrot.slane %v5559, 4
        %s5613 = scalar_lea.vmem [#allocation2], 12
        %vm5614 = vcmask 1043456
        %vm5615 = vsmask.f32 7938
        %vm5616 = vmand %vm5614, %vm5615
        %v5617 = vld [vmem:[%s5613] sm:$0xf]
        %v5618 = vsel %vm5616, %v5299, %v5617
        %5619 = vst [vmem:[%s5613] sm:$0xf] %v5618
        %5620 = vst [vmem:[%s5613 + $0x4] sm:$0xf] %v5308
        %vm5621 = vcmask 1040384
        %vm5622 = vmand %vm5621, %vm5290
        %v5623 = vld [vmem:[%s5613 + $0x8] sm:$0x1]
        %v5624 = vsel %vm5622, %v5309, %v5623
        %5625 = vst [vmem:[%s5613 + $0x8] sm:$0x1] %v5624
        %v5626 = vld [vmem:[%s5613 + $0xc] sm:$0xf]
        %v5627 = vsel %vm5616, %v5316, %v5626
        %5628 = vst [vmem:[%s5613 + $0xc] sm:$0xf] %v5627
        %5629 = vst [vmem:[%s5613 + $0x10] sm:$0xf] %v5325
        %v5630 = vld [vmem:[%s5613 + $0x14] sm:$0x1]
        %v5631 = vsel %vm5622, %v5326, %v5630
        %5632 = vst [vmem:[%s5613 + $0x14] sm:$0x1] %v5631
        %v5633 = vld [vmem:[%s5613 + $0x18] sm:$0xf]
        %v5634 = vsel %vm5616, %v5333, %v5633
        %5635 = vst [vmem:[%s5613 + $0x18] sm:$0xf] %v5634
        %5636 = vst [vmem:[%s5613 + $0x1c] sm:$0xf] %v5342
        %v5637 = vld [vmem:[%s5613 + $0x20] sm:$0x1]
        %v5638 = vsel %vm5622, %v5343, %v5637
        %5639 = vst [vmem:[%s5613 + $0x20] sm:$0x1] %v5638
        %v5640 = vld [vmem:[%s5613 + $0x24] sm:$0xf]
        %v5641 = vsel %vm5616, %v5350, %v5640
        %5642 = vst [vmem:[%s5613 + $0x24] sm:$0xf] %v5641
        %5643 = vst [vmem:[%s5613 + $0x28] sm:$0xf] %v5359
        %v5644 = vld [vmem:[%s5613 + $0x2c] sm:$0x1]
        %v5645 = vsel %vm5622, %v5360, %v5644
        %5646 = vst [vmem:[%s5613 + $0x2c] sm:$0x1] %v5645
        %v5647 = vld [vmem:[%s5613 + $0x30] sm:$0xf]
        %v5648 = vsel %vm5616, %v5367, %v5647
        %5649 = vst [vmem:[%s5613 + $0x30] sm:$0xf] %v5648
        %5650 = vst [vmem:[%s5613 + $0x34] sm:$0xf] %v5376
        %v5651 = vld [vmem:[%s5613 + $0x38] sm:$0x1]
        %v5652 = vsel %vm5622, %v5377, %v5651
        %5653 = vst [vmem:[%s5613 + $0x38] sm:$0x1] %v5652
        %v5654 = vld [vmem:[%s5613 + $0x3c] sm:$0xf]
        %v5655 = vsel %vm5616, %v5384, %v5654
        %5656 = vst [vmem:[%s5613 + $0x3c] sm:$0xf] %v5655
        %5657 = vst [vmem:[%s5613 + $0x40] sm:$0xf] %v5393
        %v5658 = vld [vmem:[%s5613 + $0x44] sm:$0x1]
        %v5659 = vsel %vm5622, %v5394, %v5658
        %5660 = vst [vmem:[%s5613 + $0x44] sm:$0x1] %v5659
        %v5661 = vld [vmem:[%s5613 + $0x48] sm:$0xf]
        %v5662 = vsel %vm5616, %v5401, %v5661
        %5663 = vst [vmem:[%s5613 + $0x48] sm:$0xf] %v5662
        %5664 = vst [vmem:[%s5613 + $0x4c] sm:$0xf] %v5410
        %v5665 = vld [vmem:[%s5613 + $0x50] sm:$0x1]
        %v5666 = vsel %vm5622, %v5411, %v5665
        %5667 = vst [vmem:[%s5613 + $0x50] sm:$0x1] %v5666
        %v5668 = vld [vmem:[%s5613 + $0x54] sm:$0xf]
        %v5669 = vsel %vm5616, %v5418, %v5668
        %5670 = vst [vmem:[%s5613 + $0x54] sm:$0xf] %v5669
        %5671 = vst [vmem:[%s5613 + $0x58] sm:$0xf] %v5427
        %v5672 = vld [vmem:[%s5613 + $0x5c] sm:$0x1]
        %v5673 = vsel %vm5622, %v5428, %v5672
        %5674 = vst [vmem:[%s5613 + $0x5c] sm:$0x1] %v5673
        %v5675 = vld [vmem:[%s5613 + $0x60] sm:$0xf]
        %v5676 = vsel %vm5616, %v5435, %v5675
        %5677 = vst [vmem:[%s5613 + $0x60] sm:$0xf] %v5676
        %5678 = vst [vmem:[%s5613 + $0x64] sm:$0xf] %v5444
        %v5679 = vld [vmem:[%s5613 + $0x68] sm:$0x1]
        %v5680 = vsel %vm5622, %v5445, %v5679
        %5681 = vst [vmem:[%s5613 + $0x68] sm:$0x1] %v5680
        %v5682 = vld [vmem:[%s5613 + $0x6c] sm:$0xf]
        %v5683 = vsel %vm5616, %v5452, %v5682
        %5684 = vst [vmem:[%s5613 + $0x6c] sm:$0xf] %v5683
        %5685 = vst [vmem:[%s5613 + $0x70] sm:$0xf] %v5461
        %v5686 = vld [vmem:[%s5613 + $0x74] sm:$0x1]
        %v5687 = vsel %vm5622, %v5462, %v5686
        %5688 = vst [vmem:[%s5613 + $0x74] sm:$0x1] %v5687
        %v5689 = vld [vmem:[%s5613 + $0x78] sm:$0xf]
        %v5690 = vsel %vm5616, %v5469, %v5689
        %5691 = vst [vmem:[%s5613 + $0x78] sm:$0xf] %v5690
        %5692 = vst [vmem:[%s5613 + $0x7c] sm:$0xf] %v5478
        %v5693 = vld [vmem:[%s5613 + $0x80] sm:$0x1]
        %v5694 = vsel %vm5622, %v5479, %v5693
        %5695 = vst [vmem:[%s5613 + $0x80] sm:$0x1] %v5694
        %v5696 = vld [vmem:[%s5613 + $0x84] sm:$0xf]
        %v5697 = vsel %vm5616, %v5486, %v5696
        %5698 = vst [vmem:[%s5613 + $0x84] sm:$0xf] %v5697
        %5699 = vst [vmem:[%s5613 + $0x88] sm:$0xf] %v5495
        %v5700 = vld [vmem:[%s5613 + $0x8c] sm:$0x1]
        %v5701 = vsel %vm5622, %v5496, %v5700
        %5702 = vst [vmem:[%s5613 + $0x8c] sm:$0x1] %v5701
        %v5703 = vld [vmem:[%s5613 + $0x90] sm:$0xf]
        %v5704 = vsel %vm5616, %v5503, %v5703
        %5705 = vst [vmem:[%s5613 + $0x90] sm:$0xf] %v5704
        %5706 = vst [vmem:[%s5613 + $0x94] sm:$0xf] %v5512
        %v5707 = vld [vmem:[%s5613 + $0x98] sm:$0x1]
        %v5708 = vsel %vm5622, %v5513, %v5707
        %5709 = vst [vmem:[%s5613 + $0x98] sm:$0x1] %v5708
        %v5710 = vld [vmem:[%s5613 + $0x9c] sm:$0xf]
        %v5711 = vsel %vm5616, %v5520, %v5710
        %5712 = vst [vmem:[%s5613 + $0x9c] sm:$0xf] %v5711
        %5713 = vst [vmem:[%s5613 + $0xa0] sm:$0xf] %v5529
        %v5714 = vld [vmem:[%s5613 + $0xa4] sm:$0x1]
        %v5715 = vsel %vm5622, %v5530, %v5714
        %5716 = vst [vmem:[%s5613 + $0xa4] sm:$0x1] %v5715
        %v5717 = vld [vmem:[%s5613 + $0xa8] sm:$0xf]
        %v5718 = vsel %vm5616, %v5537, %v5717
        %5719 = vst [vmem:[%s5613 + $0xa8] sm:$0xf] %v5718
        %5720 = vst [vmem:[%s5613 + $0xac] sm:$0xf] %v5546
        %v5721 = vld [vmem:[%s5613 + $0xb0] sm:$0x1]
        %v5722 = vsel %vm5622, %v5547, %v5721
        %5723 = vst [vmem:[%s5613 + $0xb0] sm:$0x1] %v5722
        %v5724 = vld [vmem:[%s5613 + $0xb4] sm:$0xf]
        %v5725 = vsel %vm5616, %v5554, %v5724
        %5726 = vst [vmem:[%s5613 + $0xb4] sm:$0xf] %v5725
        %5727 = vst [vmem:[%s5613 + $0xb8] sm:$0xf] %v5563
        %v5728 = vld [vmem:[%s5613 + $0xbc] sm:$0x1]
        %v5729 = vsel %vm5622, %v5564, %v5728
        %5730 = vst [vmem:[%s5613 + $0xbc] sm:$0x1] %v5729
        %v5731 = vld [vmem:[#allocation2] sm:$0xf]
        %v5732 = vld [vmem:[#allocation2 + $0x4] sm:$0xf]
        %v5733 = vld [vmem:[#allocation2 + $0xc] sm:$0xf]
        %v5734 = vld [vmem:[#allocation2 + $0x10] sm:$0xf]
        %v5735 = vld [vmem:[#allocation2 + $0x18] sm:$0xf]
        %v5736 = vld [vmem:[#allocation2 + $0x1c] sm:$0xf]
        %v5737 = vld [vmem:[#allocation2 + $0x24] sm:$0xf]
        %v5738 = vld [vmem:[#allocation2 + $0x28] sm:$0xf]
        %v5739 = vld [vmem:[#allocation2 + $0x30] sm:$0xf]
        %v5740 = vld [vmem:[#allocation2 + $0x34] sm:$0xf]
        %v5741 = vld [vmem:[#allocation2 + $0x3c] sm:$0xf]
        %v5742 = vld [vmem:[#allocation2 + $0x40] sm:$0xf]
        %v5743 = vld [vmem:[#allocation2 + $0x48] sm:$0xf]
        %v5744 = vld [vmem:[#allocation2 + $0x4c] sm:$0xf]
        %v5745 = vld [vmem:[#allocation2 + $0x54] sm:$0xf]
        %v5746 = vld [vmem:[#allocation2 + $0x58] sm:$0xf]
        %v5747 = vld [vmem:[#allocation2 + $0x60] sm:$0xf]
        %v5748 = vld [vmem:[#allocation2 + $0x64] sm:$0xf]
        %v5749 = vld [vmem:[#allocation2 + $0x6c] sm:$0xf]
        %v5750 = vld [vmem:[#allocation2 + $0x70] sm:$0xf]
        %v5751 = vld [vmem:[#allocation2 + $0x78] sm:$0xf]
        %v5752 = vld [vmem:[#allocation2 + $0x7c] sm:$0xf]
        %v5753 = vld [vmem:[#allocation2 + $0x84] sm:$0xf]
        %v5754 = vld [vmem:[#allocation2 + $0x88] sm:$0xf]
        %v5755 = vld [vmem:[#allocation2 + $0x90] sm:$0xf]
        %v5756 = vld [vmem:[#allocation2 + $0x94] sm:$0xf]
        %v5757 = vld [vmem:[#allocation2 + $0x9c] sm:$0xf]
        %v5758 = vld [vmem:[#allocation2 + $0xa0] sm:$0xf]
        %v5759 = vld [vmem:[#allocation2 + $0xa8] sm:$0xf]
        %v5760 = vld [vmem:[#allocation2 + $0xac] sm:$0xf]
        %v5761 = vld [vmem:[#allocation2 + $0xb4] sm:$0xf]
        %v5762 = vld [vmem:[#allocation2 + $0xb8] sm:$0xf]
        %v5763 = vld [vmem:[%s3] sm:$0xf]
        %v5764 = vld [vmem:[%s3 + $0x4] sm:$0xf]
        %v5765 = vld [vmem:[%s3 + $0x8] sm:$0xf]
        %v5766 = vld [vmem:[%s3 + $0xc] sm:$0xf]
        %v5767 = vld [vmem:[%s3 + $0x10] sm:$0xf]
        %v5768 = vld [vmem:[%s3 + $0x14] sm:$0xf]
        %v5769 = vld [vmem:[%s3 + $0x18] sm:$0xf]
        %v5770 = vld [vmem:[%s3 + $0x1c] sm:$0xf]
        %v5771 = vld [vmem:[%s3 + $0x20] sm:$0xf]
        %v5772 = vld [vmem:[%s3 + $0x24] sm:$0xf]
        %v5773 = vld [vmem:[%s3 + $0x28] sm:$0xf]
        %v5774 = vld [vmem:[%s3 + $0x2c] sm:$0xf]
        %v5775 = vld [vmem:[%s3 + $0x30] sm:$0xf]
        %v5776 = vld [vmem:[%s3 + $0x34] sm:$0xf]
        %v5777 = vld [vmem:[%s3 + $0x38] sm:$0xf]
        %v5778 = vld [vmem:[%s3 + $0x3c] sm:$0xf]
        %v5779 = vld [vmem:[#allocation2 + $0x8] sm:$0x1]
        %v5780 = vld [vmem:[#allocation2 + $0x14] sm:$0x1]
        %v5781 = vld [vmem:[#allocation2 + $0x20] sm:$0x1]
        %v5782 = vld [vmem:[#allocation2 + $0x2c] sm:$0x1]
        %v5783 = vld [vmem:[#allocation2 + $0x38] sm:$0x1]
        %v5784 = vld [vmem:[#allocation2 + $0x44] sm:$0x1]
        %v5785 = vld [vmem:[#allocation2 + $0x50] sm:$0x1]
        %v5786 = vld [vmem:[#allocation2 + $0x5c] sm:$0x1]
        %v5787 = vld [vmem:[#allocation2 + $0x68] sm:$0x1]
        %v5788 = vld [vmem:[#allocation2 + $0x74] sm:$0x1]
        %v5789 = vld [vmem:[#allocation2 + $0x80] sm:$0x1]
        %v5790 = vld [vmem:[#allocation2 + $0x8c] sm:$0x1]
        %v5791 = vld [vmem:[#allocation2 + $0x98] sm:$0x1]
        %v5792 = vld [vmem:[#allocation2 + $0xa4] sm:$0x1]
        %v5793 = vld [vmem:[#allocation2 + $0xb0] sm:$0x1]
        %v5794 = vld [vmem:[#allocation2 + $0xbc] sm:$0x1]
        %v5796 = vshrl.u32 %v5731, 16
        %v5798 = vrot.slane %v5796, 4
        %v5799 = vshll.u32 %v5731, 16
        %v5801 = vrot.slane %v5799, 5
        %v5802 = vor.u32 %v5798, %v5801
        %v5803 = vrot.slane %v5802, 4
        %v5805 = vshll.u32 %v5732, 16
        %v5807 = vrot.slane %v5805, 5
        %v5808 = vsel %vm388, %v5803, %v5807
        %v5809 = vshrl.u32 %v5732, 16
        %v5811 = vrot.slane %v5809, 4
        %v5812 = vor.u32 %v5811, %v5807
        %v5813 = vrot.slane %v5812, 4
        %v5815 = vshll.u32 %v5779, 16
        %v5817 = vrot.slane %v5815, 5
        %v5818 = vsel %vm388, %v5813, %v5817
        %v5820 = vshrl.u32 %v5733, 16
        %v5822 = vrot.slane %v5820, 4
        %v5823 = vshll.u32 %v5733, 16
        %v5825 = vrot.slane %v5823, 5
        %v5826 = vor.u32 %v5822, %v5825
        %v5827 = vrot.slane %v5826, 4
        %v5829 = vshll.u32 %v5734, 16
        %v5831 = vrot.slane %v5829, 5
        %v5832 = vsel %vm388, %v5827, %v5831
        %v5833 = vshrl.u32 %v5734, 16
        %v5835 = vrot.slane %v5833, 4
        %v5836 = vor.u32 %v5835, %v5831
        %v5837 = vrot.slane %v5836, 4
        %v5839 = vshll.u32 %v5780, 16
        %v5841 = vrot.slane %v5839, 5
        %v5842 = vsel %vm388, %v5837, %v5841
        %v5844 = vshrl.u32 %v5735, 16
        %v5846 = vrot.slane %v5844, 4
        %v5847 = vshll.u32 %v5735, 16
        %v5849 = vrot.slane %v5847, 5
        %v5850 = vor.u32 %v5846, %v5849
        %v5851 = vrot.slane %v5850, 4
        %v5853 = vshll.u32 %v5736, 16
        %v5855 = vrot.slane %v5853, 5
        %v5856 = vsel %vm388, %v5851, %v5855
        %v5857 = vshrl.u32 %v5736, 16
        %v5859 = vrot.slane %v5857, 4
        %v5860 = vor.u32 %v5859, %v5855
        %v5861 = vrot.slane %v5860, 4
        %v5863 = vshll.u32 %v5781, 16
        %v5865 = vrot.slane %v5863, 5
        %v5866 = vsel %vm388, %v5861, %v5865
        %v5868 = vshrl.u32 %v5737, 16
        %v5870 = vrot.slane %v5868, 4
        %v5871 = vshll.u32 %v5737, 16
        %v5873 = vrot.slane %v5871, 5
        %v5874 = vor.u32 %v5870, %v5873
        %v5875 = vrot.slane %v5874, 4
        %v5877 = vshll.u32 %v5738, 16
        %v5879 = vrot.slane %v5877, 5
        %v5880 = vsel %vm388, %v5875, %v5879
        %v5881 = vshrl.u32 %v5738, 16
        %v5883 = vrot.slane %v5881, 4
        %v5884 = vor.u32 %v5883, %v5879
        %v5885 = vrot.slane %v5884, 4
        %v5887 = vshll.u32 %v5782, 16
        %v5889 = vrot.slane %v5887, 5
        %v5890 = vsel %vm388, %v5885, %v5889
        %v5892 = vshrl.u32 %v5739, 16
        %v5894 = vrot.slane %v5892, 4
        %v5895 = vshll.u32 %v5739, 16
        %v5897 = vrot.slane %v5895, 5
        %v5898 = vor.u32 %v5894, %v5897
        %v5899 = vrot.slane %v5898, 4
        %v5901 = vshll.u32 %v5740, 16
        %v5903 = vrot.slane %v5901, 5
        %v5904 = vsel %vm388, %v5899, %v5903
        %v5905 = vshrl.u32 %v5740, 16
        %v5907 = vrot.slane %v5905, 4
        %v5908 = vor.u32 %v5907, %v5903
        %v5909 = vrot.slane %v5908, 4
        %v5911 = vshll.u32 %v5783, 16
        %v5913 = vrot.slane %v5911, 5
        %v5914 = vsel %vm388, %v5909, %v5913
        %v5916 = vshrl.u32 %v5741, 16
        %v5918 = vrot.slane %v5916, 4
        %v5919 = vshll.u32 %v5741, 16
        %v5921 = vrot.slane %v5919, 5
        %v5922 = vor.u32 %v5918, %v5921
        %v5923 = vrot.slane %v5922, 4
        %v5925 = vshll.u32 %v5742, 16
        %v5927 = vrot.slane %v5925, 5
        %v5928 = vsel %vm388, %v5923, %v5927
        %v5929 = vshrl.u32 %v5742, 16
        %v5931 = vrot.slane %v5929, 4
        %v5932 = vor.u32 %v5931, %v5927
        %v5933 = vrot.slane %v5932, 4
        %v5935 = vshll.u32 %v5784, 16
        %v5937 = vrot.slane %v5935, 5
        %v5938 = vsel %vm388, %v5933, %v5937
        %v5940 = vshrl.u32 %v5743, 16
        %v5942 = vrot.slane %v5940, 4
        %v5943 = vshll.u32 %v5743, 16
        %v5945 = vrot.slane %v5943, 5
        %v5946 = vor.u32 %v5942, %v5945
        %v5947 = vrot.slane %v5946, 4
        %v5949 = vshll.u32 %v5744, 16
        %v5951 = vrot.slane %v5949, 5
        %v5952 = vsel %vm388, %v5947, %v5951
        %v5953 = vshrl.u32 %v5744, 16
        %v5955 = vrot.slane %v5953, 4
        %v5956 = vor.u32 %v5955, %v5951
        %v5957 = vrot.slane %v5956, 4
        %v5959 = vshll.u32 %v5785, 16
        %v5961 = vrot.slane %v5959, 5
        %v5962 = vsel %vm388, %v5957, %v5961
        %v5964 = vshrl.u32 %v5745, 16
        %v5966 = vrot.slane %v5964, 4
        %v5967 = vshll.u32 %v5745, 16
        %v5969 = vrot.slane %v5967, 5
        %v5970 = vor.u32 %v5966, %v5969
        %v5971 = vrot.slane %v5970, 4
        %v5973 = vshll.u32 %v5746, 16
        %v5975 = vrot.slane %v5973, 5
        %v5976 = vsel %vm388, %v5971, %v5975
        %v5977 = vshrl.u32 %v5746, 16
        %v5979 = vrot.slane %v5977, 4
        %v5980 = vor.u32 %v5979, %v5975
        %v5981 = vrot.slane %v5980, 4
        %v5983 = vshll.u32 %v5786, 16
        %v5985 = vrot.slane %v5983, 5
        %v5986 = vsel %vm388, %v5981, %v5985
        %v5988 = vshrl.u32 %v5747, 16
        %v5990 = vrot.slane %v5988, 4
        %v5991 = vshll.u32 %v5747, 16
        %v5993 = vrot.slane %v5991, 5
        %v5994 = vor.u32 %v5990, %v5993
        %v5995 = vrot.slane %v5994, 4
        %v5997 = vshll.u32 %v5748, 16
        %v5999 = vrot.slane %v5997, 5
        %v6000 = vsel %vm388, %v5995, %v5999
        %v6001 = vshrl.u32 %v5748, 16
        %v6003 = vrot.slane %v6001, 4
        %v6004 = vor.u32 %v6003, %v5999
        %v6005 = vrot.slane %v6004, 4
        %v6007 = vshll.u32 %v5787, 16
        %v6009 = vrot.slane %v6007, 5
        %v6010 = vsel %vm388, %v6005, %v6009
        %v6012 = vshrl.u32 %v5749, 16
        %v6014 = vrot.slane %v6012, 4
        %v6015 = vshll.u32 %v5749, 16
        %v6017 = vrot.slane %v6015, 5
        %v6018 = vor.u32 %v6014, %v6017
        %v6019 = vrot.slane %v6018, 4
        %v6021 = vshll.u32 %v5750, 16
        %v6023 = vrot.slane %v6021, 5
        %v6024 = vsel %vm388, %v6019, %v6023
        %v6025 = vshrl.u32 %v5750, 16
        %v6027 = vrot.slane %v6025, 4
        %v6028 = vor.u32 %v6027, %v6023
        %v6029 = vrot.slane %v6028, 4
        %v6031 = vshll.u32 %v5788, 16
        %v6033 = vrot.slane %v6031, 5
        %v6034 = vsel %vm388, %v6029, %v6033
        %v6036 = vshrl.u32 %v5751, 16
        %v6038 = vrot.slane %v6036, 4
        %v6039 = vshll.u32 %v5751, 16
        %v6041 = vrot.slane %v6039, 5
        %v6042 = vor.u32 %v6038, %v6041
        %v6043 = vrot.slane %v6042, 4
        %v6045 = vshll.u32 %v5752, 16
        %v6047 = vrot.slane %v6045, 5
        %v6048 = vsel %vm388, %v6043, %v6047
        %v6049 = vshrl.u32 %v5752, 16
        %v6051 = vrot.slane %v6049, 4
        %v6052 = vor.u32 %v6051, %v6047
        %v6053 = vrot.slane %v6052, 4
        %v6055 = vshll.u32 %v5789, 16
        %v6057 = vrot.slane %v6055, 5
        %v6058 = vsel %vm388, %v6053, %v6057
        %v6060 = vshrl.u32 %v5753, 16
        %v6062 = vrot.slane %v6060, 4
        %v6063 = vshll.u32 %v5753, 16
        %v6065 = vrot.slane %v6063, 5
        %v6066 = vor.u32 %v6062, %v6065
        %v6067 = vrot.slane %v6066, 4
        %v6069 = vshll.u32 %v5754, 16
        %v6071 = vrot.slane %v6069, 5
        %v6072 = vsel %vm388, %v6067, %v6071
        %v6073 = vshrl.u32 %v5754, 16
        %v6075 = vrot.slane %v6073, 4
        %v6076 = vor.u32 %v6075, %v6071
        %v6077 = vrot.slane %v6076, 4
        %v6079 = vshll.u32 %v5790, 16
        %v6081 = vrot.slane %v6079, 5
        %v6082 = vsel %vm388, %v6077, %v6081
        %v6084 = vshrl.u32 %v5755, 16
        %v6086 = vrot.slane %v6084, 4
        %v6087 = vshll.u32 %v5755, 16
        %v6089 = vrot.slane %v6087, 5
        %v6090 = vor.u32 %v6086, %v6089
        %v6091 = vrot.slane %v6090, 4
        %v6093 = vshll.u32 %v5756, 16
        %v6095 = vrot.slane %v6093, 5
        %v6096 = vsel %vm388, %v6091, %v6095
        %v6097 = vshrl.u32 %v5756, 16
        %v6099 = vrot.slane %v6097, 4
        %v6100 = vor.u32 %v6099, %v6095
        %v6101 = vrot.slane %v6100, 4
        %v6103 = vshll.u32 %v5791, 16
        %v6105 = vrot.slane %v6103, 5
        %v6106 = vsel %vm388, %v6101, %v6105
        %v6108 = vshrl.u32 %v5757, 16
        %v6110 = vrot.slane %v6108, 4
        %v6111 = vshll.u32 %v5757, 16
        %v6113 = vrot.slane %v6111, 5
        %v6114 = vor.u32 %v6110, %v6113
        %v6115 = vrot.slane %v6114, 4
        %v6117 = vshll.u32 %v5758, 16
        %v6119 = vrot.slane %v6117, 5
        %v6120 = vsel %vm388, %v6115, %v6119
        %v6121 = vshrl.u32 %v5758, 16
        %v6123 = vrot.slane %v6121, 4
        %v6124 = vor.u32 %v6123, %v6119
        %v6125 = vrot.slane %v6124, 4
        %v6127 = vshll.u32 %v5792, 16
        %v6129 = vrot.slane %v6127, 5
        %v6130 = vsel %vm388, %v6125, %v6129
        %v6132 = vshrl.u32 %v5759, 16
        %v6134 = vrot.slane %v6132, 4
        %v6135 = vshll.u32 %v5759, 16
        %v6137 = vrot.slane %v6135, 5
        %v6138 = vor.u32 %v6134, %v6137
        %v6139 = vrot.slane %v6138, 4
        %v6141 = vshll.u32 %v5760, 16
        %v6143 = vrot.slane %v6141, 5
        %v6144 = vsel %vm388, %v6139, %v6143
        %v6145 = vshrl.u32 %v5760, 16
        %v6147 = vrot.slane %v6145, 4
        %v6148 = vor.u32 %v6147, %v6143
        %v6149 = vrot.slane %v6148, 4
        %v6151 = vshll.u32 %v5793, 16
        %v6153 = vrot.slane %v6151, 5
        %v6154 = vsel %vm388, %v6149, %v6153
        %v6156 = vshrl.u32 %v5761, 16
        %v6158 = vrot.slane %v6156, 4
        %v6159 = vshll.u32 %v5761, 16
        %v6161 = vrot.slane %v6159, 5
        %v6162 = vor.u32 %v6158, %v6161
        %v6163 = vrot.slane %v6162, 4
        %v6165 = vshll.u32 %v5762, 16
        %v6167 = vrot.slane %v6165, 5
        %v6168 = vsel %vm388, %v6163, %v6167
        %v6169 = vshrl.u32 %v5762, 16
        %v6171 = vrot.slane %v6169, 4
        %v6172 = vor.u32 %v6171, %v6167
        %v6173 = vrot.slane %v6172, 4
        %v6175 = vshll.u32 %v5794, 16
        %v6177 = vrot.slane %v6175, 5
        %v6178 = vsel %vm388, %v6173, %v6177
        %v6179 = vld [vmem:[%s3 + $0x40] sm:$0xf]
        %v6180 = vld [vmem:[%s3 + $0x44] sm:$0xf]
        %v6181 = vld [vmem:[%s3 + $0x48] sm:$0xf]
        %v6182 = vld [vmem:[%s3 + $0x4c] sm:$0xf]
        %v6183 = vld [vmem:[%s3 + $0x50] sm:$0xf]
        %v6184 = vld [vmem:[%s3 + $0x54] sm:$0xf]
        %v6185 = vld [vmem:[%s3 + $0x58] sm:$0xf]
        %v6186 = vld [vmem:[%s3 + $0x5c] sm:$0xf]
        %v6187 = vld [vmem:[%s3 + $0x60] sm:$0xf]
        %v6188 = vld [vmem:[%s3 + $0x64] sm:$0xf]
        %v6189 = vld [vmem:[%s3 + $0x68] sm:$0xf]
        %v6190 = vld [vmem:[%s3 + $0x6c] sm:$0xf]
        %v6191 = vld [vmem:[%s3 + $0x70] sm:$0xf]
        %v6192 = vld [vmem:[%s3 + $0x74] sm:$0xf]
        %v6193 = vld [vmem:[%s3 + $0x78] sm:$0xf]
        %v6194 = vld [vmem:[%s3 + $0x7c] sm:$0xf]
        %v6195 = vunpack.c.l.b16 %v5808
        %v6196 = vunpack.c.l.b16 %v5818
        %v6197 = vunpack.c.l.b16 %v5832
        %v6198 = vunpack.c.l.b16 %v5842
        %v6199 = vunpack.c.l.b16 %v5856
        %v6200 = vunpack.c.l.b16 %v5866
        %v6201 = vunpack.c.l.b16 %v5880
        %v6202 = vunpack.c.l.b16 %v5890
        %v6203 = vunpack.c.l.b16 %v5904
        %v6204 = vunpack.c.l.b16 %v5914
        %v6205 = vunpack.c.l.b16 %v5928
        %v6206 = vunpack.c.l.b16 %v5938
        %v6207 = vunpack.c.l.b16 %v5952
        %v6208 = vunpack.c.l.b16 %v5962
        %v6209 = vunpack.c.l.b16 %v5976
        %v6210 = vunpack.c.l.b16 %v5986
        %v6211 = vunpack.c.l.b16 %v6000
        %v6212 = vunpack.c.l.b16 %v6010
        %v6213 = vunpack.c.l.b16 %v6024
        %v6214 = vunpack.c.l.b16 %v6034
        %v6215 = vunpack.c.l.b16 %v6048
        %v6216 = vunpack.c.l.b16 %v6058
        %v6217 = vunpack.c.l.b16 %v6072
        %v6218 = vunpack.c.l.b16 %v6082
        %v6219 = vunpack.c.l.b16 %v6096
        %v6220 = vunpack.c.l.b16 %v6106
        %v6221 = vunpack.c.l.b16 %v6120
        %v6222 = vunpack.c.l.b16 %v6130
        %v6223 = vunpack.c.l.b16 %v6144
        %v6224 = vunpack.c.l.b16 %v6154
        %v6225 = vunpack.c.l.b16 %v6168
        %v6226 = vunpack.c.l.b16 %v6178
        %v6227 = vpack.c.b16 %v6196, %v6195
        %v6228 = vpack.c.b16 %v6198, %v6197
        %v6229 = vpack.c.b16 %v6200, %v6199
        %v6230 = vpack.c.b16 %v6202, %v6201
        %v6231 = vpack.c.b16 %v6204, %v6203
        %v6232 = vpack.c.b16 %v6206, %v6205
        %v6233 = vpack.c.b16 %v6208, %v6207
        %v6234 = vpack.c.b16 %v6210, %v6209
        %v6235 = vpack.c.b16 %v6212, %v6211
        %v6236 = vpack.c.b16 %v6214, %v6213
        %v6237 = vpack.c.b16 %v6216, %v6215
        %v6238 = vpack.c.b16 %v6218, %v6217
        %v6239 = vpack.c.b16 %v6220, %v6219
        %v6240 = vpack.c.b16 %v6222, %v6221
        %v6241 = vpack.c.b16 %v6224, %v6223
        %v6242 = vpack.c.b16 %v6226, %v6225
        %v6275 = vunpack.c.l.b16 %v6179
        %v6276 = vunpack.c.l.b16 %v6180
        %v6277 = vunpack.c.l.b16 %v6181
        %v6278 = vunpack.c.l.b16 %v6182
        %v6279 = vunpack.c.l.b16 %v6183
        %v6280 = vunpack.c.l.b16 %v6184
        %v6281 = vunpack.c.l.b16 %v6185
        %v6282 = vunpack.c.l.b16 %v6186
        %v6283 = vunpack.c.l.b16 %v6187
        %v6284 = vunpack.c.l.b16 %v6188
        %v6285 = vunpack.c.l.b16 %v6189
        %v6286 = vunpack.c.l.b16 %v6190
        %v6287 = vunpack.c.l.b16 %v6191
        %v6288 = vunpack.c.l.b16 %v6192
        %v6289 = vunpack.c.l.b16 %v6193
        %v6290 = vunpack.c.l.b16 %v6194
        %v6291 = vpack.c.b16 %v6276, %v6275
        %v6292 = vpack.c.b16 %v6278, %v6277
        %v6293 = vpack.c.b16 %v6280, %v6279
        %v6294 = vpack.c.b16 %v6282, %v6281
        %v6295 = vpack.c.b16 %v6284, %v6283
        %v6296 = vpack.c.b16 %v6286, %v6285
        %v6297 = vpack.c.b16 %v6288, %v6287
        %v6298 = vpack.c.b16 %v6290, %v6289
        %6307 = vmatprep.subr.bf16.mxu0 0
        %6308 = vmatpush1.bf16.msra.mxu0 %v6298
        %6309 = vmatprep.subr.bf16.mxu0 0
        %6310 = vmatpush1.bf16.msra.mxu0 %v6297
        %6311 = vmatprep.subr.bf16.mxu0 0
        %6312 = vmatpush1.bf16.msra.mxu0 %v6296
        %6313 = vmatprep.subr.bf16.mxu0 0
        %6314 = vmatpush1.bf16.msra.mxu0 %v6295
        %6315 = vmatprep.subr.bf16.mxu0 0
        %6316 = vmatpush1.bf16.msra.mxu0 %v6294
        %6317 = vmatprep.subr.bf16.mxu0 0
        %6318 = vmatpush1.bf16.msra.mxu0 %v6293
        %6319 = vmatprep.subr.bf16.mxu0 0
        %6320 = vmatpush1.bf16.msra.mxu0 %v6292
        %6321 = vmatprep.subr.bf16.mxu0 0
        %6322 = vmatpush1.bf16.msra.mxu0 %v6291
        %6323 = vmatprep.subr.bf16.mxu0 0
        %6324 = vmatpush2.bf16.msra.mxu0 0
        %6325 = vmatprep.subr.bf16.mxu0 0
        %6326 = vmatpush2.bf16.msra.mxu0 0
        %6327 = vmatprep.subr.bf16.mxu0 0
        %6328 = vmatpush2.bf16.msra.mxu0 0
        %6329 = vmatprep.subr.bf16.mxu0 0
        %6330 = vmatpush2.bf16.msra.mxu0 0
        %6331 = vmatprep.subr.bf16.mxu0 0
        %6332 = vmatpush2.bf16.msra.mxu0 0
        %6333 = vmatprep.subr.bf16.mxu0 0
        %6334 = vmatpush2.bf16.msra.mxu0 0
        %6335 = vmatprep.subr.bf16.mxu0 0
        %6336 = vmatpush2.bf16.msra.mxu0 0
        %6337 = vmatprep.subr.bf16.mxu0 0
        %6338 = vmatpush2.bf16.msra.mxu0 0
        %6339 = vmatprep.mubr.bf16.mxu0 0
        %6340 = vmatmul.mubr.bf16.gmra.mxu0 %v6227
        %v6341 = vpop.f32.mrf.mxu0
        %v6342 = vadd.f32 0.0, %v6341
        %v6343 = vpop.f32.mrf.mxu0
        %v6344 = vpop.f32.mrf.mxu0
        %v6345 = vadd.f32 0.0, %v6344
        %v6346 = vpop.f32.mrf.mxu0
        %6347 = vmatprep.mubr.bf16.mxu0 0
        %6348 = vmatmul.mubr.bf16.gmra.mxu0 %v6228
        %v6349 = vpop.f32.mrf.mxu0
        %v6350 = vadd.f32 0.0, %v6349
        %v6351 = vpop.f32.mrf.mxu0
        %v6352 = vpop.f32.mrf.mxu0
        %v6353 = vadd.f32 0.0, %v6352
        %v6354 = vpop.f32.mrf.mxu0
        %6355 = vmatprep.mubr.bf16.mxu0 0
        %6356 = vmatmul.mubr.bf16.gmra.mxu0 %v6229
        %v6357 = vpop.f32.mrf.mxu0
        %v6358 = vadd.f32 0.0, %v6357
        %v6359 = vpop.f32.mrf.mxu0
        %v6360 = vpop.f32.mrf.mxu0
        %v6361 = vadd.f32 0.0, %v6360
        %v6362 = vpop.f32.mrf.mxu0
        %6363 = vmatprep.mubr.bf16.mxu0 0
        %6364 = vmatmul.mubr.bf16.gmra.mxu0 %v6230
        %v6365 = vpop.f32.mrf.mxu0
        %v6366 = vadd.f32 0.0, %v6365
        %v6367 = vpop.f32.mrf.mxu0
        %v6368 = vpop.f32.mrf.mxu0
        %v6369 = vadd.f32 0.0, %v6368
        %v6370 = vpop.f32.mrf.mxu0
        %6371 = vmatprep.mubr.bf16.mxu0 0
        %6372 = vmatmul.mubr.bf16.gmra.mxu0 %v6231
        %v6373 = vpop.f32.mrf.mxu0
        %v6374 = vadd.f32 0.0, %v6373
        %v6375 = vpop.f32.mrf.mxu0
        %v6376 = vpop.f32.mrf.mxu0
        %v6377 = vadd.f32 0.0, %v6376
        %v6378 = vpop.f32.mrf.mxu0
        %6379 = vmatprep.mubr.bf16.mxu0 0
        %6380 = vmatmul.mubr.bf16.gmra.mxu0 %v6232
        %v6381 = vpop.f32.mrf.mxu0
        %v6382 = vadd.f32 0.0, %v6381
        %v6383 = vpop.f32.mrf.mxu0
        %v6384 = vpop.f32.mrf.mxu0
        %v6385 = vadd.f32 0.0, %v6384
        %v6386 = vpop.f32.mrf.mxu0
        %6387 = vmatprep.mubr.bf16.mxu0 0
        %6388 = vmatmul.mubr.bf16.gmra.mxu0 %v6233
        %v6389 = vpop.f32.mrf.mxu0
        %v6390 = vadd.f32 0.0, %v6389
        %v6391 = vpop.f32.mrf.mxu0
        %v6392 = vpop.f32.mrf.mxu0
        %v6393 = vadd.f32 0.0, %v6392
        %v6394 = vpop.f32.mrf.mxu0
        %6395 = vmatprep.mubr.bf16.mxu0 0
        %6396 = vmatmul.mubr.bf16.gmra.mxu0 %v6234
        %v6397 = vpop.f32.mrf.mxu0
        %v6398 = vadd.f32 0.0, %v6397
        %v6399 = vpop.f32.mrf.mxu0
        %v6400 = vpop.f32.mrf.mxu0
        %v6401 = vadd.f32 0.0, %v6400
        %v6402 = vpop.f32.mrf.mxu0
        %6403 = vmatprep.mubr.bf16.mxu0 0
        %6404 = vmatmul.mubr.bf16.gmra.mxu0 %v6235
        %v6405 = vpop.f32.mrf.mxu0
        %v6406 = vadd.f32 0.0, %v6405
        %v6407 = vpop.f32.mrf.mxu0
        %v6408 = vpop.f32.mrf.mxu0
        %v6409 = vadd.f32 0.0, %v6408
        %v6410 = vpop.f32.mrf.mxu0
        %6411 = vmatprep.mubr.bf16.mxu0 0
        %6412 = vmatmul.mubr.bf16.gmra.mxu0 %v6236
        %v6413 = vpop.f32.mrf.mxu0
        %v6414 = vadd.f32 0.0, %v6413
        %v6415 = vpop.f32.mrf.mxu0
        %v6416 = vpop.f32.mrf.mxu0
        %v6417 = vadd.f32 0.0, %v6416
        %v6418 = vpop.f32.mrf.mxu0
        %6419 = vmatprep.mubr.bf16.mxu0 0
        %6420 = vmatmul.mubr.bf16.gmra.mxu0 %v6237
        %v6421 = vpop.f32.mrf.mxu0
        %v6422 = vadd.f32 0.0, %v6421
        %v6423 = vpop.f32.mrf.mxu0
        %v6424 = vpop.f32.mrf.mxu0
        %v6425 = vadd.f32 0.0, %v6424
        %v6426 = vpop.f32.mrf.mxu0
        %6427 = vmatprep.mubr.bf16.mxu0 0
        %6428 = vmatmul.mubr.bf16.gmra.mxu0 %v6238
        %v6429 = vpop.f32.mrf.mxu0
        %v6430 = vadd.f32 0.0, %v6429
        %v6431 = vpop.f32.mrf.mxu0
        %v6432 = vpop.f32.mrf.mxu0
        %v6433 = vadd.f32 0.0, %v6432
        %v6434 = vpop.f32.mrf.mxu0
        %6435 = vmatprep.mubr.bf16.mxu0 0
        %6436 = vmatmul.mubr.bf16.gmra.mxu0 %v6239
        %v6437 = vpop.f32.mrf.mxu0
        %v6438 = vadd.f32 0.0, %v6437
        %v6439 = vpop.f32.mrf.mxu0
        %v6440 = vpop.f32.mrf.mxu0
        %v6441 = vadd.f32 0.0, %v6440
        %v6442 = vpop.f32.mrf.mxu0
        %6443 = vmatprep.mubr.bf16.mxu0 0
        %6444 = vmatmul.mubr.bf16.gmra.mxu0 %v6240
        %v6445 = vpop.f32.mrf.mxu0
        %v6446 = vadd.f32 0.0, %v6445
        %v6447 = vpop.f32.mrf.mxu0
        %v6448 = vpop.f32.mrf.mxu0
        %v6449 = vadd.f32 0.0, %v6448
        %v6450 = vpop.f32.mrf.mxu0
        %6451 = vmatprep.mubr.bf16.mxu0 0
        %6452 = vmatmul.mubr.bf16.gmra.mxu0 %v6241
        %v6453 = vpop.f32.mrf.mxu0
        %v6454 = vadd.f32 0.0, %v6453
        %v6455 = vpop.f32.mrf.mxu0
        %v6456 = vpop.f32.mrf.mxu0
        %v6457 = vadd.f32 0.0, %v6456
        %v6458 = vpop.f32.mrf.mxu0
        %6459 = vmatprep.mubr.bf16.mxu0 0
        %6460 = vmatmul.mubr.bf16.gmra.mxu0 %v6242
        %v6461 = vpop.f32.mrf.mxu0
        %v6462 = vadd.f32 0.0, %v6461
        %v6463 = vpop.f32.mrf.mxu0
        %v6464 = vpop.f32.mrf.mxu0
        %v6465 = vadd.f32 0.0, %v6464
        %v6466 = vpop.f32.mrf.mxu0
        %6467 = vdwg.mxu0
        %v6500 = vunpack.c.l.b16 %v5731
        %v6501 = vunpack.c.l.b16 %v5732
        %v6502 = vunpack.c.l.b16 %v5733
        %v6503 = vunpack.c.l.b16 %v5734
        %v6504 = vunpack.c.l.b16 %v5735
        %v6505 = vunpack.c.l.b16 %v5736
        %v6506 = vunpack.c.l.b16 %v5737
        %v6507 = vunpack.c.l.b16 %v5738
        %v6508 = vunpack.c.l.b16 %v5739
        %v6509 = vunpack.c.l.b16 %v5740
        %v6510 = vunpack.c.l.b16 %v5741
        %v6511 = vunpack.c.l.b16 %v5742
        %v6512 = vunpack.c.l.b16 %v5743
        %v6513 = vunpack.c.l.b16 %v5744
        %v6514 = vunpack.c.l.b16 %v5745
        %v6515 = vunpack.c.l.b16 %v5746
        %v6516 = vunpack.c.l.b16 %v5747
        %v6517 = vunpack.c.l.b16 %v5748
        %v6518 = vunpack.c.l.b16 %v5749
        %v6519 = vunpack.c.l.b16 %v5750
        %v6520 = vunpack.c.l.b16 %v5751
        %v6521 = vunpack.c.l.b16 %v5752
        %v6522 = vunpack.c.l.b16 %v5753
        %v6523 = vunpack.c.l.b16 %v5754
        %v6524 = vunpack.c.l.b16 %v5755
        %v6525 = vunpack.c.l.b16 %v5756
        %v6526 = vunpack.c.l.b16 %v5757
        %v6527 = vunpack.c.l.b16 %v5758
        %v6528 = vunpack.c.l.b16 %v5759
        %v6529 = vunpack.c.l.b16 %v5760
        %v6530 = vunpack.c.l.b16 %v5761
        %v6531 = vunpack.c.l.b16 %v5762
        %v6532 = vpack.c.b16 %v6501, %v6500
        %v6533 = vpack.c.b16 %v6503, %v6502
        %v6534 = vpack.c.b16 %v6505, %v6504
        %v6535 = vpack.c.b16 %v6507, %v6506
        %v6536 = vpack.c.b16 %v6509, %v6508
        %v6537 = vpack.c.b16 %v6511, %v6510
        %v6538 = vpack.c.b16 %v6513, %v6512
        %v6539 = vpack.c.b16 %v6515, %v6514
        %v6540 = vpack.c.b16 %v6517, %v6516
        %v6541 = vpack.c.b16 %v6519, %v6518
        %v6542 = vpack.c.b16 %v6521, %v6520
        %v6543 = vpack.c.b16 %v6523, %v6522
        %v6544 = vpack.c.b16 %v6525, %v6524
        %v6545 = vpack.c.b16 %v6527, %v6526
        %v6546 = vpack.c.b16 %v6529, %v6528
        %v6547 = vpack.c.b16 %v6531, %v6530
        %v6580 = vunpack.c.l.b16 %v5763
        %v6581 = vunpack.c.l.b16 %v5764
        %v6582 = vunpack.c.l.b16 %v5765
        %v6583 = vunpack.c.l.b16 %v5766
        %v6584 = vunpack.c.l.b16 %v5767
        %v6585 = vunpack.c.l.b16 %v5768
        %v6586 = vunpack.c.l.b16 %v5769
        %v6587 = vunpack.c.l.b16 %v5770
        %v6588 = vunpack.c.l.b16 %v5771
        %v6589 = vunpack.c.l.b16 %v5772
        %v6590 = vunpack.c.l.b16 %v5773
        %v6591 = vunpack.c.l.b16 %v5774
        %v6592 = vunpack.c.l.b16 %v5775
        %v6593 = vunpack.c.l.b16 %v5776
        %v6594 = vunpack.c.l.b16 %v5777
        %v6595 = vunpack.c.l.b16 %v5778
        %v6596 = vpack.c.b16 %v6581, %v6580
        %v6597 = vpack.c.b16 %v6583, %v6582
        %v6598 = vpack.c.b16 %v6585, %v6584
        %v6599 = vpack.c.b16 %v6587, %v6586
        %v6600 = vpack.c.b16 %v6589, %v6588
        %v6601 = vpack.c.b16 %v6591, %v6590
        %v6602 = vpack.c.b16 %v6593, %v6592
        %v6603 = vpack.c.b16 %v6595, %v6594
        %6612 = vmatprep.subr.bf16.mxu0 0
        %6613 = vmatpush1.bf16.msra.mxu0 %v6603
        %6614 = vmatprep.subr.bf16.mxu0 0
        %6615 = vmatpush1.bf16.msra.mxu0 %v6602
        %6616 = vmatprep.subr.bf16.mxu0 0
        %6617 = vmatpush1.bf16.msra.mxu0 %v6601
        %6618 = vmatprep.subr.bf16.mxu0 0
        %6619 = vmatpush1.bf16.msra.mxu0 %v6600
        %6620 = vmatprep.subr.bf16.mxu0 0
        %6621 = vmatpush1.bf16.msra.mxu0 %v6599
        %6622 = vmatprep.subr.bf16.mxu0 0
        %6623 = vmatpush1.bf16.msra.mxu0 %v6598
        %6624 = vmatprep.subr.bf16.mxu0 0
        %6625 = vmatpush1.bf16.msra.mxu0 %v6597
        %6626 = vmatprep.subr.bf16.mxu0 0
        %6627 = vmatpush1.bf16.msra.mxu0 %v6596
        %6628 = vmatprep.subr.bf16.mxu0 0
        %6629 = vmatpush2.bf16.msra.mxu0 0
        %6630 = vmatprep.subr.bf16.mxu0 0
        %6631 = vmatpush2.bf16.msra.mxu0 0
        %6632 = vmatprep.subr.bf16.mxu0 0
        %6633 = vmatpush2.bf16.msra.mxu0 0
        %6634 = vmatprep.subr.bf16.mxu0 0
        %6635 = vmatpush2.bf16.msra.mxu0 0
        %6636 = vmatprep.subr.bf16.mxu0 0
        %6637 = vmatpush2.bf16.msra.mxu0 0
        %6638 = vmatprep.subr.bf16.mxu0 0
        %6639 = vmatpush2.bf16.msra.mxu0 0
        %6640 = vmatprep.subr.bf16.mxu0 0
        %6641 = vmatpush2.bf16.msra.mxu0 0
        %6642 = vmatprep.subr.bf16.mxu0 0
        %6643 = vmatpush2.bf16.msra.mxu0 0
        %6644 = vmatprep.mubr.bf16.mxu0 0
        %6645 = vmatmul.mubr.bf16.gmra.mxu0 %v6532
        %v6646 = vpop.f32.mrf.mxu0
        %v6647 = vadd.f32 %v6342, %v6646
        %v6648 = vpop.f32.mrf.mxu0
        %v6649 = vpop.f32.mrf.mxu0
        %v6650 = vadd.f32 %v6345, %v6649
        %v6651 = vpop.f32.mrf.mxu0
        %6652 = vmatprep.mubr.bf16.mxu0 0
        %6653 = vmatmul.mubr.bf16.gmra.mxu0 %v6533
        %v6654 = vpop.f32.mrf.mxu0
        %v6655 = vadd.f32 %v6350, %v6654
        %v6656 = vpop.f32.mrf.mxu0
        %v6657 = vpop.f32.mrf.mxu0
        %v6658 = vadd.f32 %v6353, %v6657
        %v6659 = vpop.f32.mrf.mxu0
        %6660 = vmatprep.mubr.bf16.mxu0 0
        %6661 = vmatmul.mubr.bf16.gmra.mxu0 %v6534
        %v6662 = vpop.f32.mrf.mxu0
        %v6663 = vadd.f32 %v6358, %v6662
        %v6664 = vpop.f32.mrf.mxu0
        %v6665 = vpop.f32.mrf.mxu0
        %v6666 = vadd.f32 %v6361, %v6665
        %v6667 = vpop.f32.mrf.mxu0
        %6668 = vmatprep.mubr.bf16.mxu0 0
        %6669 = vmatmul.mubr.bf16.gmra.mxu0 %v6535
        %v6670 = vpop.f32.mrf.mxu0
        %v6671 = vadd.f32 %v6366, %v6670
        %v6672 = vpop.f32.mrf.mxu0
        %v6673 = vpop.f32.mrf.mxu0
        %v6674 = vadd.f32 %v6369, %v6673
        %v6675 = vpop.f32.mrf.mxu0
        %6676 = vmatprep.mubr.bf16.mxu0 0
        %6677 = vmatmul.mubr.bf16.gmra.mxu0 %v6536
        %v6678 = vpop.f32.mrf.mxu0
        %v6679 = vadd.f32 %v6374, %v6678
        %v6680 = vpop.f32.mrf.mxu0
        %v6681 = vpop.f32.mrf.mxu0
        %v6682 = vadd.f32 %v6377, %v6681
        %v6683 = vpop.f32.mrf.mxu0
        %6684 = vmatprep.mubr.bf16.mxu0 0
        %6685 = vmatmul.mubr.bf16.gmra.mxu0 %v6537
        %v6686 = vpop.f32.mrf.mxu0
        %v6687 = vadd.f32 %v6382, %v6686
        %v6688 = vpop.f32.mrf.mxu0
        %v6689 = vpop.f32.mrf.mxu0
        %v6690 = vadd.f32 %v6385, %v6689
        %v6691 = vpop.f32.mrf.mxu0
        %6692 = vmatprep.mubr.bf16.mxu0 0
        %6693 = vmatmul.mubr.bf16.gmra.mxu0 %v6538
        %v6694 = vpop.f32.mrf.mxu0
        %v6695 = vadd.f32 %v6390, %v6694
        %v6696 = vpop.f32.mrf.mxu0
        %v6697 = vpop.f32.mrf.mxu0
        %v6698 = vadd.f32 %v6393, %v6697
        %v6699 = vpop.f32.mrf.mxu0
        %6700 = vmatprep.mubr.bf16.mxu0 0
        %6701 = vmatmul.mubr.bf16.gmra.mxu0 %v6539
        %v6702 = vpop.f32.mrf.mxu0
        %v6703 = vadd.f32 %v6398, %v6702
        %v6704 = vpop.f32.mrf.mxu0
        %v6705 = vpop.f32.mrf.mxu0
        %v6706 = vadd.f32 %v6401, %v6705
        %v6707 = vpop.f32.mrf.mxu0
        %6708 = vmatprep.mubr.bf16.mxu0 0
        %6709 = vmatmul.mubr.bf16.gmra.mxu0 %v6540
        %v6710 = vpop.f32.mrf.mxu0
        %v6711 = vadd.f32 %v6406, %v6710
        %v6712 = vpop.f32.mrf.mxu0
        %v6713 = vpop.f32.mrf.mxu0
        %v6714 = vadd.f32 %v6409, %v6713
        %v6715 = vpop.f32.mrf.mxu0
        %6716 = vmatprep.mubr.bf16.mxu0 0
        %6717 = vmatmul.mubr.bf16.gmra.mxu0 %v6541
        %v6718 = vpop.f32.mrf.mxu0
        %v6719 = vadd.f32 %v6414, %v6718
        %v6720 = vpop.f32.mrf.mxu0
        %v6721 = vpop.f32.mrf.mxu0
        %v6722 = vadd.f32 %v6417, %v6721
        %v6723 = vpop.f32.mrf.mxu0
        %6724 = vmatprep.mubr.bf16.mxu0 0
        %6725 = vmatmul.mubr.bf16.gmra.mxu0 %v6542
        %v6726 = vpop.f32.mrf.mxu0
        %v6727 = vadd.f32 %v6422, %v6726
        %v6728 = vpop.f32.mrf.mxu0
        %v6729 = vpop.f32.mrf.mxu0
        %v6730 = vadd.f32 %v6425, %v6729
        %v6731 = vpop.f32.mrf.mxu0
        %6732 = vmatprep.mubr.bf16.mxu0 0
        %6733 = vmatmul.mubr.bf16.gmra.mxu0 %v6543
        %v6734 = vpop.f32.mrf.mxu0
        %v6735 = vadd.f32 %v6430, %v6734
        %v6736 = vpop.f32.mrf.mxu0
        %v6737 = vpop.f32.mrf.mxu0
        %v6738 = vadd.f32 %v6433, %v6737
        %v6739 = vpop.f32.mrf.mxu0
        %6740 = vmatprep.mubr.bf16.mxu0 0
        %6741 = vmatmul.mubr.bf16.gmra.mxu0 %v6544
        %v6742 = vpop.f32.mrf.mxu0
        %v6743 = vadd.f32 %v6438, %v6742
        %v6744 = vpop.f32.mrf.mxu0
        %v6745 = vpop.f32.mrf.mxu0
        %v6746 = vadd.f32 %v6441, %v6745
        %v6747 = vpop.f32.mrf.mxu0
        %6748 = vmatprep.mubr.bf16.mxu0 0
        %6749 = vmatmul.mubr.bf16.gmra.mxu0 %v6545
        %v6750 = vpop.f32.mrf.mxu0
        %v6751 = vadd.f32 %v6446, %v6750
        %v6752 = vpop.f32.mrf.mxu0
        %v6753 = vpop.f32.mrf.mxu0
        %v6754 = vadd.f32 %v6449, %v6753
        %v6755 = vpop.f32.mrf.mxu0
        %6756 = vmatprep.mubr.bf16.mxu0 0
        %6757 = vmatmul.mubr.bf16.gmra.mxu0 %v6546
        %v6758 = vpop.f32.mrf.mxu0
        %v6759 = vadd.f32 %v6454, %v6758
        %v6760 = vpop.f32.mrf.mxu0
        %v6761 = vpop.f32.mrf.mxu0
        %v6762 = vadd.f32 %v6457, %v6761
        %v6763 = vpop.f32.mrf.mxu0
        %6764 = vmatprep.mubr.bf16.mxu0 0
        %6765 = vmatmul.mubr.bf16.gmra.mxu0 %v6547
        %v6766 = vpop.f32.mrf.mxu0
        %v6767 = vadd.f32 %v6462, %v6766
        %v6768 = vpop.f32.mrf.mxu0
        %v6769 = vpop.f32.mrf.mxu0
        %v6770 = vadd.f32 %v6465, %v6769
        %v6771 = vpop.f32.mrf.mxu0
        %6772 = vdwg.mxu0
        %v6773 = vld [vmem:[#allocation2] sm:$0xe]
        %v6774 = vld [vmem:[#allocation2 + $0xc] sm:$0xe]
        %v6775 = vld [vmem:[#allocation2 + $0x18] sm:$0xe]
        %v6776 = vld [vmem:[#allocation2 + $0x24] sm:$0xe]
        %v6777 = vld [vmem:[#allocation2 + $0x30] sm:$0xe]
        %v6778 = vld [vmem:[#allocation2 + $0x3c] sm:$0xe]
        %v6779 = vld [vmem:[#allocation2 + $0x48] sm:$0xe]
        %v6780 = vld [vmem:[#allocation2 + $0x54] sm:$0xe]
        %v6781 = vld [vmem:[#allocation2 + $0x60] sm:$0xe]
        %v6782 = vld [vmem:[#allocation2 + $0x6c] sm:$0xe]
        %v6783 = vld [vmem:[#allocation2 + $0x78] sm:$0xe]
        %v6784 = vld [vmem:[#allocation2 + $0x84] sm:$0xe]
        %v6785 = vld [vmem:[#allocation2 + $0x90] sm:$0xe]
        %v6786 = vld [vmem:[#allocation2 + $0x9c] sm:$0xe]
        %v6787 = vld [vmem:[#allocation2 + $0xa8] sm:$0xe]
        %v6788 = vld [vmem:[#allocation2 + $0xb4] sm:$0xe]
        %v6821 = vrot.slane %v6773, 5
        %v6822 = vrot.slane %v6821, 4
        %v6823 = vrot.slane %v5732, 5
        %v6824 = vsel %vm1417, %v6822, %v6823
        %v6825 = vrot.slane %v6823, 4
        %v6826 = vrot.slane %v5779, 5
        %v6827 = vsel %vm1417, %v6825, %v6826
        %v6828 = vrot.slane %v6774, 5
        %v6829 = vrot.slane %v6828, 4
        %v6830 = vrot.slane %v5734, 5
        %v6831 = vsel %vm1417, %v6829, %v6830
        %v6832 = vrot.slane %v6830, 4
        %v6833 = vrot.slane %v5780, 5
        %v6834 = vsel %vm1417, %v6832, %v6833
        %v6835 = vrot.slane %v6775, 5
        %v6836 = vrot.slane %v6835, 4
        %v6837 = vrot.slane %v5736, 5
        %v6838 = vsel %vm1417, %v6836, %v6837
        %v6839 = vrot.slane %v6837, 4
        %v6840 = vrot.slane %v5781, 5
        %v6841 = vsel %vm1417, %v6839, %v6840
        %v6842 = vrot.slane %v6776, 5
        %v6843 = vrot.slane %v6842, 4
        %v6844 = vrot.slane %v5738, 5
        %v6845 = vsel %vm1417, %v6843, %v6844
        %v6846 = vrot.slane %v6844, 4
        %v6847 = vrot.slane %v5782, 5
        %v6848 = vsel %vm1417, %v6846, %v6847
        %v6849 = vrot.slane %v6777, 5
        %v6850 = vrot.slane %v6849, 4
        %v6851 = vrot.slane %v5740, 5
        %v6852 = vsel %vm1417, %v6850, %v6851
        %v6853 = vrot.slane %v6851, 4
        %v6854 = vrot.slane %v5783, 5
        %v6855 = vsel %vm1417, %v6853, %v6854
        %v6856 = vrot.slane %v6778, 5
        %v6857 = vrot.slane %v6856, 4
        %v6858 = vrot.slane %v5742, 5
        %v6859 = vsel %vm1417, %v6857, %v6858
        %v6860 = vrot.slane %v6858, 4
        %v6861 = vrot.slane %v5784, 5
        %v6862 = vsel %vm1417, %v6860, %v6861
        %v6863 = vrot.slane %v6779, 5
        %v6864 = vrot.slane %v6863, 4
        %v6865 = vrot.slane %v5744, 5
        %v6866 = vsel %vm1417, %v6864, %v6865
        %v6867 = vrot.slane %v6865, 4
        %v6868 = vrot.slane %v5785, 5
        %v6869 = vsel %vm1417, %v6867, %v6868
        %v6870 = vrot.slane %v6780, 5
        %v6871 = vrot.slane %v6870, 4
        %v6872 = vrot.slane %v5746, 5
        %v6873 = vsel %vm1417, %v6871, %v6872
        %v6874 = vrot.slane %v6872, 4
        %v6875 = vrot.slane %v5786, 5
        %v6876 = vsel %vm1417, %v6874, %v6875
        %v6877 = vrot.slane %v6781, 5
        %v6878 = vrot.slane %v6877, 4
        %v6879 = vrot.slane %v5748, 5
        %v6880 = vsel %vm1417, %v6878, %v6879
        %v6881 = vrot.slane %v6879, 4
        %v6882 = vrot.slane %v5787, 5
        %v6883 = vsel %vm1417, %v6881, %v6882
        %v6884 = vrot.slane %v6782, 5
        %v6885 = vrot.slane %v6884, 4
        %v6886 = vrot.slane %v5750, 5
        %v6887 = vsel %vm1417, %v6885, %v6886
        %v6888 = vrot.slane %v6886, 4
        %v6889 = vrot.slane %v5788, 5
        %v6890 = vsel %vm1417, %v6888, %v6889
        %v6891 = vrot.slane %v6783, 5
        %v6892 = vrot.slane %v6891, 4
        %v6893 = vrot.slane %v5752, 5
        %v6894 = vsel %vm1417, %v6892, %v6893
        %v6895 = vrot.slane %v6893, 4
        %v6896 = vrot.slane %v5789, 5
        %v6897 = vsel %vm1417, %v6895, %v6896
        %v6898 = vrot.slane %v6784, 5
        %v6899 = vrot.slane %v6898, 4
        %v6900 = vrot.slane %v5754, 5
        %v6901 = vsel %vm1417, %v6899, %v6900
        %v6902 = vrot.slane %v6900, 4
        %v6903 = vrot.slane %v5790, 5
        %v6904 = vsel %vm1417, %v6902, %v6903
        %v6905 = vrot.slane %v6785, 5
        %v6906 = vrot.slane %v6905, 4
        %v6907 = vrot.slane %v5756, 5
        %v6908 = vsel %vm1417, %v6906, %v6907
        %v6909 = vrot.slane %v6907, 4
        %v6910 = vrot.slane %v5791, 5
        %v6911 = vsel %vm1417, %v6909, %v6910
        %v6912 = vrot.slane %v6786, 5
        %v6913 = vrot.slane %v6912, 4
        %v6914 = vrot.slane %v5758, 5
        %v6915 = vsel %vm1417, %v6913, %v6914
        %v6916 = vrot.slane %v6914, 4
        %v6917 = vrot.slane %v5792, 5
        %v6918 = vsel %vm1417, %v6916, %v6917
        %v6919 = vrot.slane %v6787, 5
        %v6920 = vrot.slane %v6919, 4
        %v6921 = vrot.slane %v5760, 5
        %v6922 = vsel %vm1417, %v6920, %v6921
        %v6923 = vrot.slane %v6921, 4
        %v6924 = vrot.slane %v5793, 5
        %v6925 = vsel %vm1417, %v6923, %v6924
        %v6926 = vrot.slane %v6788, 5
        %v6927 = vrot.slane %v6926, 4
        %v6928 = vrot.slane %v5762, 5
        %v6929 = vsel %vm1417, %v6927, %v6928
        %v6930 = vrot.slane %v6928, 4
        %v6931 = vrot.slane %v5794, 5
        %v6932 = vsel %vm1417, %v6930, %v6931
        %v6933 = vld [vmem:[%s3 + $0x80] sm:$0xf]
        %v6934 = vld [vmem:[%s3 + $0x84] sm:$0xf]
        %v6935 = vld [vmem:[%s3 + $0x88] sm:$0xf]
        %v6936 = vld [vmem:[%s3 + $0x8c] sm:$0xf]
        %v6937 = vld [vmem:[%s3 + $0x90] sm:$0xf]
        %v6938 = vld [vmem:[%s3 + $0x94] sm:$0xf]
        %v6939 = vld [vmem:[%s3 + $0x98] sm:$0xf]
        %v6940 = vld [vmem:[%s3 + $0x9c] sm:$0xf]
        %v6941 = vld [vmem:[%s3 + $0xa0] sm:$0xf]
        %v6942 = vld [vmem:[%s3 + $0xa4] sm:$0xf]
        %v6943 = vld [vmem:[%s3 + $0xa8] sm:$0xf]
        %v6944 = vld [vmem:[%s3 + $0xac] sm:$0xf]
        %v6945 = vld [vmem:[%s3 + $0xb0] sm:$0xf]
        %v6946 = vld [vmem:[%s3 + $0xb4] sm:$0xf]
        %v6947 = vld [vmem:[%s3 + $0xb8] sm:$0xf]
        %v6948 = vld [vmem:[%s3 + $0xbc] sm:$0xf]
        %v6949 = vunpack.c.l.b16 %v6824
        %v6950 = vunpack.c.l.b16 %v6827
        %v6951 = vunpack.c.l.b16 %v6831
        %v6952 = vunpack.c.l.b16 %v6834
        %v6953 = vunpack.c.l.b16 %v6838
        %v6954 = vunpack.c.l.b16 %v6841
        %v6955 = vunpack.c.l.b16 %v6845
        %v6956 = vunpack.c.l.b16 %v6848
        %v6957 = vunpack.c.l.b16 %v6852
        %v6958 = vunpack.c.l.b16 %v6855
        %v6959 = vunpack.c.l.b16 %v6859
        %v6960 = vunpack.c.l.b16 %v6862
        %v6961 = vunpack.c.l.b16 %v6866
        %v6962 = vunpack.c.l.b16 %v6869
        %v6963 = vunpack.c.l.b16 %v6873
        %v6964 = vunpack.c.l.b16 %v6876
        %v6965 = vunpack.c.l.b16 %v6880
        %v6966 = vunpack.c.l.b16 %v6883
        %v6967 = vunpack.c.l.b16 %v6887
        %v6968 = vunpack.c.l.b16 %v6890
        %v6969 = vunpack.c.l.b16 %v6894
        %v6970 = vunpack.c.l.b16 %v6897
        %v6971 = vunpack.c.l.b16 %v6901
        %v6972 = vunpack.c.l.b16 %v6904
        %v6973 = vunpack.c.l.b16 %v6908
        %v6974 = vunpack.c.l.b16 %v6911
        %v6975 = vunpack.c.l.b16 %v6915
        %v6976 = vunpack.c.l.b16 %v6918
        %v6977 = vunpack.c.l.b16 %v6922
        %v6978 = vunpack.c.l.b16 %v6925
        %v6979 = vunpack.c.l.b16 %v6929
        %v6980 = vunpack.c.l.b16 %v6932
        %v6981 = vpack.c.b16 %v6950, %v6949
        %v6982 = vpack.c.b16 %v6952, %v6951
        %v6983 = vpack.c.b16 %v6954, %v6953
        %v6984 = vpack.c.b16 %v6956, %v6955
        %v6985 = vpack.c.b16 %v6958, %v6957
        %v6986 = vpack.c.b16 %v6960, %v6959
        %v6987 = vpack.c.b16 %v6962, %v6961
        %v6988 = vpack.c.b16 %v6964, %v6963
        %v6989 = vpack.c.b16 %v6966, %v6965
        %v6990 = vpack.c.b16 %v6968, %v6967
        %v6991 = vpack.c.b16 %v6970, %v6969
        %v6992 = vpack.c.b16 %v6972, %v6971
        %v6993 = vpack.c.b16 %v6974, %v6973
        %v6994 = vpack.c.b16 %v6976, %v6975
        %v6995 = vpack.c.b16 %v6978, %v6977
        %v6996 = vpack.c.b16 %v6980, %v6979
        %v7029 = vunpack.c.l.b16 %v6933
        %v7030 = vunpack.c.l.b16 %v6934
        %v7031 = vunpack.c.l.b16 %v6935
        %v7032 = vunpack.c.l.b16 %v6936
        %v7033 = vunpack.c.l.b16 %v6937
        %v7034 = vunpack.c.l.b16 %v6938
        %v7035 = vunpack.c.l.b16 %v6939
        %v7036 = vunpack.c.l.b16 %v6940
        %v7037 = vunpack.c.l.b16 %v6941
        %v7038 = vunpack.c.l.b16 %v6942
        %v7039 = vunpack.c.l.b16 %v6943
        %v7040 = vunpack.c.l.b16 %v6944
        %v7041 = vunpack.c.l.b16 %v6945
        %v7042 = vunpack.c.l.b16 %v6946
        %v7043 = vunpack.c.l.b16 %v6947
        %v7044 = vunpack.c.l.b16 %v6948
        %v7045 = vpack.c.b16 %v7030, %v7029
        %v7046 = vpack.c.b16 %v7032, %v7031
        %v7047 = vpack.c.b16 %v7034, %v7033
        %v7048 = vpack.c.b16 %v7036, %v7035
        %v7049 = vpack.c.b16 %v7038, %v7037
        %v7050 = vpack.c.b16 %v7040, %v7039
        %v7051 = vpack.c.b16 %v7042, %v7041
        %v7052 = vpack.c.b16 %v7044, %v7043
        %7061 = vmatprep.subr.bf16.mxu0 0
        %7062 = vmatpush1.bf16.msra.mxu0 %v7052
        %7063 = vmatprep.subr.bf16.mxu0 0
        %7064 = vmatpush1.bf16.msra.mxu0 %v7051
        %7065 = vmatprep.subr.bf16.mxu0 0
        %7066 = vmatpush1.bf16.msra.mxu0 %v7050
        %7067 = vmatprep.subr.bf16.mxu0 0
        %7068 = vmatpush1.bf16.msra.mxu0 %v7049
        %7069 = vmatprep.subr.bf16.mxu0 0
        %7070 = vmatpush1.bf16.msra.mxu0 %v7048
        %7071 = vmatprep.subr.bf16.mxu0 0
        %7072 = vmatpush1.bf16.msra.mxu0 %v7047
        %7073 = vmatprep.subr.bf16.mxu0 0
        %7074 = vmatpush1.bf16.msra.mxu0 %v7046
        %7075 = vmatprep.subr.bf16.mxu0 0
        %7076 = vmatpush1.bf16.msra.mxu0 %v7045
        %7077 = vmatprep.subr.bf16.mxu0 0
        %7078 = vmatpush2.bf16.msra.mxu0 0
        %7079 = vmatprep.subr.bf16.mxu0 0
        %7080 = vmatpush2.bf16.msra.mxu0 0
        %7081 = vmatprep.subr.bf16.mxu0 0
        %7082 = vmatpush2.bf16.msra.mxu0 0
        %7083 = vmatprep.subr.bf16.mxu0 0
        %7084 = vmatpush2.bf16.msra.mxu0 0
        %7085 = vmatprep.subr.bf16.mxu0 0
        %7086 = vmatpush2.bf16.msra.mxu0 0
        %7087 = vmatprep.subr.bf16.mxu0 0
        %7088 = vmatpush2.bf16.msra.mxu0 0
        %7089 = vmatprep.subr.bf16.mxu0 0
        %7090 = vmatpush2.bf16.msra.mxu0 0
        %7091 = vmatprep.subr.bf16.mxu0 0
        %7092 = vmatpush2.bf16.msra.mxu0 0
        %7093 = vmatprep.mubr.bf16.mxu0 0
        %7094 = vmatmul.mubr.bf16.gmra.mxu0 %v6981
        %v7095 = vpop.f32.mrf.mxu0
        %v7096 = vadd.f32 0.0, %v7095
        %v7097 = vpop.f32.mrf.mxu0
        %v7098 = vpop.f32.mrf.mxu0
        %v7099 = vadd.f32 0.0, %v7098
        %v7100 = vpop.f32.mrf.mxu0
        %7101 = vmatprep.mubr.bf16.mxu0 0
        %7102 = vmatmul.mubr.bf16.gmra.mxu0 %v6982
        %v7103 = vpop.f32.mrf.mxu0
        %v7104 = vadd.f32 0.0, %v7103
        %v7105 = vpop.f32.mrf.mxu0
        %v7106 = vpop.f32.mrf.mxu0
        %v7107 = vadd.f32 0.0, %v7106
        %v7108 = vpop.f32.mrf.mxu0
        %7109 = vmatprep.mubr.bf16.mxu0 0
        %7110 = vmatmul.mubr.bf16.gmra.mxu0 %v6983
        %v7111 = vpop.f32.mrf.mxu0
        %v7112 = vadd.f32 0.0, %v7111
        %v7113 = vpop.f32.mrf.mxu0
        %v7114 = vpop.f32.mrf.mxu0
        %v7115 = vadd.f32 0.0, %v7114
        %v7116 = vpop.f32.mrf.mxu0
        %7117 = vmatprep.mubr.bf16.mxu0 0
        %7118 = vmatmul.mubr.bf16.gmra.mxu0 %v6984
        %v7119 = vpop.f32.mrf.mxu0
        %v7120 = vadd.f32 0.0, %v7119
        %v7121 = vpop.f32.mrf.mxu0
        %v7122 = vpop.f32.mrf.mxu0
        %v7123 = vadd.f32 0.0, %v7122
        %v7124 = vpop.f32.mrf.mxu0
        %7125 = vmatprep.mubr.bf16.mxu0 0
        %7126 = vmatmul.mubr.bf16.gmra.mxu0 %v6985
        %v7127 = vpop.f32.mrf.mxu0
        %v7128 = vadd.f32 0.0, %v7127
        %v7129 = vpop.f32.mrf.mxu0
        %v7130 = vpop.f32.mrf.mxu0
        %v7131 = vadd.f32 0.0, %v7130
        %v7132 = vpop.f32.mrf.mxu0
        %7133 = vmatprep.mubr.bf16.mxu0 0
        %7134 = vmatmul.mubr.bf16.gmra.mxu0 %v6986
        %v7135 = vpop.f32.mrf.mxu0
        %v7136 = vadd.f32 0.0, %v7135
        %v7137 = vpop.f32.mrf.mxu0
        %v7138 = vpop.f32.mrf.mxu0
        %v7139 = vadd.f32 0.0, %v7138
        %v7140 = vpop.f32.mrf.mxu0
        %7141 = vmatprep.mubr.bf16.mxu0 0
        %7142 = vmatmul.mubr.bf16.gmra.mxu0 %v6987
        %v7143 = vpop.f32.mrf.mxu0
        %v7144 = vadd.f32 0.0, %v7143
        %v7145 = vpop.f32.mrf.mxu0
        %v7146 = vpop.f32.mrf.mxu0
        %v7147 = vadd.f32 0.0, %v7146
        %v7148 = vpop.f32.mrf.mxu0
        %7149 = vmatprep.mubr.bf16.mxu0 0
        %7150 = vmatmul.mubr.bf16.gmra.mxu0 %v6988
        %v7151 = vpop.f32.mrf.mxu0
        %v7152 = vadd.f32 0.0, %v7151
        %v7153 = vpop.f32.mrf.mxu0
        %v7154 = vpop.f32.mrf.mxu0
        %v7155 = vadd.f32 0.0, %v7154
        %v7156 = vpop.f32.mrf.mxu0
        %7157 = vmatprep.mubr.bf16.mxu0 0
        %7158 = vmatmul.mubr.bf16.gmra.mxu0 %v6989
        %v7159 = vpop.f32.mrf.mxu0
        %v7160 = vadd.f32 0.0, %v7159
        %v7161 = vpop.f32.mrf.mxu0
        %v7162 = vpop.f32.mrf.mxu0
        %v7163 = vadd.f32 0.0, %v7162
        %v7164 = vpop.f32.mrf.mxu0
        %7165 = vmatprep.mubr.bf16.mxu0 0
        %7166 = vmatmul.mubr.bf16.gmra.mxu0 %v6990
        %v7167 = vpop.f32.mrf.mxu0
        %v7168 = vadd.f32 0.0, %v7167
        %v7169 = vpop.f32.mrf.mxu0
        %v7170 = vpop.f32.mrf.mxu0
        %v7171 = vadd.f32 0.0, %v7170
        %v7172 = vpop.f32.mrf.mxu0
        %7173 = vmatprep.mubr.bf16.mxu0 0
        %7174 = vmatmul.mubr.bf16.gmra.mxu0 %v6991
        %v7175 = vpop.f32.mrf.mxu0
        %v7176 = vadd.f32 0.0, %v7175
        %v7177 = vpop.f32.mrf.mxu0
        %v7178 = vpop.f32.mrf.mxu0
        %v7179 = vadd.f32 0.0, %v7178
        %v7180 = vpop.f32.mrf.mxu0
        %7181 = vmatprep.mubr.bf16.mxu0 0
        %7182 = vmatmul.mubr.bf16.gmra.mxu0 %v6992
        %v7183 = vpop.f32.mrf.mxu0
        %v7184 = vadd.f32 0.0, %v7183
        %v7185 = vpop.f32.mrf.mxu0
        %v7186 = vpop.f32.mrf.mxu0
        %v7187 = vadd.f32 0.0, %v7186
        %v7188 = vpop.f32.mrf.mxu0
        %7189 = vmatprep.mubr.bf16.mxu0 0
        %7190 = vmatmul.mubr.bf16.gmra.mxu0 %v6993
        %v7191 = vpop.f32.mrf.mxu0
        %v7192 = vadd.f32 0.0, %v7191
        %v7193 = vpop.f32.mrf.mxu0
        %v7194 = vpop.f32.mrf.mxu0
        %v7195 = vadd.f32 0.0, %v7194
        %v7196 = vpop.f32.mrf.mxu0
        %7197 = vmatprep.mubr.bf16.mxu0 0
        %7198 = vmatmul.mubr.bf16.gmra.mxu0 %v6994
        %v7199 = vpop.f32.mrf.mxu0
        %v7200 = vadd.f32 0.0, %v7199
        %v7201 = vpop.f32.mrf.mxu0
        %v7202 = vpop.f32.mrf.mxu0
        %v7203 = vadd.f32 0.0, %v7202
        %v7204 = vpop.f32.mrf.mxu0
        %7205 = vmatprep.mubr.bf16.mxu0 0
        %7206 = vmatmul.mubr.bf16.gmra.mxu0 %v6995
        %v7207 = vpop.f32.mrf.mxu0
        %v7208 = vadd.f32 0.0, %v7207
        %v7209 = vpop.f32.mrf.mxu0
        %v7210 = vpop.f32.mrf.mxu0
        %v7211 = vadd.f32 0.0, %v7210
        %v7212 = vpop.f32.mrf.mxu0
        %7213 = vmatprep.mubr.bf16.mxu0 0
        %7214 = vmatmul.mubr.bf16.gmra.mxu0 %v6996
        %v7215 = vpop.f32.mrf.mxu0
        %v7216 = vadd.f32 0.0, %v7215
        %v7217 = vpop.f32.mrf.mxu0
        %v7218 = vpop.f32.mrf.mxu0
        %v7219 = vadd.f32 0.0, %v7218
        %v7220 = vpop.f32.mrf.mxu0
        %7221 = vdwg.mxu0
        %v7222 = vadd.f32 %v6647, %v7096
        %v7223 = vadd.f32 %v6650, %v7099
        %v7224 = vadd.f32 %v6655, %v7104
        %v7225 = vadd.f32 %v6658, %v7107
        %v7226 = vadd.f32 %v6663, %v7112
        %v7227 = vadd.f32 %v6666, %v7115
        %v7228 = vadd.f32 %v6671, %v7120
        %v7229 = vadd.f32 %v6674, %v7123
        %v7230 = vadd.f32 %v6679, %v7128
        %v7231 = vadd.f32 %v6682, %v7131
        %v7232 = vadd.f32 %v6687, %v7136
        %v7233 = vadd.f32 %v6690, %v7139
        %v7234 = vadd.f32 %v6695, %v7144
        %v7235 = vadd.f32 %v6698, %v7147
        %v7236 = vadd.f32 %v6703, %v7152
        %v7237 = vadd.f32 %v6706, %v7155
        %v7238 = vadd.f32 %v6711, %v7160
        %v7239 = vadd.f32 %v6714, %v7163
        %v7240 = vadd.f32 %v6719, %v7168
        %v7241 = vadd.f32 %v6722, %v7171
        %v7242 = vadd.f32 %v6727, %v7176
        %v7243 = vadd.f32 %v6730, %v7179
        %v7244 = vadd.f32 %v6735, %v7184
        %v7245 = vadd.f32 %v6738, %v7187
        %v7246 = vadd.f32 %v6743, %v7192
        %v7247 = vadd.f32 %v6746, %v7195
        %v7248 = vadd.f32 %v6751, %v7200
        %v7249 = vadd.f32 %v6754, %v7203
        %v7250 = vadd.f32 %v6759, %v7208
        %v7251 = vadd.f32 %v6762, %v7211
        %v7252 = vadd.f32 %v6767, %v7216
        %v7253 = vadd.f32 %v6770, %v7219
        %v7254 = vld [vmem:[%s5613] sm:$0xf]
        %v7255 = vld [vmem:[%s5613 + $0x4] sm:$0xf]
        %v7256 = vld [vmem:[%s5613 + $0xc] sm:$0xf]
        %v7257 = vld [vmem:[%s5613 + $0x10] sm:$0xf]
        %v7258 = vld [vmem:[%s5613 + $0x18] sm:$0xf]
        %v7259 = vld [vmem:[%s5613 + $0x1c] sm:$0xf]
        %v7260 = vld [vmem:[%s5613 + $0x24] sm:$0xf]
        %v7261 = vld [vmem:[%s5613 + $0x28] sm:$0xf]
        %v7262 = vld [vmem:[%s5613 + $0x30] sm:$0xf]
        %v7263 = vld [vmem:[%s5613 + $0x34] sm:$0xf]
        %v7264 = vld [vmem:[%s5613 + $0x3c] sm:$0xf]
        %v7265 = vld [vmem:[%s5613 + $0x40] sm:$0xf]
        %v7266 = vld [vmem:[%s5613 + $0x48] sm:$0xf]
        %v7267 = vld [vmem:[%s5613 + $0x4c] sm:$0xf]
        %v7268 = vld [vmem:[%s5613 + $0x54] sm:$0xf]
        %v7269 = vld [vmem:[%s5613 + $0x58] sm:$0xf]
        %v7270 = vld [vmem:[%s5613 + $0x60] sm:$0xf]
        %v7271 = vld [vmem:[%s5613 + $0x64] sm:$0xf]
        %v7272 = vld [vmem:[%s5613 + $0x6c] sm:$0xf]
        %v7273 = vld [vmem:[%s5613 + $0x70] sm:$0xf]
        %v7274 = vld [vmem:[%s5613 + $0x78] sm:$0xf]
        %v7275 = vld [vmem:[%s5613 + $0x7c] sm:$0xf]
        %v7276 = vld [vmem:[%s5613 + $0x84] sm:$0xf]
        %v7277 = vld [vmem:[%s5613 + $0x88] sm:$0xf]
        %v7278 = vld [vmem:[%s5613 + $0x90] sm:$0xf]
        %v7279 = vld [vmem:[%s5613 + $0x94] sm:$0xf]
        %v7280 = vld [vmem:[%s5613 + $0x9c] sm:$0xf]
        %v7281 = vld [vmem:[%s5613 + $0xa0] sm:$0xf]
        %v7282 = vld [vmem:[%s5613 + $0xa8] sm:$0xf]
        %v7283 = vld [vmem:[%s5613 + $0xac] sm:$0xf]
        %v7284 = vld [vmem:[%s5613 + $0xb4] sm:$0xf]
        %v7285 = vld [vmem:[%s5613 + $0xb8] sm:$0xf]
        %v7286 = vld [vmem:[%s3 + $0xc0] sm:$0xf]
        %v7287 = vld [vmem:[%s3 + $0xc4] sm:$0xf]
        %v7288 = vld [vmem:[%s3 + $0xc8] sm:$0xf]
        %v7289 = vld [vmem:[%s3 + $0xcc] sm:$0xf]
        %v7290 = vld [vmem:[%s3 + $0xd0] sm:$0xf]
        %v7291 = vld [vmem:[%s3 + $0xd4] sm:$0xf]
        %v7292 = vld [vmem:[%s3 + $0xd8] sm:$0xf]
        %v7293 = vld [vmem:[%s3 + $0xdc] sm:$0xf]
        %v7294 = vld [vmem:[%s3 + $0xe0] sm:$0xf]
        %v7295 = vld [vmem:[%s3 + $0xe4] sm:$0xf]
        %v7296 = vld [vmem:[%s3 + $0xe8] sm:$0xf]
        %v7297 = vld [vmem:[%s3 + $0xec] sm:$0xf]
        %v7298 = vld [vmem:[%s3 + $0xf0] sm:$0xf]
        %v7299 = vld [vmem:[%s3 + $0xf4] sm:$0xf]
        %v7300 = vld [vmem:[%s3 + $0xf8] sm:$0xf]
        %v7301 = vld [vmem:[%s3 + $0xfc] sm:$0xf]
        %v7334 = vunpack.c.l.b16 %v7254
        %v7335 = vunpack.c.l.b16 %v7255
        %v7336 = vunpack.c.l.b16 %v7256
        %v7337 = vunpack.c.l.b16 %v7257
        %v7338 = vunpack.c.l.b16 %v7258
        %v7339 = vunpack.c.l.b16 %v7259
        %v7340 = vunpack.c.l.b16 %v7260
        %v7341 = vunpack.c.l.b16 %v7261
        %v7342 = vunpack.c.l.b16 %v7262
        %v7343 = vunpack.c.l.b16 %v7263
        %v7344 = vunpack.c.l.b16 %v7264
        %v7345 = vunpack.c.l.b16 %v7265
        %v7346 = vunpack.c.l.b16 %v7266
        %v7347 = vunpack.c.l.b16 %v7267
        %v7348 = vunpack.c.l.b16 %v7268
        %v7349 = vunpack.c.l.b16 %v7269
        %v7350 = vunpack.c.l.b16 %v7270
        %v7351 = vunpack.c.l.b16 %v7271
        %v7352 = vunpack.c.l.b16 %v7272
        %v7353 = vunpack.c.l.b16 %v7273
        %v7354 = vunpack.c.l.b16 %v7274
        %v7355 = vunpack.c.l.b16 %v7275
        %v7356 = vunpack.c.l.b16 %v7276
        %v7357 = vunpack.c.l.b16 %v7277
        %v7358 = vunpack.c.l.b16 %v7278
        %v7359 = vunpack.c.l.b16 %v7279
        %v7360 = vunpack.c.l.b16 %v7280
        %v7361 = vunpack.c.l.b16 %v7281
        %v7362 = vunpack.c.l.b16 %v7282
        %v7363 = vunpack.c.l.b16 %v7283
        %v7364 = vunpack.c.l.b16 %v7284
        %v7365 = vunpack.c.l.b16 %v7285
        %v7366 = vpack.c.b16 %v7335, %v7334
        %v7367 = vpack.c.b16 %v7337, %v7336
        %v7368 = vpack.c.b16 %v7339, %v7338
        %v7369 = vpack.c.b16 %v7341, %v7340
        %v7370 = vpack.c.b16 %v7343, %v7342
        %v7371 = vpack.c.b16 %v7345, %v7344
        %v7372 = vpack.c.b16 %v7347, %v7346
        %v7373 = vpack.c.b16 %v7349, %v7348
        %v7374 = vpack.c.b16 %v7351, %v7350
        %v7375 = vpack.c.b16 %v7353, %v7352
        %v7376 = vpack.c.b16 %v7355, %v7354
        %v7377 = vpack.c.b16 %v7357, %v7356
        %v7378 = vpack.c.b16 %v7359, %v7358
        %v7379 = vpack.c.b16 %v7361, %v7360
        %v7380 = vpack.c.b16 %v7363, %v7362
        %v7381 = vpack.c.b16 %v7365, %v7364
        %v7414 = vunpack.c.l.b16 %v7286
        %v7415 = vunpack.c.l.b16 %v7287
        %v7416 = vunpack.c.l.b16 %v7288
        %v7417 = vunpack.c.l.b16 %v7289
        %v7418 = vunpack.c.l.b16 %v7290
        %v7419 = vunpack.c.l.b16 %v7291
        %v7420 = vunpack.c.l.b16 %v7292
        %v7421 = vunpack.c.l.b16 %v7293
        %v7422 = vunpack.c.l.b16 %v7294
        %v7423 = vunpack.c.l.b16 %v7295
        %v7424 = vunpack.c.l.b16 %v7296
        %v7425 = vunpack.c.l.b16 %v7297
        %v7426 = vunpack.c.l.b16 %v7298
        %v7427 = vunpack.c.l.b16 %v7299
        %v7428 = vunpack.c.l.b16 %v7300
        %v7429 = vunpack.c.l.b16 %v7301
        %v7430 = vpack.c.b16 %v7415, %v7414
        %v7431 = vpack.c.b16 %v7417, %v7416
        %v7432 = vpack.c.b16 %v7419, %v7418
        %v7433 = vpack.c.b16 %v7421, %v7420
        %v7434 = vpack.c.b16 %v7423, %v7422
        %v7435 = vpack.c.b16 %v7425, %v7424
        %v7436 = vpack.c.b16 %v7427, %v7426
        %v7437 = vpack.c.b16 %v7429, %v7428
        %7446 = vmatprep.subr.bf16.mxu0 0
        %7447 = vmatpush1.bf16.msra.mxu0 %v7437
        %7448 = vmatprep.subr.bf16.mxu0 0
        %7449 = vmatpush1.bf16.msra.mxu0 %v7436
        %7450 = vmatprep.subr.bf16.mxu0 0
        %7451 = vmatpush1.bf16.msra.mxu0 %v7435
        %7452 = vmatprep.subr.bf16.mxu0 0
        %7453 = vmatpush1.bf16.msra.mxu0 %v7434
        %7454 = vmatprep.subr.bf16.mxu0 0
        %7455 = vmatpush1.bf16.msra.mxu0 %v7433
        %7456 = vmatprep.subr.bf16.mxu0 0
        %7457 = vmatpush1.bf16.msra.mxu0 %v7432
        %7458 = vmatprep.subr.bf16.mxu0 0
        %7459 = vmatpush1.bf16.msra.mxu0 %v7431
        %7460 = vmatprep.subr.bf16.mxu0 0
        %7461 = vmatpush1.bf16.msra.mxu0 %v7430
        %7462 = vmatprep.subr.bf16.mxu0 0
        %7463 = vmatpush2.bf16.msra.mxu0 0
        %7464 = vmatprep.subr.bf16.mxu0 0
        %7465 = vmatpush2.bf16.msra.mxu0 0
        %7466 = vmatprep.subr.bf16.mxu0 0
        %7467 = vmatpush2.bf16.msra.mxu0 0
        %7468 = vmatprep.subr.bf16.mxu0 0
        %7469 = vmatpush2.bf16.msra.mxu0 0
        %7470 = vmatprep.subr.bf16.mxu0 0
        %7471 = vmatpush2.bf16.msra.mxu0 0
        %7472 = vmatprep.subr.bf16.mxu0 0
        %7473 = vmatpush2.bf16.msra.mxu0 0
        %7474 = vmatprep.subr.bf16.mxu0 0
        %7475 = vmatpush2.bf16.msra.mxu0 0
        %7476 = vmatprep.subr.bf16.mxu0 0
        %7477 = vmatpush2.bf16.msra.mxu0 0
        %7478 = vmatprep.mubr.bf16.mxu0 0
        %7479 = vmatmul.mubr.bf16.gmra.mxu0 %v7366
        %v7480 = vpop.f32.mrf.mxu0
        %v7481 = vadd.f32 0.0, %v7480
        %v7482 = vpop.f32.mrf.mxu0
        %v7483 = vpop.f32.mrf.mxu0
        %v7484 = vadd.f32 0.0, %v7483
        %v7485 = vpop.f32.mrf.mxu0
        %7486 = vmatprep.mubr.bf16.mxu0 0
        %7487 = vmatmul.mubr.bf16.gmra.mxu0 %v7367
        %v7488 = vpop.f32.mrf.mxu0
        %v7489 = vadd.f32 0.0, %v7488
        %v7490 = vpop.f32.mrf.mxu0
        %v7491 = vpop.f32.mrf.mxu0
        %v7492 = vadd.f32 0.0, %v7491
        %v7493 = vpop.f32.mrf.mxu0
        %7494 = vmatprep.mubr.bf16.mxu0 0
        %7495 = vmatmul.mubr.bf16.gmra.mxu0 %v7368
        %v7496 = vpop.f32.mrf.mxu0
        %v7497 = vadd.f32 0.0, %v7496
        %v7498 = vpop.f32.mrf.mxu0
        %v7499 = vpop.f32.mrf.mxu0
        %v7500 = vadd.f32 0.0, %v7499
        %v7501 = vpop.f32.mrf.mxu0
        %7502 = vmatprep.mubr.bf16.mxu0 0
        %7503 = vmatmul.mubr.bf16.gmra.mxu0 %v7369
        %v7504 = vpop.f32.mrf.mxu0
        %v7505 = vadd.f32 0.0, %v7504
        %v7506 = vpop.f32.mrf.mxu0
        %v7507 = vpop.f32.mrf.mxu0
        %v7508 = vadd.f32 0.0, %v7507
        %v7509 = vpop.f32.mrf.mxu0
        %7510 = vmatprep.mubr.bf16.mxu0 0
        %7511 = vmatmul.mubr.bf16.gmra.mxu0 %v7370
        %v7512 = vpop.f32.mrf.mxu0
        %v7513 = vadd.f32 0.0, %v7512
        %v7514 = vpop.f32.mrf.mxu0
        %v7515 = vpop.f32.mrf.mxu0
        %v7516 = vadd.f32 0.0, %v7515
        %v7517 = vpop.f32.mrf.mxu0
        %7518 = vmatprep.mubr.bf16.mxu0 0
        %7519 = vmatmul.mubr.bf16.gmra.mxu0 %v7371
        %v7520 = vpop.f32.mrf.mxu0
        %v7521 = vadd.f32 0.0, %v7520
        %v7522 = vpop.f32.mrf.mxu0
        %v7523 = vpop.f32.mrf.mxu0
        %v7524 = vadd.f32 0.0, %v7523
        %v7525 = vpop.f32.mrf.mxu0
        %7526 = vmatprep.mubr.bf16.mxu0 0
        %7527 = vmatmul.mubr.bf16.gmra.mxu0 %v7372
        %v7528 = vpop.f32.mrf.mxu0
        %v7529 = vadd.f32 0.0, %v7528
        %v7530 = vpop.f32.mrf.mxu0
        %v7531 = vpop.f32.mrf.mxu0
        %v7532 = vadd.f32 0.0, %v7531
        %v7533 = vpop.f32.mrf.mxu0
        %7534 = vmatprep.mubr.bf16.mxu0 0
        %7535 = vmatmul.mubr.bf16.gmra.mxu0 %v7373
        %v7536 = vpop.f32.mrf.mxu0
        %v7537 = vadd.f32 0.0, %v7536
        %v7538 = vpop.f32.mrf.mxu0
        %v7539 = vpop.f32.mrf.mxu0
        %v7540 = vadd.f32 0.0, %v7539
        %v7541 = vpop.f32.mrf.mxu0
        %7542 = vmatprep.mubr.bf16.mxu0 0
        %7543 = vmatmul.mubr.bf16.gmra.mxu0 %v7374
        %v7544 = vpop.f32.mrf.mxu0
        %v7545 = vadd.f32 0.0, %v7544
        %v7546 = vpop.f32.mrf.mxu0
        %v7547 = vpop.f32.mrf.mxu0
        %v7548 = vadd.f32 0.0, %v7547
        %v7549 = vpop.f32.mrf.mxu0
        %7550 = vmatprep.mubr.bf16.mxu0 0
        %7551 = vmatmul.mubr.bf16.gmra.mxu0 %v7375
        %v7552 = vpop.f32.mrf.mxu0
        %v7553 = vadd.f32 0.0, %v7552
        %v7554 = vpop.f32.mrf.mxu0
        %v7555 = vpop.f32.mrf.mxu0
        %v7556 = vadd.f32 0.0, %v7555
        %v7557 = vpop.f32.mrf.mxu0
        %7558 = vmatprep.mubr.bf16.mxu0 0
        %7559 = vmatmul.mubr.bf16.gmra.mxu0 %v7376
        %v7560 = vpop.f32.mrf.mxu0
        %v7561 = vadd.f32 0.0, %v7560
        %v7562 = vpop.f32.mrf.mxu0
        %v7563 = vpop.f32.mrf.mxu0
        %v7564 = vadd.f32 0.0, %v7563
        %v7565 = vpop.f32.mrf.mxu0
        %7566 = vmatprep.mubr.bf16.mxu0 0
        %7567 = vmatmul.mubr.bf16.gmra.mxu0 %v7377
        %v7568 = vpop.f32.mrf.mxu0
        %v7569 = vadd.f32 0.0, %v7568
        %v7570 = vpop.f32.mrf.mxu0
        %v7571 = vpop.f32.mrf.mxu0
        %v7572 = vadd.f32 0.0, %v7571
        %v7573 = vpop.f32.mrf.mxu0
        %7574 = vmatprep.mubr.bf16.mxu0 0
        %7575 = vmatmul.mubr.bf16.gmra.mxu0 %v7378
        %v7576 = vpop.f32.mrf.mxu0
        %v7577 = vadd.f32 0.0, %v7576
        %v7578 = vpop.f32.mrf.mxu0
        %v7579 = vpop.f32.mrf.mxu0
        %v7580 = vadd.f32 0.0, %v7579
        %v7581 = vpop.f32.mrf.mxu0
        %7582 = vmatprep.mubr.bf16.mxu0 0
        %7583 = vmatmul.mubr.bf16.gmra.mxu0 %v7379
        %v7584 = vpop.f32.mrf.mxu0
        %v7585 = vadd.f32 0.0, %v7584
        %v7586 = vpop.f32.mrf.mxu0
        %v7587 = vpop.f32.mrf.mxu0
        %v7588 = vadd.f32 0.0, %v7587
        %v7589 = vpop.f32.mrf.mxu0
        %7590 = vmatprep.mubr.bf16.mxu0 0
        %7591 = vmatmul.mubr.bf16.gmra.mxu0 %v7380
        %v7592 = vpop.f32.mrf.mxu0
        %v7593 = vadd.f32 0.0, %v7592
        %v7594 = vpop.f32.mrf.mxu0
        %v7595 = vpop.f32.mrf.mxu0
        %v7596 = vadd.f32 0.0, %v7595
        %v7597 = vpop.f32.mrf.mxu0
        %7598 = vmatprep.mubr.bf16.mxu0 0
        %7599 = vmatmul.mubr.bf16.gmra.mxu0 %v7381
        %v7600 = vpop.f32.mrf.mxu0
        %v7601 = vadd.f32 0.0, %v7600
        %v7602 = vpop.f32.mrf.mxu0
        %v7603 = vpop.f32.mrf.mxu0
        %v7604 = vadd.f32 0.0, %v7603
        %v7605 = vpop.f32.mrf.mxu0
        %7606 = vdwg.mxu0
        %v7607 = vadd.f32 %v7222, %v7481
        %v7608 = vadd.f32 %v7223, %v7484
        %v7609 = vadd.f32 %v7224, %v7489
        %v7610 = vadd.f32 %v7225, %v7492
        %v7611 = vadd.f32 %v7226, %v7497
        %v7612 = vadd.f32 %v7227, %v7500
        %v7613 = vadd.f32 %v7228, %v7505
        %v7614 = vadd.f32 %v7229, %v7508
        %v7615 = vadd.f32 %v7230, %v7513
        %v7616 = vadd.f32 %v7231, %v7516
        %v7617 = vadd.f32 %v7232, %v7521
        %v7618 = vadd.f32 %v7233, %v7524
        %v7619 = vadd.f32 %v7234, %v7529
        %v7620 = vadd.f32 %v7235, %v7532
        %v7621 = vadd.f32 %v7236, %v7537
        %v7622 = vadd.f32 %v7237, %v7540
        %v7623 = vadd.f32 %v7238, %v7545
        %v7624 = vadd.f32 %v7239, %v7548
        %v7625 = vadd.f32 %v7240, %v7553
        %v7626 = vadd.f32 %v7241, %v7556
        %v7627 = vadd.f32 %v7242, %v7561
        %v7628 = vadd.f32 %v7243, %v7564
        %v7629 = vadd.f32 %v7244, %v7569
        %v7630 = vadd.f32 %v7245, %v7572
        %v7631 = vadd.f32 %v7246, %v7577
        %v7632 = vadd.f32 %v7247, %v7580
        %v7633 = vadd.f32 %v7248, %v7585
        %v7634 = vadd.f32 %v7249, %v7588
        %v7635 = vadd.f32 %v7250, %v7593
        %v7636 = vadd.f32 %v7251, %v7596
        %v7637 = vadd.f32 %v7252, %v7601
        %v7638 = vadd.f32 %v7253, %v7604
        %v7639 = vld [vmem:[%s5613] sm:$0xf]
        %v7640 = vld [vmem:[%s5613 + $0x4] sm:$0xf]
        %v7641 = vld [vmem:[%s5613 + $0x8] sm:$0x1]
        %v7642 = vld [vmem:[%s5613 + $0xc] sm:$0xf]
        %v7643 = vld [vmem:[%s5613 + $0x10] sm:$0xf]
        %v7644 = vld [vmem:[%s5613 + $0x14] sm:$0x1]
        %v7645 = vld [vmem:[%s5613 + $0x18] sm:$0xf]
        %v7646 = vld [vmem:[%s5613 + $0x1c] sm:$0xf]
        %v7647 = vld [vmem:[%s5613 + $0x20] sm:$0x1]
        %v7648 = vld [vmem:[%s5613 + $0x24] sm:$0xf]
        %v7649 = vld [vmem:[%s5613 + $0x28] sm:$0xf]
        %v7650 = vld [vmem:[%s5613 + $0x2c] sm:$0x1]
        %v7651 = vld [vmem:[%s5613 + $0x30] sm:$0xf]
        %v7652 = vld [vmem:[%s5613 + $0x34] sm:$0xf]
        %v7653 = vld [vmem:[%s5613 + $0x38] sm:$0x1]
        %v7654 = vld [vmem:[%s5613 + $0x3c] sm:$0xf]
        %v7655 = vld [vmem:[%s5613 + $0x40] sm:$0xf]
        %v7656 = vld [vmem:[%s5613 + $0x44] sm:$0x1]
        %v7657 = vld [vmem:[%s5613 + $0x48] sm:$0xf]
        %v7658 = vld [vmem:[%s5613 + $0x4c] sm:$0xf]
        %v7659 = vld [vmem:[%s5613 + $0x50] sm:$0x1]
        %v7660 = vld [vmem:[%s5613 + $0x54] sm:$0xf]
        %v7661 = vld [vmem:[%s5613 + $0x58] sm:$0xf]
        %v7662 = vld [vmem:[%s5613 + $0x5c] sm:$0x1]
        %v7663 = vld [vmem:[%s5613 + $0x60] sm:$0xf]
        %v7664 = vld [vmem:[%s5613 + $0x64] sm:$0xf]
        %v7665 = vld [vmem:[%s5613 + $0x68] sm:$0x1]
        %v7666 = vld [vmem:[%s5613 + $0x6c] sm:$0xf]
        %v7667 = vld [vmem:[%s5613 + $0x70] sm:$0xf]
        %v7668 = vld [vmem:[%s5613 + $0x74] sm:$0x1]
        %v7669 = vld [vmem:[%s5613 + $0x78] sm:$0xf]
        %v7670 = vld [vmem:[%s5613 + $0x7c] sm:$0xf]
        %v7671 = vld [vmem:[%s5613 + $0x80] sm:$0x1]
        %v7672 = vld [vmem:[%s5613 + $0x84] sm:$0xf]
        %v7673 = vld [vmem:[%s5613 + $0x88] sm:$0xf]
        %v7674 = vld [vmem:[%s5613 + $0x8c] sm:$0x1]
        %v7675 = vld [vmem:[%s5613 + $0x90] sm:$0xf]
        %v7676 = vld [vmem:[%s5613 + $0x94] sm:$0xf]
        %v7677 = vld [vmem:[%s5613 + $0x98] sm:$0x1]
        %v7678 = vld [vmem:[%s5613 + $0x9c] sm:$0xf]
        %v7679 = vld [vmem:[%s5613 + $0xa0] sm:$0xf]
        %v7680 = vld [vmem:[%s5613 + $0xa4] sm:$0x1]
        %v7681 = vld [vmem:[%s5613 + $0xa8] sm:$0xf]
        %v7682 = vld [vmem:[%s5613 + $0xac] sm:$0xf]
        %v7683 = vld [vmem:[%s5613 + $0xb0] sm:$0x1]
        %v7684 = vld [vmem:[%s5613 + $0xb4] sm:$0xf]
        %v7685 = vld [vmem:[%s5613 + $0xb8] sm:$0xf]
        %v7686 = vld [vmem:[%s5613 + $0xbc] sm:$0x1]
        %v7688 = vshrl.u32 %v7639, 16
        %v7690 = vrot.slane %v7688, 4
        %v7691 = vshll.u32 %v7639, 16
        %v7693 = vrot.slane %v7691, 5
        %v7694 = vor.u32 %v7690, %v7693
        %v7695 = vrot.slane %v7694, 4
        %v7697 = vshll.u32 %v7640, 16
        %v7699 = vrot.slane %v7697, 5
        %v7700 = vsel %vm388, %v7695, %v7699
        %v7701 = vshrl.u32 %v7640, 16
        %v7703 = vrot.slane %v7701, 4
        %v7704 = vor.u32 %v7703, %v7699
        %v7705 = vrot.slane %v7704, 4
        %v7707 = vshll.u32 %v7641, 16
        %v7709 = vrot.slane %v7707, 5
        %v7710 = vsel %vm388, %v7705, %v7709
        %v7712 = vshrl.u32 %v7642, 16
        %v7714 = vrot.slane %v7712, 4
        %v7715 = vshll.u32 %v7642, 16
        %v7717 = vrot.slane %v7715, 5
        %v7718 = vor.u32 %v7714, %v7717
        %v7719 = vrot.slane %v7718, 4
        %v7721 = vshll.u32 %v7643, 16
        %v7723 = vrot.slane %v7721, 5
        %v7724 = vsel %vm388, %v7719, %v7723
        %v7725 = vshrl.u32 %v7643, 16
        %v7727 = vrot.slane %v7725, 4
        %v7728 = vor.u32 %v7727, %v7723
        %v7729 = vrot.slane %v7728, 4
        %v7731 = vshll.u32 %v7644, 16
        %v7733 = vrot.slane %v7731, 5
        %v7734 = vsel %vm388, %v7729, %v7733
        %v7736 = vshrl.u32 %v7645, 16
        %v7738 = vrot.slane %v7736, 4
        %v7739 = vshll.u32 %v7645, 16
        %v7741 = vrot.slane %v7739, 5
        %v7742 = vor.u32 %v7738, %v7741
        %v7743 = vrot.slane %v7742, 4
        %v7745 = vshll.u32 %v7646, 16
        %v7747 = vrot.slane %v7745, 5
        %v7748 = vsel %vm388, %v7743, %v7747
        %v7749 = vshrl.u32 %v7646, 16
        %v7751 = vrot.slane %v7749, 4
        %v7752 = vor.u32 %v7751, %v7747
        %v7753 = vrot.slane %v7752, 4
        %v7755 = vshll.u32 %v7647, 16
        %v7757 = vrot.slane %v7755, 5
        %v7758 = vsel %vm388, %v7753, %v7757
        %v7760 = vshrl.u32 %v7648, 16
        %v7762 = vrot.slane %v7760, 4
        %v7763 = vshll.u32 %v7648, 16
        %v7765 = vrot.slane %v7763, 5
        %v7766 = vor.u32 %v7762, %v7765
        %v7767 = vrot.slane %v7766, 4
        %v7769 = vshll.u32 %v7649, 16
        %v7771 = vrot.slane %v7769, 5
        %v7772 = vsel %vm388, %v7767, %v7771
        %v7773 = vshrl.u32 %v7649, 16
        %v7775 = vrot.slane %v7773, 4
        %v7776 = vor.u32 %v7775, %v7771
        %v7777 = vrot.slane %v7776, 4
        %v7779 = vshll.u32 %v7650, 16
        %v7781 = vrot.slane %v7779, 5
        %v7782 = vsel %vm388, %v7777, %v7781
        %v7784 = vshrl.u32 %v7651, 16
        %v7786 = vrot.slane %v7784, 4
        %v7787 = vshll.u32 %v7651, 16
        %v7789 = vrot.slane %v7787, 5
        %v7790 = vor.u32 %v7786, %v7789
        %v7791 = vrot.slane %v7790, 4
        %v7793 = vshll.u32 %v7652, 16
        %v7795 = vrot.slane %v7793, 5
        %v7796 = vsel %vm388, %v7791, %v7795
        %v7797 = vshrl.u32 %v7652, 16
        %v7799 = vrot.slane %v7797, 4
        %v7800 = vor.u32 %v7799, %v7795
        %v7801 = vrot.slane %v7800, 4
        %v7803 = vshll.u32 %v7653, 16
        %v7805 = vrot.slane %v7803, 5
        %v7806 = vsel %vm388, %v7801, %v7805
        %v7808 = vshrl.u32 %v7654, 16
        %v7810 = vrot.slane %v7808, 4
        %v7811 = vshll.u32 %v7654, 16
        %v7813 = vrot.slane %v7811, 5
        %v7814 = vor.u32 %v7810, %v7813
        %v7815 = vrot.slane %v7814, 4
        %v7817 = vshll.u32 %v7655, 16
        %v7819 = vrot.slane %v7817, 5
        %v7820 = vsel %vm388, %v7815, %v7819
        %v7821 = vshrl.u32 %v7655, 16
        %v7823 = vrot.slane %v7821, 4
        %v7824 = vor.u32 %v7823, %v7819
        %v7825 = vrot.slane %v7824, 4
        %v7827 = vshll.u32 %v7656, 16
        %v7829 = vrot.slane %v7827, 5
        %v7830 = vsel %vm388, %v7825, %v7829
        %v7832 = vshrl.u32 %v7657, 16
        %v7834 = vrot.slane %v7832, 4
        %v7835 = vshll.u32 %v7657, 16
        %v7837 = vrot.slane %v7835, 5
        %v7838 = vor.u32 %v7834, %v7837
        %v7839 = vrot.slane %v7838, 4
        %v7841 = vshll.u32 %v7658, 16
        %v7843 = vrot.slane %v7841, 5
        %v7844 = vsel %vm388, %v7839, %v7843
        %v7845 = vshrl.u32 %v7658, 16
        %v7847 = vrot.slane %v7845, 4
        %v7848 = vor.u32 %v7847, %v7843
        %v7849 = vrot.slane %v7848, 4
        %v7851 = vshll.u32 %v7659, 16
        %v7853 = vrot.slane %v7851, 5
        %v7854 = vsel %vm388, %v7849, %v7853
        %v7856 = vshrl.u32 %v7660, 16
        %v7858 = vrot.slane %v7856, 4
        %v7859 = vshll.u32 %v7660, 16
        %v7861 = vrot.slane %v7859, 5
        %v7862 = vor.u32 %v7858, %v7861
        %v7863 = vrot.slane %v7862, 4
        %v7865 = vshll.u32 %v7661, 16
        %v7867 = vrot.slane %v7865, 5
        %v7868 = vsel %vm388, %v7863, %v7867
        %v7869 = vshrl.u32 %v7661, 16
        %v7871 = vrot.slane %v7869, 4
        %v7872 = vor.u32 %v7871, %v7867
        %v7873 = vrot.slane %v7872, 4
        %v7875 = vshll.u32 %v7662, 16
        %v7877 = vrot.slane %v7875, 5
        %v7878 = vsel %vm388, %v7873, %v7877
        %v7880 = vshrl.u32 %v7663, 16
        %v7882 = vrot.slane %v7880, 4
        %v7883 = vshll.u32 %v7663, 16
        %v7885 = vrot.slane %v7883, 5
        %v7886 = vor.u32 %v7882, %v7885
        %v7887 = vrot.slane %v7886, 4
        %v7889 = vshll.u32 %v7664, 16
        %v7891 = vrot.slane %v7889, 5
        %v7892 = vsel %vm388, %v7887, %v7891
        %v7893 = vshrl.u32 %v7664, 16
        %v7895 = vrot.slane %v7893, 4
        %v7896 = vor.u32 %v7895, %v7891
        %v7897 = vrot.slane %v7896, 4
        %v7899 = vshll.u32 %v7665, 16
        %v7901 = vrot.slane %v7899, 5
        %v7902 = vsel %vm388, %v7897, %v7901
        %v7904 = vshrl.u32 %v7666, 16
        %v7906 = vrot.slane %v7904, 4
        %v7907 = vshll.u32 %v7666, 16
        %v7909 = vrot.slane %v7907, 5
        %v7910 = vor.u32 %v7906, %v7909
        %v7911 = vrot.slane %v7910, 4
        %v7913 = vshll.u32 %v7667, 16
        %v7915 = vrot.slane %v7913, 5
        %v7916 = vsel %vm388, %v7911, %v7915
        %v7917 = vshrl.u32 %v7667, 16
        %v7919 = vrot.slane %v7917, 4
        %v7920 = vor.u32 %v7919, %v7915
        %v7921 = vrot.slane %v7920, 4
        %v7923 = vshll.u32 %v7668, 16
        %v7925 = vrot.slane %v7923, 5
        %v7926 = vsel %vm388, %v7921, %v7925
        %v7928 = vshrl.u32 %v7669, 16
        %v7930 = vrot.slane %v7928, 4
        %v7931 = vshll.u32 %v7669, 16
        %v7933 = vrot.slane %v7931, 5
        %v7934 = vor.u32 %v7930, %v7933
        %v7935 = vrot.slane %v7934, 4
        %v7937 = vshll.u32 %v7670, 16
        %v7939 = vrot.slane %v7937, 5
        %v7940 = vsel %vm388, %v7935, %v7939
        %v7941 = vshrl.u32 %v7670, 16
        %v7943 = vrot.slane %v7941, 4
        %v7944 = vor.u32 %v7943, %v7939
        %v7945 = vrot.slane %v7944, 4
        %v7947 = vshll.u32 %v7671, 16
        %v7949 = vrot.slane %v7947, 5
        %v7950 = vsel %vm388, %v7945, %v7949
        %v7952 = vshrl.u32 %v7672, 16
        %v7954 = vrot.slane %v7952, 4
        %v7955 = vshll.u32 %v7672, 16
        %v7957 = vrot.slane %v7955, 5
        %v7958 = vor.u32 %v7954, %v7957
        %v7959 = vrot.slane %v7958, 4
        %v7961 = vshll.u32 %v7673, 16
        %v7963 = vrot.slane %v7961, 5
        %v7964 = vsel %vm388, %v7959, %v7963
        %v7965 = vshrl.u32 %v7673, 16
        %v7967 = vrot.slane %v7965, 4
        %v7968 = vor.u32 %v7967, %v7963
        %v7969 = vrot.slane %v7968, 4
        %v7971 = vshll.u32 %v7674, 16
        %v7973 = vrot.slane %v7971, 5
        %v7974 = vsel %vm388, %v7969, %v7973
        %v7976 = vshrl.u32 %v7675, 16
        %v7978 = vrot.slane %v7976, 4
        %v7979 = vshll.u32 %v7675, 16
        %v7981 = vrot.slane %v7979, 5
        %v7982 = vor.u32 %v7978, %v7981
        %v7983 = vrot.slane %v7982, 4
        %v7985 = vshll.u32 %v7676, 16
        %v7987 = vrot.slane %v7985, 5
        %v7988 = vsel %vm388, %v7983, %v7987
        %v7989 = vshrl.u32 %v7676, 16
        %v7991 = vrot.slane %v7989, 4
        %v7992 = vor.u32 %v7991, %v7987
        %v7993 = vrot.slane %v7992, 4
        %v7995 = vshll.u32 %v7677, 16
        %v7997 = vrot.slane %v7995, 5
        %v7998 = vsel %vm388, %v7993, %v7997
        %v8000 = vshrl.u32 %v7678, 16
        %v8002 = vrot.slane %v8000, 4
        %v8003 = vshll.u32 %v7678, 16
        %v8005 = vrot.slane %v8003, 5
        %v8006 = vor.u32 %v8002, %v8005
        %v8007 = vrot.slane %v8006, 4
        %v8009 = vshll.u32 %v7679, 16
        %v8011 = vrot.slane %v8009, 5
        %v8012 = vsel %vm388, %v8007, %v8011
        %v8013 = vshrl.u32 %v7679, 16
        %v8015 = vrot.slane %v8013, 4
        %v8016 = vor.u32 %v8015, %v8011
        %v8017 = vrot.slane %v8016, 4
        %v8019 = vshll.u32 %v7680, 16
        %v8021 = vrot.slane %v8019, 5
        %v8022 = vsel %vm388, %v8017, %v8021
        %v8024 = vshrl.u32 %v7681, 16
        %v8026 = vrot.slane %v8024, 4
        %v8027 = vshll.u32 %v7681, 16
        %v8029 = vrot.slane %v8027, 5
        %v8030 = vor.u32 %v8026, %v8029
        %v8031 = vrot.slane %v8030, 4
        %v8033 = vshll.u32 %v7682, 16
        %v8035 = vrot.slane %v8033, 5
        %v8036 = vsel %vm388, %v8031, %v8035
        %v8037 = vshrl.u32 %v7682, 16
        %v8039 = vrot.slane %v8037, 4
        %v8040 = vor.u32 %v8039, %v8035
        %v8041 = vrot.slane %v8040, 4
        %v8043 = vshll.u32 %v7683, 16
        %v8045 = vrot.slane %v8043, 5
        %v8046 = vsel %vm388, %v8041, %v8045
        %v8048 = vshrl.u32 %v7684, 16
        %v8050 = vrot.slane %v8048, 4
        %v8051 = vshll.u32 %v7684, 16
        %v8053 = vrot.slane %v8051, 5
        %v8054 = vor.u32 %v8050, %v8053
        %v8055 = vrot.slane %v8054, 4
        %v8057 = vshll.u32 %v7685, 16
        %v8059 = vrot.slane %v8057, 5
        %v8060 = vsel %vm388, %v8055, %v8059
        %v8061 = vshrl.u32 %v7685, 16
        %v8063 = vrot.slane %v8061, 4
        %v8064 = vor.u32 %v8063, %v8059
        %v8065 = vrot.slane %v8064, 4
        %v8067 = vshll.u32 %v7686, 16
        %v8069 = vrot.slane %v8067, 5
        %v8070 = vsel %vm388, %v8065, %v8069
        %v8071 = vld [vmem:[%s3 + $0x100] sm:$0xf]
        %v8072 = vld [vmem:[%s3 + $0x104] sm:$0xf]
        %v8073 = vld [vmem:[%s3 + $0x108] sm:$0xf]
        %v8074 = vld [vmem:[%s3 + $0x10c] sm:$0xf]
        %v8075 = vld [vmem:[%s3 + $0x110] sm:$0xf]
        %v8076 = vld [vmem:[%s3 + $0x114] sm:$0xf]
        %v8077 = vld [vmem:[%s3 + $0x118] sm:$0xf]
        %v8078 = vld [vmem:[%s3 + $0x11c] sm:$0xf]
        %v8079 = vld [vmem:[%s3 + $0x120] sm:$0xf]
        %v8080 = vld [vmem:[%s3 + $0x124] sm:$0xf]
        %v8081 = vld [vmem:[%s3 + $0x128] sm:$0xf]
        %v8082 = vld [vmem:[%s3 + $0x12c] sm:$0xf]
        %v8083 = vld [vmem:[%s3 + $0x130] sm:$0xf]
        %v8084 = vld [vmem:[%s3 + $0x134] sm:$0xf]
        %v8085 = vld [vmem:[%s3 + $0x138] sm:$0xf]
        %v8086 = vld [vmem:[%s3 + $0x13c] sm:$0xf]
        %v8087 = vunpack.c.l.b16 %v7700
        %v8088 = vunpack.c.l.b16 %v7710
        %v8089 = vunpack.c.l.b16 %v7724
        %v8090 = vunpack.c.l.b16 %v7734
        %v8091 = vunpack.c.l.b16 %v7748
        %v8092 = vunpack.c.l.b16 %v7758
        %v8093 = vunpack.c.l.b16 %v7772
        %v8094 = vunpack.c.l.b16 %v7782
        %v8095 = vunpack.c.l.b16 %v7796
        %v8096 = vunpack.c.l.b16 %v7806
        %v8097 = vunpack.c.l.b16 %v7820
        %v8098 = vunpack.c.l.b16 %v7830
        %v8099 = vunpack.c.l.b16 %v7844
        %v8100 = vunpack.c.l.b16 %v7854
        %v8101 = vunpack.c.l.b16 %v7868
        %v8102 = vunpack.c.l.b16 %v7878
        %v8103 = vunpack.c.l.b16 %v7892
        %v8104 = vunpack.c.l.b16 %v7902
        %v8105 = vunpack.c.l.b16 %v7916
        %v8106 = vunpack.c.l.b16 %v7926
        %v8107 = vunpack.c.l.b16 %v7940
        %v8108 = vunpack.c.l.b16 %v7950
        %v8109 = vunpack.c.l.b16 %v7964
        %v8110 = vunpack.c.l.b16 %v7974
        %v8111 = vunpack.c.l.b16 %v7988
        %v8112 = vunpack.c.l.b16 %v7998
        %v8113 = vunpack.c.l.b16 %v8012
        %v8114 = vunpack.c.l.b16 %v8022
        %v8115 = vunpack.c.l.b16 %v8036
        %v8116 = vunpack.c.l.b16 %v8046
        %v8117 = vunpack.c.l.b16 %v8060
        %v8118 = vunpack.c.l.b16 %v8070
        %v8119 = vpack.c.b16 %v8088, %v8087
        %v8120 = vpack.c.b16 %v8090, %v8089
        %v8121 = vpack.c.b16 %v8092, %v8091
        %v8122 = vpack.c.b16 %v8094, %v8093
        %v8123 = vpack.c.b16 %v8096, %v8095
        %v8124 = vpack.c.b16 %v8098, %v8097
        %v8125 = vpack.c.b16 %v8100, %v8099
        %v8126 = vpack.c.b16 %v8102, %v8101
        %v8127 = vpack.c.b16 %v8104, %v8103
        %v8128 = vpack.c.b16 %v8106, %v8105
        %v8129 = vpack.c.b16 %v8108, %v8107
        %v8130 = vpack.c.b16 %v8110, %v8109
        %v8131 = vpack.c.b16 %v8112, %v8111
        %v8132 = vpack.c.b16 %v8114, %v8113
        %v8133 = vpack.c.b16 %v8116, %v8115
        %v8134 = vpack.c.b16 %v8118, %v8117
        %v8167 = vunpack.c.l.b16 %v8071
        %v8168 = vunpack.c.l.b16 %v8072
        %v8169 = vunpack.c.l.b16 %v8073
        %v8170 = vunpack.c.l.b16 %v8074
        %v8171 = vunpack.c.l.b16 %v8075
        %v8172 = vunpack.c.l.b16 %v8076
        %v8173 = vunpack.c.l.b16 %v8077
        %v8174 = vunpack.c.l.b16 %v8078
        %v8175 = vunpack.c.l.b16 %v8079
        %v8176 = vunpack.c.l.b16 %v8080
        %v8177 = vunpack.c.l.b16 %v8081
        %v8178 = vunpack.c.l.b16 %v8082
        %v8179 = vunpack.c.l.b16 %v8083
        %v8180 = vunpack.c.l.b16 %v8084
        %v8181 = vunpack.c.l.b16 %v8085
        %v8182 = vunpack.c.l.b16 %v8086
        %v8183 = vpack.c.b16 %v8168, %v8167
        %v8184 = vpack.c.b16 %v8170, %v8169
        %v8185 = vpack.c.b16 %v8172, %v8171
        %v8186 = vpack.c.b16 %v8174, %v8173
        %v8187 = vpack.c.b16 %v8176, %v8175
        %v8188 = vpack.c.b16 %v8178, %v8177
        %v8189 = vpack.c.b16 %v8180, %v8179
        %v8190 = vpack.c.b16 %v8182, %v8181
        %8199 = vmatprep.subr.bf16.mxu0 0
        %8200 = vmatpush1.bf16.msra.mxu0 %v8190
        %8201 = vmatprep.subr.bf16.mxu0 0
        %8202 = vmatpush1.bf16.msra.mxu0 %v8189
        %8203 = vmatprep.subr.bf16.mxu0 0
        %8204 = vmatpush1.bf16.msra.mxu0 %v8188
        %8205 = vmatprep.subr.bf16.mxu0 0
        %8206 = vmatpush1.bf16.msra.mxu0 %v8187
        %8207 = vmatprep.subr.bf16.mxu0 0
        %8208 = vmatpush1.bf16.msra.mxu0 %v8186
        %8209 = vmatprep.subr.bf16.mxu0 0
        %8210 = vmatpush1.bf16.msra.mxu0 %v8185
        %8211 = vmatprep.subr.bf16.mxu0 0
        %8212 = vmatpush1.bf16.msra.mxu0 %v8184
        %8213 = vmatprep.subr.bf16.mxu0 0
        %8214 = vmatpush1.bf16.msra.mxu0 %v8183
        %8215 = vmatprep.subr.bf16.mxu0 0
        %8216 = vmatpush2.bf16.msra.mxu0 0
        %8217 = vmatprep.subr.bf16.mxu0 0
        %8218 = vmatpush2.bf16.msra.mxu0 0
        %8219 = vmatprep.subr.bf16.mxu0 0
        %8220 = vmatpush2.bf16.msra.mxu0 0
        %8221 = vmatprep.subr.bf16.mxu0 0
        %8222 = vmatpush2.bf16.msra.mxu0 0
        %8223 = vmatprep.subr.bf16.mxu0 0
        %8224 = vmatpush2.bf16.msra.mxu0 0
        %8225 = vmatprep.subr.bf16.mxu0 0
        %8226 = vmatpush2.bf16.msra.mxu0 0
        %8227 = vmatprep.subr.bf16.mxu0 0
        %8228 = vmatpush2.bf16.msra.mxu0 0
        %8229 = vmatprep.subr.bf16.mxu0 0
        %8230 = vmatpush2.bf16.msra.mxu0 0
        %8231 = vmatprep.mubr.bf16.mxu0 0
        %8232 = vmatmul.mubr.bf16.gmra.mxu0 %v8119
        %v8233 = vpop.f32.mrf.mxu0
        %v8234 = vadd.f32 0.0, %v8233
        %v8235 = vpop.f32.mrf.mxu0
        %v8236 = vpop.f32.mrf.mxu0
        %v8237 = vadd.f32 0.0, %v8236
        %v8238 = vpop.f32.mrf.mxu0
        %8239 = vmatprep.mubr.bf16.mxu0 0
        %8240 = vmatmul.mubr.bf16.gmra.mxu0 %v8120
        %v8241 = vpop.f32.mrf.mxu0
        %v8242 = vadd.f32 0.0, %v8241
        %v8243 = vpop.f32.mrf.mxu0
        %v8244 = vpop.f32.mrf.mxu0
        %v8245 = vadd.f32 0.0, %v8244
        %v8246 = vpop.f32.mrf.mxu0
        %8247 = vmatprep.mubr.bf16.mxu0 0
        %8248 = vmatmul.mubr.bf16.gmra.mxu0 %v8121
        %v8249 = vpop.f32.mrf.mxu0
        %v8250 = vadd.f32 0.0, %v8249
        %v8251 = vpop.f32.mrf.mxu0
        %v8252 = vpop.f32.mrf.mxu0
        %v8253 = vadd.f32 0.0, %v8252
        %v8254 = vpop.f32.mrf.mxu0
        %8255 = vmatprep.mubr.bf16.mxu0 0
        %8256 = vmatmul.mubr.bf16.gmra.mxu0 %v8122
        %v8257 = vpop.f32.mrf.mxu0
        %v8258 = vadd.f32 0.0, %v8257
        %v8259 = vpop.f32.mrf.mxu0
        %v8260 = vpop.f32.mrf.mxu0
        %v8261 = vadd.f32 0.0, %v8260
        %v8262 = vpop.f32.mrf.mxu0
        %8263 = vmatprep.mubr.bf16.mxu0 0
        %8264 = vmatmul.mubr.bf16.gmra.mxu0 %v8123
        %v8265 = vpop.f32.mrf.mxu0
        %v8266 = vadd.f32 0.0, %v8265
        %v8267 = vpop.f32.mrf.mxu0
        %v8268 = vpop.f32.mrf.mxu0
        %v8269 = vadd.f32 0.0, %v8268
        %v8270 = vpop.f32.mrf.mxu0
        %8271 = vmatprep.mubr.bf16.mxu0 0
        %8272 = vmatmul.mubr.bf16.gmra.mxu0 %v8124
        %v8273 = vpop.f32.mrf.mxu0
        %v8274 = vadd.f32 0.0, %v8273
        %v8275 = vpop.f32.mrf.mxu0
        %v8276 = vpop.f32.mrf.mxu0
        %v8277 = vadd.f32 0.0, %v8276
        %v8278 = vpop.f32.mrf.mxu0
        %8279 = vmatprep.mubr.bf16.mxu0 0
        %8280 = vmatmul.mubr.bf16.gmra.mxu0 %v8125
        %v8281 = vpop.f32.mrf.mxu0
        %v8282 = vadd.f32 0.0, %v8281
        %v8283 = vpop.f32.mrf.mxu0
        %v8284 = vpop.f32.mrf.mxu0
        %v8285 = vadd.f32 0.0, %v8284
        %v8286 = vpop.f32.mrf.mxu0
        %8287 = vmatprep.mubr.bf16.mxu0 0
        %8288 = vmatmul.mubr.bf16.gmra.mxu0 %v8126
        %v8289 = vpop.f32.mrf.mxu0
        %v8290 = vadd.f32 0.0, %v8289
        %v8291 = vpop.f32.mrf.mxu0
        %v8292 = vpop.f32.mrf.mxu0
        %v8293 = vadd.f32 0.0, %v8292
        %v8294 = vpop.f32.mrf.mxu0
        %8295 = vmatprep.mubr.bf16.mxu0 0
        %8296 = vmatmul.mubr.bf16.gmra.mxu0 %v8127
        %v8297 = vpop.f32.mrf.mxu0
        %v8298 = vadd.f32 0.0, %v8297
        %v8299 = vpop.f32.mrf.mxu0
        %v8300 = vpop.f32.mrf.mxu0
        %v8301 = vadd.f32 0.0, %v8300
        %v8302 = vpop.f32.mrf.mxu0
        %8303 = vmatprep.mubr.bf16.mxu0 0
        %8304 = vmatmul.mubr.bf16.gmra.mxu0 %v8128
        %v8305 = vpop.f32.mrf.mxu0
        %v8306 = vadd.f32 0.0, %v8305
        %v8307 = vpop.f32.mrf.mxu0
        %v8308 = vpop.f32.mrf.mxu0
        %v8309 = vadd.f32 0.0, %v8308
        %v8310 = vpop.f32.mrf.mxu0
        %8311 = vmatprep.mubr.bf16.mxu0 0
        %8312 = vmatmul.mubr.bf16.gmra.mxu0 %v8129
        %v8313 = vpop.f32.mrf.mxu0
        %v8314 = vadd.f32 0.0, %v8313
        %v8315 = vpop.f32.mrf.mxu0
        %v8316 = vpop.f32.mrf.mxu0
        %v8317 = vadd.f32 0.0, %v8316
        %v8318 = vpop.f32.mrf.mxu0
        %8319 = vmatprep.mubr.bf16.mxu0 0
        %8320 = vmatmul.mubr.bf16.gmra.mxu0 %v8130
        %v8321 = vpop.f32.mrf.mxu0
        %v8322 = vadd.f32 0.0, %v8321
        %v8323 = vpop.f32.mrf.mxu0
        %v8324 = vpop.f32.mrf.mxu0
        %v8325 = vadd.f32 0.0, %v8324
        %v8326 = vpop.f32.mrf.mxu0
        %8327 = vmatprep.mubr.bf16.mxu0 0
        %8328 = vmatmul.mubr.bf16.gmra.mxu0 %v8131
        %v8329 = vpop.f32.mrf.mxu0
        %v8330 = vadd.f32 0.0, %v8329
        %v8331 = vpop.f32.mrf.mxu0
        %v8332 = vpop.f32.mrf.mxu0
        %v8333 = vadd.f32 0.0, %v8332
        %v8334 = vpop.f32.mrf.mxu0
        %8335 = vmatprep.mubr.bf16.mxu0 0
        %8336 = vmatmul.mubr.bf16.gmra.mxu0 %v8132
        %v8337 = vpop.f32.mrf.mxu0
        %v8338 = vadd.f32 0.0, %v8337
        %v8339 = vpop.f32.mrf.mxu0
        %v8340 = vpop.f32.mrf.mxu0
        %v8341 = vadd.f32 0.0, %v8340
        %v8342 = vpop.f32.mrf.mxu0
        %8343 = vmatprep.mubr.bf16.mxu0 0
        %8344 = vmatmul.mubr.bf16.gmra.mxu0 %v8133
        %v8345 = vpop.f32.mrf.mxu0
        %v8346 = vadd.f32 0.0, %v8345
        %v8347 = vpop.f32.mrf.mxu0
        %v8348 = vpop.f32.mrf.mxu0
        %v8349 = vadd.f32 0.0, %v8348
        %v8350 = vpop.f32.mrf.mxu0
        %8351 = vmatprep.mubr.bf16.mxu0 0
        %8352 = vmatmul.mubr.bf16.gmra.mxu0 %v8134
        %v8353 = vpop.f32.mrf.mxu0
        %v8354 = vadd.f32 0.0, %v8353
        %v8355 = vpop.f32.mrf.mxu0
        %v8356 = vpop.f32.mrf.mxu0
        %v8357 = vadd.f32 0.0, %v8356
        %v8358 = vpop.f32.mrf.mxu0
        %8359 = vdwg.mxu0
        %v8360 = vadd.f32 %v7607, %v8234
        %v8361 = vadd.f32 %v7608, %v8237
        %v8362 = vadd.f32 %v7609, %v8242
        %v8363 = vadd.f32 %v7610, %v8245
        %v8364 = vadd.f32 %v7611, %v8250
        %v8365 = vadd.f32 %v7612, %v8253
        %v8366 = vadd.f32 %v7613, %v8258
        %v8367 = vadd.f32 %v7614, %v8261
        %v8368 = vadd.f32 %v7615, %v8266
        %v8369 = vadd.f32 %v7616, %v8269
        %v8370 = vadd.f32 %v7617, %v8274
        %v8371 = vadd.f32 %v7618, %v8277
        %v8372 = vadd.f32 %v7619, %v8282
        %v8373 = vadd.f32 %v7620, %v8285
        %v8374 = vadd.f32 %v7621, %v8290
        %v8375 = vadd.f32 %v7622, %v8293
        %v8376 = vadd.f32 %v7623, %v8298
        %v8377 = vadd.f32 %v7624, %v8301
        %v8378 = vadd.f32 %v7625, %v8306
        %v8379 = vadd.f32 %v7626, %v8309
        %v8380 = vadd.f32 %v7627, %v8314
        %v8381 = vadd.f32 %v7628, %v8317
        %v8382 = vadd.f32 %v7629, %v8322
        %v8383 = vadd.f32 %v7630, %v8325
        %v8384 = vadd.f32 %v7631, %v8330
        %v8385 = vadd.f32 %v7632, %v8333
        %v8386 = vadd.f32 %v7633, %v8338
        %v8387 = vadd.f32 %v7634, %v8341
        %v8388 = vadd.f32 %v7635, %v8346
        %v8389 = vadd.f32 %v7636, %v8349
        %v8390 = vadd.f32 %v7637, %v8354
        %v8391 = vadd.f32 %v7638, %v8357
        %v8392 = vld [vmem:[%s5613] sm:$0xe]
        %v8393 = vld [vmem:[%s5613 + $0xc] sm:$0xe]
        %v8394 = vld [vmem:[%s5613 + $0x18] sm:$0xe]
        %v8395 = vld [vmem:[%s5613 + $0x24] sm:$0xe]
        %v8396 = vld [vmem:[%s5613 + $0x30] sm:$0xe]
        %v8397 = vld [vmem:[%s5613 + $0x3c] sm:$0xe]
        %v8398 = vld [vmem:[%s5613 + $0x48] sm:$0xe]
        %v8399 = vld [vmem:[%s5613 + $0x54] sm:$0xe]
        %v8400 = vld [vmem:[%s5613 + $0x60] sm:$0xe]
        %v8401 = vld [vmem:[%s5613 + $0x6c] sm:$0xe]
        %v8402 = vld [vmem:[%s5613 + $0x78] sm:$0xe]
        %v8403 = vld [vmem:[%s5613 + $0x84] sm:$0xe]
        %v8404 = vld [vmem:[%s5613 + $0x90] sm:$0xe]
        %v8405 = vld [vmem:[%s5613 + $0x9c] sm:$0xe]
        %v8406 = vld [vmem:[%s5613 + $0xa8] sm:$0xe]
        %v8407 = vld [vmem:[%s5613 + $0xb4] sm:$0xe]
        %v8456 = vrot.slane %v8392, 5
        %v8457 = vrot.slane %v8456, 4
        %v8458 = vrot.slane %v7640, 5
        %v8459 = vsel %vm1417, %v8457, %v8458
        %v8460 = vrot.slane %v8458, 4
        %v8461 = vrot.slane %v7641, 5
        %v8462 = vsel %vm1417, %v8460, %v8461
        %v8463 = vrot.slane %v8393, 5
        %v8464 = vrot.slane %v8463, 4
        %v8465 = vrot.slane %v7643, 5
        %v8466 = vsel %vm1417, %v8464, %v8465
        %v8467 = vrot.slane %v8465, 4
        %v8468 = vrot.slane %v7644, 5
        %v8469 = vsel %vm1417, %v8467, %v8468
        %v8470 = vrot.slane %v8394, 5
        %v8471 = vrot.slane %v8470, 4
        %v8472 = vrot.slane %v7646, 5
        %v8473 = vsel %vm1417, %v8471, %v8472
        %v8474 = vrot.slane %v8472, 4
        %v8475 = vrot.slane %v7647, 5
        %v8476 = vsel %vm1417, %v8474, %v8475
        %v8477 = vrot.slane %v8395, 5
        %v8478 = vrot.slane %v8477, 4
        %v8479 = vrot.slane %v7649, 5
        %v8480 = vsel %vm1417, %v8478, %v8479
        %v8481 = vrot.slane %v8479, 4
        %v8482 = vrot.slane %v7650, 5
        %v8483 = vsel %vm1417, %v8481, %v8482
        %v8484 = vrot.slane %v8396, 5
        %v8485 = vrot.slane %v8484, 4
        %v8486 = vrot.slane %v7652, 5
        %v8487 = vsel %vm1417, %v8485, %v8486
        %v8488 = vrot.slane %v8486, 4
        %v8489 = vrot.slane %v7653, 5
        %v8490 = vsel %vm1417, %v8488, %v8489
        %v8491 = vrot.slane %v8397, 5
        %v8492 = vrot.slane %v8491, 4
        %v8493 = vrot.slane %v7655, 5
        %v8494 = vsel %vm1417, %v8492, %v8493
        %v8495 = vrot.slane %v8493, 4
        %v8496 = vrot.slane %v7656, 5
        %v8497 = vsel %vm1417, %v8495, %v8496
        %v8498 = vrot.slane %v8398, 5
        %v8499 = vrot.slane %v8498, 4
        %v8500 = vrot.slane %v7658, 5
        %v8501 = vsel %vm1417, %v8499, %v8500
        %v8502 = vrot.slane %v8500, 4
        %v8503 = vrot.slane %v7659, 5
        %v8504 = vsel %vm1417, %v8502, %v8503
        %v8505 = vrot.slane %v8399, 5
        %v8506 = vrot.slane %v8505, 4
        %v8507 = vrot.slane %v7661, 5
        %v8508 = vsel %vm1417, %v8506, %v8507
        %v8509 = vrot.slane %v8507, 4
        %v8510 = vrot.slane %v7662, 5
        %v8511 = vsel %vm1417, %v8509, %v8510
        %v8512 = vrot.slane %v8400, 5
        %v8513 = vrot.slane %v8512, 4
        %v8514 = vrot.slane %v7664, 5
        %v8515 = vsel %vm1417, %v8513, %v8514
        %v8516 = vrot.slane %v8514, 4
        %v8517 = vrot.slane %v7665, 5
        %v8518 = vsel %vm1417, %v8516, %v8517
        %v8519 = vrot.slane %v8401, 5
        %v8520 = vrot.slane %v8519, 4
        %v8521 = vrot.slane %v7667, 5
        %v8522 = vsel %vm1417, %v8520, %v8521
        %v8523 = vrot.slane %v8521, 4
        %v8524 = vrot.slane %v7668, 5
        %v8525 = vsel %vm1417, %v8523, %v8524
        %v8526 = vrot.slane %v8402, 5
        %v8527 = vrot.slane %v8526, 4
        %v8528 = vrot.slane %v7670, 5
        %v8529 = vsel %vm1417, %v8527, %v8528
        %v8530 = vrot.slane %v8528, 4
        %v8531 = vrot.slane %v7671, 5
        %v8532 = vsel %vm1417, %v8530, %v8531
        %v8533 = vrot.slane %v8403, 5
        %v8534 = vrot.slane %v8533, 4
        %v8535 = vrot.slane %v7673, 5
        %v8536 = vsel %vm1417, %v8534, %v8535
        %v8537 = vrot.slane %v8535, 4
        %v8538 = vrot.slane %v7674, 5
        %v8539 = vsel %vm1417, %v8537, %v8538
        %v8540 = vrot.slane %v8404, 5
        %v8541 = vrot.slane %v8540, 4
        %v8542 = vrot.slane %v7676, 5
        %v8543 = vsel %vm1417, %v8541, %v8542
        %v8544 = vrot.slane %v8542, 4
        %v8545 = vrot.slane %v7677, 5
        %v8546 = vsel %vm1417, %v8544, %v8545
        %v8547 = vrot.slane %v8405, 5
        %v8548 = vrot.slane %v8547, 4
        %v8549 = vrot.slane %v7679, 5
        %v8550 = vsel %vm1417, %v8548, %v8549
        %v8551 = vrot.slane %v8549, 4
        %v8552 = vrot.slane %v7680, 5
        %v8553 = vsel %vm1417, %v8551, %v8552
        %v8554 = vrot.slane %v8406, 5
        %v8555 = vrot.slane %v8554, 4
        %v8556 = vrot.slane %v7682, 5
        %v8557 = vsel %vm1417, %v8555, %v8556
        %v8558 = vrot.slane %v8556, 4
        %v8559 = vrot.slane %v7683, 5
        %v8560 = vsel %vm1417, %v8558, %v8559
        %v8561 = vrot.slane %v8407, 5
        %v8562 = vrot.slane %v8561, 4
        %v8563 = vrot.slane %v7685, 5
        %v8564 = vsel %vm1417, %v8562, %v8563
        %v8565 = vrot.slane %v8563, 4
        %v8566 = vrot.slane %v7686, 5
        %v8567 = vsel %vm1417, %v8565, %v8566
        %v8568 = vld [vmem:[%s3 + $0x140] sm:$0xf]
        %v8569 = vld [vmem:[%s3 + $0x144] sm:$0xf]
        %v8570 = vld [vmem:[%s3 + $0x148] sm:$0xf]
        %v8571 = vld [vmem:[%s3 + $0x14c] sm:$0xf]
        %v8572 = vld [vmem:[%s3 + $0x150] sm:$0xf]
        %v8573 = vld [vmem:[%s3 + $0x154] sm:$0xf]
        %v8574 = vld [vmem:[%s3 + $0x158] sm:$0xf]
        %v8575 = vld [vmem:[%s3 + $0x15c] sm:$0xf]
        %v8576 = vld [vmem:[%s3 + $0x160] sm:$0xf]
        %v8577 = vld [vmem:[%s3 + $0x164] sm:$0xf]
        %v8578 = vld [vmem:[%s3 + $0x168] sm:$0xf]
        %v8579 = vld [vmem:[%s3 + $0x16c] sm:$0xf]
        %v8580 = vld [vmem:[%s3 + $0x170] sm:$0xf]
        %v8581 = vld [vmem:[%s3 + $0x174] sm:$0xf]
        %v8582 = vld [vmem:[%s3 + $0x178] sm:$0xf]
        %v8583 = vld [vmem:[%s3 + $0x17c] sm:$0xf]
        %v8584 = vunpack.c.l.b16 %v8459
        %v8585 = vunpack.c.l.b16 %v8462
        %v8586 = vunpack.c.l.b16 %v8466
        %v8587 = vunpack.c.l.b16 %v8469
        %v8588 = vunpack.c.l.b16 %v8473
        %v8589 = vunpack.c.l.b16 %v8476
        %v8590 = vunpack.c.l.b16 %v8480
        %v8591 = vunpack.c.l.b16 %v8483
        %v8592 = vunpack.c.l.b16 %v8487
        %v8593 = vunpack.c.l.b16 %v8490
        %v8594 = vunpack.c.l.b16 %v8494
        %v8595 = vunpack.c.l.b16 %v8497
        %v8596 = vunpack.c.l.b16 %v8501
        %v8597 = vunpack.c.l.b16 %v8504
        %v8598 = vunpack.c.l.b16 %v8508
        %v8599 = vunpack.c.l.b16 %v8511
        %v8600 = vunpack.c.l.b16 %v8515
        %v8601 = vunpack.c.l.b16 %v8518
        %v8602 = vunpack.c.l.b16 %v8522
        %v8603 = vunpack.c.l.b16 %v8525
        %v8604 = vunpack.c.l.b16 %v8529
        %v8605 = vunpack.c.l.b16 %v8532
        %v8606 = vunpack.c.l.b16 %v8536
        %v8607 = vunpack.c.l.b16 %v8539
        %v8608 = vunpack.c.l.b16 %v8543
        %v8609 = vunpack.c.l.b16 %v8546
        %v8610 = vunpack.c.l.b16 %v8550
        %v8611 = vunpack.c.l.b16 %v8553
        %v8612 = vunpack.c.l.b16 %v8557
        %v8613 = vunpack.c.l.b16 %v8560
        %v8614 = vunpack.c.l.b16 %v8564
        %v8615 = vunpack.c.l.b16 %v8567
        %v8616 = vpack.c.b16 %v8585, %v8584
        %v8617 = vpack.c.b16 %v8587, %v8586
        %v8618 = vpack.c.b16 %v8589, %v8588
        %v8619 = vpack.c.b16 %v8591, %v8590
        %v8620 = vpack.c.b16 %v8593, %v8592
        %v8621 = vpack.c.b16 %v8595, %v8594
        %v8622 = vpack.c.b16 %v8597, %v8596
        %v8623 = vpack.c.b16 %v8599, %v8598
        %v8624 = vpack.c.b16 %v8601, %v8600
        %v8625 = vpack.c.b16 %v8603, %v8602
        %v8626 = vpack.c.b16 %v8605, %v8604
        %v8627 = vpack.c.b16 %v8607, %v8606
        %v8628 = vpack.c.b16 %v8609, %v8608
        %v8629 = vpack.c.b16 %v8611, %v8610
        %v8630 = vpack.c.b16 %v8613, %v8612
        %v8631 = vpack.c.b16 %v8615, %v8614
        %v8664 = vunpack.c.l.b16 %v8568
        %v8665 = vunpack.c.l.b16 %v8569
        %v8666 = vunpack.c.l.b16 %v8570
        %v8667 = vunpack.c.l.b16 %v8571
        %v8668 = vunpack.c.l.b16 %v8572
        %v8669 = vunpack.c.l.b16 %v8573
        %v8670 = vunpack.c.l.b16 %v8574
        %v8671 = vunpack.c.l.b16 %v8575
        %v8672 = vunpack.c.l.b16 %v8576
        %v8673 = vunpack.c.l.b16 %v8577
        %v8674 = vunpack.c.l.b16 %v8578
        %v8675 = vunpack.c.l.b16 %v8579
        %v8676 = vunpack.c.l.b16 %v8580
        %v8677 = vunpack.c.l.b16 %v8581
        %v8678 = vunpack.c.l.b16 %v8582
        %v8679 = vunpack.c.l.b16 %v8583
        %v8680 = vpack.c.b16 %v8665, %v8664
        %v8681 = vpack.c.b16 %v8667, %v8666
        %v8682 = vpack.c.b16 %v8669, %v8668
        %v8683 = vpack.c.b16 %v8671, %v8670
        %v8684 = vpack.c.b16 %v8673, %v8672
        %v8685 = vpack.c.b16 %v8675, %v8674
        %v8686 = vpack.c.b16 %v8677, %v8676
        %v8687 = vpack.c.b16 %v8679, %v8678
        %8696 = vmatprep.subr.bf16.mxu0 0
        %8697 = vmatpush1.bf16.msra.mxu0 %v8687
        %8698 = vmatprep.subr.bf16.mxu0 0
        %8699 = vmatpush1.bf16.msra.mxu0 %v8686
        %8700 = vmatprep.subr.bf16.mxu0 0
        %8701 = vmatpush1.bf16.msra.mxu0 %v8685
        %8702 = vmatprep.subr.bf16.mxu0 0
        %8703 = vmatpush1.bf16.msra.mxu0 %v8684
        %8704 = vmatprep.subr.bf16.mxu0 0
        %8705 = vmatpush1.bf16.msra.mxu0 %v8683
        %8706 = vmatprep.subr.bf16.mxu0 0
        %8707 = vmatpush1.bf16.msra.mxu0 %v8682
        %8708 = vmatprep.subr.bf16.mxu0 0
        %8709 = vmatpush1.bf16.msra.mxu0 %v8681
        %8710 = vmatprep.subr.bf16.mxu0 0
        %8711 = vmatpush1.bf16.msra.mxu0 %v8680
        %8712 = vmatprep.subr.bf16.mxu0 0
        %8713 = vmatpush2.bf16.msra.mxu0 0
        %8714 = vmatprep.subr.bf16.mxu0 0
        %8715 = vmatpush2.bf16.msra.mxu0 0
        %8716 = vmatprep.subr.bf16.mxu0 0
        %8717 = vmatpush2.bf16.msra.mxu0 0
        %8718 = vmatprep.subr.bf16.mxu0 0
        %8719 = vmatpush2.bf16.msra.mxu0 0
        %8720 = vmatprep.subr.bf16.mxu0 0
        %8721 = vmatpush2.bf16.msra.mxu0 0
        %8722 = vmatprep.subr.bf16.mxu0 0
        %8723 = vmatpush2.bf16.msra.mxu0 0
        %8724 = vmatprep.subr.bf16.mxu0 0
        %8725 = vmatpush2.bf16.msra.mxu0 0
        %8726 = vmatprep.subr.bf16.mxu0 0
        %8727 = vmatpush2.bf16.msra.mxu0 0
        %8728 = vmatprep.mubr.bf16.mxu0 0
        %8729 = vmatmul.mubr.bf16.gmra.mxu0 %v8616
        %v8730 = vpop.f32.mrf.mxu0
        %v8731 = vadd.f32 0.0, %v8730
        %v8732 = vpop.f32.mrf.mxu0
        %v8733 = vpop.f32.mrf.mxu0
        %v8734 = vadd.f32 0.0, %v8733
        %v8735 = vpop.f32.mrf.mxu0
        %8736 = vmatprep.mubr.bf16.mxu0 0
        %8737 = vmatmul.mubr.bf16.gmra.mxu0 %v8617
        %v8738 = vpop.f32.mrf.mxu0
        %v8739 = vadd.f32 0.0, %v8738
        %v8740 = vpop.f32.mrf.mxu0
        %v8741 = vpop.f32.mrf.mxu0
        %v8742 = vadd.f32 0.0, %v8741
        %v8743 = vpop.f32.mrf.mxu0
        %8744 = vmatprep.mubr.bf16.mxu0 0
        %8745 = vmatmul.mubr.bf16.gmra.mxu0 %v8618
        %v8746 = vpop.f32.mrf.mxu0
        %v8747 = vadd.f32 0.0, %v8746
        %v8748 = vpop.f32.mrf.mxu0
        %v8749 = vpop.f32.mrf.mxu0
        %v8750 = vadd.f32 0.0, %v8749
        %v8751 = vpop.f32.mrf.mxu0
        %8752 = vmatprep.mubr.bf16.mxu0 0
        %8753 = vmatmul.mubr.bf16.gmra.mxu0 %v8619
        %v8754 = vpop.f32.mrf.mxu0
        %v8755 = vadd.f32 0.0, %v8754
        %v8756 = vpop.f32.mrf.mxu0
        %v8757 = vpop.f32.mrf.mxu0
        %v8758 = vadd.f32 0.0, %v8757
        %v8759 = vpop.f32.mrf.mxu0
        %8760 = vmatprep.mubr.bf16.mxu0 0
        %8761 = vmatmul.mubr.bf16.gmra.mxu0 %v8620
        %v8762 = vpop.f32.mrf.mxu0
        %v8763 = vadd.f32 0.0, %v8762
        %v8764 = vpop.f32.mrf.mxu0
        %v8765 = vpop.f32.mrf.mxu0
        %v8766 = vadd.f32 0.0, %v8765
        %v8767 = vpop.f32.mrf.mxu0
        %8768 = vmatprep.mubr.bf16.mxu0 0
        %8769 = vmatmul.mubr.bf16.gmra.mxu0 %v8621
        %v8770 = vpop.f32.mrf.mxu0
        %v8771 = vadd.f32 0.0, %v8770
        %v8772 = vpop.f32.mrf.mxu0
        %v8773 = vpop.f32.mrf.mxu0
        %v8774 = vadd.f32 0.0, %v8773
        %v8775 = vpop.f32.mrf.mxu0
        %8776 = vmatprep.mubr.bf16.mxu0 0
        %8777 = vmatmul.mubr.bf16.gmra.mxu0 %v8622
        %v8778 = vpop.f32.mrf.mxu0
        %v8779 = vadd.f32 0.0, %v8778
        %v8780 = vpop.f32.mrf.mxu0
        %v8781 = vpop.f32.mrf.mxu0
        %v8782 = vadd.f32 0.0, %v8781
        %v8783 = vpop.f32.mrf.mxu0
        %8784 = vmatprep.mubr.bf16.mxu0 0
        %8785 = vmatmul.mubr.bf16.gmra.mxu0 %v8623
        %v8786 = vpop.f32.mrf.mxu0
        %v8787 = vadd.f32 0.0, %v8786
        %v8788 = vpop.f32.mrf.mxu0
        %v8789 = vpop.f32.mrf.mxu0
        %v8790 = vadd.f32 0.0, %v8789
        %v8791 = vpop.f32.mrf.mxu0
        %8792 = vmatprep.mubr.bf16.mxu0 0
        %8793 = vmatmul.mubr.bf16.gmra.mxu0 %v8624
        %v8794 = vpop.f32.mrf.mxu0
        %v8795 = vadd.f32 0.0, %v8794
        %v8796 = vpop.f32.mrf.mxu0
        %v8797 = vpop.f32.mrf.mxu0
        %v8798 = vadd.f32 0.0, %v8797
        %v8799 = vpop.f32.mrf.mxu0
        %8800 = vmatprep.mubr.bf16.mxu0 0
        %8801 = vmatmul.mubr.bf16.gmra.mxu0 %v8625
        %v8802 = vpop.f32.mrf.mxu0
        %v8803 = vadd.f32 0.0, %v8802
        %v8804 = vpop.f32.mrf.mxu0
        %v8805 = vpop.f32.mrf.mxu0
        %v8806 = vadd.f32 0.0, %v8805
        %v8807 = vpop.f32.mrf.mxu0
        %8808 = vmatprep.mubr.bf16.mxu0 0
        %8809 = vmatmul.mubr.bf16.gmra.mxu0 %v8626
        %v8810 = vpop.f32.mrf.mxu0
        %v8811 = vadd.f32 0.0, %v8810
        %v8812 = vpop.f32.mrf.mxu0
        %v8813 = vpop.f32.mrf.mxu0
        %v8814 = vadd.f32 0.0, %v8813
        %v8815 = vpop.f32.mrf.mxu0
        %8816 = vmatprep.mubr.bf16.mxu0 0
        %8817 = vmatmul.mubr.bf16.gmra.mxu0 %v8627
        %v8818 = vpop.f32.mrf.mxu0
        %v8819 = vadd.f32 0.0, %v8818
        %v8820 = vpop.f32.mrf.mxu0
        %v8821 = vpop.f32.mrf.mxu0
        %v8822 = vadd.f32 0.0, %v8821
        %v8823 = vpop.f32.mrf.mxu0
        %8824 = vmatprep.mubr.bf16.mxu0 0
        %8825 = vmatmul.mubr.bf16.gmra.mxu0 %v8628
        %v8826 = vpop.f32.mrf.mxu0
        %v8827 = vadd.f32 0.0, %v8826
        %v8828 = vpop.f32.mrf.mxu0
        %v8829 = vpop.f32.mrf.mxu0
        %v8830 = vadd.f32 0.0, %v8829
        %v8831 = vpop.f32.mrf.mxu0
        %8832 = vmatprep.mubr.bf16.mxu0 0
        %8833 = vmatmul.mubr.bf16.gmra.mxu0 %v8629
        %v8834 = vpop.f32.mrf.mxu0
        %v8835 = vadd.f32 0.0, %v8834
        %v8836 = vpop.f32.mrf.mxu0
        %v8837 = vpop.f32.mrf.mxu0
        %v8838 = vadd.f32 0.0, %v8837
        %v8839 = vpop.f32.mrf.mxu0
        %8840 = vmatprep.mubr.bf16.mxu0 0
        %8841 = vmatmul.mubr.bf16.gmra.mxu0 %v8630
        %v8842 = vpop.f32.mrf.mxu0
        %v8843 = vadd.f32 0.0, %v8842
        %v8844 = vpop.f32.mrf.mxu0
        %v8845 = vpop.f32.mrf.mxu0
        %v8846 = vadd.f32 0.0, %v8845
        %v8847 = vpop.f32.mrf.mxu0
        %8848 = vmatprep.mubr.bf16.mxu0 0
        %8849 = vmatmul.mubr.bf16.gmra.mxu0 %v8631
        %v8850 = vpop.f32.mrf.mxu0
        %v8851 = vadd.f32 0.0, %v8850
        %v8852 = vpop.f32.mrf.mxu0
        %v8853 = vpop.f32.mrf.mxu0
        %v8854 = vadd.f32 0.0, %v8853
        %v8855 = vpop.f32.mrf.mxu0
        %8856 = vdwg.mxu0
        %v8857 = vadd.f32 %v8360, %v8731
        %v8858 = vadd.f32 %v8361, %v8734
        %v8859 = vadd.f32 %v8362, %v8739
        %v8860 = vadd.f32 %v8363, %v8742
        %v8861 = vadd.f32 %v8364, %v8747
        %v8862 = vadd.f32 %v8365, %v8750
        %v8863 = vadd.f32 %v8366, %v8755
        %v8864 = vadd.f32 %v8367, %v8758
        %v8865 = vadd.f32 %v8368, %v8763
        %v8866 = vadd.f32 %v8369, %v8766
        %v8867 = vadd.f32 %v8370, %v8771
        %v8868 = vadd.f32 %v8371, %v8774
        %v8869 = vadd.f32 %v8372, %v8779
        %v8870 = vadd.f32 %v8373, %v8782
        %v8871 = vadd.f32 %v8374, %v8787
        %v8872 = vadd.f32 %v8375, %v8790
        %v8873 = vadd.f32 %v8376, %v8795
        %v8874 = vadd.f32 %v8377, %v8798
        %v8875 = vadd.f32 %v8378, %v8803
        %v8876 = vadd.f32 %v8379, %v8806
        %v8877 = vadd.f32 %v8380, %v8811
        %v8878 = vadd.f32 %v8381, %v8814
        %v8879 = vadd.f32 %v8382, %v8819
        %v8880 = vadd.f32 %v8383, %v8822
        %v8881 = vadd.f32 %v8384, %v8827
        %v8882 = vadd.f32 %v8385, %v8830
        %v8883 = vadd.f32 %v8386, %v8835
        %v8884 = vadd.f32 %v8387, %v8838
        %v8885 = vadd.f32 %v8388, %v8843
        %v8886 = vadd.f32 %v8389, %v8846
        %v8887 = vadd.f32 %v8390, %v8851
        %v8888 = vadd.f32 %v8391, %v8854
        %s8889 = scalar_lea.vmem [#allocation2], 24
        %v8890 = vld [vmem:[%s8889] sm:$0xf]
        %v8891 = vld [vmem:[%s8889 + $0x4] sm:$0xf]
        %v8892 = vld [vmem:[%s8889 + $0xc] sm:$0xf]
        %v8893 = vld [vmem:[%s8889 + $0x10] sm:$0xf]
        %v8894 = vld [vmem:[%s8889 + $0x18] sm:$0xf]
        %v8895 = vld [vmem:[%s8889 + $0x1c] sm:$0xf]
        %v8896 = vld [vmem:[%s8889 + $0x24] sm:$0xf]
        %v8897 = vld [vmem:[%s8889 + $0x28] sm:$0xf]
        %v8898 = vld [vmem:[%s8889 + $0x30] sm:$0xf]
        %v8899 = vld [vmem:[%s8889 + $0x34] sm:$0xf]
        %v8900 = vld [vmem:[%s8889 + $0x3c] sm:$0xf]
        %v8901 = vld [vmem:[%s8889 + $0x40] sm:$0xf]
        %v8902 = vld [vmem:[%s8889 + $0x48] sm:$0xf]
        %v8903 = vld [vmem:[%s8889 + $0x4c] sm:$0xf]
        %v8904 = vld [vmem:[%s8889 + $0x54] sm:$0xf]
        %v8905 = vld [vmem:[%s8889 + $0x58] sm:$0xf]
        %v8906 = vld [vmem:[%s8889 + $0x60] sm:$0xf]
        %v8907 = vld [vmem:[%s8889 + $0x64] sm:$0xf]
        %v8908 = vld [vmem:[%s8889 + $0x6c] sm:$0xf]
        %v8909 = vld [vmem:[%s8889 + $0x70] sm:$0xf]
        %v8910 = vld [vmem:[%s8889 + $0x78] sm:$0xf]
        %v8911 = vld [vmem:[%s8889 + $0x7c] sm:$0xf]
        %v8912 = vld [vmem:[%s8889 + $0x84] sm:$0xf]
        %v8913 = vld [vmem:[%s8889 + $0x88] sm:$0xf]
        %v8914 = vld [vmem:[%s8889 + $0x90] sm:$0xf]
        %v8915 = vld [vmem:[%s8889 + $0x94] sm:$0xf]
        %v8916 = vld [vmem:[%s8889 + $0x9c] sm:$0xf]
        %v8917 = vld [vmem:[%s8889 + $0xa0] sm:$0xf]
        %v8918 = vld [vmem:[%s8889 + $0xa8] sm:$0xf]
        %v8919 = vld [vmem:[%s8889 + $0xac] sm:$0xf]
        %v8920 = vld [vmem:[%s8889 + $0xb4] sm:$0xf]
        %v8921 = vld [vmem:[%s8889 + $0xb8] sm:$0xf]
        %v8922 = vld [vmem:[%s3 + $0x180] sm:$0xf]
        %v8923 = vld [vmem:[%s3 + $0x184] sm:$0xf]
        %v8924 = vld [vmem:[%s3 + $0x188] sm:$0xf]
        %v8925 = vld [vmem:[%s3 + $0x18c] sm:$0xf]
        %v8926 = vld [vmem:[%s3 + $0x190] sm:$0xf]
        %v8927 = vld [vmem:[%s3 + $0x194] sm:$0xf]
        %v8928 = vld [vmem:[%s3 + $0x198] sm:$0xf]
        %v8929 = vld [vmem:[%s3 + $0x19c] sm:$0xf]
        %v8930 = vld [vmem:[%s3 + $0x1a0] sm:$0xf]
        %v8931 = vld [vmem:[%s3 + $0x1a4] sm:$0xf]
        %v8932 = vld [vmem:[%s3 + $0x1a8] sm:$0xf]
        %v8933 = vld [vmem:[%s3 + $0x1ac] sm:$0xf]
        %v8934 = vld [vmem:[%s3 + $0x1b0] sm:$0xf]
        %v8935 = vld [vmem:[%s3 + $0x1b4] sm:$0xf]
        %v8936 = vld [vmem:[%s3 + $0x1b8] sm:$0xf]
        %v8937 = vld [vmem:[%s3 + $0x1bc] sm:$0xf]
        %v8970 = vunpack.c.l.b16 %v8890
        %v8971 = vunpack.c.l.b16 %v8891
        %v8972 = vunpack.c.l.b16 %v8892
        %v8973 = vunpack.c.l.b16 %v8893
        %v8974 = vunpack.c.l.b16 %v8894
        %v8975 = vunpack.c.l.b16 %v8895
        %v8976 = vunpack.c.l.b16 %v8896
        %v8977 = vunpack.c.l.b16 %v8897
        %v8978 = vunpack.c.l.b16 %v8898
        %v8979 = vunpack.c.l.b16 %v8899
        %v8980 = vunpack.c.l.b16 %v8900
        %v8981 = vunpack.c.l.b16 %v8901
        %v8982 = vunpack.c.l.b16 %v8902
        %v8983 = vunpack.c.l.b16 %v8903
        %v8984 = vunpack.c.l.b16 %v8904
        %v8985 = vunpack.c.l.b16 %v8905
        %v8986 = vunpack.c.l.b16 %v8906
        %v8987 = vunpack.c.l.b16 %v8907
        %v8988 = vunpack.c.l.b16 %v8908
        %v8989 = vunpack.c.l.b16 %v8909
        %v8990 = vunpack.c.l.b16 %v8910
        %v8991 = vunpack.c.l.b16 %v8911
        %v8992 = vunpack.c.l.b16 %v8912
        %v8993 = vunpack.c.l.b16 %v8913
        %v8994 = vunpack.c.l.b16 %v8914
        %v8995 = vunpack.c.l.b16 %v8915
        %v8996 = vunpack.c.l.b16 %v8916
        %v8997 = vunpack.c.l.b16 %v8917
        %v8998 = vunpack.c.l.b16 %v8918
        %v8999 = vunpack.c.l.b16 %v8919
        %v9000 = vunpack.c.l.b16 %v8920
        %v9001 = vunpack.c.l.b16 %v8921
        %v9002 = vpack.c.b16 %v8971, %v8970
        %v9003 = vpack.c.b16 %v8973, %v8972
        %v9004 = vpack.c.b16 %v8975, %v8974
        %v9005 = vpack.c.b16 %v8977, %v8976
        %v9006 = vpack.c.b16 %v8979, %v8978
        %v9007 = vpack.c.b16 %v8981, %v8980
        %v9008 = vpack.c.b16 %v8983, %v8982
        %v9009 = vpack.c.b16 %v8985, %v8984
        %v9010 = vpack.c.b16 %v8987, %v8986
        %v9011 = vpack.c.b16 %v8989, %v8988
        %v9012 = vpack.c.b16 %v8991, %v8990
        %v9013 = vpack.c.b16 %v8993, %v8992
        %v9014 = vpack.c.b16 %v8995, %v8994
        %v9015 = vpack.c.b16 %v8997, %v8996
        %v9016 = vpack.c.b16 %v8999, %v8998
        %v9017 = vpack.c.b16 %v9001, %v9000
        %v9050 = vunpack.c.l.b16 %v8922
        %v9051 = vunpack.c.l.b16 %v8923
        %v9052 = vunpack.c.l.b16 %v8924
        %v9053 = vunpack.c.l.b16 %v8925
        %v9054 = vunpack.c.l.b16 %v8926
        %v9055 = vunpack.c.l.b16 %v8927
        %v9056 = vunpack.c.l.b16 %v8928
        %v9057 = vunpack.c.l.b16 %v8929
        %v9058 = vunpack.c.l.b16 %v8930
        %v9059 = vunpack.c.l.b16 %v8931
        %v9060 = vunpack.c.l.b16 %v8932
        %v9061 = vunpack.c.l.b16 %v8933
        %v9062 = vunpack.c.l.b16 %v8934
        %v9063 = vunpack.c.l.b16 %v8935
        %v9064 = vunpack.c.l.b16 %v8936
        %v9065 = vunpack.c.l.b16 %v8937
        %v9066 = vpack.c.b16 %v9051, %v9050
        %v9067 = vpack.c.b16 %v9053, %v9052
        %v9068 = vpack.c.b16 %v9055, %v9054
        %v9069 = vpack.c.b16 %v9057, %v9056
        %v9070 = vpack.c.b16 %v9059, %v9058
        %v9071 = vpack.c.b16 %v9061, %v9060
        %v9072 = vpack.c.b16 %v9063, %v9062
        %v9073 = vpack.c.b16 %v9065, %v9064
        %9082 = vmatprep.subr.bf16.mxu0 0
        %9083 = vmatpush1.bf16.msra.mxu0 %v9073
        %9084 = vmatprep.subr.bf16.mxu0 0
        %9085 = vmatpush1.bf16.msra.mxu0 %v9072
        %9086 = vmatprep.subr.bf16.mxu0 0
        %9087 = vmatpush1.bf16.msra.mxu0 %v9071
        %9088 = vmatprep.subr.bf16.mxu0 0
        %9089 = vmatpush1.bf16.msra.mxu0 %v9070
        %9090 = vmatprep.subr.bf16.mxu0 0
        %9091 = vmatpush1.bf16.msra.mxu0 %v9069
        %9092 = vmatprep.subr.bf16.mxu0 0
        %9093 = vmatpush1.bf16.msra.mxu0 %v9068
        %9094 = vmatprep.subr.bf16.mxu0 0
        %9095 = vmatpush1.bf16.msra.mxu0 %v9067
        %9096 = vmatprep.subr.bf16.mxu0 0
        %9097 = vmatpush1.bf16.msra.mxu0 %v9066
        %9098 = vmatprep.subr.bf16.mxu0 0
        %9099 = vmatpush2.bf16.msra.mxu0 0
        %9100 = vmatprep.subr.bf16.mxu0 0
        %9101 = vmatpush2.bf16.msra.mxu0 0
        %9102 = vmatprep.subr.bf16.mxu0 0
        %9103 = vmatpush2.bf16.msra.mxu0 0
        %9104 = vmatprep.subr.bf16.mxu0 0
        %9105 = vmatpush2.bf16.msra.mxu0 0
        %9106 = vmatprep.subr.bf16.mxu0 0
        %9107 = vmatpush2.bf16.msra.mxu0 0
        %9108 = vmatprep.subr.bf16.mxu0 0
        %9109 = vmatpush2.bf16.msra.mxu0 0
        %9110 = vmatprep.subr.bf16.mxu0 0
        %9111 = vmatpush2.bf16.msra.mxu0 0
        %9112 = vmatprep.subr.bf16.mxu0 0
        %9113 = vmatpush2.bf16.msra.mxu0 0
        %9114 = vmatprep.mubr.bf16.mxu0 0
        %9115 = vmatmul.mubr.bf16.gmra.mxu0 %v9002
        %v9116 = vpop.f32.mrf.mxu0
        %v9117 = vadd.f32 0.0, %v9116
        %v9118 = vpop.f32.mrf.mxu0
        %v9119 = vpop.f32.mrf.mxu0
        %v9120 = vadd.f32 0.0, %v9119
        %v9121 = vpop.f32.mrf.mxu0
        %9122 = vmatprep.mubr.bf16.mxu0 0
        %9123 = vmatmul.mubr.bf16.gmra.mxu0 %v9003
        %v9124 = vpop.f32.mrf.mxu0
        %v9125 = vadd.f32 0.0, %v9124
        %v9126 = vpop.f32.mrf.mxu0
        %v9127 = vpop.f32.mrf.mxu0
        %v9128 = vadd.f32 0.0, %v9127
        %v9129 = vpop.f32.mrf.mxu0
        %9130 = vmatprep.mubr.bf16.mxu0 0
        %9131 = vmatmul.mubr.bf16.gmra.mxu0 %v9004
        %v9132 = vpop.f32.mrf.mxu0
        %v9133 = vadd.f32 0.0, %v9132
        %v9134 = vpop.f32.mrf.mxu0
        %v9135 = vpop.f32.mrf.mxu0
        %v9136 = vadd.f32 0.0, %v9135
        %v9137 = vpop.f32.mrf.mxu0
        %9138 = vmatprep.mubr.bf16.mxu0 0
        %9139 = vmatmul.mubr.bf16.gmra.mxu0 %v9005
        %v9140 = vpop.f32.mrf.mxu0
        %v9141 = vadd.f32 0.0, %v9140
        %v9142 = vpop.f32.mrf.mxu0
        %v9143 = vpop.f32.mrf.mxu0
        %v9144 = vadd.f32 0.0, %v9143
        %v9145 = vpop.f32.mrf.mxu0
        %9146 = vmatprep.mubr.bf16.mxu0 0
        %9147 = vmatmul.mubr.bf16.gmra.mxu0 %v9006
        %v9148 = vpop.f32.mrf.mxu0
        %v9149 = vadd.f32 0.0, %v9148
        %v9150 = vpop.f32.mrf.mxu0
        %v9151 = vpop.f32.mrf.mxu0
        %v9152 = vadd.f32 0.0, %v9151
        %v9153 = vpop.f32.mrf.mxu0
        %9154 = vmatprep.mubr.bf16.mxu0 0
        %9155 = vmatmul.mubr.bf16.gmra.mxu0 %v9007
        %v9156 = vpop.f32.mrf.mxu0
        %v9157 = vadd.f32 0.0, %v9156
        %v9158 = vpop.f32.mrf.mxu0
        %v9159 = vpop.f32.mrf.mxu0
        %v9160 = vadd.f32 0.0, %v9159
        %v9161 = vpop.f32.mrf.mxu0
        %9162 = vmatprep.mubr.bf16.mxu0 0
        %9163 = vmatmul.mubr.bf16.gmra.mxu0 %v9008
        %v9164 = vpop.f32.mrf.mxu0
        %v9165 = vadd.f32 0.0, %v9164
        %v9166 = vpop.f32.mrf.mxu0
        %v9167 = vpop.f32.mrf.mxu0
        %v9168 = vadd.f32 0.0, %v9167
        %v9169 = vpop.f32.mrf.mxu0
        %9170 = vmatprep.mubr.bf16.mxu0 0
        %9171 = vmatmul.mubr.bf16.gmra.mxu0 %v9009
        %v9172 = vpop.f32.mrf.mxu0
        %v9173 = vadd.f32 0.0, %v9172
        %v9174 = vpop.f32.mrf.mxu0
        %v9175 = vpop.f32.mrf.mxu0
        %v9176 = vadd.f32 0.0, %v9175
        %v9177 = vpop.f32.mrf.mxu0
        %9178 = vmatprep.mubr.bf16.mxu0 0
        %9179 = vmatmul.mubr.bf16.gmra.mxu0 %v9010
        %v9180 = vpop.f32.mrf.mxu0
        %v9181 = vadd.f32 0.0, %v9180
        %v9182 = vpop.f32.mrf.mxu0
        %v9183 = vpop.f32.mrf.mxu0
        %v9184 = vadd.f32 0.0, %v9183
        %v9185 = vpop.f32.mrf.mxu0
        %9186 = vmatprep.mubr.bf16.mxu0 0
        %9187 = vmatmul.mubr.bf16.gmra.mxu0 %v9011
        %v9188 = vpop.f32.mrf.mxu0
        %v9189 = vadd.f32 0.0, %v9188
        %v9190 = vpop.f32.mrf.mxu0
        %v9191 = vpop.f32.mrf.mxu0
        %v9192 = vadd.f32 0.0, %v9191
        %v9193 = vpop.f32.mrf.mxu0
        %9194 = vmatprep.mubr.bf16.mxu0 0
        %9195 = vmatmul.mubr.bf16.gmra.mxu0 %v9012
        %v9196 = vpop.f32.mrf.mxu0
        %v9197 = vadd.f32 0.0, %v9196
        %v9198 = vpop.f32.mrf.mxu0
        %v9199 = vpop.f32.mrf.mxu0
        %v9200 = vadd.f32 0.0, %v9199
        %v9201 = vpop.f32.mrf.mxu0
        %9202 = vmatprep.mubr.bf16.mxu0 0
        %9203 = vmatmul.mubr.bf16.gmra.mxu0 %v9013
        %v9204 = vpop.f32.mrf.mxu0
        %v9205 = vadd.f32 0.0, %v9204
        %v9206 = vpop.f32.mrf.mxu0
        %v9207 = vpop.f32.mrf.mxu0
        %v9208 = vadd.f32 0.0, %v9207
        %v9209 = vpop.f32.mrf.mxu0
        %9210 = vmatprep.mubr.bf16.mxu0 0
        %9211 = vmatmul.mubr.bf16.gmra.mxu0 %v9014
        %v9212 = vpop.f32.mrf.mxu0
        %v9213 = vadd.f32 0.0, %v9212
        %v9214 = vpop.f32.mrf.mxu0
        %v9215 = vpop.f32.mrf.mxu0
        %v9216 = vadd.f32 0.0, %v9215
        %v9217 = vpop.f32.mrf.mxu0
        %9218 = vmatprep.mubr.bf16.mxu0 0
        %9219 = vmatmul.mubr.bf16.gmra.mxu0 %v9015
        %v9220 = vpop.f32.mrf.mxu0
        %v9221 = vadd.f32 0.0, %v9220
        %v9222 = vpop.f32.mrf.mxu0
        %v9223 = vpop.f32.mrf.mxu0
        %v9224 = vadd.f32 0.0, %v9223
        %v9225 = vpop.f32.mrf.mxu0
        %9226 = vmatprep.mubr.bf16.mxu0 0
        %9227 = vmatmul.mubr.bf16.gmra.mxu0 %v9016
        %v9228 = vpop.f32.mrf.mxu0
        %v9229 = vadd.f32 0.0, %v9228
        %v9230 = vpop.f32.mrf.mxu0
        %v9231 = vpop.f32.mrf.mxu0
        %v9232 = vadd.f32 0.0, %v9231
        %v9233 = vpop.f32.mrf.mxu0
        %9234 = vmatprep.mubr.bf16.mxu0 0
        %9235 = vmatmul.mubr.bf16.gmra.mxu0 %v9017
        %v9236 = vpop.f32.mrf.mxu0
        %v9237 = vadd.f32 0.0, %v9236
        %v9238 = vpop.f32.mrf.mxu0
        %v9239 = vpop.f32.mrf.mxu0
        %v9240 = vadd.f32 0.0, %v9239
        %v9241 = vpop.f32.mrf.mxu0
        %9242 = vdwg.mxu0
        %v9243 = vadd.f32 %v8857, %v9117
        %v9244 = vadd.f32 %v8858, %v9120
        %v9245 = vadd.f32 %v8859, %v9125
        %v9246 = vadd.f32 %v8860, %v9128
        %v9247 = vadd.f32 %v8861, %v9133
        %v9248 = vadd.f32 %v8862, %v9136
        %v9249 = vadd.f32 %v8863, %v9141
        %v9250 = vadd.f32 %v8864, %v9144
        %v9251 = vadd.f32 %v8865, %v9149
        %v9252 = vadd.f32 %v8866, %v9152
        %v9253 = vadd.f32 %v8867, %v9157
        %v9254 = vadd.f32 %v8868, %v9160
        %v9255 = vadd.f32 %v8869, %v9165
        %v9256 = vadd.f32 %v8870, %v9168
        %v9257 = vadd.f32 %v8871, %v9173
        %v9258 = vadd.f32 %v8872, %v9176
        %v9259 = vadd.f32 %v8873, %v9181
        %v9260 = vadd.f32 %v8874, %v9184
        %v9261 = vadd.f32 %v8875, %v9189
        %v9262 = vadd.f32 %v8876, %v9192
        %v9263 = vadd.f32 %v8877, %v9197
        %v9264 = vadd.f32 %v8878, %v9200
        %v9265 = vadd.f32 %v8879, %v9205
        %v9266 = vadd.f32 %v8880, %v9208
        %v9267 = vadd.f32 %v8881, %v9213
        %v9268 = vadd.f32 %v8882, %v9216
        %v9269 = vadd.f32 %v8883, %v9221
        %v9270 = vadd.f32 %v8884, %v9224
        %v9271 = vadd.f32 %v8885, %v9229
        %v9272 = vadd.f32 %v8886, %v9232
        %v9273 = vadd.f32 %v8887, %v9237
        %v9274 = vadd.f32 %v8888, %v9240
        %v9275 = vld [vmem:[%s8889] sm:$0xf]
        %v9276 = vld [vmem:[%s8889 + $0x4] sm:$0xf]
        %v9277 = vld [vmem:[%s8889 + $0x8] sm:$0x1]
        %v9278 = vld [vmem:[%s8889 + $0xc] sm:$0xf]
        %v9279 = vld [vmem:[%s8889 + $0x10] sm:$0xf]
        %v9280 = vld [vmem:[%s8889 + $0x14] sm:$0x1]
        %v9281 = vld [vmem:[%s8889 + $0x18] sm:$0xf]
        %v9282 = vld [vmem:[%s8889 + $0x1c] sm:$0xf]
        %v9283 = vld [vmem:[%s8889 + $0x20] sm:$0x1]
        %v9284 = vld [vmem:[%s8889 + $0x24] sm:$0xf]
        %v9285 = vld [vmem:[%s8889 + $0x28] sm:$0xf]
        %v9286 = vld [vmem:[%s8889 + $0x2c] sm:$0x1]
        %v9287 = vld [vmem:[%s8889 + $0x30] sm:$0xf]
        %v9288 = vld [vmem:[%s8889 + $0x34] sm:$0xf]
        %v9289 = vld [vmem:[%s8889 + $0x38] sm:$0x1]
        %v9290 = vld [vmem:[%s8889 + $0x3c] sm:$0xf]
        %v9291 = vld [vmem:[%s8889 + $0x40] sm:$0xf]
        %v9292 = vld [vmem:[%s8889 + $0x44] sm:$0x1]
        %v9293 = vld [vmem:[%s8889 + $0x48] sm:$0xf]
        %v9294 = vld [vmem:[%s8889 + $0x4c] sm:$0xf]
        %v9295 = vld [vmem:[%s8889 + $0x50] sm:$0x1]
        %v9296 = vld [vmem:[%s8889 + $0x54] sm:$0xf]
        %v9297 = vld [vmem:[%s8889 + $0x58] sm:$0xf]
        %v9298 = vld [vmem:[%s8889 + $0x5c] sm:$0x1]
        %v9299 = vld [vmem:[%s8889 + $0x60] sm:$0xf]
        %v9300 = vld [vmem:[%s8889 + $0x64] sm:$0xf]
        %v9301 = vld [vmem:[%s8889 + $0x68] sm:$0x1]
        %v9302 = vld [vmem:[%s8889 + $0x6c] sm:$0xf]
        %v9303 = vld [vmem:[%s8889 + $0x70] sm:$0xf]
        %v9304 = vld [vmem:[%s8889 + $0x74] sm:$0x1]
        %v9305 = vld [vmem:[%s8889 + $0x78] sm:$0xf]
        %v9306 = vld [vmem:[%s8889 + $0x7c] sm:$0xf]
        %v9307 = vld [vmem:[%s8889 + $0x80] sm:$0x1]
        %v9308 = vld [vmem:[%s8889 + $0x84] sm:$0xf]
        %v9309 = vld [vmem:[%s8889 + $0x88] sm:$0xf]
        %v9310 = vld [vmem:[%s8889 + $0x8c] sm:$0x1]
        %v9311 = vld [vmem:[%s8889 + $0x90] sm:$0xf]
        %v9312 = vld [vmem:[%s8889 + $0x94] sm:$0xf]
        %v9313 = vld [vmem:[%s8889 + $0x98] sm:$0x1]
        %v9314 = vld [vmem:[%s8889 + $0x9c] sm:$0xf]
        %v9315 = vld [vmem:[%s8889 + $0xa0] sm:$0xf]
        %v9316 = vld [vmem:[%s8889 + $0xa4] sm:$0x1]
        %v9317 = vld [vmem:[%s8889 + $0xa8] sm:$0xf]
        %v9318 = vld [vmem:[%s8889 + $0xac] sm:$0xf]
        %v9319 = vld [vmem:[%s8889 + $0xb0] sm:$0x1]
        %v9320 = vld [vmem:[%s8889 + $0xb4] sm:$0xf]
        %v9321 = vld [vmem:[%s8889 + $0xb8] sm:$0xf]
        %v9322 = vld [vmem:[%s8889 + $0xbc] sm:$0x1]
        %v9324 = vshrl.u32 %v9275, 16
        %v9326 = vrot.slane %v9324, 4
        %v9327 = vshll.u32 %v9275, 16
        %v9329 = vrot.slane %v9327, 5
        %v9330 = vor.u32 %v9326, %v9329
        %v9331 = vrot.slane %v9330, 4
        %v9333 = vshll.u32 %v9276, 16
        %v9335 = vrot.slane %v9333, 5
        %v9336 = vsel %vm388, %v9331, %v9335
        %v9337 = vshrl.u32 %v9276, 16
        %v9339 = vrot.slane %v9337, 4
        %v9340 = vor.u32 %v9339, %v9335
        %v9341 = vrot.slane %v9340, 4
        %v9343 = vshll.u32 %v9277, 16
        %v9345 = vrot.slane %v9343, 5
        %v9346 = vsel %vm388, %v9341, %v9345
        %v9348 = vshrl.u32 %v9278, 16
        %v9350 = vrot.slane %v9348, 4
        %v9351 = vshll.u32 %v9278, 16
        %v9353 = vrot.slane %v9351, 5
        %v9354 = vor.u32 %v9350, %v9353
        %v9355 = vrot.slane %v9354, 4
        %v9357 = vshll.u32 %v9279, 16
        %v9359 = vrot.slane %v9357, 5
        %v9360 = vsel %vm388, %v9355, %v9359
        %v9361 = vshrl.u32 %v9279, 16
        %v9363 = vrot.slane %v9361, 4
        %v9364 = vor.u32 %v9363, %v9359
        %v9365 = vrot.slane %v9364, 4
        %v9367 = vshll.u32 %v9280, 16
        %v9369 = vrot.slane %v9367, 5
        %v9370 = vsel %vm388, %v9365, %v9369
        %v9372 = vshrl.u32 %v9281, 16
        %v9374 = vrot.slane %v9372, 4
        %v9375 = vshll.u32 %v9281, 16
        %v9377 = vrot.slane %v9375, 5
        %v9378 = vor.u32 %v9374, %v9377
        %v9379 = vrot.slane %v9378, 4
        %v9381 = vshll.u32 %v9282, 16
        %v9383 = vrot.slane %v9381, 5
        %v9384 = vsel %vm388, %v9379, %v9383
        %v9385 = vshrl.u32 %v9282, 16
        %v9387 = vrot.slane %v9385, 4
        %v9388 = vor.u32 %v9387, %v9383
        %v9389 = vrot.slane %v9388, 4
        %v9391 = vshll.u32 %v9283, 16
        %v9393 = vrot.slane %v9391, 5
        %v9394 = vsel %vm388, %v9389, %v9393
        %v9396 = vshrl.u32 %v9284, 16
        %v9398 = vrot.slane %v9396, 4
        %v9399 = vshll.u32 %v9284, 16
        %v9401 = vrot.slane %v9399, 5
        %v9402 = vor.u32 %v9398, %v9401
        %v9403 = vrot.slane %v9402, 4
        %v9405 = vshll.u32 %v9285, 16
        %v9407 = vrot.slane %v9405, 5
        %v9408 = vsel %vm388, %v9403, %v9407
        %v9409 = vshrl.u32 %v9285, 16
        %v9411 = vrot.slane %v9409, 4
        %v9412 = vor.u32 %v9411, %v9407
        %v9413 = vrot.slane %v9412, 4
        %v9415 = vshll.u32 %v9286, 16
        %v9417 = vrot.slane %v9415, 5
        %v9418 = vsel %vm388, %v9413, %v9417
        %v9420 = vshrl.u32 %v9287, 16
        %v9422 = vrot.slane %v9420, 4
        %v9423 = vshll.u32 %v9287, 16
        %v9425 = vrot.slane %v9423, 5
        %v9426 = vor.u32 %v9422, %v9425
        %v9427 = vrot.slane %v9426, 4
        %v9429 = vshll.u32 %v9288, 16
        %v9431 = vrot.slane %v9429, 5
        %v9432 = vsel %vm388, %v9427, %v9431
        %v9433 = vshrl.u32 %v9288, 16
        %v9435 = vrot.slane %v9433, 4
        %v9436 = vor.u32 %v9435, %v9431
        %v9437 = vrot.slane %v9436, 4
        %v9439 = vshll.u32 %v9289, 16
        %v9441 = vrot.slane %v9439, 5
        %v9442 = vsel %vm388, %v9437, %v9441
        %v9444 = vshrl.u32 %v9290, 16
        %v9446 = vrot.slane %v9444, 4
        %v9447 = vshll.u32 %v9290, 16
        %v9449 = vrot.slane %v9447, 5
        %v9450 = vor.u32 %v9446, %v9449
        %v9451 = vrot.slane %v9450, 4
        %v9453 = vshll.u32 %v9291, 16
        %v9455 = vrot.slane %v9453, 5
        %v9456 = vsel %vm388, %v9451, %v9455
        %v9457 = vshrl.u32 %v9291, 16
        %v9459 = vrot.slane %v9457, 4
        %v9460 = vor.u32 %v9459, %v9455
        %v9461 = vrot.slane %v9460, 4
        %v9463 = vshll.u32 %v9292, 16
        %v9465 = vrot.slane %v9463, 5
        %v9466 = vsel %vm388, %v9461, %v9465
        %v9468 = vshrl.u32 %v9293, 16
        %v9470 = vrot.slane %v9468, 4
        %v9471 = vshll.u32 %v9293, 16
        %v9473 = vrot.slane %v9471, 5
        %v9474 = vor.u32 %v9470, %v9473
        %v9475 = vrot.slane %v9474, 4
        %v9477 = vshll.u32 %v9294, 16
        %v9479 = vrot.slane %v9477, 5
        %v9480 = vsel %vm388, %v9475, %v9479
        %v9481 = vshrl.u32 %v9294, 16
        %v9483 = vrot.slane %v9481, 4
        %v9484 = vor.u32 %v9483, %v9479
        %v9485 = vrot.slane %v9484, 4
        %v9487 = vshll.u32 %v9295, 16
        %v9489 = vrot.slane %v9487, 5
        %v9490 = vsel %vm388, %v9485, %v9489
        %v9492 = vshrl.u32 %v9296, 16
        %v9494 = vrot.slane %v9492, 4
        %v9495 = vshll.u32 %v9296, 16
        %v9497 = vrot.slane %v9495, 5
        %v9498 = vor.u32 %v9494, %v9497
        %v9499 = vrot.slane %v9498, 4
        %v9501 = vshll.u32 %v9297, 16
        %v9503 = vrot.slane %v9501, 5
        %v9504 = vsel %vm388, %v9499, %v9503
        %v9505 = vshrl.u32 %v9297, 16
        %v9507 = vrot.slane %v9505, 4
        %v9508 = vor.u32 %v9507, %v9503
        %v9509 = vrot.slane %v9508, 4
        %v9511 = vshll.u32 %v9298, 16
        %v9513 = vrot.slane %v9511, 5
        %v9514 = vsel %vm388, %v9509, %v9513
        %v9516 = vshrl.u32 %v9299, 16
        %v9518 = vrot.slane %v9516, 4
        %v9519 = vshll.u32 %v9299, 16
        %v9521 = vrot.slane %v9519, 5
        %v9522 = vor.u32 %v9518, %v9521
        %v9523 = vrot.slane %v9522, 4
        %v9525 = vshll.u32 %v9300, 16
        %v9527 = vrot.slane %v9525, 5
        %v9528 = vsel %vm388, %v9523, %v9527
        %v9529 = vshrl.u32 %v9300, 16
        %v9531 = vrot.slane %v9529, 4
        %v9532 = vor.u32 %v9531, %v9527
        %v9533 = vrot.slane %v9532, 4
        %v9535 = vshll.u32 %v9301, 16
        %v9537 = vrot.slane %v9535, 5
        %v9538 = vsel %vm388, %v9533, %v9537
        %v9540 = vshrl.u32 %v9302, 16
        %v9542 = vrot.slane %v9540, 4
        %v9543 = vshll.u32 %v9302, 16
        %v9545 = vrot.slane %v9543, 5
        %v9546 = vor.u32 %v9542, %v9545
        %v9547 = vrot.slane %v9546, 4
        %v9549 = vshll.u32 %v9303, 16
        %v9551 = vrot.slane %v9549, 5
        %v9552 = vsel %vm388, %v9547, %v9551
        %v9553 = vshrl.u32 %v9303, 16
        %v9555 = vrot.slane %v9553, 4
        %v9556 = vor.u32 %v9555, %v9551
        %v9557 = vrot.slane %v9556, 4
        %v9559 = vshll.u32 %v9304, 16
        %v9561 = vrot.slane %v9559, 5
        %v9562 = vsel %vm388, %v9557, %v9561
        %v9564 = vshrl.u32 %v9305, 16
        %v9566 = vrot.slane %v9564, 4
        %v9567 = vshll.u32 %v9305, 16
        %v9569 = vrot.slane %v9567, 5
        %v9570 = vor.u32 %v9566, %v9569
        %v9571 = vrot.slane %v9570, 4
        %v9573 = vshll.u32 %v9306, 16
        %v9575 = vrot.slane %v9573, 5
        %v9576 = vsel %vm388, %v9571, %v9575
        %v9577 = vshrl.u32 %v9306, 16
        %v9579 = vrot.slane %v9577, 4
        %v9580 = vor.u32 %v9579, %v9575
        %v9581 = vrot.slane %v9580, 4
        %v9583 = vshll.u32 %v9307, 16
        %v9585 = vrot.slane %v9583, 5
        %v9586 = vsel %vm388, %v9581, %v9585
        %v9588 = vshrl.u32 %v9308, 16
        %v9590 = vrot.slane %v9588, 4
        %v9591 = vshll.u32 %v9308, 16
        %v9593 = vrot.slane %v9591, 5
        %v9594 = vor.u32 %v9590, %v9593
        %v9595 = vrot.slane %v9594, 4
        %v9597 = vshll.u32 %v9309, 16
        %v9599 = vrot.slane %v9597, 5
        %v9600 = vsel %vm388, %v9595, %v9599
        %v9601 = vshrl.u32 %v9309, 16
        %v9603 = vrot.slane %v9601, 4
        %v9604 = vor.u32 %v9603, %v9599
        %v9605 = vrot.slane %v9604, 4
        %v9607 = vshll.u32 %v9310, 16
        %v9609 = vrot.slane %v9607, 5
        %v9610 = vsel %vm388, %v9605, %v9609
        %v9612 = vshrl.u32 %v9311, 16
        %v9614 = vrot.slane %v9612, 4
        %v9615 = vshll.u32 %v9311, 16
        %v9617 = vrot.slane %v9615, 5
        %v9618 = vor.u32 %v9614, %v9617
        %v9619 = vrot.slane %v9618, 4
        %v9621 = vshll.u32 %v9312, 16
        %v9623 = vrot.slane %v9621, 5
        %v9624 = vsel %vm388, %v9619, %v9623
        %v9625 = vshrl.u32 %v9312, 16
        %v9627 = vrot.slane %v9625, 4
        %v9628 = vor.u32 %v9627, %v9623
        %v9629 = vrot.slane %v9628, 4
        %v9631 = vshll.u32 %v9313, 16
        %v9633 = vrot.slane %v9631, 5
        %v9634 = vsel %vm388, %v9629, %v9633
        %v9636 = vshrl.u32 %v9314, 16
        %v9638 = vrot.slane %v9636, 4
        %v9639 = vshll.u32 %v9314, 16
        %v9641 = vrot.slane %v9639, 5
        %v9642 = vor.u32 %v9638, %v9641
        %v9643 = vrot.slane %v9642, 4
        %v9645 = vshll.u32 %v9315, 16
        %v9647 = vrot.slane %v9645, 5
        %v9648 = vsel %vm388, %v9643, %v9647
        %v9649 = vshrl.u32 %v9315, 16
        %v9651 = vrot.slane %v9649, 4
        %v9652 = vor.u32 %v9651, %v9647
        %v9653 = vrot.slane %v9652, 4
        %v9655 = vshll.u32 %v9316, 16
        %v9657 = vrot.slane %v9655, 5
        %v9658 = vsel %vm388, %v9653, %v9657
        %v9660 = vshrl.u32 %v9317, 16
        %v9662 = vrot.slane %v9660, 4
        %v9663 = vshll.u32 %v9317, 16
        %v9665 = vrot.slane %v9663, 5
        %v9666 = vor.u32 %v9662, %v9665
        %v9667 = vrot.slane %v9666, 4
        %v9669 = vshll.u32 %v9318, 16
        %v9671 = vrot.slane %v9669, 5
        %v9672 = vsel %vm388, %v9667, %v9671
        %v9673 = vshrl.u32 %v9318, 16
        %v9675 = vrot.slane %v9673, 4
        %v9676 = vor.u32 %v9675, %v9671
        %v9677 = vrot.slane %v9676, 4
        %v9679 = vshll.u32 %v9319, 16
        %v9681 = vrot.slane %v9679, 5
        %v9682 = vsel %vm388, %v9677, %v9681
        %v9684 = vshrl.u32 %v9320, 16
        %v9686 = vrot.slane %v9684, 4
        %v9687 = vshll.u32 %v9320, 16
        %v9689 = vrot.slane %v9687, 5
        %v9690 = vor.u32 %v9686, %v9689
        %v9691 = vrot.slane %v9690, 4
        %v9693 = vshll.u32 %v9321, 16
        %v9695 = vrot.slane %v9693, 5
        %v9696 = vsel %vm388, %v9691, %v9695
        %v9697 = vshrl.u32 %v9321, 16
        %v9699 = vrot.slane %v9697, 4
        %v9700 = vor.u32 %v9699, %v9695
        %v9701 = vrot.slane %v9700, 4
        %v9703 = vshll.u32 %v9322, 16
        %v9705 = vrot.slane %v9703, 5
        %v9706 = vsel %vm388, %v9701, %v9705
        %v9707 = vld [vmem:[%s3 + $0x1c0] sm:$0xf]
        %v9708 = vld [vmem:[%s3 + $0x1c4] sm:$0xf]
        %v9709 = vld [vmem:[%s3 + $0x1c8] sm:$0xf]
        %v9710 = vld [vmem:[%s3 + $0x1cc] sm:$0xf]
        %v9711 = vld [vmem:[%s3 + $0x1d0] sm:$0xf]
        %v9712 = vld [vmem:[%s3 + $0x1d4] sm:$0xf]
        %v9713 = vld [vmem:[%s3 + $0x1d8] sm:$0xf]
        %v9714 = vld [vmem:[%s3 + $0x1dc] sm:$0xf]
        %v9715 = vld [vmem:[%s3 + $0x1e0] sm:$0xf]
        %v9716 = vld [vmem:[%s3 + $0x1e4] sm:$0xf]
        %v9717 = vld [vmem:[%s3 + $0x1e8] sm:$0xf]
        %v9718 = vld [vmem:[%s3 + $0x1ec] sm:$0xf]
        %v9719 = vld [vmem:[%s3 + $0x1f0] sm:$0xf]
        %v9720 = vld [vmem:[%s3 + $0x1f4] sm:$0xf]
        %v9721 = vld [vmem:[%s3 + $0x1f8] sm:$0xf]
        %v9722 = vld [vmem:[%s3 + $0x1fc] sm:$0xf]
        %v9723 = vunpack.c.l.b16 %v9336
        %v9724 = vunpack.c.l.b16 %v9346
        %v9725 = vunpack.c.l.b16 %v9360
        %v9726 = vunpack.c.l.b16 %v9370
        %v9727 = vunpack.c.l.b16 %v9384
        %v9728 = vunpack.c.l.b16 %v9394
        %v9729 = vunpack.c.l.b16 %v9408
        %v9730 = vunpack.c.l.b16 %v9418
        %v9731 = vunpack.c.l.b16 %v9432
        %v9732 = vunpack.c.l.b16 %v9442
        %v9733 = vunpack.c.l.b16 %v9456
        %v9734 = vunpack.c.l.b16 %v9466
        %v9735 = vunpack.c.l.b16 %v9480
        %v9736 = vunpack.c.l.b16 %v9490
        %v9737 = vunpack.c.l.b16 %v9504
        %v9738 = vunpack.c.l.b16 %v9514
        %v9739 = vunpack.c.l.b16 %v9528
        %v9740 = vunpack.c.l.b16 %v9538
        %v9741 = vunpack.c.l.b16 %v9552
        %v9742 = vunpack.c.l.b16 %v9562
        %v9743 = vunpack.c.l.b16 %v9576
        %v9744 = vunpack.c.l.b16 %v9586
        %v9745 = vunpack.c.l.b16 %v9600
        %v9746 = vunpack.c.l.b16 %v9610
        %v9747 = vunpack.c.l.b16 %v9624
        %v9748 = vunpack.c.l.b16 %v9634
        %v9749 = vunpack.c.l.b16 %v9648
        %v9750 = vunpack.c.l.b16 %v9658
        %v9751 = vunpack.c.l.b16 %v9672
        %v9752 = vunpack.c.l.b16 %v9682
        %v9753 = vunpack.c.l.b16 %v9696
        %v9754 = vunpack.c.l.b16 %v9706
        %v9755 = vpack.c.b16 %v9724, %v9723
        %v9756 = vpack.c.b16 %v9726, %v9725
        %v9757 = vpack.c.b16 %v9728, %v9727
        %v9758 = vpack.c.b16 %v9730, %v9729
        %v9759 = vpack.c.b16 %v9732, %v9731
        %v9760 = vpack.c.b16 %v9734, %v9733
        %v9761 = vpack.c.b16 %v9736, %v9735
        %v9762 = vpack.c.b16 %v9738, %v9737
        %v9763 = vpack.c.b16 %v9740, %v9739
        %v9764 = vpack.c.b16 %v9742, %v9741
        %v9765 = vpack.c.b16 %v9744, %v9743
        %v9766 = vpack.c.b16 %v9746, %v9745
        %v9767 = vpack.c.b16 %v9748, %v9747
        %v9768 = vpack.c.b16 %v9750, %v9749
        %v9769 = vpack.c.b16 %v9752, %v9751
        %v9770 = vpack.c.b16 %v9754, %v9753
        %v9803 = vunpack.c.l.b16 %v9707
        %v9804 = vunpack.c.l.b16 %v9708
        %v9805 = vunpack.c.l.b16 %v9709
        %v9806 = vunpack.c.l.b16 %v9710
        %v9807 = vunpack.c.l.b16 %v9711
        %v9808 = vunpack.c.l.b16 %v9712
        %v9809 = vunpack.c.l.b16 %v9713
        %v9810 = vunpack.c.l.b16 %v9714
        %v9811 = vunpack.c.l.b16 %v9715
        %v9812 = vunpack.c.l.b16 %v9716
        %v9813 = vunpack.c.l.b16 %v9717
        %v9814 = vunpack.c.l.b16 %v9718
        %v9815 = vunpack.c.l.b16 %v9719
        %v9816 = vunpack.c.l.b16 %v9720
        %v9817 = vunpack.c.l.b16 %v9721
        %v9818 = vunpack.c.l.b16 %v9722
        %v9819 = vpack.c.b16 %v9804, %v9803
        %v9820 = vpack.c.b16 %v9806, %v9805
        %v9821 = vpack.c.b16 %v9808, %v9807
        %v9822 = vpack.c.b16 %v9810, %v9809
        %v9823 = vpack.c.b16 %v9812, %v9811
        %v9824 = vpack.c.b16 %v9814, %v9813
        %v9825 = vpack.c.b16 %v9816, %v9815
        %v9826 = vpack.c.b16 %v9818, %v9817
        %9835 = vmatprep.subr.bf16.mxu0 0
        %9836 = vmatpush1.bf16.msra.mxu0 %v9826
        %9837 = vmatprep.subr.bf16.mxu0 0
        %9838 = vmatpush1.bf16.msra.mxu0 %v9825
        %9839 = vmatprep.subr.bf16.mxu0 0
        %9840 = vmatpush1.bf16.msra.mxu0 %v9824
        %9841 = vmatprep.subr.bf16.mxu0 0
        %9842 = vmatpush1.bf16.msra.mxu0 %v9823
        %9843 = vmatprep.subr.bf16.mxu0 0
        %9844 = vmatpush1.bf16.msra.mxu0 %v9822
        %9845 = vmatprep.subr.bf16.mxu0 0
        %9846 = vmatpush1.bf16.msra.mxu0 %v9821
        %9847 = vmatprep.subr.bf16.mxu0 0
        %9848 = vmatpush1.bf16.msra.mxu0 %v9820
        %9849 = vmatprep.subr.bf16.mxu0 0
        %9850 = vmatpush1.bf16.msra.mxu0 %v9819
        %9851 = vmatprep.subr.bf16.mxu0 0
        %9852 = vmatpush2.bf16.msra.mxu0 0
        %9853 = vmatprep.subr.bf16.mxu0 0
        %9854 = vmatpush2.bf16.msra.mxu0 0
        %9855 = vmatprep.subr.bf16.mxu0 0
        %9856 = vmatpush2.bf16.msra.mxu0 0
        %9857 = vmatprep.subr.bf16.mxu0 0
        %9858 = vmatpush2.bf16.msra.mxu0 0
        %9859 = vmatprep.subr.bf16.mxu0 0
        %9860 = vmatpush2.bf16.msra.mxu0 0
        %9861 = vmatprep.subr.bf16.mxu0 0
        %9862 = vmatpush2.bf16.msra.mxu0 0
        %9863 = vmatprep.subr.bf16.mxu0 0
        %9864 = vmatpush2.bf16.msra.mxu0 0
        %9865 = vmatprep.subr.bf16.mxu0 0
        %9866 = vmatpush2.bf16.msra.mxu0 0
        %9867 = vmatprep.mubr.bf16.mxu0 0
        %9868 = vmatmul.mubr.bf16.gmra.mxu0 %v9755
        %v9869 = vpop.f32.mrf.mxu0
        %v9870 = vadd.f32 0.0, %v9869
        %v9871 = vpop.f32.mrf.mxu0
        %v9872 = vpop.f32.mrf.mxu0
        %v9873 = vadd.f32 0.0, %v9872
        %v9874 = vpop.f32.mrf.mxu0
        %9875 = vmatprep.mubr.bf16.mxu0 0
        %9876 = vmatmul.mubr.bf16.gmra.mxu0 %v9756
        %v9877 = vpop.f32.mrf.mxu0
        %v9878 = vadd.f32 0.0, %v9877
        %v9879 = vpop.f32.mrf.mxu0
        %v9880 = vpop.f32.mrf.mxu0
        %v9881 = vadd.f32 0.0, %v9880
        %v9882 = vpop.f32.mrf.mxu0
        %9883 = vmatprep.mubr.bf16.mxu0 0
        %9884 = vmatmul.mubr.bf16.gmra.mxu0 %v9757
        %v9885 = vpop.f32.mrf.mxu0
        %v9886 = vadd.f32 0.0, %v9885
        %v9887 = vpop.f32.mrf.mxu0
        %v9888 = vpop.f32.mrf.mxu0
        %v9889 = vadd.f32 0.0, %v9888
        %v9890 = vpop.f32.mrf.mxu0
        %9891 = vmatprep.mubr.bf16.mxu0 0
        %9892 = vmatmul.mubr.bf16.gmra.mxu0 %v9758
        %v9893 = vpop.f32.mrf.mxu0
        %v9894 = vadd.f32 0.0, %v9893
        %v9895 = vpop.f32.mrf.mxu0
        %v9896 = vpop.f32.mrf.mxu0
        %v9897 = vadd.f32 0.0, %v9896
        %v9898 = vpop.f32.mrf.mxu0
        %9899 = vmatprep.mubr.bf16.mxu0 0
        %9900 = vmatmul.mubr.bf16.gmra.mxu0 %v9759
        %v9901 = vpop.f32.mrf.mxu0
        %v9902 = vadd.f32 0.0, %v9901
        %v9903 = vpop.f32.mrf.mxu0
        %v9904 = vpop.f32.mrf.mxu0
        %v9905 = vadd.f32 0.0, %v9904
        %v9906 = vpop.f32.mrf.mxu0
        %9907 = vmatprep.mubr.bf16.mxu0 0
        %9908 = vmatmul.mubr.bf16.gmra.mxu0 %v9760
        %v9909 = vpop.f32.mrf.mxu0
        %v9910 = vadd.f32 0.0, %v9909
        %v9911 = vpop.f32.mrf.mxu0
        %v9912 = vpop.f32.mrf.mxu0
        %v9913 = vadd.f32 0.0, %v9912
        %v9914 = vpop.f32.mrf.mxu0
        %9915 = vmatprep.mubr.bf16.mxu0 0
        %9916 = vmatmul.mubr.bf16.gmra.mxu0 %v9761
        %v9917 = vpop.f32.mrf.mxu0
        %v9918 = vadd.f32 0.0, %v9917
        %v9919 = vpop.f32.mrf.mxu0
        %v9920 = vpop.f32.mrf.mxu0
        %v9921 = vadd.f32 0.0, %v9920
        %v9922 = vpop.f32.mrf.mxu0
        %9923 = vmatprep.mubr.bf16.mxu0 0
        %9924 = vmatmul.mubr.bf16.gmra.mxu0 %v9762
        %v9925 = vpop.f32.mrf.mxu0
        %v9926 = vadd.f32 0.0, %v9925
        %v9927 = vpop.f32.mrf.mxu0
        %v9928 = vpop.f32.mrf.mxu0
        %v9929 = vadd.f32 0.0, %v9928
        %v9930 = vpop.f32.mrf.mxu0
        %9931 = vmatprep.mubr.bf16.mxu0 0
        %9932 = vmatmul.mubr.bf16.gmra.mxu0 %v9763
        %v9933 = vpop.f32.mrf.mxu0
        %v9934 = vadd.f32 0.0, %v9933
        %v9935 = vpop.f32.mrf.mxu0
        %v9936 = vpop.f32.mrf.mxu0
        %v9937 = vadd.f32 0.0, %v9936
        %v9938 = vpop.f32.mrf.mxu0
        %9939 = vmatprep.mubr.bf16.mxu0 0
        %9940 = vmatmul.mubr.bf16.gmra.mxu0 %v9764
        %v9941 = vpop.f32.mrf.mxu0
        %v9942 = vadd.f32 0.0, %v9941
        %v9943 = vpop.f32.mrf.mxu0
        %v9944 = vpop.f32.mrf.mxu0
        %v9945 = vadd.f32 0.0, %v9944
        %v9946 = vpop.f32.mrf.mxu0
        %9947 = vmatprep.mubr.bf16.mxu0 0
        %9948 = vmatmul.mubr.bf16.gmra.mxu0 %v9765
        %v9949 = vpop.f32.mrf.mxu0
        %v9950 = vadd.f32 0.0, %v9949
        %v9951 = vpop.f32.mrf.mxu0
        %v9952 = vpop.f32.mrf.mxu0
        %v9953 = vadd.f32 0.0, %v9952
        %v9954 = vpop.f32.mrf.mxu0
        %9955 = vmatprep.mubr.bf16.mxu0 0
        %9956 = vmatmul.mubr.bf16.gmra.mxu0 %v9766
        %v9957 = vpop.f32.mrf.mxu0
        %v9958 = vadd.f32 0.0, %v9957
        %v9959 = vpop.f32.mrf.mxu0
        %v9960 = vpop.f32.mrf.mxu0
        %v9961 = vadd.f32 0.0, %v9960
        %v9962 = vpop.f32.mrf.mxu0
        %9963 = vmatprep.mubr.bf16.mxu0 0
        %9964 = vmatmul.mubr.bf16.gmra.mxu0 %v9767
        %v9965 = vpop.f32.mrf.mxu0
        %v9966 = vadd.f32 0.0, %v9965
        %v9967 = vpop.f32.mrf.mxu0
        %v9968 = vpop.f32.mrf.mxu0
        %v9969 = vadd.f32 0.0, %v9968
        %v9970 = vpop.f32.mrf.mxu0
        %9971 = vmatprep.mubr.bf16.mxu0 0
        %9972 = vmatmul.mubr.bf16.gmra.mxu0 %v9768
        %v9973 = vpop.f32.mrf.mxu0
        %v9974 = vadd.f32 0.0, %v9973
        %v9975 = vpop.f32.mrf.mxu0
        %v9976 = vpop.f32.mrf.mxu0
        %v9977 = vadd.f32 0.0, %v9976
        %v9978 = vpop.f32.mrf.mxu0
        %9979 = vmatprep.mubr.bf16.mxu0 0
        %9980 = vmatmul.mubr.bf16.gmra.mxu0 %v9769
        %v9981 = vpop.f32.mrf.mxu0
        %v9982 = vadd.f32 0.0, %v9981
        %v9983 = vpop.f32.mrf.mxu0
        %v9984 = vpop.f32.mrf.mxu0
        %v9985 = vadd.f32 0.0, %v9984
        %v9986 = vpop.f32.mrf.mxu0
        %9987 = vmatprep.mubr.bf16.mxu0 0
        %9988 = vmatmul.mubr.bf16.gmra.mxu0 %v9770
        %v9989 = vpop.f32.mrf.mxu0
        %v9990 = vadd.f32 0.0, %v9989
        %v9991 = vpop.f32.mrf.mxu0
        %v9992 = vpop.f32.mrf.mxu0
        %v9993 = vadd.f32 0.0, %v9992
        %v9994 = vpop.f32.mrf.mxu0
        %9995 = vdwg.mxu0
        %v9996 = vadd.f32 %v9243, %v9870
        %v9997 = vadd.f32 %v9244, %v9873
        %v9998 = vadd.f32 %v9245, %v9878
        %v9999 = vadd.f32 %v9246, %v9881
        %v10000 = vadd.f32 %v9247, %v9886
        %v10001 = vadd.f32 %v9248, %v9889
        %v10002 = vadd.f32 %v9249, %v9894
        %v10003 = vadd.f32 %v9250, %v9897
        %v10004 = vadd.f32 %v9251, %v9902
        %v10005 = vadd.f32 %v9252, %v9905
        %v10006 = vadd.f32 %v9253, %v9910
        %v10007 = vadd.f32 %v9254, %v9913
        %v10008 = vadd.f32 %v9255, %v9918
        %v10009 = vadd.f32 %v9256, %v9921
        %v10010 = vadd.f32 %v9257, %v9926
        %v10011 = vadd.f32 %v9258, %v9929
        %v10012 = vadd.f32 %v9259, %v9934
        %v10013 = vadd.f32 %v9260, %v9937
        %v10014 = vadd.f32 %v9261, %v9942
        %v10015 = vadd.f32 %v9262, %v9945
        %v10016 = vadd.f32 %v9263, %v9950
        %v10017 = vadd.f32 %v9264, %v9953
        %v10018 = vadd.f32 %v9265, %v9958
        %v10019 = vadd.f32 %v9266, %v9961
        %v10020 = vadd.f32 %v9267, %v9966
        %v10021 = vadd.f32 %v9268, %v9969
        %v10022 = vadd.f32 %v9269, %v9974
        %v10023 = vadd.f32 %v9270, %v9977
        %v10024 = vadd.f32 %v9271, %v9982
        %v10025 = vadd.f32 %v9272, %v9985
        %v10026 = vadd.f32 %v9273, %v9990
        %v10027 = vadd.f32 %v9274, %v9993
        %v10028 = vld [vmem:[%s8889] sm:$0xe]
        %v10029 = vld [vmem:[%s8889 + $0xc] sm:$0xe]
        %v10030 = vld [vmem:[%s8889 + $0x18] sm:$0xe]
        %v10031 = vld [vmem:[%s8889 + $0x24] sm:$0xe]
        %v10032 = vld [vmem:[%s8889 + $0x30] sm:$0xe]
        %v10033 = vld [vmem:[%s8889 + $0x3c] sm:$0xe]
        %v10034 = vld [vmem:[%s8889 + $0x48] sm:$0xe]
        %v10035 = vld [vmem:[%s8889 + $0x54] sm:$0xe]
        %v10036 = vld [vmem:[%s8889 + $0x60] sm:$0xe]
        %v10037 = vld [vmem:[%s8889 + $0x6c] sm:$0xe]
        %v10038 = vld [vmem:[%s8889 + $0x78] sm:$0xe]
        %v10039 = vld [vmem:[%s8889 + $0x84] sm:$0xe]
        %v10040 = vld [vmem:[%s8889 + $0x90] sm:$0xe]
        %v10041 = vld [vmem:[%s8889 + $0x9c] sm:$0xe]
        %v10042 = vld [vmem:[%s8889 + $0xa8] sm:$0xe]
        %v10043 = vld [vmem:[%s8889 + $0xb4] sm:$0xe]
        %v10092 = vrot.slane %v10028, 5
        %v10093 = vrot.slane %v10092, 4
        %v10094 = vrot.slane %v9276, 5
        %v10095 = vsel %vm1417, %v10093, %v10094
        %v10096 = vrot.slane %v10094, 4
        %v10097 = vrot.slane %v9277, 5
        %v10098 = vsel %vm1417, %v10096, %v10097
        %v10099 = vrot.slane %v10029, 5
        %v10100 = vrot.slane %v10099, 4
        %v10101 = vrot.slane %v9279, 5
        %v10102 = vsel %vm1417, %v10100, %v10101
        %v10103 = vrot.slane %v10101, 4
        %v10104 = vrot.slane %v9280, 5
        %v10105 = vsel %vm1417, %v10103, %v10104
        %v10106 = vrot.slane %v10030, 5
        %v10107 = vrot.slane %v10106, 4
        %v10108 = vrot.slane %v9282, 5
        %v10109 = vsel %vm1417, %v10107, %v10108
        %v10110 = vrot.slane %v10108, 4
        %v10111 = vrot.slane %v9283, 5
        %v10112 = vsel %vm1417, %v10110, %v10111
        %v10113 = vrot.slane %v10031, 5
        %v10114 = vrot.slane %v10113, 4
        %v10115 = vrot.slane %v9285, 5
        %v10116 = vsel %vm1417, %v10114, %v10115
        %v10117 = vrot.slane %v10115, 4
        %v10118 = vrot.slane %v9286, 5
        %v10119 = vsel %vm1417, %v10117, %v10118
        %v10120 = vrot.slane %v10032, 5
        %v10121 = vrot.slane %v10120, 4
        %v10122 = vrot.slane %v9288, 5
        %v10123 = vsel %vm1417, %v10121, %v10122
        %v10124 = vrot.slane %v10122, 4
        %v10125 = vrot.slane %v9289, 5
        %v10126 = vsel %vm1417, %v10124, %v10125
        %v10127 = vrot.slane %v10033, 5
        %v10128 = vrot.slane %v10127, 4
        %v10129 = vrot.slane %v9291, 5
        %v10130 = vsel %vm1417, %v10128, %v10129
        %v10131 = vrot.slane %v10129, 4
        %v10132 = vrot.slane %v9292, 5
        %v10133 = vsel %vm1417, %v10131, %v10132
        %v10134 = vrot.slane %v10034, 5
        %v10135 = vrot.slane %v10134, 4
        %v10136 = vrot.slane %v9294, 5
        %v10137 = vsel %vm1417, %v10135, %v10136
        %v10138 = vrot.slane %v10136, 4
        %v10139 = vrot.slane %v9295, 5
        %v10140 = vsel %vm1417, %v10138, %v10139
        %v10141 = vrot.slane %v10035, 5
        %v10142 = vrot.slane %v10141, 4
        %v10143 = vrot.slane %v9297, 5
        %v10144 = vsel %vm1417, %v10142, %v10143
        %v10145 = vrot.slane %v10143, 4
        %v10146 = vrot.slane %v9298, 5
        %v10147 = vsel %vm1417, %v10145, %v10146
        %v10148 = vrot.slane %v10036, 5
        %v10149 = vrot.slane %v10148, 4
        %v10150 = vrot.slane %v9300, 5
        %v10151 = vsel %vm1417, %v10149, %v10150
        %v10152 = vrot.slane %v10150, 4
        %v10153 = vrot.slane %v9301, 5
        %v10154 = vsel %vm1417, %v10152, %v10153
        %v10155 = vrot.slane %v10037, 5
        %v10156 = vrot.slane %v10155, 4
        %v10157 = vrot.slane %v9303, 5
        %v10158 = vsel %vm1417, %v10156, %v10157
        %v10159 = vrot.slane %v10157, 4
        %v10160 = vrot.slane %v9304, 5
        %v10161 = vsel %vm1417, %v10159, %v10160
        %v10162 = vrot.slane %v10038, 5
        %v10163 = vrot.slane %v10162, 4
        %v10164 = vrot.slane %v9306, 5
        %v10165 = vsel %vm1417, %v10163, %v10164
        %v10166 = vrot.slane %v10164, 4
        %v10167 = vrot.slane %v9307, 5
        %v10168 = vsel %vm1417, %v10166, %v10167
        %v10169 = vrot.slane %v10039, 5
        %v10170 = vrot.slane %v10169, 4
        %v10171 = vrot.slane %v9309, 5
        %v10172 = vsel %vm1417, %v10170, %v10171
        %v10173 = vrot.slane %v10171, 4
        %v10174 = vrot.slane %v9310, 5
        %v10175 = vsel %vm1417, %v10173, %v10174
        %v10176 = vrot.slane %v10040, 5
        %v10177 = vrot.slane %v10176, 4
        %v10178 = vrot.slane %v9312, 5
        %v10179 = vsel %vm1417, %v10177, %v10178
        %v10180 = vrot.slane %v10178, 4
        %v10181 = vrot.slane %v9313, 5
        %v10182 = vsel %vm1417, %v10180, %v10181
        %v10183 = vrot.slane %v10041, 5
        %v10184 = vrot.slane %v10183, 4
        %v10185 = vrot.slane %v9315, 5
        %v10186 = vsel %vm1417, %v10184, %v10185
        %v10187 = vrot.slane %v10185, 4
        %v10188 = vrot.slane %v9316, 5
        %v10189 = vsel %vm1417, %v10187, %v10188
        %v10190 = vrot.slane %v10042, 5
        %v10191 = vrot.slane %v10190, 4
        %v10192 = vrot.slane %v9318, 5
        %v10193 = vsel %vm1417, %v10191, %v10192
        %v10194 = vrot.slane %v10192, 4
        %v10195 = vrot.slane %v9319, 5
        %v10196 = vsel %vm1417, %v10194, %v10195
        %v10197 = vrot.slane %v10043, 5
        %v10198 = vrot.slane %v10197, 4
        %v10199 = vrot.slane %v9321, 5
        %v10200 = vsel %vm1417, %v10198, %v10199
        %v10201 = vrot.slane %v10199, 4
        %v10202 = vrot.slane %v9322, 5
        %v10203 = vsel %vm1417, %v10201, %v10202
        %v10204 = vld [vmem:[%s3 + $0x200] sm:$0xf]
        %v10205 = vld [vmem:[%s3 + $0x204] sm:$0xf]
        %v10206 = vld [vmem:[%s3 + $0x208] sm:$0xf]
        %v10207 = vld [vmem:[%s3 + $0x20c] sm:$0xf]
        %v10208 = vld [vmem:[%s3 + $0x210] sm:$0xf]
        %v10209 = vld [vmem:[%s3 + $0x214] sm:$0xf]
        %v10210 = vld [vmem:[%s3 + $0x218] sm:$0xf]
        %v10211 = vld [vmem:[%s3 + $0x21c] sm:$0xf]
        %v10212 = vld [vmem:[%s3 + $0x220] sm:$0xf]
        %v10213 = vld [vmem:[%s3 + $0x224] sm:$0xf]
        %v10214 = vld [vmem:[%s3 + $0x228] sm:$0xf]
        %v10215 = vld [vmem:[%s3 + $0x22c] sm:$0xf]
        %v10216 = vld [vmem:[%s3 + $0x230] sm:$0xf]
        %v10217 = vld [vmem:[%s3 + $0x234] sm:$0xf]
        %v10218 = vld [vmem:[%s3 + $0x238] sm:$0xf]
        %v10219 = vld [vmem:[%s3 + $0x23c] sm:$0xf]
        %v10220 = vunpack.c.l.b16 %v10095
        %v10221 = vunpack.c.l.b16 %v10098
        %v10222 = vunpack.c.l.b16 %v10102
        %v10223 = vunpack.c.l.b16 %v10105
        %v10224 = vunpack.c.l.b16 %v10109
        %v10225 = vunpack.c.l.b16 %v10112
        %v10226 = vunpack.c.l.b16 %v10116
        %v10227 = vunpack.c.l.b16 %v10119
        %v10228 = vunpack.c.l.b16 %v10123
        %v10229 = vunpack.c.l.b16 %v10126
        %v10230 = vunpack.c.l.b16 %v10130
        %v10231 = vunpack.c.l.b16 %v10133
        %v10232 = vunpack.c.l.b16 %v10137
        %v10233 = vunpack.c.l.b16 %v10140
        %v10234 = vunpack.c.l.b16 %v10144
        %v10235 = vunpack.c.l.b16 %v10147
        %v10236 = vunpack.c.l.b16 %v10151
        %v10237 = vunpack.c.l.b16 %v10154
        %v10238 = vunpack.c.l.b16 %v10158
        %v10239 = vunpack.c.l.b16 %v10161
        %v10240 = vunpack.c.l.b16 %v10165
        %v10241 = vunpack.c.l.b16 %v10168
        %v10242 = vunpack.c.l.b16 %v10172
        %v10243 = vunpack.c.l.b16 %v10175
        %v10244 = vunpack.c.l.b16 %v10179
        %v10245 = vunpack.c.l.b16 %v10182
        %v10246 = vunpack.c.l.b16 %v10186
        %v10247 = vunpack.c.l.b16 %v10189
        %v10248 = vunpack.c.l.b16 %v10193
        %v10249 = vunpack.c.l.b16 %v10196
        %v10250 = vunpack.c.l.b16 %v10200
        %v10251 = vunpack.c.l.b16 %v10203
        %v10252 = vpack.c.b16 %v10221, %v10220
        %v10253 = vpack.c.b16 %v10223, %v10222
        %v10254 = vpack.c.b16 %v10225, %v10224
        %v10255 = vpack.c.b16 %v10227, %v10226
        %v10256 = vpack.c.b16 %v10229, %v10228
        %v10257 = vpack.c.b16 %v10231, %v10230
        %v10258 = vpack.c.b16 %v10233, %v10232
        %v10259 = vpack.c.b16 %v10235, %v10234
        %v10260 = vpack.c.b16 %v10237, %v10236
        %v10261 = vpack.c.b16 %v10239, %v10238
        %v10262 = vpack.c.b16 %v10241, %v10240
        %v10263 = vpack.c.b16 %v10243, %v10242
        %v10264 = vpack.c.b16 %v10245, %v10244
        %v10265 = vpack.c.b16 %v10247, %v10246
        %v10266 = vpack.c.b16 %v10249, %v10248
        %v10267 = vpack.c.b16 %v10251, %v10250
        %v10300 = vunpack.c.l.b16 %v10204
        %v10301 = vunpack.c.l.b16 %v10205
        %v10302 = vunpack.c.l.b16 %v10206
        %v10303 = vunpack.c.l.b16 %v10207
        %v10304 = vunpack.c.l.b16 %v10208
        %v10305 = vunpack.c.l.b16 %v10209
        %v10306 = vunpack.c.l.b16 %v10210
        %v10307 = vunpack.c.l.b16 %v10211
        %v10308 = vunpack.c.l.b16 %v10212
        %v10309 = vunpack.c.l.b16 %v10213
        %v10310 = vunpack.c.l.b16 %v10214
        %v10311 = vunpack.c.l.b16 %v10215
        %v10312 = vunpack.c.l.b16 %v10216
        %v10313 = vunpack.c.l.b16 %v10217
        %v10314 = vunpack.c.l.b16 %v10218
        %v10315 = vunpack.c.l.b16 %v10219
        %v10316 = vpack.c.b16 %v10301, %v10300
        %v10317 = vpack.c.b16 %v10303, %v10302
        %v10318 = vpack.c.b16 %v10305, %v10304
        %v10319 = vpack.c.b16 %v10307, %v10306
        %v10320 = vpack.c.b16 %v10309, %v10308
        %v10321 = vpack.c.b16 %v10311, %v10310
        %v10322 = vpack.c.b16 %v10313, %v10312
        %v10323 = vpack.c.b16 %v10315, %v10314
        %10332 = vmatprep.subr.bf16.mxu0 0
        %10333 = vmatpush1.bf16.msra.mxu0 %v10323
        %10334 = vmatprep.subr.bf16.mxu0 0
        %10335 = vmatpush1.bf16.msra.mxu0 %v10322
        %10336 = vmatprep.subr.bf16.mxu0 0
        %10337 = vmatpush1.bf16.msra.mxu0 %v10321
        %10338 = vmatprep.subr.bf16.mxu0 0
        %10339 = vmatpush1.bf16.msra.mxu0 %v10320
        %10340 = vmatprep.subr.bf16.mxu0 0
        %10341 = vmatpush1.bf16.msra.mxu0 %v10319
        %10342 = vmatprep.subr.bf16.mxu0 0
        %10343 = vmatpush1.bf16.msra.mxu0 %v10318
        %10344 = vmatprep.subr.bf16.mxu0 0
        %10345 = vmatpush1.bf16.msra.mxu0 %v10317
        %10346 = vmatprep.subr.bf16.mxu0 0
        %10347 = vmatpush1.bf16.msra.mxu0 %v10316
        %10348 = vmatprep.subr.bf16.mxu0 0
        %10349 = vmatpush2.bf16.msra.mxu0 0
        %10350 = vmatprep.subr.bf16.mxu0 0
        %10351 = vmatpush2.bf16.msra.mxu0 0
        %10352 = vmatprep.subr.bf16.mxu0 0
        %10353 = vmatpush2.bf16.msra.mxu0 0
        %10354 = vmatprep.subr.bf16.mxu0 0
        %10355 = vmatpush2.bf16.msra.mxu0 0
        %10356 = vmatprep.subr.bf16.mxu0 0
        %10357 = vmatpush2.bf16.msra.mxu0 0
        %10358 = vmatprep.subr.bf16.mxu0 0
        %10359 = vmatpush2.bf16.msra.mxu0 0
        %10360 = vmatprep.subr.bf16.mxu0 0
        %10361 = vmatpush2.bf16.msra.mxu0 0
        %10362 = vmatprep.subr.bf16.mxu0 0
        %10363 = vmatpush2.bf16.msra.mxu0 0
        %10364 = vmatprep.mubr.bf16.mxu0 0
        %10365 = vmatmul.mubr.bf16.gmra.mxu0 %v10252
        %v10366 = vpop.f32.mrf.mxu0
        %v10367 = vadd.f32 0.0, %v10366
        %v10368 = vpop.f32.mrf.mxu0
        %v10369 = vpop.f32.mrf.mxu0
        %v10370 = vadd.f32 0.0, %v10369
        %v10371 = vpop.f32.mrf.mxu0
        %10372 = vmatprep.mubr.bf16.mxu0 0
        %10373 = vmatmul.mubr.bf16.gmra.mxu0 %v10253
        %v10374 = vpop.f32.mrf.mxu0
        %v10375 = vadd.f32 0.0, %v10374
        %v10376 = vpop.f32.mrf.mxu0
        %v10377 = vpop.f32.mrf.mxu0
        %v10378 = vadd.f32 0.0, %v10377
        %v10379 = vpop.f32.mrf.mxu0
        %10380 = vmatprep.mubr.bf16.mxu0 0
        %10381 = vmatmul.mubr.bf16.gmra.mxu0 %v10254
        %v10382 = vpop.f32.mrf.mxu0
        %v10383 = vadd.f32 0.0, %v10382
        %v10384 = vpop.f32.mrf.mxu0
        %v10385 = vpop.f32.mrf.mxu0
        %v10386 = vadd.f32 0.0, %v10385
        %v10387 = vpop.f32.mrf.mxu0
        %10388 = vmatprep.mubr.bf16.mxu0 0
        %10389 = vmatmul.mubr.bf16.gmra.mxu0 %v10255
        %v10390 = vpop.f32.mrf.mxu0
        %v10391 = vadd.f32 0.0, %v10390
        %v10392 = vpop.f32.mrf.mxu0
        %v10393 = vpop.f32.mrf.mxu0
        %v10394 = vadd.f32 0.0, %v10393
        %v10395 = vpop.f32.mrf.mxu0
        %10396 = vmatprep.mubr.bf16.mxu0 0
        %10397 = vmatmul.mubr.bf16.gmra.mxu0 %v10256
        %v10398 = vpop.f32.mrf.mxu0
        %v10399 = vadd.f32 0.0, %v10398
        %v10400 = vpop.f32.mrf.mxu0
        %v10401 = vpop.f32.mrf.mxu0
        %v10402 = vadd.f32 0.0, %v10401
        %v10403 = vpop.f32.mrf.mxu0
        %10404 = vmatprep.mubr.bf16.mxu0 0
        %10405 = vmatmul.mubr.bf16.gmra.mxu0 %v10257
        %v10406 = vpop.f32.mrf.mxu0
        %v10407 = vadd.f32 0.0, %v10406
        %v10408 = vpop.f32.mrf.mxu0
        %v10409 = vpop.f32.mrf.mxu0
        %v10410 = vadd.f32 0.0, %v10409
        %v10411 = vpop.f32.mrf.mxu0
        %10412 = vmatprep.mubr.bf16.mxu0 0
        %10413 = vmatmul.mubr.bf16.gmra.mxu0 %v10258
        %v10414 = vpop.f32.mrf.mxu0
        %v10415 = vadd.f32 0.0, %v10414
        %v10416 = vpop.f32.mrf.mxu0
        %v10417 = vpop.f32.mrf.mxu0
        %v10418 = vadd.f32 0.0, %v10417
        %v10419 = vpop.f32.mrf.mxu0
        %10420 = vmatprep.mubr.bf16.mxu0 0
        %10421 = vmatmul.mubr.bf16.gmra.mxu0 %v10259
        %v10422 = vpop.f32.mrf.mxu0
        %v10423 = vadd.f32 0.0, %v10422
        %v10424 = vpop.f32.mrf.mxu0
        %v10425 = vpop.f32.mrf.mxu0
        %v10426 = vadd.f32 0.0, %v10425
        %v10427 = vpop.f32.mrf.mxu0
        %10428 = vmatprep.mubr.bf16.mxu0 0
        %10429 = vmatmul.mubr.bf16.gmra.mxu0 %v10260
        %v10430 = vpop.f32.mrf.mxu0
        %v10431 = vadd.f32 0.0, %v10430
        %v10432 = vpop.f32.mrf.mxu0
        %v10433 = vpop.f32.mrf.mxu0
        %v10434 = vadd.f32 0.0, %v10433
        %v10435 = vpop.f32.mrf.mxu0
        %10436 = vmatprep.mubr.bf16.mxu0 0
        %10437 = vmatmul.mubr.bf16.gmra.mxu0 %v10261
        %v10438 = vpop.f32.mrf.mxu0
        %v10439 = vadd.f32 0.0, %v10438
        %v10440 = vpop.f32.mrf.mxu0
        %v10441 = vpop.f32.mrf.mxu0
        %v10442 = vadd.f32 0.0, %v10441
        %v10443 = vpop.f32.mrf.mxu0
        %10444 = vmatprep.mubr.bf16.mxu0 0
        %10445 = vmatmul.mubr.bf16.gmra.mxu0 %v10262
        %v10446 = vpop.f32.mrf.mxu0
        %v10447 = vadd.f32 0.0, %v10446
        %v10448 = vpop.f32.mrf.mxu0
        %v10449 = vpop.f32.mrf.mxu0
        %v10450 = vadd.f32 0.0, %v10449
        %v10451 = vpop.f32.mrf.mxu0
        %10452 = vmatprep.mubr.bf16.mxu0 0
        %10453 = vmatmul.mubr.bf16.gmra.mxu0 %v10263
        %v10454 = vpop.f32.mrf.mxu0
        %v10455 = vadd.f32 0.0, %v10454
        %v10456 = vpop.f32.mrf.mxu0
        %v10457 = vpop.f32.mrf.mxu0
        %v10458 = vadd.f32 0.0, %v10457
        %v10459 = vpop.f32.mrf.mxu0
        %10460 = vmatprep.mubr.bf16.mxu0 0
        %10461 = vmatmul.mubr.bf16.gmra.mxu0 %v10264
        %v10462 = vpop.f32.mrf.mxu0
        %v10463 = vadd.f32 0.0, %v10462
        %v10464 = vpop.f32.mrf.mxu0
        %v10465 = vpop.f32.mrf.mxu0
        %v10466 = vadd.f32 0.0, %v10465
        %v10467 = vpop.f32.mrf.mxu0
        %10468 = vmatprep.mubr.bf16.mxu0 0
        %10469 = vmatmul.mubr.bf16.gmra.mxu0 %v10265
        %v10470 = vpop.f32.mrf.mxu0
        %v10471 = vadd.f32 0.0, %v10470
        %v10472 = vpop.f32.mrf.mxu0
        %v10473 = vpop.f32.mrf.mxu0
        %v10474 = vadd.f32 0.0, %v10473
        %v10475 = vpop.f32.mrf.mxu0
        %10476 = vmatprep.mubr.bf16.mxu0 0
        %10477 = vmatmul.mubr.bf16.gmra.mxu0 %v10266
        %v10478 = vpop.f32.mrf.mxu0
        %v10479 = vadd.f32 0.0, %v10478
        %v10480 = vpop.f32.mrf.mxu0
        %v10481 = vpop.f32.mrf.mxu0
        %v10482 = vadd.f32 0.0, %v10481
        %v10483 = vpop.f32.mrf.mxu0
        %10484 = vmatprep.mubr.bf16.mxu0 0
        %10485 = vmatmul.mubr.bf16.gmra.mxu0 %v10267
        %v10486 = vpop.f32.mrf.mxu0
        %v10487 = vadd.f32 0.0, %v10486
        %v10488 = vpop.f32.mrf.mxu0
        %v10489 = vpop.f32.mrf.mxu0
        %v10490 = vadd.f32 0.0, %v10489
        %v10491 = vpop.f32.mrf.mxu0
        %10492 = vdwg.mxu0
        %v10493 = vadd.f32 %v9996, %v10367
        %v10494 = vadd.f32 %v9997, %v10370
        %v10495 = vadd.f32 %v9998, %v10375
        %v10496 = vadd.f32 %v9999, %v10378
        %v10497 = vadd.f32 %v10000, %v10383
        %v10498 = vadd.f32 %v10001, %v10386
        %v10499 = vadd.f32 %v10002, %v10391
        %v10500 = vadd.f32 %v10003, %v10394
        %v10501 = vadd.f32 %v10004, %v10399
        %v10502 = vadd.f32 %v10005, %v10402
        %v10503 = vadd.f32 %v10006, %v10407
        %v10504 = vadd.f32 %v10007, %v10410
        %v10505 = vadd.f32 %v10008, %v10415
        %v10506 = vadd.f32 %v10009, %v10418
        %v10507 = vadd.f32 %v10010, %v10423
        %v10508 = vadd.f32 %v10011, %v10426
        %v10509 = vadd.f32 %v10012, %v10431
        %v10510 = vadd.f32 %v10013, %v10434
        %v10511 = vadd.f32 %v10014, %v10439
        %v10512 = vadd.f32 %v10015, %v10442
        %v10513 = vadd.f32 %v10016, %v10447
        %v10514 = vadd.f32 %v10017, %v10450
        %v10515 = vadd.f32 %v10018, %v10455
        %v10516 = vadd.f32 %v10019, %v10458
        %v10517 = vadd.f32 %v10020, %v10463
        %v10518 = vadd.f32 %v10021, %v10466
        %v10519 = vadd.f32 %v10022, %v10471
        %v10520 = vadd.f32 %v10023, %v10474
        %v10521 = vadd.f32 %v10024, %v10479
        %v10522 = vadd.f32 %v10025, %v10482
        %v10523 = vadd.f32 %v10026, %v10487
        %v10524 = vadd.f32 %v10027, %v10490
        %v10525 = vld [vmem:[%s1851] sm:$0xf]
        %v10526 = vld [vmem:[%s1851 + $0x4] sm:$0xf]
        %v10527 = vld [vmem:[%s1851 + $0x8] sm:$0x1]
        %v10528 = vld [vmem:[%s1851 + $0xc] sm:$0xf]
        %v10529 = vld [vmem:[%s1851 + $0x10] sm:$0xf]
        %v10530 = vld [vmem:[%s1851 + $0x14] sm:$0x1]
        %v10531 = vld [vmem:[%s1851 + $0x18] sm:$0xf]
        %v10532 = vld [vmem:[%s1851 + $0x1c] sm:$0xf]
        %v10533 = vld [vmem:[%s1851 + $0x20] sm:$0x1]
        %v10534 = vld [vmem:[%s1851 + $0x24] sm:$0xf]
        %v10535 = vld [vmem:[%s1851 + $0x28] sm:$0xf]
        %v10536 = vld [vmem:[%s1851 + $0x2c] sm:$0x1]
        %v10537 = vld [vmem:[%s1851 + $0x30] sm:$0xf]
        %v10538 = vld [vmem:[%s1851 + $0x34] sm:$0xf]
        %v10539 = vld [vmem:[%s1851 + $0x38] sm:$0x1]
        %v10540 = vld [vmem:[%s1851 + $0x3c] sm:$0xf]
        %v10541 = vld [vmem:[%s1851 + $0x40] sm:$0xf]
        %v10542 = vld [vmem:[%s1851 + $0x44] sm:$0x1]
        %v10543 = vld [vmem:[%s1851 + $0x48] sm:$0xf]
        %v10544 = vld [vmem:[%s1851 + $0x4c] sm:$0xf]
        %v10545 = vld [vmem:[%s1851 + $0x50] sm:$0x1]
        %v10546 = vld [vmem:[%s1851 + $0x54] sm:$0xf]
        %v10547 = vld [vmem:[%s1851 + $0x58] sm:$0xf]
        %v10548 = vld [vmem:[%s1851 + $0x5c] sm:$0x1]
        %v10549 = vld [vmem:[%s1851 + $0x60] sm:$0xf]
        %v10550 = vld [vmem:[%s1851 + $0x64] sm:$0xf]
        %v10551 = vld [vmem:[%s1851 + $0x68] sm:$0x1]
        %v10552 = vld [vmem:[%s1851 + $0x6c] sm:$0xf]
        %v10553 = vld [vmem:[%s1851 + $0x70] sm:$0xf]
        %v10554 = vld [vmem:[%s1851 + $0x74] sm:$0x1]
        %v10555 = vld [vmem:[%s1851 + $0x78] sm:$0xf]
        %v10556 = vld [vmem:[%s1851 + $0x7c] sm:$0xf]
        %v10557 = vld [vmem:[%s1851 + $0x80] sm:$0x1]
        %v10558 = vld [vmem:[%s1851 + $0x84] sm:$0xf]
        %v10559 = vld [vmem:[%s1851 + $0x88] sm:$0xf]
        %v10560 = vld [vmem:[%s1851 + $0x8c] sm:$0x1]
        %v10561 = vld [vmem:[%s1851 + $0x90] sm:$0xf]
        %v10562 = vld [vmem:[%s1851 + $0x94] sm:$0xf]
        %v10563 = vld [vmem:[%s1851 + $0x98] sm:$0x1]
        %v10564 = vld [vmem:[%s1851 + $0x9c] sm:$0xf]
        %v10565 = vld [vmem:[%s1851 + $0xa0] sm:$0xf]
        %v10566 = vld [vmem:[%s1851 + $0xa4] sm:$0x1]
        %v10567 = vld [vmem:[%s1851 + $0xa8] sm:$0xf]
        %v10568 = vld [vmem:[%s1851 + $0xac] sm:$0xf]
        %v10569 = vld [vmem:[%s1851 + $0xb0] sm:$0x1]
        %v10570 = vld [vmem:[%s1851 + $0xb4] sm:$0xf]
        %v10571 = vld [vmem:[%s1851 + $0xb8] sm:$0xf]
        %v10572 = vld [vmem:[%s1851 + $0xbc] sm:$0x1]
        %v10574 = vshrl.u32 %v10525, 16
        %v10576 = vrot.slane %v10574, 4
        %v10577 = vshll.u32 %v10525, 16
        %v10579 = vrot.slane %v10577, 5
        %v10580 = vor.u32 %v10576, %v10579
        %v10581 = vrot.slane %v10580, 4
        %v10583 = vshll.u32 %v10526, 16
        %v10585 = vrot.slane %v10583, 5
        %v10586 = vsel %vm388, %v10581, %v10585
        %v10587 = vshrl.u32 %v10526, 16
        %v10589 = vrot.slane %v10587, 4
        %v10590 = vor.u32 %v10589, %v10585
        %v10591 = vrot.slane %v10590, 4
        %v10593 = vshll.u32 %v10527, 16
        %v10595 = vrot.slane %v10593, 5
        %v10596 = vsel %vm388, %v10591, %v10595
        %v10598 = vshrl.u32 %v10528, 16
        %v10600 = vrot.slane %v10598, 4
        %v10601 = vshll.u32 %v10528, 16
        %v10603 = vrot.slane %v10601, 5
        %v10604 = vor.u32 %v10600, %v10603
        %v10605 = vrot.slane %v10604, 4
        %v10607 = vshll.u32 %v10529, 16
        %v10609 = vrot.slane %v10607, 5
        %v10610 = vsel %vm388, %v10605, %v10609
        %v10611 = vshrl.u32 %v10529, 16
        %v10613 = vrot.slane %v10611, 4
        %v10614 = vor.u32 %v10613, %v10609
        %v10615 = vrot.slane %v10614, 4
        %v10617 = vshll.u32 %v10530, 16
        %v10619 = vrot.slane %v10617, 5
        %v10620 = vsel %vm388, %v10615, %v10619
        %v10622 = vshrl.u32 %v10531, 16
        %v10624 = vrot.slane %v10622, 4
        %v10625 = vshll.u32 %v10531, 16
        %v10627 = vrot.slane %v10625, 5
        %v10628 = vor.u32 %v10624, %v10627
        %v10629 = vrot.slane %v10628, 4
        %v10631 = vshll.u32 %v10532, 16
        %v10633 = vrot.slane %v10631, 5
        %v10634 = vsel %vm388, %v10629, %v10633
        %v10635 = vshrl.u32 %v10532, 16
        %v10637 = vrot.slane %v10635, 4
        %v10638 = vor.u32 %v10637, %v10633
        %v10639 = vrot.slane %v10638, 4
        %v10641 = vshll.u32 %v10533, 16
        %v10643 = vrot.slane %v10641, 5
        %v10644 = vsel %vm388, %v10639, %v10643
        %v10646 = vshrl.u32 %v10534, 16
        %v10648 = vrot.slane %v10646, 4
        %v10649 = vshll.u32 %v10534, 16
        %v10651 = vrot.slane %v10649, 5
        %v10652 = vor.u32 %v10648, %v10651
        %v10653 = vrot.slane %v10652, 4
        %v10655 = vshll.u32 %v10535, 16
        %v10657 = vrot.slane %v10655, 5
        %v10658 = vsel %vm388, %v10653, %v10657
        %v10659 = vshrl.u32 %v10535, 16
        %v10661 = vrot.slane %v10659, 4
        %v10662 = vor.u32 %v10661, %v10657
        %v10663 = vrot.slane %v10662, 4
        %v10665 = vshll.u32 %v10536, 16
        %v10667 = vrot.slane %v10665, 5
        %v10668 = vsel %vm388, %v10663, %v10667
        %v10670 = vshrl.u32 %v10537, 16
        %v10672 = vrot.slane %v10670, 4
        %v10673 = vshll.u32 %v10537, 16
        %v10675 = vrot.slane %v10673, 5
        %v10676 = vor.u32 %v10672, %v10675
        %v10677 = vrot.slane %v10676, 4
        %v10679 = vshll.u32 %v10538, 16
        %v10681 = vrot.slane %v10679, 5
        %v10682 = vsel %vm388, %v10677, %v10681
        %v10683 = vshrl.u32 %v10538, 16
        %v10685 = vrot.slane %v10683, 4
        %v10686 = vor.u32 %v10685, %v10681
        %v10687 = vrot.slane %v10686, 4
        %v10689 = vshll.u32 %v10539, 16
        %v10691 = vrot.slane %v10689, 5
        %v10692 = vsel %vm388, %v10687, %v10691
        %v10694 = vshrl.u32 %v10540, 16
        %v10696 = vrot.slane %v10694, 4
        %v10697 = vshll.u32 %v10540, 16
        %v10699 = vrot.slane %v10697, 5
        %v10700 = vor.u32 %v10696, %v10699
        %v10701 = vrot.slane %v10700, 4
        %v10703 = vshll.u32 %v10541, 16
        %v10705 = vrot.slane %v10703, 5
        %v10706 = vsel %vm388, %v10701, %v10705
        %v10707 = vshrl.u32 %v10541, 16
        %v10709 = vrot.slane %v10707, 4
        %v10710 = vor.u32 %v10709, %v10705
        %v10711 = vrot.slane %v10710, 4
        %v10713 = vshll.u32 %v10542, 16
        %v10715 = vrot.slane %v10713, 5
        %v10716 = vsel %vm388, %v10711, %v10715
        %v10718 = vshrl.u32 %v10543, 16
        %v10720 = vrot.slane %v10718, 4
        %v10721 = vshll.u32 %v10543, 16
        %v10723 = vrot.slane %v10721, 5
        %v10724 = vor.u32 %v10720, %v10723
        %v10725 = vrot.slane %v10724, 4
        %v10727 = vshll.u32 %v10544, 16
        %v10729 = vrot.slane %v10727, 5
        %v10730 = vsel %vm388, %v10725, %v10729
        %v10731 = vshrl.u32 %v10544, 16
        %v10733 = vrot.slane %v10731, 4
        %v10734 = vor.u32 %v10733, %v10729
        %v10735 = vrot.slane %v10734, 4
        %v10737 = vshll.u32 %v10545, 16
        %v10739 = vrot.slane %v10737, 5
        %v10740 = vsel %vm388, %v10735, %v10739
        %v10742 = vshrl.u32 %v10546, 16
        %v10744 = vrot.slane %v10742, 4
        %v10745 = vshll.u32 %v10546, 16
        %v10747 = vrot.slane %v10745, 5
        %v10748 = vor.u32 %v10744, %v10747
        %v10749 = vrot.slane %v10748, 4
        %v10751 = vshll.u32 %v10547, 16
        %v10753 = vrot.slane %v10751, 5
        %v10754 = vsel %vm388, %v10749, %v10753
        %v10755 = vshrl.u32 %v10547, 16
        %v10757 = vrot.slane %v10755, 4
        %v10758 = vor.u32 %v10757, %v10753
        %v10759 = vrot.slane %v10758, 4
        %v10761 = vshll.u32 %v10548, 16
        %v10763 = vrot.slane %v10761, 5
        %v10764 = vsel %vm388, %v10759, %v10763
        %v10766 = vshrl.u32 %v10549, 16
        %v10768 = vrot.slane %v10766, 4
        %v10769 = vshll.u32 %v10549, 16
        %v10771 = vrot.slane %v10769, 5
        %v10772 = vor.u32 %v10768, %v10771
        %v10773 = vrot.slane %v10772, 4
        %v10775 = vshll.u32 %v10550, 16
        %v10777 = vrot.slane %v10775, 5
        %v10778 = vsel %vm388, %v10773, %v10777
        %v10779 = vshrl.u32 %v10550, 16
        %v10781 = vrot.slane %v10779, 4
        %v10782 = vor.u32 %v10781, %v10777
        %v10783 = vrot.slane %v10782, 4
        %v10785 = vshll.u32 %v10551, 16
        %v10787 = vrot.slane %v10785, 5
        %v10788 = vsel %vm388, %v10783, %v10787
        %v10790 = vshrl.u32 %v10552, 16
        %v10792 = vrot.slane %v10790, 4
        %v10793 = vshll.u32 %v10552, 16
        %v10795 = vrot.slane %v10793, 5
        %v10796 = vor.u32 %v10792, %v10795
        %v10797 = vrot.slane %v10796, 4
        %v10799 = vshll.u32 %v10553, 16
        %v10801 = vrot.slane %v10799, 5
        %v10802 = vsel %vm388, %v10797, %v10801
        %v10803 = vshrl.u32 %v10553, 16
        %v10805 = vrot.slane %v10803, 4
        %v10806 = vor.u32 %v10805, %v10801
        %v10807 = vrot.slane %v10806, 4
        %v10809 = vshll.u32 %v10554, 16
        %v10811 = vrot.slane %v10809, 5
        %v10812 = vsel %vm388, %v10807, %v10811
        %v10814 = vshrl.u32 %v10555, 16
        %v10816 = vrot.slane %v10814, 4
        %v10817 = vshll.u32 %v10555, 16
        %v10819 = vrot.slane %v10817, 5
        %v10820 = vor.u32 %v10816, %v10819
        %v10821 = vrot.slane %v10820, 4
        %v10823 = vshll.u32 %v10556, 16
        %v10825 = vrot.slane %v10823, 5
        %v10826 = vsel %vm388, %v10821, %v10825
        %v10827 = vshrl.u32 %v10556, 16
        %v10829 = vrot.slane %v10827, 4
        %v10830 = vor.u32 %v10829, %v10825
        %v10831 = vrot.slane %v10830, 4
        %v10833 = vshll.u32 %v10557, 16
        %v10835 = vrot.slane %v10833, 5
        %v10836 = vsel %vm388, %v10831, %v10835
        %v10838 = vshrl.u32 %v10558, 16
        %v10840 = vrot.slane %v10838, 4
        %v10841 = vshll.u32 %v10558, 16
        %v10843 = vrot.slane %v10841, 5
        %v10844 = vor.u32 %v10840, %v10843
        %v10845 = vrot.slane %v10844, 4
        %v10847 = vshll.u32 %v10559, 16
        %v10849 = vrot.slane %v10847, 5
        %v10850 = vsel %vm388, %v10845, %v10849
        %v10851 = vshrl.u32 %v10559, 16
        %v10853 = vrot.slane %v10851, 4
        %v10854 = vor.u32 %v10853, %v10849
        %v10855 = vrot.slane %v10854, 4
        %v10857 = vshll.u32 %v10560, 16
        %v10859 = vrot.slane %v10857, 5
        %v10860 = vsel %vm388, %v10855, %v10859
        %v10862 = vshrl.u32 %v10561, 16
        %v10864 = vrot.slane %v10862, 4
        %v10865 = vshll.u32 %v10561, 16
        %v10867 = vrot.slane %v10865, 5
        %v10868 = vor.u32 %v10864, %v10867
        %v10869 = vrot.slane %v10868, 4
        %v10871 = vshll.u32 %v10562, 16
        %v10873 = vrot.slane %v10871, 5
        %v10874 = vsel %vm388, %v10869, %v10873
        %v10875 = vshrl.u32 %v10562, 16
        %v10877 = vrot.slane %v10875, 4
        %v10878 = vor.u32 %v10877, %v10873
        %v10879 = vrot.slane %v10878, 4
        %v10881 = vshll.u32 %v10563, 16
        %v10883 = vrot.slane %v10881, 5
        %v10884 = vsel %vm388, %v10879, %v10883
        %v10886 = vshrl.u32 %v10564, 16
        %v10888 = vrot.slane %v10886, 4
        %v10889 = vshll.u32 %v10564, 16
        %v10891 = vrot.slane %v10889, 5
        %v10892 = vor.u32 %v10888, %v10891
        %v10893 = vrot.slane %v10892, 4
        %v10895 = vshll.u32 %v10565, 16
        %v10897 = vrot.slane %v10895, 5
        %v10898 = vsel %vm388, %v10893, %v10897
        %v10899 = vshrl.u32 %v10565, 16
        %v10901 = vrot.slane %v10899, 4
        %v10902 = vor.u32 %v10901, %v10897
        %v10903 = vrot.slane %v10902, 4
        %v10905 = vshll.u32 %v10566, 16
        %v10907 = vrot.slane %v10905, 5
        %v10908 = vsel %vm388, %v10903, %v10907
        %v10910 = vshrl.u32 %v10567, 16
        %v10912 = vrot.slane %v10910, 4
        %v10913 = vshll.u32 %v10567, 16
        %v10915 = vrot.slane %v10913, 5
        %v10916 = vor.u32 %v10912, %v10915
        %v10917 = vrot.slane %v10916, 4
        %v10919 = vshll.u32 %v10568, 16
        %v10921 = vrot.slane %v10919, 5
        %v10922 = vsel %vm388, %v10917, %v10921
        %v10923 = vshrl.u32 %v10568, 16
        %v10925 = vrot.slane %v10923, 4
        %v10926 = vor.u32 %v10925, %v10921
        %v10927 = vrot.slane %v10926, 4
        %v10929 = vshll.u32 %v10569, 16
        %v10931 = vrot.slane %v10929, 5
        %v10932 = vsel %vm388, %v10927, %v10931
        %v10934 = vshrl.u32 %v10570, 16
        %v10936 = vrot.slane %v10934, 4
        %v10937 = vshll.u32 %v10570, 16
        %v10939 = vrot.slane %v10937, 5
        %v10940 = vor.u32 %v10936, %v10939
        %v10941 = vrot.slane %v10940, 4
        %v10943 = vshll.u32 %v10571, 16
        %v10945 = vrot.slane %v10943, 5
        %v10946 = vsel %vm388, %v10941, %v10945
        %v10947 = vshrl.u32 %v10571, 16
        %v10949 = vrot.slane %v10947, 4
        %v10950 = vor.u32 %v10949, %v10945
        %v10951 = vrot.slane %v10950, 4
        %v10953 = vshll.u32 %v10572, 16
        %v10955 = vrot.slane %v10953, 5
        %v10956 = vsel %vm388, %v10951, %v10955
        %v10957 = vld [vmem:[#allocation3] sm:$0xf]
        %v10958 = vld [vmem:[#allocation3 + $0x4] sm:$0xf]
        %v10959 = vld [vmem:[#allocation3 + $0x8] sm:$0xf]
        %v10960 = vld [vmem:[#allocation3 + $0xc] sm:$0xf]
        %v10961 = vld [vmem:[#allocation3 + $0x10] sm:$0xf]
        %v10962 = vld [vmem:[#allocation3 + $0x14] sm:$0xf]
        %v10963 = vld [vmem:[#allocation3 + $0x18] sm:$0xf]
        %v10964 = vld [vmem:[#allocation3 + $0x1c] sm:$0xf]
        %v10965 = vld [vmem:[#allocation3 + $0x20] sm:$0xf]
        %v10966 = vld [vmem:[#allocation3 + $0x24] sm:$0xf]
        %v10967 = vld [vmem:[#allocation3 + $0x28] sm:$0xf]
        %v10968 = vld [vmem:[#allocation3 + $0x2c] sm:$0xf]
        %v10969 = vld [vmem:[#allocation3 + $0x30] sm:$0xf]
        %v10970 = vld [vmem:[#allocation3 + $0x34] sm:$0xf]
        %v10971 = vld [vmem:[#allocation3 + $0x38] sm:$0xf]
        %v10972 = vld [vmem:[#allocation3 + $0x3c] sm:$0xf]
        %v10973 = vunpack.c.l.b16 %v10586
        %v10974 = vunpack.c.l.b16 %v10596
        %v10975 = vunpack.c.l.b16 %v10610
        %v10976 = vunpack.c.l.b16 %v10620
        %v10977 = vunpack.c.l.b16 %v10634
        %v10978 = vunpack.c.l.b16 %v10644
        %v10979 = vunpack.c.l.b16 %v10658
        %v10980 = vunpack.c.l.b16 %v10668
        %v10981 = vunpack.c.l.b16 %v10682
        %v10982 = vunpack.c.l.b16 %v10692
        %v10983 = vunpack.c.l.b16 %v10706
        %v10984 = vunpack.c.l.b16 %v10716
        %v10985 = vunpack.c.l.b16 %v10730
        %v10986 = vunpack.c.l.b16 %v10740
        %v10987 = vunpack.c.l.b16 %v10754
        %v10988 = vunpack.c.l.b16 %v10764
        %v10989 = vunpack.c.l.b16 %v10778
        %v10990 = vunpack.c.l.b16 %v10788
        %v10991 = vunpack.c.l.b16 %v10802
        %v10992 = vunpack.c.l.b16 %v10812
        %v10993 = vunpack.c.l.b16 %v10826
        %v10994 = vunpack.c.l.b16 %v10836
        %v10995 = vunpack.c.l.b16 %v10850
        %v10996 = vunpack.c.l.b16 %v10860
        %v10997 = vunpack.c.l.b16 %v10874
        %v10998 = vunpack.c.l.b16 %v10884
        %v10999 = vunpack.c.l.b16 %v10898
        %v11000 = vunpack.c.l.b16 %v10908
        %v11001 = vunpack.c.l.b16 %v10922
        %v11002 = vunpack.c.l.b16 %v10932
        %v11003 = vunpack.c.l.b16 %v10946
        %v11004 = vunpack.c.l.b16 %v10956
        %v11005 = vpack.c.b16 %v10974, %v10973
        %v11006 = vpack.c.b16 %v10976, %v10975
        %v11007 = vpack.c.b16 %v10978, %v10977
        %v11008 = vpack.c.b16 %v10980, %v10979
        %v11009 = vpack.c.b16 %v10982, %v10981
        %v11010 = vpack.c.b16 %v10984, %v10983
        %v11011 = vpack.c.b16 %v10986, %v10985
        %v11012 = vpack.c.b16 %v10988, %v10987
        %v11013 = vpack.c.b16 %v10990, %v10989
        %v11014 = vpack.c.b16 %v10992, %v10991
        %v11015 = vpack.c.b16 %v10994, %v10993
        %v11016 = vpack.c.b16 %v10996, %v10995
        %v11017 = vpack.c.b16 %v10998, %v10997
        %v11018 = vpack.c.b16 %v11000, %v10999
        %v11019 = vpack.c.b16 %v11002, %v11001
        %v11020 = vpack.c.b16 %v11004, %v11003
        %v11053 = vunpack.c.l.b16 %v10957
        %v11054 = vunpack.c.l.b16 %v10958
        %v11055 = vunpack.c.l.b16 %v10959
        %v11056 = vunpack.c.l.b16 %v10960
        %v11057 = vunpack.c.l.b16 %v10961
        %v11058 = vunpack.c.l.b16 %v10962
        %v11059 = vunpack.c.l.b16 %v10963
        %v11060 = vunpack.c.l.b16 %v10964
        %v11061 = vunpack.c.l.b16 %v10965
        %v11062 = vunpack.c.l.b16 %v10966
        %v11063 = vunpack.c.l.b16 %v10967
        %v11064 = vunpack.c.l.b16 %v10968
        %v11065 = vunpack.c.l.b16 %v10969
        %v11066 = vunpack.c.l.b16 %v10970
        %v11067 = vunpack.c.l.b16 %v10971
        %v11068 = vunpack.c.l.b16 %v10972
        %v11069 = vpack.c.b16 %v11054, %v11053
        %v11070 = vpack.c.b16 %v11056, %v11055
        %v11071 = vpack.c.b16 %v11058, %v11057
        %v11072 = vpack.c.b16 %v11060, %v11059
        %v11073 = vpack.c.b16 %v11062, %v11061
        %v11074 = vpack.c.b16 %v11064, %v11063
        %v11075 = vpack.c.b16 %v11066, %v11065
        %v11076 = vpack.c.b16 %v11068, %v11067
        %11085 = vmatprep.subr.bf16.mxu0 0
        %11086 = vmatpush1.bf16.msra.mxu0 %v11076
        %11087 = vmatprep.subr.bf16.mxu0 0
        %11088 = vmatpush1.bf16.msra.mxu0 %v11075
        %11089 = vmatprep.subr.bf16.mxu0 0
        %11090 = vmatpush1.bf16.msra.mxu0 %v11074
        %11091 = vmatprep.subr.bf16.mxu0 0
        %11092 = vmatpush1.bf16.msra.mxu0 %v11073
        %11093 = vmatprep.subr.bf16.mxu0 0
        %11094 = vmatpush1.bf16.msra.mxu0 %v11072
        %11095 = vmatprep.subr.bf16.mxu0 0
        %11096 = vmatpush1.bf16.msra.mxu0 %v11071
        %11097 = vmatprep.subr.bf16.mxu0 0
        %11098 = vmatpush1.bf16.msra.mxu0 %v11070
        %11099 = vmatprep.subr.bf16.mxu0 0
        %11100 = vmatpush1.bf16.msra.mxu0 %v11069
        %11101 = vmatprep.subr.bf16.mxu0 0
        %11102 = vmatpush2.bf16.msra.mxu0 0
        %11103 = vmatprep.subr.bf16.mxu0 0
        %11104 = vmatpush2.bf16.msra.mxu0 0
        %11105 = vmatprep.subr.bf16.mxu0 0
        %11106 = vmatpush2.bf16.msra.mxu0 0
        %11107 = vmatprep.subr.bf16.mxu0 0
        %11108 = vmatpush2.bf16.msra.mxu0 0
        %11109 = vmatprep.subr.bf16.mxu0 0
        %11110 = vmatpush2.bf16.msra.mxu0 0
        %11111 = vmatprep.subr.bf16.mxu0 0
        %11112 = vmatpush2.bf16.msra.mxu0 0
        %11113 = vmatprep.subr.bf16.mxu0 0
        %11114 = vmatpush2.bf16.msra.mxu0 0
        %11115 = vmatprep.subr.bf16.mxu0 0
        %11116 = vmatpush2.bf16.msra.mxu0 0
        %11117 = vmatprep.mubr.bf16.mxu0 0
        %11118 = vmatmul.mubr.bf16.gmra.mxu0 %v11005
        %v11119 = vpop.f32.mrf.mxu0
        %v11120 = vadd.f32 0.0, %v11119
        %v11121 = vpop.f32.mrf.mxu0
        %v11122 = vpop.f32.mrf.mxu0
        %v11123 = vadd.f32 0.0, %v11122
        %v11124 = vpop.f32.mrf.mxu0
        %11125 = vmatprep.mubr.bf16.mxu0 0
        %11126 = vmatmul.mubr.bf16.gmra.mxu0 %v11006
        %v11127 = vpop.f32.mrf.mxu0
        %v11128 = vadd.f32 0.0, %v11127
        %v11129 = vpop.f32.mrf.mxu0
        %v11130 = vpop.f32.mrf.mxu0
        %v11131 = vadd.f32 0.0, %v11130
        %v11132 = vpop.f32.mrf.mxu0
        %11133 = vmatprep.mubr.bf16.mxu0 0
        %11134 = vmatmul.mubr.bf16.gmra.mxu0 %v11007
        %v11135 = vpop.f32.mrf.mxu0
        %v11136 = vadd.f32 0.0, %v11135
        %v11137 = vpop.f32.mrf.mxu0
        %v11138 = vpop.f32.mrf.mxu0
        %v11139 = vadd.f32 0.0, %v11138
        %v11140 = vpop.f32.mrf.mxu0
        %11141 = vmatprep.mubr.bf16.mxu0 0
        %11142 = vmatmul.mubr.bf16.gmra.mxu0 %v11008
        %v11143 = vpop.f32.mrf.mxu0
        %v11144 = vadd.f32 0.0, %v11143
        %v11145 = vpop.f32.mrf.mxu0
        %v11146 = vpop.f32.mrf.mxu0
        %v11147 = vadd.f32 0.0, %v11146
        %v11148 = vpop.f32.mrf.mxu0
        %11149 = vmatprep.mubr.bf16.mxu0 0
        %11150 = vmatmul.mubr.bf16.gmra.mxu0 %v11009
        %v11151 = vpop.f32.mrf.mxu0
        %v11152 = vadd.f32 0.0, %v11151
        %v11153 = vpop.f32.mrf.mxu0
        %v11154 = vpop.f32.mrf.mxu0
        %v11155 = vadd.f32 0.0, %v11154
        %v11156 = vpop.f32.mrf.mxu0
        %11157 = vmatprep.mubr.bf16.mxu0 0
        %11158 = vmatmul.mubr.bf16.gmra.mxu0 %v11010
        %v11159 = vpop.f32.mrf.mxu0
        %v11160 = vadd.f32 0.0, %v11159
        %v11161 = vpop.f32.mrf.mxu0
        %v11162 = vpop.f32.mrf.mxu0
        %v11163 = vadd.f32 0.0, %v11162
        %v11164 = vpop.f32.mrf.mxu0
        %11165 = vmatprep.mubr.bf16.mxu0 0
        %11166 = vmatmul.mubr.bf16.gmra.mxu0 %v11011
        %v11167 = vpop.f32.mrf.mxu0
        %v11168 = vadd.f32 0.0, %v11167
        %v11169 = vpop.f32.mrf.mxu0
        %v11170 = vpop.f32.mrf.mxu0
        %v11171 = vadd.f32 0.0, %v11170
        %v11172 = vpop.f32.mrf.mxu0
        %11173 = vmatprep.mubr.bf16.mxu0 0
        %11174 = vmatmul.mubr.bf16.gmra.mxu0 %v11012
        %v11175 = vpop.f32.mrf.mxu0
        %v11176 = vadd.f32 0.0, %v11175
        %v11177 = vpop.f32.mrf.mxu0
        %v11178 = vpop.f32.mrf.mxu0
        %v11179 = vadd.f32 0.0, %v11178
        %v11180 = vpop.f32.mrf.mxu0
        %11181 = vmatprep.mubr.bf16.mxu0 0
        %11182 = vmatmul.mubr.bf16.gmra.mxu0 %v11013
        %v11183 = vpop.f32.mrf.mxu0
        %v11184 = vadd.f32 0.0, %v11183
        %v11185 = vpop.f32.mrf.mxu0
        %v11186 = vpop.f32.mrf.mxu0
        %v11187 = vadd.f32 0.0, %v11186
        %v11188 = vpop.f32.mrf.mxu0
        %11189 = vmatprep.mubr.bf16.mxu0 0
        %11190 = vmatmul.mubr.bf16.gmra.mxu0 %v11014
        %v11191 = vpop.f32.mrf.mxu0
        %v11192 = vadd.f32 0.0, %v11191
        %v11193 = vpop.f32.mrf.mxu0
        %v11194 = vpop.f32.mrf.mxu0
        %v11195 = vadd.f32 0.0, %v11194
        %v11196 = vpop.f32.mrf.mxu0
        %11197 = vmatprep.mubr.bf16.mxu0 0
        %11198 = vmatmul.mubr.bf16.gmra.mxu0 %v11015
        %v11199 = vpop.f32.mrf.mxu0
        %v11200 = vadd.f32 0.0, %v11199
        %v11201 = vpop.f32.mrf.mxu0
        %v11202 = vpop.f32.mrf.mxu0
        %v11203 = vadd.f32 0.0, %v11202
        %v11204 = vpop.f32.mrf.mxu0
        %11205 = vmatprep.mubr.bf16.mxu0 0
        %11206 = vmatmul.mubr.bf16.gmra.mxu0 %v11016
        %v11207 = vpop.f32.mrf.mxu0
        %v11208 = vadd.f32 0.0, %v11207
        %v11209 = vpop.f32.mrf.mxu0
        %v11210 = vpop.f32.mrf.mxu0
        %v11211 = vadd.f32 0.0, %v11210
        %v11212 = vpop.f32.mrf.mxu0
        %11213 = vmatprep.mubr.bf16.mxu0 0
        %11214 = vmatmul.mubr.bf16.gmra.mxu0 %v11017
        %v11215 = vpop.f32.mrf.mxu0
        %v11216 = vadd.f32 0.0, %v11215
        %v11217 = vpop.f32.mrf.mxu0
        %v11218 = vpop.f32.mrf.mxu0
        %v11219 = vadd.f32 0.0, %v11218
        %v11220 = vpop.f32.mrf.mxu0
        %11221 = vmatprep.mubr.bf16.mxu0 0
        %11222 = vmatmul.mubr.bf16.gmra.mxu0 %v11018
        %v11223 = vpop.f32.mrf.mxu0
        %v11224 = vadd.f32 0.0, %v11223
        %v11225 = vpop.f32.mrf.mxu0
        %v11226 = vpop.f32.mrf.mxu0
        %v11227 = vadd.f32 0.0, %v11226
        %v11228 = vpop.f32.mrf.mxu0
        %11229 = vmatprep.mubr.bf16.mxu0 0
        %11230 = vmatmul.mubr.bf16.gmra.mxu0 %v11019
        %v11231 = vpop.f32.mrf.mxu0
        %v11232 = vadd.f32 0.0, %v11231
        %v11233 = vpop.f32.mrf.mxu0
        %v11234 = vpop.f32.mrf.mxu0
        %v11235 = vadd.f32 0.0, %v11234
        %v11236 = vpop.f32.mrf.mxu0
        %11237 = vmatprep.mubr.bf16.mxu0 0
        %11238 = vmatmul.mubr.bf16.gmra.mxu0 %v11020
        %v11239 = vpop.f32.mrf.mxu0
        %v11240 = vadd.f32 0.0, %v11239
        %v11241 = vpop.f32.mrf.mxu0
        %v11242 = vpop.f32.mrf.mxu0
        %v11243 = vadd.f32 0.0, %v11242
        %v11244 = vpop.f32.mrf.mxu0
        %11245 = vdwg.mxu0
        %v11246 = vadd.f32 %v10493, %v11120
        %v11247 = vadd.f32 %v10494, %v11123
        %v11248 = vadd.f32 %v10495, %v11128
        %v11249 = vadd.f32 %v10496, %v11131
        %v11250 = vadd.f32 %v10497, %v11136
        %v11251 = vadd.f32 %v10498, %v11139
        %v11252 = vadd.f32 %v10499, %v11144
        %v11253 = vadd.f32 %v10500, %v11147
        %v11254 = vadd.f32 %v10501, %v11152
        %v11255 = vadd.f32 %v10502, %v11155
        %v11256 = vadd.f32 %v10503, %v11160
        %v11257 = vadd.f32 %v10504, %v11163
        %v11258 = vadd.f32 %v10505, %v11168
        %v11259 = vadd.f32 %v10506, %v11171
        %v11260 = vadd.f32 %v10507, %v11176
        %v11261 = vadd.f32 %v10508, %v11179
        %v11262 = vadd.f32 %v10509, %v11184
        %v11263 = vadd.f32 %v10510, %v11187
        %v11264 = vadd.f32 %v10511, %v11192
        %v11265 = vadd.f32 %v10512, %v11195
        %v11266 = vadd.f32 %v10513, %v11200
        %v11267 = vadd.f32 %v10514, %v11203
        %v11268 = vadd.f32 %v10515, %v11208
        %v11269 = vadd.f32 %v10516, %v11211
        %v11270 = vadd.f32 %v10517, %v11216
        %v11271 = vadd.f32 %v10518, %v11219
        %v11272 = vadd.f32 %v10519, %v11224
        %v11273 = vadd.f32 %v10520, %v11227
        %v11274 = vadd.f32 %v10521, %v11232
        %v11275 = vadd.f32 %v10522, %v11235
        %v11276 = vadd.f32 %v10523, %v11240
        %v11277 = vadd.f32 %v10524, %v11243
        %v11278 = vld [vmem:[%s4] sm:$0x1]
        %v11280 = vlaneseq
        %v11281 = vshrl.u32 %v11280, 7
        %v11282 = vsub.s32 0, %v11281
        %v11283 = vrot.slane %v11278, %v11282
        %v11285 = vadd.f32 %v11246, %v11283
        %v11286 = vadd.f32 %v11247, %v11283
        %v11287 = vadd.f32 %v11248, %v11283
        %v11288 = vadd.f32 %v11249, %v11283
        %v11289 = vadd.f32 %v11250, %v11283
        %v11290 = vadd.f32 %v11251, %v11283
        %v11291 = vadd.f32 %v11252, %v11283
        %v11292 = vadd.f32 %v11253, %v11283
        %v11293 = vadd.f32 %v11254, %v11283
        %v11294 = vadd.f32 %v11255, %v11283
        %v11295 = vadd.f32 %v11256, %v11283
        %v11296 = vadd.f32 %v11257, %v11283
        %v11297 = vadd.f32 %v11258, %v11283
        %v11298 = vadd.f32 %v11259, %v11283
        %v11299 = vadd.f32 %v11260, %v11283
        %v11300 = vadd.f32 %v11261, %v11283
        %v11301 = vadd.f32 %v11262, %v11283
        %v11302 = vadd.f32 %v11263, %v11283
        %v11303 = vadd.f32 %v11264, %v11283
        %v11304 = vadd.f32 %v11265, %v11283
        %v11305 = vadd.f32 %v11266, %v11283
        %v11306 = vadd.f32 %v11267, %v11283
        %v11307 = vadd.f32 %v11268, %v11283
        %v11308 = vadd.f32 %v11269, %v11283
        %v11309 = vadd.f32 %v11270, %v11283
        %v11310 = vadd.f32 %v11271, %v11283
        %v11311 = vadd.f32 %v11272, %v11283
        %v11312 = vadd.f32 %v11273, %v11283
        %v11313 = vadd.f32 %v11274, %v11283
        %v11314 = vadd.f32 %v11275, %v11283
        %v11315 = vadd.f32 %v11276, %v11283
        %v11316 = vadd.f32 %v11277, %v11283
        %v11317 = vmax.f32 %v11285, 0.0
        %v11318 = vmax.f32 %v11286, 0.0
        %v11319 = vmax.f32 %v11287, 0.0
        %v11320 = vmax.f32 %v11288, 0.0
        %v11321 = vmax.f32 %v11289, 0.0
        %v11322 = vmax.f32 %v11290, 0.0
        %v11323 = vmax.f32 %v11291, 0.0
        %v11324 = vmax.f32 %v11292, 0.0
        %v11325 = vmax.f32 %v11293, 0.0
        %v11326 = vmax.f32 %v11294, 0.0
        %v11327 = vmax.f32 %v11295, 0.0
        %v11328 = vmax.f32 %v11296, 0.0
        %v11329 = vmax.f32 %v11297, 0.0
        %v11330 = vmax.f32 %v11298, 0.0
        %v11331 = vmax.f32 %v11299, 0.0
        %v11332 = vmax.f32 %v11300, 0.0
        %v11333 = vmax.f32 %v11301, 0.0
        %v11334 = vmax.f32 %v11302, 0.0
        %v11335 = vmax.f32 %v11303, 0.0
        %v11336 = vmax.f32 %v11304, 0.0
        %v11337 = vmax.f32 %v11305, 0.0
        %v11338 = vmax.f32 %v11306, 0.0
        %v11339 = vmax.f32 %v11307, 0.0
        %v11340 = vmax.f32 %v11308, 0.0
        %v11341 = vmax.f32 %v11309, 0.0
        %v11342 = vmax.f32 %v11310, 0.0
        %v11343 = vmax.f32 %v11311, 0.0
        %v11344 = vmax.f32 %v11312, 0.0
        %v11345 = vmax.f32 %v11313, 0.0
        %v11346 = vmax.f32 %v11314, 0.0
        %v11347 = vmax.f32 %v11315, 0.0
        %v11348 = vmax.f32 %v11316, 0.0
        %11349 = vst [vmem:[%s266] sm:$0xff] %v11317
        %11350 = vst [vmem:[%s266 + $0x8] sm:$0xff] %v11318
        %11351 = vst [vmem:[%s266 + $0x10] sm:$0xff] %v11319
        %11352 = vst [vmem:[%s266 + $0x18] sm:$0xff] %v11320
        %11353 = vst [vmem:[%s266 + $0x20] sm:$0xff] %v11321
        %11354 = vst [vmem:[%s266 + $0x28] sm:$0xff] %v11322
        %11355 = vst [vmem:[%s266 + $0x30] sm:$0xff] %v11323
        %11356 = vst [vmem:[%s266 + $0x38] sm:$0xff] %v11324
        %11357 = vst [vmem:[%s266 + $0x40] sm:$0xff] %v11325
        %11358 = vst [vmem:[%s266 + $0x48] sm:$0xff] %v11326
        %11359 = vst [vmem:[%s266 + $0x50] sm:$0xff] %v11327
        %11360 = vst [vmem:[%s266 + $0x58] sm:$0xff] %v11328
        %11361 = vst [vmem:[%s266 + $0x60] sm:$0xff] %v11329
        %11362 = vst [vmem:[%s266 + $0x68] sm:$0xff] %v11330
        %11363 = vst [vmem:[%s266 + $0x70] sm:$0xff] %v11331
        %11364 = vst [vmem:[%s266 + $0x78] sm:$0xff] %v11332
        %11365 = vst [vmem:[%s266 + $0x80] sm:$0xff] %v11333
        %11366 = vst [vmem:[%s266 + $0x88] sm:$0xff] %v11334
        %11367 = vst [vmem:[%s266 + $0x90] sm:$0xff] %v11335
        %11368 = vst [vmem:[%s266 + $0x98] sm:$0xff] %v11336
        %11369 = vst [vmem:[%s266 + $0xa0] sm:$0xff] %v11337
        %11370 = vst [vmem:[%s266 + $0xa8] sm:$0xff] %v11338
        %11371 = vst [vmem:[%s266 + $0xb0] sm:$0xff] %v11339
        %11372 = vst [vmem:[%s266 + $0xb8] sm:$0xff] %v11340
        %11373 = vst [vmem:[%s266 + $0xc0] sm:$0xff] %v11341
        %11374 = vst [vmem:[%s266 + $0xc8] sm:$0xff] %v11342
        %11375 = vst [vmem:[%s266 + $0xd0] sm:$0xff] %v11343
        %11376 = vst [vmem:[%s266 + $0xd8] sm:$0xff] %v11344
        %11377 = vst [vmem:[%s266 + $0xe0] sm:$0xff] %v11345
        %11378 = vst [vmem:[%s266 + $0xe8] sm:$0xff] %v11346
        %11379 = vst [vmem:[%s266 + $0xf0] sm:$0xff] %v11347
        %11380 = vst [vmem:[%s266 + $0xf8] sm:$0xff] %v11348
        %p11381 = scmp.lt.s32.totalorder %s18, 1
        %s11382 = scalar_select %p11381, %s18, 1
        %s11383 = smul.addr %s11382, 32
        %s11384 = smul.addr %s11383, 8
        %s11385 = scalar_lea.vmem %s6, %s11384
        // Predicated region
        $region49: #{a_call__.1} parent=43 // pred_check
          %p11386 = pneg %p167
        $region50: #{a_call__.1} parent=43 // pred_check_branch
          %11388 = sbr.rel (%p11386) target = $region52
        $region51: #{a_call__.1} parent=43 // pred_region
          _
        $region52: #{a_call__.1} parent=43 // pred_fallthru
          _
      $region44: #{a_call__.1} parent=5 // pred_fallthru
        _
      %p11389 = scmp.le.s32.totalorder 2, %s13
      // Predicated region
      $region53: #{a_call__.1} parent=5 // pred_check
        %p11390 = pneg %p11389
      $region54: #{a_call__.1} parent=5 // pred_check_branch
        %11392 = sbr.rel (%p11390) target = $region56
      $region55: #{a_call__.1} parent=5 // pred_region
        %s11393 = ssub.s32 %s13, 2
        // Predicated region
        $region57: #{a_call__.1} parent=55 // pred_check
          %p11394 = pneg %p173
        $region58: #{a_call__.1} parent=55 // pred_check_branch
          %11396 = sbr.rel (%p11394) target = $region60
        $region59: #{a_call__.1} parent=55 // pred_region
          %p11397 = scmp.lt.s32.totalorder %s19, 1
          %s11398 = scalar_select %p11397, %s19, 1
          %s11399 = smul.addr %s11398, 32
          %s11400 = smul.addr %s11399, 8
          %s11401 = scalar_lea.vmem %s6, %s11400
        $region60: #{a_call__.1} parent=55 // pred_fallthru
          _
      $region56: #{a_call__.1} parent=5 // pred_fallthru
        _
    $region6: #{a_call__.1} parent=1 // loop_footer
      %s17 = sadd.s32 1, %s13
    $region7: #{a_call__.1} parent=1 // loop_footer_branch
      %12 = sbr.rel target = $region3
    $region8: #{a_call__.1} parent=1 // loop_exit
      _
    %11402 = vsyncpa [#allocation4], 1
    %s11403 = scalar_lea.sflag [#allocation4], 1
    %11404 = vsyncpa %s11403, 1

</llo_original>
